<compile_context>
chip_gen: v7x
topology: tpu7x:2x2x1
jax: 0.10.0
libtpu: 0.0.40
codegen_flags: <defaults>
</compile_context>

<pallas_src>
import functools
import math

import jax
import jax.numpy as jnp
from jax import lax
from jax.experimental import pallas as pl
from jax.experimental.pallas import tpu as pltpu


def _round_up(v, m):
    return ((v + m - 1) // m) * m


# ------------------------------ Pallas kernel --------------------------------

def _transgat_kernel(adj_ref, x_ref,
                     w1_ref, asrc1_ref, adst1_ref, b1_ref,
                     wc_ref, asrcc_ref, adstc_ref, bc_ref,
                     ln1g_ref, ln1b_ref,
                     f1w_ref, f1b_ref, f2w_ref, f2b_ref,
                     ln2g_ref, ln2b_ref,
                     out_ref, acc_ref, *,
                     heads, d_head, hidden_true, num_inception,
                     neg_slope, ln_eps):
    """Fused TransGATEncoder forward.  All shapes padded: N_p nodes, H_p lanes."""
    # Zero the head-concat scratch once so padded lanes stay exactly zero.
    acc_ref[...] = jnp.zeros_like(acc_ref)

    # Additive attention mask: 0 on edges/self-loops, -1e9 elsewhere (bf16 DMA).
    adj_bias = adj_ref[...].astype(jnp.float32)

    def gat_conv(x_f32, w, asrc_t, adst, bias):
        xb = x_f32.astype(jnp.bfloat16)
        h = jnp.dot(xb, w.astype(jnp.bfloat16),
                    preferred_element_type=jnp.float32)            # (N_p, H_p)
        hb = h.astype(jnp.bfloat16)
        # (heads, N_p): contract feature dims of (heads,H_p) with (N_p,H_p)
        a_src_t = lax.dot_general(
            asrc_t.astype(jnp.bfloat16), hb,
            dimension_numbers=(((1,), (1,)), ((), ())),
            preferred_element_type=jnp.float32)
        a_dst = jnp.dot(hb, adst.astype(jnp.bfloat16),
                        preferred_element_type=jnp.float32)         # (N_p, heads)
        for hd in range(heads):
            s = a_dst[:, hd:hd + 1] + a_src_t[hd:hd + 1, :]          # (N_p, N_p)
            s = jnp.where(s > 0, s, neg_slope * s)                   # LeakyReLU(0.2)
            s = s + adj_bias                                         # mask non-edges
            s = s - jnp.max(s, axis=-1, keepdims=True)
            p = jnp.exp(s)
            p = p * pl.reciprocal(jnp.sum(p, axis=-1, keepdims=True), approx=True)
            hs = hb[:, hd * d_head:(hd + 1) * d_head]                # (N_p, D) bf16
            acc_ref[:, hd * d_head:(hd + 1) * d_head] = jnp.dot(
                p.astype(jnp.bfloat16), hs,
                preferred_element_type=jnp.float32)
        return acc_ref[...] + bias                                   # (N_p, H_p)

    def elu(v):
        return jnp.where(v > 0, v, jnp.exp(jnp.minimum(v, 0.0)) - 1.0)

    def layer_norm(v, g, b):
        # Padding-aware: pad lanes are exactly zero, so sums over all lanes
        # equal sums over the true hidden width; divide by the true width.
        s1 = jnp.sum(v, axis=-1, keepdims=True)
        s2 = jnp.sum(v * v, axis=-1, keepdims=True)
        mean = s1 * (1.0 / hidden_true)
        var = s2 * (1.0 / hidden_true) - mean * mean
        inv = lax.rsqrt(var + ln_eps)
        return (v - mean) * inv * g + b

    # conv1 + ELU  (feature dropout is identity at inference time)
    x = elu(gat_conv(x_ref[...], w1_ref[...], asrc1_ref[...],
                     adst1_ref[...], b1_ref[...]))

    for l in range(num_inception):
        x1 = elu(gat_conv(x, wc_ref[l], asrcc_ref[l], adstc_ref[l], bc_ref[l]))
        x = layer_norm(x + x1, ln1g_ref[l], ln1b_ref[l])
        y = jnp.dot(x.astype(jnp.bfloat16), f1w_ref[l].astype(jnp.bfloat16),
                    preferred_element_type=jnp.float32) + f1b_ref[l]
        y = jnp.maximum(y, 0.0)
        y = jnp.dot(y.astype(jnp.bfloat16), f2w_ref[l].astype(jnp.bfloat16),
                    preferred_element_type=jnp.float32) + f2b_ref[l]
        x = layer_norm(x + y, ln2g_ref[l], ln2b_ref[l])

    out_ref[...] = x


def transgat_forward_pallas(adj_bias_bf16, x_p, kp, *, heads, d_head,
                            hidden_dim, inception, neg_slope=0.2, ln_eps=1e-5):
    n_p = x_p.shape[0]
    h_p = kp["w1"].shape[1]

    operands = [
        adj_bias_bf16, x_p,
        kp["w1"], kp["asrc1"], kp["adst1"], kp["b1"],
        kp["wc"], kp["asrcc"], kp["adstc"], kp["bc"],
        kp["ln1g"], kp["ln1b"],
        kp["f1w"], kp["f1b"], kp["f2w"], kp["f2b"],
        kp["ln2g"], kp["ln2b"],
    ]

    def _spec(a):
        return pl.BlockSpec(a.shape, lambda i, _nd=a.ndim: (0,) * _nd)

    kernel = functools.partial(
        _transgat_kernel, heads=heads, d_head=d_head, hidden_true=hidden_dim,
        num_inception=inception, neg_slope=neg_slope, ln_eps=ln_eps)

    return pl.pallas_call(
        kernel,
        out_shape=jax.ShapeDtypeStruct((n_p, h_p), jnp.float32),
        grid=(1,),
        in_specs=[_spec(a) for a in operands],
        out_specs=pl.BlockSpec((n_p, h_p), lambda i: (0, 0)),
        scratch_shapes=[pltpu.VMEM((n_p, h_p), jnp.float32)],
        compiler_params=pltpu.CompilerParams(
            dimension_semantics=("arbitrary",),
            vmem_limit_bytes=48 * 1024 * 1024),
    )(*operands)


# ----------------------- graph prep (hoisted, cached) ------------------------

def build_attention_bias(edge_index, num_nodes, num_nodes_p):
    """Dense additive mask: 0 where edge (A[dst,src]=1) or self-loop, else -1e9."""
    src, dst = edge_index[0], edge_index[1]
    adj = jnp.zeros((num_nodes_p, num_nodes_p), jnp.float32)
    adj = adj.at[dst, src].set(1.0)
    diag = jnp.arange(num_nodes_p)
    adj = adj.at[diag, diag].set(1.0)   # remove+add self loops (PyG GATConv)
    return jnp.where(adj > 0.0, 0.0, -1e9)


# ------------------------------- parameters ----------------------------------

def init_params(key, input_dim, hidden_dim, heads, inception):
    d_head = hidden_dim // heads
    keys = iter(jax.random.split(key, 256))

    def gat(f_in):
        scale = math.sqrt(2.0 / (f_in + hidden_dim))
        return {
            "w": scale * jax.random.normal(next(keys), (f_in, hidden_dim), jnp.float32),
            "att_src": 0.3 * jax.random.normal(next(keys), (heads, d_head), jnp.float32),
            "att_dst": 0.3 * jax.random.normal(next(keys), (heads, d_head), jnp.float32),
            "b": 0.05 * jax.random.normal(next(keys), (hidden_dim,), jnp.float32),
        }

    def lin():
        scale = math.sqrt(2.0 / (2 * hidden_dim))
        return {
            "w": scale * jax.random.normal(next(keys), (hidden_dim, hidden_dim), jnp.float32),
            "b": 0.05 * jax.random.normal(next(keys), (hidden_dim,), jnp.float32),
        }

    def ln_params():
        return {
            "g": 1.0 + 0.1 * jax.random.normal(next(keys), (hidden_dim,), jnp.float32),
            "b": 0.1 * jax.random.normal(next(keys), (hidden_dim,), jnp.float32),
        }

    return {
        "conv1": gat(input_dim),
        "convs": [gat(hidden_dim) for _ in range(inception)],
        "norms": [ln_params() for _ in range(inception)],
        "fcs": [{"lin1": lin(), "lin2": lin()} for _ in range(inception)],
        "fc_norms": [ln_params() for _ in range(inception)],
    }


def pad_params(params, *, hidden_dim, heads, inception, f_in_p, h_p):
    """Zero-pad params to lane-dense shapes (exact: pad rows/cols are zero)."""
    d_head = hidden_dim // heads

    def pad_mat(m, rows_p, cols_p):
        out = jnp.zeros((rows_p, cols_p), jnp.float32)
        return out.at[: m.shape[0], : m.shape[1]].set(m)

    def pad_row(v, cols_p):
        return pad_mat(v[None, :], 1, cols_p)

    def att_mats(p):
        asrc_t = jnp.zeros((heads, h_p), jnp.float32)
        adst = jnp.zeros((h_p, heads), jnp.float32)
        for hd in range(heads):
            c0 = hd * d_head
            asrc_t = asrc_t.at[hd, c0:c0 + d_head].set(p["att_src"][hd])
            adst = adst.at[c0:c0 + d_head, hd].set(p["att_dst"][hd])
        return asrc_t, adst

    asrc1, adst1 = att_mats(params["conv1"])
    kp = {
        "w1": pad_mat(params["conv1"]["w"], f_in_p, h_p),
        "asrc1": asrc1, "adst1": adst1,
        "b1": pad_row(params["conv1"]["b"], h_p),
    }

    conv_atts = [att_mats(p) for p in params["convs"]]
    kp["wc"] = jnp.stack([pad_mat(params["convs"][i]["w"], h_p, h_p)
                          for i in range(inception)])
    kp["asrcc"] = jnp.stack([a for a, _ in conv_atts])
    kp["adstc"] = jnp.stack([d for _, d in conv_atts])
    kp["bc"] = jnp.stack([pad_row(params["convs"][i]["b"], h_p)
                          for i in range(inception)])
    kp["ln1g"] = jnp.stack([pad_row(params["norms"][i]["g"], h_p)
                            for i in range(inception)])
    kp["ln1b"] = jnp.stack([pad_row(params["norms"][i]["b"], h_p)
                            for i in range(inception)])
    kp["f1w"] = jnp.stack([pad_mat(params["fcs"][i]["lin1"]["w"], h_p, h_p)
                           for i in range(inception)])
    kp["f1b"] = jnp.stack([pad_row(params["fcs"][i]["lin1"]["b"], h_p)
                           for i in range(inception)])
    kp["f2w"] = jnp.stack([pad_mat(params["fcs"][i]["lin2"]["w"], h_p, h_p)
                           for i in range(inception)])
    kp["f2b"] = jnp.stack([pad_row(params["fcs"][i]["lin2"]["b"], h_p)
                           for i in range(inception)])
    kp["ln2g"] = jnp.stack([pad_row(params["fc_norms"][i]["g"], h_p)
                            for i in range(inception)])
    kp["ln2b"] = jnp.stack([pad_row(params["fc_norms"][i]["b"], h_p)
                            for i in range(inception)])
    return kp


# --------------------------- pure-JAX f32 reference ---------------------------

def gat_conv_reference(x, p, adj_bias, heads, d_head, neg_slope=0.2):
    n = x.shape[0]
    h = x @ p["w"]
    h3 = h.reshape(n, heads, d_head)
    a_src = jnp.einsum("nhd,hd->nh", h3, p["att_src"])
    a_dst = jnp.einsum("nhd,hd->nh", h3, p["att_dst"])
    s = a_dst[:, None, :] + a_src[None, :, :]          # (dst, src, head)
    s = jnp.where(s > 0, s, neg_slope * s)
    s = s + adj_bias[:, :, None]
    s = s - jnp.max(s, axis=1, keepdims=True)
    e = jnp.exp(s)
    alpha = e / jnp.sum(e, axis=1, keepdims=True)
    out = jnp.einsum("ijh,jhd->ihd", alpha, h3).reshape(n, heads * d_head)
    return out + p["b"]


def transgat_forward_reference(params, x, adj_bias, *, heads, d_head,
                               inception, neg_slope=0.2, eps=1e-5):
    def elu(v):
        return jnp.where(v > 0, v, jnp.exp(jnp.minimum(v, 0.0)) - 1.0)

    def ln(v, g, b):
        m = jnp.mean(v, axis=-1, keepdims=True)
        var = jnp.mean((v - m) ** 2, axis=-1, keepdims=True)
        return (v - m) / jnp.sqrt(var + eps) * g + b

    x = elu(gat_conv_reference(x, params["conv1"], adj_bias, heads, d_head, neg_slope))
    for i in range(inception):
        x1 = elu(gat_conv_reference(x, params["convs"][i], adj_bias, heads,
                                    d_head, neg_slope))
        x = ln(x + x1, params["norms"][i]["g"], params["norms"][i]["b"])
        fc = params["fcs"][i]
        y = jnp.maximum(x @ fc["lin1"]["w"] + fc["lin1"]["b"], 0.0)
        y = y @ fc["lin2"]["w"] + fc["lin2"]["b"]
        x = ln(x + y, params["fc_norms"][i]["g"], params["fc_norms"][i]["b"])
    return x


# ----------------------------------- main -------------------------------------

if __name__ == "__main__":
    num_nodes = 64
    input_dim = 16
    hidden_dim = 64
    heads = 8
    inception = 2          # module default is 5; small for the demo
    num_edges = 256

    d_head = hidden_dim // heads
    n_p = _round_up(num_nodes, 8)
    f_in_p = _round_up(input_dim, 128)
    h_p = _round_up(hidden_dim, 128)

    key = jax.random.PRNGKey(0)
    k_x, k_e, k_p = jax.random.split(key, 3)
    x = jax.random.normal(k_x, (num_nodes, input_dim), jnp.float32)
    edge_index = jax.random.randint(k_e, (2, num_edges), 0, num_nodes,
                                    dtype=jnp.int32)

    params = init_params(k_p, input_dim, hidden_dim, heads, inception)
    kparams = pad_params(params, hidden_dim=hidden_dim, heads=heads,
                         inception=inception, f_in_p=f_in_p, h_p=h_p)

    # Topology is static across forward passes -> build once, reuse (bf16 DMA).
    adj_bias_f32 = build_attention_bias(edge_index, num_nodes, n_p)
    adj_bias_bf16 = adj_bias_f32.astype(jnp.bfloat16)

    x_p = jnp.zeros((n_p, f_in_p), jnp.float32).at[:num_nodes, :input_dim].set(x)

    out_p = transgat_forward_pallas(
        adj_bias_bf16, x_p, kparams, heads=heads, d_head=d_head,
        hidden_dim=hidden_dim, inception=inception)
    out_p = jax.block_until_ready(out_p)
    out = out_p[:num_nodes, :hidden_dim]

    assert out.shape == (num_nodes, hidden_dim), out.shape
    assert bool(jnp.all(jnp.isfinite(out)))

    ref = transgat_forward_reference(
        params, x, adj_bias_f32[:num_nodes, :num_nodes],
        heads=heads, d_head=d_head, inception=inception)

    max_abs = float(jnp.max(jnp.abs(out - ref)))
    rel_fro = float(jnp.linalg.norm(out - ref) /
                    (jnp.linalg.norm(ref) + 1e-12))
    # bf16 MXU inputs (f32 accumulation) -> relaxed tolerance vs f32 reference.
    assert max_abs < 0.15 and rel_fro < 0.05, (max_abs, rel_fro)

    print("KERNEL_OK")
</pallas_src>

<mosaic_0001>
module attributes {stable_mosaic.version = 11 : i64} {
  func.func @_transgat_kernel(%arg0: i32, %arg1: memref<64x64xbf16, #tpu.memory_space<vmem>>, %arg2: memref<64x128xf32, #tpu.memory_space<vmem>>, %arg3: memref<128x128xf32, #tpu.memory_space<vmem>>, %arg4: memref<8x128xf32, #tpu.memory_space<vmem>>, %arg5: memref<128x8xf32, #tpu.memory_space<vmem>>, %arg6: memref<1x128xf32, #tpu.memory_space<vmem>>, %arg7: memref<2x128x128xf32, #tpu.memory_space<vmem>>, %arg8: memref<2x8x128xf32, #tpu.memory_space<vmem>>, %arg9: memref<2x128x8xf32, #tpu.memory_space<vmem>>, %arg10: memref<2x1x128xf32, #tpu.memory_space<vmem>>, %arg11: memref<2x1x128xf32, #tpu.memory_space<vmem>>, %arg12: memref<2x1x128xf32, #tpu.memory_space<vmem>>, %arg13: memref<2x128x128xf32, #tpu.memory_space<vmem>>, %arg14: memref<2x1x128xf32, #tpu.memory_space<vmem>>, %arg15: memref<2x128x128xf32, #tpu.memory_space<vmem>>, %arg16: memref<2x1x128xf32, #tpu.memory_space<vmem>>, %arg17: memref<2x1x128xf32, #tpu.memory_space<vmem>>, %arg18: memref<2x1x128xf32, #tpu.memory_space<vmem>>, %arg19: memref<64x128xf32, #tpu.memory_space<vmem>>, %arg20: memref<64x128xf32, #tpu.memory_space<vmem>>) attributes {dimension_semantics = [#tpu.dimension_semantics<arbitrary>], iteration_bounds = array<i64: 1>, scalar_prefetch = 0 : i64, scratch_operands = 1 : i64, tpu.core_type = #tpu.core_type<tc>, window_params = [{pipeline_mode = #tpu.pipeline_mode<synchronous>, transform_indices = @transform_0, window_bounds = array<i64: 64, 64>}, {pipeline_mode = #tpu.pipeline_mode<synchronous>, transform_indices = @transform_1, window_bounds = array<i64: 64, 128>}, {pipeline_mode = #tpu.pipeline_mode<synchronous>, transform_indices = @transform_2, window_bounds = array<i64: 128, 128>}, {pipeline_mode = #tpu.pipeline_mode<synchronous>, transform_indices = @transform_3, window_bounds = array<i64: 8, 128>}, {pipeline_mode = #tpu.pipeline_mode<synchronous>, transform_indices = @transform_4, window_bounds = array<i64: 128, 8>}, {pipeline_mode = #tpu.pipeline_mode<synchronous>, transform_indices = @transform_5, window_bounds = array<i64: 1, 128>}, {pipeline_mode = #tpu.pipeline_mode<synchronous>, transform_indices = @transform_6, window_bounds = array<i64: 2, 128, 128>}, {pipeline_mode = #tpu.pipeline_mode<synchronous>, transform_indices = @transform_7, window_bounds = array<i64: 2, 8, 128>}, {pipeline_mode = #tpu.pipeline_mode<synchronous>, transform_indices = @transform_8, window_bounds = array<i64: 2, 128, 8>}, {pipeline_mode = #tpu.pipeline_mode<synchronous>, transform_indices = @transform_9, window_bounds = array<i64: 2, 1, 128>}, {pipeline_mode = #tpu.pipeline_mode<synchronous>, transform_indices = @transform_10, window_bounds = array<i64: 2, 1, 128>}, {pipeline_mode = #tpu.pipeline_mode<synchronous>, transform_indices = @transform_11, window_bounds = array<i64: 2, 1, 128>}, {pipeline_mode = #tpu.pipeline_mode<synchronous>, transform_indices = @transform_12, window_bounds = array<i64: 2, 128, 128>}, {pipeline_mode = #tpu.pipeline_mode<synchronous>, transform_indices = @transform_13, window_bounds = array<i64: 2, 1, 128>}, {pipeline_mode = #tpu.pipeline_mode<synchronous>, transform_indices = @transform_14, window_bounds = array<i64: 2, 128, 128>}, {pipeline_mode = #tpu.pipeline_mode<synchronous>, transform_indices = @transform_15, window_bounds = array<i64: 2, 1, 128>}, {pipeline_mode = #tpu.pipeline_mode<synchronous>, transform_indices = @transform_16, window_bounds = array<i64: 2, 1, 128>}, {pipeline_mode = #tpu.pipeline_mode<synchronous>, transform_indices = @transform_17, window_bounds = array<i64: 2, 1, 128>}, {pipeline_mode = #tpu.pipeline_mode<synchronous>, transform_indices = @transform_18, window_bounds = array<i64: 64, 128>}]} {
    %cst = arith.constant 0.000000e+00 : f32
    %0 = vector.broadcast %cst : f32 to vector<64x128xf32>
    %c0 = arith.constant 0 : index
    %c0_0 = arith.constant 0 : index
    %1 = vector.load %arg20[%c0, %c0_0] : memref<64x128xf32, #tpu.memory_space<vmem>>, vector<64x128xf32>
    tpu.vector_store %arg20[%c0, %c0_0], %0 {strides = array<i32>} : memref<64x128xf32, #tpu.memory_space<vmem>>, vector<64x128xf32>,
    %c0_1 = arith.constant 0 : index
    %c0_2 = arith.constant 0 : index
    %2 = vector.load %arg1[%c0_1, %c0_2] : memref<64x64xbf16, #tpu.memory_space<vmem>>, vector<64x64xbf16>
    %3 = arith.extf %2 : vector<64x64xbf16> to vector<64x64xf32>
    %c0_3 = arith.constant 0 : index
    %c0_4 = arith.constant 0 : index
    %4 = vector.load %arg2[%c0_3, %c0_4] : memref<64x128xf32, #tpu.memory_space<vmem>>, vector<64x128xf32>
    %c0_5 = arith.constant 0 : index
    %c0_6 = arith.constant 0 : index
    %5 = vector.load %arg3[%c0_5, %c0_6] : memref<128x128xf32, #tpu.memory_space<vmem>>, vector<128x128xf32>
    %c0_7 = arith.constant 0 : index
    %c0_8 = arith.constant 0 : index
    %6 = vector.load %arg4[%c0_7, %c0_8] : memref<8x128xf32, #tpu.memory_space<vmem>>, vector<8x128xf32>
    %c0_9 = arith.constant 0 : index
    %c0_10 = arith.constant 0 : index
    %7 = vector.load %arg5[%c0_9, %c0_10] : memref<128x8xf32, #tpu.memory_space<vmem>>, vector<128x8xf32>
    %c0_11 = arith.constant 0 : index
    %c0_12 = arith.constant 0 : index
    %8 = vector.load %arg6[%c0_11, %c0_12] : memref<1x128xf32, #tpu.memory_space<vmem>>, vector<1x128xf32>
    %9 = arith.truncf %4 : vector<64x128xf32> to vector<64x128xbf16>
    %10 = arith.truncf %5 : vector<128x128xf32> to vector<128x128xbf16>
    %cst_13 = arith.constant dense<0.000000e+00> : vector<64x128xf32>
    %11 = tpu.matmul %9, %10, %cst_13 {dimension_numbers = #tpu.dot_dimension_numbers<[1], [0], [0], [1], [0, 0, 1, 1], [], []>} : vector<64x128xbf16>, vector<128x128xbf16>, vector<64x128xf32> -> vector<64x128xf32>
    %12 = arith.truncf %11 : vector<64x128xf32> to vector<64x128xbf16>
    %13 = arith.truncf %6 : vector<8x128xf32> to vector<8x128xbf16>
    %cst_14 = arith.constant dense<0.000000e+00> : vector<8x64xf32>
    %14 = tpu.matmul %13, %12, %cst_14 {dimension_numbers = #tpu.dot_dimension_numbers<[1], [1], [0], [0], [0, 0, 1, 0], [], []>} : vector<8x128xbf16>, vector<64x128xbf16>, vector<8x64xf32> -> vector<8x64xf32>
    %15 = arith.truncf %7 : vector<128x8xf32> to vector<128x8xbf16>
    %cst_15 = arith.constant dense<0.000000e+00> : vector<64x8xf32>
    %16 = tpu.matmul %12, %15, %cst_15 {dimension_numbers = #tpu.dot_dimension_numbers<[1], [0], [0], [1], [0, 0, 1, 1], [], []>} : vector<64x128xbf16>, vector<128x8xbf16>, vector<64x8xf32> -> vector<64x8xf32>
    %17 = vector.extract_strided_slice %16 {offsets = [0, 0], sizes = [64, 1], strides = [1, 1]} : vector<64x8xf32> to vector<64x1xf32>
    %18 = vector.extract_strided_slice %14 {offsets = [0, 0], sizes = [1, 64], strides = [1, 1]} : vector<8x64xf32> to vector<1x64xf32>
    %19 = vector.broadcast %17 : vector<64x1xf32> to vector<64x64xf32>
    %20 = vector.broadcast %18 : vector<1x64xf32> to vector<64x64xf32>
    %21 = arith.addf %19, %20 : vector<64x64xf32>
    %cst_16 = arith.constant 0.000000e+00 : f32
    %22 = vector.broadcast %cst_16 : f32 to vector<64x64xf32>
    %23 = arith.cmpf ogt, %21, %22 : vector<64x64xf32>
    %cst_17 = arith.constant 2.000000e-01 : f32
    %24 = vector.broadcast %cst_17 : f32 to vector<64x64xf32>
    %25 = arith.mulf %24, %21 : vector<64x64xf32>
    %26 = arith.select %23, %21, %25 : vector<64x64xi1>, vector<64x64xf32>
    %27 = arith.addf %26, %3 : vector<64x64xf32>
    %cst_18 = arith.constant dense<0xFF800000> : vector<64xf32>
    %28 = vector.multi_reduction <maximumf>, %27, %cst_18 [1] : vector<64x64xf32> to vector<64xf32>
    %29 = vector.shape_cast %28 : vector<64xf32> to vector<64x1xf32>
    %30 = vector.broadcast %29 : vector<64x1xf32> to vector<64x64xf32>
    %31 = arith.subf %27, %30 : vector<64x64xf32>
    %32 = math.exp %31 : vector<64x64xf32>
    %cst_19 = arith.constant dense<0.000000e+00> : vector<64xf32>
    %33 = vector.multi_reduction <add>, %32, %cst_19 [1] : vector<64x64xf32> to vector<64xf32>
    %34 = vector.shape_cast %33 : vector<64xf32> to vector<64x1xf32>
    %35 = tpu.reciprocal %34 {approx = true} : vector<64x1xf32> -> vector<64x1xf32>
    %36 = vector.broadcast %35 : vector<64x1xf32> to vector<64x64xf32>
    %37 = arith.mulf %32, %36 : vector<64x64xf32>
    %38 = vector.extract_strided_slice %12 {offsets = [0, 0], sizes = [64, 8], strides = [1, 1]} : vector<64x128xbf16> to vector<64x8xbf16>
    %39 = arith.truncf %37 : vector<64x64xf32> to vector<64x64xbf16>
    %cst_20 = arith.constant dense<0.000000e+00> : vector<64x8xf32>
    %40 = tpu.matmul %39, %38, %cst_20 {dimension_numbers = #tpu.dot_dimension_numbers<[1], [0], [0], [1], [0, 0, 1, 1], [], []>} : vector<64x64xbf16>, vector<64x8xbf16>, vector<64x8xf32> -> vector<64x8xf32>
    %c0_21 = arith.constant 0 : index
    %c0_22 = arith.constant 0 : index
    %41 = vector.load %arg20[%c0_21, %c0_22] : memref<64x128xf32, #tpu.memory_space<vmem>>, vector<64x8xf32>
    tpu.vector_store %arg20[%c0_21, %c0_22], %40 {strides = array<i32>} : memref<64x128xf32, #tpu.memory_space<vmem>>, vector<64x8xf32>,
    %42 = vector.extract_strided_slice %16 {offsets = [0, 1], sizes = [64, 1], strides = [1, 1]} : vector<64x8xf32> to vector<64x1xf32>
    %43 = vector.extract_strided_slice %14 {offsets = [1, 0], sizes = [1, 64], strides = [1, 1]} : vector<8x64xf32> to vector<1x64xf32>
    %44 = vector.broadcast %42 : vector<64x1xf32> to vector<64x64xf32>
    %45 = vector.broadcast %43 : vector<1x64xf32> to vector<64x64xf32>
    %46 = arith.addf %44, %45 : vector<64x64xf32>
    %cst_23 = arith.constant 0.000000e+00 : f32
    %47 = vector.broadcast %cst_23 : f32 to vector<64x64xf32>
    %48 = arith.cmpf ogt, %46, %47 : vector<64x64xf32>
    %cst_24 = arith.constant 2.000000e-01 : f32
    %49 = vector.broadcast %cst_24 : f32 to vector<64x64xf32>
    %50 = arith.mulf %49, %46 : vector<64x64xf32>
    %51 = arith.select %48, %46, %50 : vector<64x64xi1>, vector<64x64xf32>
    %52 = arith.addf %51, %3 : vector<64x64xf32>
    %cst_25 = arith.constant dense<0xFF800000> : vector<64xf32>
    %53 = vector.multi_reduction <maximumf>, %52, %cst_25 [1] : vector<64x64xf32> to vector<64xf32>
    %54 = vector.shape_cast %53 : vector<64xf32> to vector<64x1xf32>
    %55 = vector.broadcast %54 : vector<64x1xf32> to vector<64x64xf32>
    %56 = arith.subf %52, %55 : vector<64x64xf32>
    %57 = math.exp %56 : vector<64x64xf32>
    %cst_26 = arith.constant dense<0.000000e+00> : vector<64xf32>
    %58 = vector.multi_reduction <add>, %57, %cst_26 [1] : vector<64x64xf32> to vector<64xf32>
    %59 = vector.shape_cast %58 : vector<64xf32> to vector<64x1xf32>
    %60 = tpu.reciprocal %59 {approx = true} : vector<64x1xf32> -> vector<64x1xf32>
    %61 = vector.broadcast %60 : vector<64x1xf32> to vector<64x64xf32>
    %62 = arith.mulf %57, %61 : vector<64x64xf32>
    %63 = vector.extract_strided_slice %12 {offsets = [0, 8], sizes = [64, 8], strides = [1, 1]} : vector<64x128xbf16> to vector<64x8xbf16>
    %64 = arith.truncf %62 : vector<64x64xf32> to vector<64x64xbf16>
    %cst_27 = arith.constant dense<0.000000e+00> : vector<64x8xf32>
    %65 = tpu.matmul %64, %63, %cst_27 {dimension_numbers = #tpu.dot_dimension_numbers<[1], [0], [0], [1], [0, 0, 1, 1], [], []>} : vector<64x64xbf16>, vector<64x8xbf16>, vector<64x8xf32> -> vector<64x8xf32>
    %c0_28 = arith.constant 0 : index
    %c8 = arith.constant 8 : index
    %66 = vector.load %arg20[%c0_28, %c8] : memref<64x128xf32, #tpu.memory_space<vmem>>, vector<64x8xf32>
    tpu.vector_store %arg20[%c0_28, %c8], %65 {strides = array<i32>} : memref<64x128xf32, #tpu.memory_space<vmem>>, vector<64x8xf32>,
    %67 = vector.extract_strided_slice %16 {offsets = [0, 2], sizes = [64, 1], strides = [1, 1]} : vector<64x8xf32> to vector<64x1xf32>
    %68 = vector.extract_strided_slice %14 {offsets = [2, 0], sizes = [1, 64], strides = [1, 1]} : vector<8x64xf32> to vector<1x64xf32>
    %69 = vector.broadcast %67 : vector<64x1xf32> to vector<64x64xf32>
    %70 = vector.broadcast %68 : vector<1x64xf32> to vector<64x64xf32>
    %71 = arith.addf %69, %70 : vector<64x64xf32>
    %cst_29 = arith.constant 0.000000e+00 : f32
    %72 = vector.broadcast %cst_29 : f32 to vector<64x64xf32>
    %73 = arith.cmpf ogt, %71, %72 : vector<64x64xf32>
    %cst_30 = arith.constant 2.000000e-01 : f32
    %74 = vector.broadcast %cst_30 : f32 to vector<64x64xf32>
    %75 = arith.mulf %74, %71 : vector<64x64xf32>
    %76 = arith.select %73, %71, %75 : vector<64x64xi1>, vector<64x64xf32>
    %77 = arith.addf %76, %3 : vector<64x64xf32>
    %cst_31 = arith.constant dense<0xFF800000> : vector<64xf32>
    %78 = vector.multi_reduction <maximumf>, %77, %cst_31 [1] : vector<64x64xf32> to vector<64xf32>
    %79 = vector.shape_cast %78 : vector<64xf32> to vector<64x1xf32>
    %80 = vector.broadcast %79 : vector<64x1xf32> to vector<64x64xf32>
    %81 = arith.subf %77, %80 : vector<64x64xf32>
    %82 = math.exp %81 : vector<64x64xf32>
    %cst_32 = arith.constant dense<0.000000e+00> : vector<64xf32>
    %83 = vector.multi_reduction <add>, %82, %cst_32 [1] : vector<64x64xf32> to vector<64xf32>
    %84 = vector.shape_cast %83 : vector<64xf32> to vector<64x1xf32>
    %85 = tpu.reciprocal %84 {approx = true} : vector<64x1xf32> -> vector<64x1xf32>
    %86 = vector.broadcast %85 : vector<64x1xf32> to vector<64x64xf32>
    %87 = arith.mulf %82, %86 : vector<64x64xf32>
    %88 = vector.extract_strided_slice %12 {offsets = [0, 16], sizes = [64, 8], strides = [1, 1]} : vector<64x128xbf16> to vector<64x8xbf16>
    %89 = arith.truncf %87 : vector<64x64xf32> to vector<64x64xbf16>
    %cst_33 = arith.constant dense<0.000000e+00> : vector<64x8xf32>
    %90 = tpu.matmul %89, %88, %cst_33 {dimension_numbers = #tpu.dot_dimension_numbers<[1], [0], [0], [1], [0, 0, 1, 1], [], []>} : vector<64x64xbf16>, vector<64x8xbf16>, vector<64x8xf32> -> vector<64x8xf32>
    %c0_34 = arith.constant 0 : index
    %c16 = arith.constant 16 : index
    %91 = vector.load %arg20[%c0_34, %c16] : memref<64x128xf32, #tpu.memory_space<vmem>>, vector<64x8xf32>
    tpu.vector_store %arg20[%c0_34, %c16], %90 {strides = array<i32>} : memref<64x128xf32, #tpu.memory_space<vmem>>, vector<64x8xf32>,
    %92 = vector.extract_strided_slice %16 {offsets = [0, 3], sizes = [64, 1], strides = [1, 1]} : vector<64x8xf32> to vector<64x1xf32>
    %93 = vector.extract_strided_slice %14 {offsets = [3, 0], sizes = [1, 64], strides = [1, 1]} : vector<8x64xf32> to vector<1x64xf32>
    %94 = vector.broadcast %92 : vector<64x1xf32> to vector<64x64xf32>
    %95 = vector.broadcast %93 : vector<1x64xf32> to vector<64x64xf32>
    %96 = arith.addf %94, %95 : vector<64x64xf32>
    %cst_35 = arith.constant 0.000000e+00 : f32
    %97 = vector.broadcast %cst_35 : f32 to vector<64x64xf32>
    %98 = arith.cmpf ogt, %96, %97 : vector<64x64xf32>
    %cst_36 = arith.constant 2.000000e-01 : f32
    %99 = vector.broadcast %cst_36 : f32 to vector<64x64xf32>
    %100 = arith.mulf %99, %96 : vector<64x64xf32>
    %101 = arith.select %98, %96, %100 : vector<64x64xi1>, vector<64x64xf32>
    %102 = arith.addf %101, %3 : vector<64x64xf32>
    %cst_37 = arith.constant dense<0xFF800000> : vector<64xf32>
    %103 = vector.multi_reduction <maximumf>, %102, %cst_37 [1] : vector<64x64xf32> to vector<64xf32>
    %104 = vector.shape_cast %103 : vector<64xf32> to vector<64x1xf32>
    %105 = vector.broadcast %104 : vector<64x1xf32> to vector<64x64xf32>
    %106 = arith.subf %102, %105 : vector<64x64xf32>
    %107 = math.exp %106 : vector<64x64xf32>
    %cst_38 = arith.constant dense<0.000000e+00> : vector<64xf32>
    %108 = vector.multi_reduction <add>, %107, %cst_38 [1] : vector<64x64xf32> to vector<64xf32>
    %109 = vector.shape_cast %108 : vector<64xf32> to vector<64x1xf32>
    %110 = tpu.reciprocal %109 {approx = true} : vector<64x1xf32> -> vector<64x1xf32>
    %111 = vector.broadcast %110 : vector<64x1xf32> to vector<64x64xf32>
    %112 = arith.mulf %107, %111 : vector<64x64xf32>
    %113 = vector.extract_strided_slice %12 {offsets = [0, 24], sizes = [64, 8], strides = [1, 1]} : vector<64x128xbf16> to vector<64x8xbf16>
    %114 = arith.truncf %112 : vector<64x64xf32> to vector<64x64xbf16>
    %cst_39 = arith.constant dense<0.000000e+00> : vector<64x8xf32>
    %115 = tpu.matmul %114, %113, %cst_39 {dimension_numbers = #tpu.dot_dimension_numbers<[1], [0], [0], [1], [0, 0, 1, 1], [], []>} : vector<64x64xbf16>, vector<64x8xbf16>, vector<64x8xf32> -> vector<64x8xf32>
    %c0_40 = arith.constant 0 : index
    %c24 = arith.constant 24 : index
    %116 = vector.load %arg20[%c0_40, %c24] : memref<64x128xf32, #tpu.memory_space<vmem>>, vector<64x8xf32>
    tpu.vector_store %arg20[%c0_40, %c24], %115 {strides = array<i32>} : memref<64x128xf32, #tpu.memory_space<vmem>>, vector<64x8xf32>,
    %117 = vector.extract_strided_slice %16 {offsets = [0, 4], sizes = [64, 1], strides = [1, 1]} : vector<64x8xf32> to vector<64x1xf32>
    %118 = vector.extract_strided_slice %14 {offsets = [4, 0], sizes = [1, 64], strides = [1, 1]} : vector<8x64xf32> to vector<1x64xf32>
    %119 = vector.broadcast %117 : vector<64x1xf32> to vector<64x64xf32>
    %120 = vector.broadcast %118 : vector<1x64xf32> to vector<64x64xf32>
    %121 = arith.addf %119, %120 : vector<64x64xf32>
    %cst_41 = arith.constant 0.000000e+00 : f32
    %122 = vector.broadcast %cst_41 : f32 to vector<64x64xf32>
    %123 = arith.cmpf ogt, %121, %122 : vector<64x64xf32>
    %cst_42 = arith.constant 2.000000e-01 : f32
    %124 = vector.broadcast %cst_42 : f32 to vector<64x64xf32>
    %125 = arith.mulf %124, %121 : vector<64x64xf32>
    %126 = arith.select %123, %121, %125 : vector<64x64xi1>, vector<64x64xf32>
    %127 = arith.addf %126, %3 : vector<64x64xf32>
    %cst_43 = arith.constant dense<0xFF800000> : vector<64xf32>
    %128 = vector.multi_reduction <maximumf>, %127, %cst_43 [1] : vector<64x64xf32> to vector<64xf32>
    %129 = vector.shape_cast %128 : vector<64xf32> to vector<64x1xf32>
    %130 = vector.broadcast %129 : vector<64x1xf32> to vector<64x64xf32>
    %131 = arith.subf %127, %130 : vector<64x64xf32>
    %132 = math.exp %131 : vector<64x64xf32>
    %cst_44 = arith.constant dense<0.000000e+00> : vector<64xf32>
    %133 = vector.multi_reduction <add>, %132, %cst_44 [1] : vector<64x64xf32> to vector<64xf32>
    %134 = vector.shape_cast %133 : vector<64xf32> to vector<64x1xf32>
    %135 = tpu.reciprocal %134 {approx = true} : vector<64x1xf32> -> vector<64x1xf32>
    %136 = vector.broadcast %135 : vector<64x1xf32> to vector<64x64xf32>
    %137 = arith.mulf %132, %136 : vector<64x64xf32>
    %138 = vector.extract_strided_slice %12 {offsets = [0, 32], sizes = [64, 8], strides = [1, 1]} : vector<64x128xbf16> to vector<64x8xbf16>
    %139 = arith.truncf %137 : vector<64x64xf32> to vector<64x64xbf16>
    %cst_45 = arith.constant dense<0.000000e+00> : vector<64x8xf32>
    %140 = tpu.matmul %139, %138, %cst_45 {dimension_numbers = #tpu.dot_dimension_numbers<[1], [0], [0], [1], [0, 0, 1, 1], [], []>} : vector<64x64xbf16>, vector<64x8xbf16>, vector<64x8xf32> -> vector<64x8xf32>
    %c0_46 = arith.constant 0 : index
    %c32 = arith.constant 32 : index
    %141 = vector.load %arg20[%c0_46, %c32] : memref<64x128xf32, #tpu.memory_space<vmem>>, vector<64x8xf32>
    tpu.vector_store %arg20[%c0_46, %c32], %140 {strides = array<i32>} : memref<64x128xf32, #tpu.memory_space<vmem>>, vector<64x8xf32>,
    %142 = vector.extract_strided_slice %16 {offsets = [0, 5], sizes = [64, 1], strides = [1, 1]} : vector<64x8xf32> to vector<64x1xf32>
    %143 = vector.extract_strided_slice %14 {offsets = [5, 0], sizes = [1, 64], strides = [1, 1]} : vector<8x64xf32> to vector<1x64xf32>
    %144 = vector.broadcast %142 : vector<64x1xf32> to vector<64x64xf32>
    %145 = vector.broadcast %143 : vector<1x64xf32> to vector<64x64xf32>
    %146 = arith.addf %144, %145 : vector<64x64xf32>
    %cst_47 = arith.constant 0.000000e+00 : f32
    %147 = vector.broadcast %cst_47 : f32 to vector<64x64xf32>
    %148 = arith.cmpf ogt, %146, %147 : vector<64x64xf32>
    %cst_48 = arith.constant 2.000000e-01 : f32
    %149 = vector.broadcast %cst_48 : f32 to vector<64x64xf32>
    %150 = arith.mulf %149, %146 : vector<64x64xf32>
    %151 = arith.select %148, %146, %150 : vector<64x64xi1>, vector<64x64xf32>
    %152 = arith.addf %151, %3 : vector<64x64xf32>
    %cst_49 = arith.constant dense<0xFF800000> : vector<64xf32>
    %153 = vector.multi_reduction <maximumf>, %152, %cst_49 [1] : vector<64x64xf32> to vector<64xf32>
    %154 = vector.shape_cast %153 : vector<64xf32> to vector<64x1xf32>
    %155 = vector.broadcast %154 : vector<64x1xf32> to vector<64x64xf32>
    %156 = arith.subf %152, %155 : vector<64x64xf32>
    %157 = math.exp %156 : vector<64x64xf32>
    %cst_50 = arith.constant dense<0.000000e+00> : vector<64xf32>
    %158 = vector.multi_reduction <add>, %157, %cst_50 [1] : vector<64x64xf32> to vector<64xf32>
    %159 = vector.shape_cast %158 : vector<64xf32> to vector<64x1xf32>
    %160 = tpu.reciprocal %159 {approx = true} : vector<64x1xf32> -> vector<64x1xf32>
    %161 = vector.broadcast %160 : vector<64x1xf32> to vector<64x64xf32>
    %162 = arith.mulf %157, %161 : vector<64x64xf32>
    %163 = vector.extract_strided_slice %12 {offsets = [0, 40], sizes = [64, 8], strides = [1, 1]} : vector<64x128xbf16> to vector<64x8xbf16>
    %164 = arith.truncf %162 : vector<64x64xf32> to vector<64x64xbf16>
    %cst_51 = arith.constant dense<0.000000e+00> : vector<64x8xf32>
    %165 = tpu.matmul %164, %163, %cst_51 {dimension_numbers = #tpu.dot_dimension_numbers<[1], [0], [0], [1], [0, 0, 1, 1], [], []>} : vector<64x64xbf16>, vector<64x8xbf16>, vector<64x8xf32> -> vector<64x8xf32>
    %c0_52 = arith.constant 0 : index
    %c40 = arith.constant 40 : index
    %166 = vector.load %arg20[%c0_52, %c40] : memref<64x128xf32, #tpu.memory_space<vmem>>, vector<64x8xf32>
    tpu.vector_store %arg20[%c0_52, %c40], %165 {strides = array<i32>} : memref<64x128xf32, #tpu.memory_space<vmem>>, vector<64x8xf32>,
    %167 = vector.extract_strided_slice %16 {offsets = [0, 6], sizes = [64, 1], strides = [1, 1]} : vector<64x8xf32> to vector<64x1xf32>
    %168 = vector.extract_strided_slice %14 {offsets = [6, 0], sizes = [1, 64], strides = [1, 1]} : vector<8x64xf32> to vector<1x64xf32>
    %169 = vector.broadcast %167 : vector<64x1xf32> to vector<64x64xf32>
    %170 = vector.broadcast %168 : vector<1x64xf32> to vector<64x64xf32>
    %171 = arith.addf %169, %170 : vector<64x64xf32>
    %cst_53 = arith.constant 0.000000e+00 : f32
    %172 = vector.broadcast %cst_53 : f32 to vector<64x64xf32>
    %173 = arith.cmpf ogt, %171, %172 : vector<64x64xf32>
    %cst_54 = arith.constant 2.000000e-01 : f32
    %174 = vector.broadcast %cst_54 : f32 to vector<64x64xf32>
    %175 = arith.mulf %174, %171 : vector<64x64xf32>
    %176 = arith.select %173, %171, %175 : vector<64x64xi1>, vector<64x64xf32>
    %177 = arith.addf %176, %3 : vector<64x64xf32>
    %cst_55 = arith.constant dense<0xFF800000> : vector<64xf32>
    %178 = vector.multi_reduction <maximumf>, %177, %cst_55 [1] : vector<64x64xf32> to vector<64xf32>
    %179 = vector.shape_cast %178 : vector<64xf32> to vector<64x1xf32>
    %180 = vector.broadcast %179 : vector<64x1xf32> to vector<64x64xf32>
    %181 = arith.subf %177, %180 : vector<64x64xf32>
    %182 = math.exp %181 : vector<64x64xf32>
    %cst_56 = arith.constant dense<0.000000e+00> : vector<64xf32>
    %183 = vector.multi_reduction <add>, %182, %cst_56 [1] : vector<64x64xf32> to vector<64xf32>
    %184 = vector.shape_cast %183 : vector<64xf32> to vector<64x1xf32>
    %185 = tpu.reciprocal %184 {approx = true} : vector<64x1xf32> -> vector<64x1xf32>
    %186 = vector.broadcast %185 : vector<64x1xf32> to vector<64x64xf32>
    %187 = arith.mulf %182, %186 : vector<64x64xf32>
    %188 = vector.extract_strided_slice %12 {offsets = [0, 48], sizes = [64, 8], strides = [1, 1]} : vector<64x128xbf16> to vector<64x8xbf16>
    %189 = arith.truncf %187 : vector<64x64xf32> to vector<64x64xbf16>
    %cst_57 = arith.constant dense<0.000000e+00> : vector<64x8xf32>
    %190 = tpu.matmul %189, %188, %cst_57 {dimension_numbers = #tpu.dot_dimension_numbers<[1], [0], [0], [1], [0, 0, 1, 1], [], []>} : vector<64x64xbf16>, vector<64x8xbf16>, vector<64x8xf32> -> vector<64x8xf32>
    %c0_58 = arith.constant 0 : index
    %c48 = arith.constant 48 : index
    %191 = vector.load %arg20[%c0_58, %c48] : memref<64x128xf32, #tpu.memory_space<vmem>>, vector<64x8xf32>
    tpu.vector_store %arg20[%c0_58, %c48], %190 {strides = array<i32>} : memref<64x128xf32, #tpu.memory_space<vmem>>, vector<64x8xf32>,
    %192 = vector.extract_strided_slice %16 {offsets = [0, 7], sizes = [64, 1], strides = [1, 1]} : vector<64x8xf32> to vector<64x1xf32>
    %193 = vector.extract_strided_slice %14 {offsets = [7, 0], sizes = [1, 64], strides = [1, 1]} : vector<8x64xf32> to vector<1x64xf32>
    %194 = vector.broadcast %192 : vector<64x1xf32> to vector<64x64xf32>
    %195 = vector.broadcast %193 : vector<1x64xf32> to vector<64x64xf32>
    %196 = arith.addf %194, %195 : vector<64x64xf32>
    %cst_59 = arith.constant 0.000000e+00 : f32
    %197 = vector.broadcast %cst_59 : f32 to vector<64x64xf32>
    %198 = arith.cmpf ogt, %196, %197 : vector<64x64xf32>
    %cst_60 = arith.constant 2.000000e-01 : f32
    %199 = vector.broadcast %cst_60 : f32 to vector<64x64xf32>
    %200 = arith.mulf %199, %196 : vector<64x64xf32>
    %201 = arith.select %198, %196, %200 : vector<64x64xi1>, vector<64x64xf32>
    %202 = arith.addf %201, %3 : vector<64x64xf32>
    %cst_61 = arith.constant dense<0xFF800000> : vector<64xf32>
    %203 = vector.multi_reduction <maximumf>, %202, %cst_61 [1] : vector<64x64xf32> to vector<64xf32>
    %204 = vector.shape_cast %203 : vector<64xf32> to vector<64x1xf32>
    %205 = vector.broadcast %204 : vector<64x1xf32> to vector<64x64xf32>
    %206 = arith.subf %202, %205 : vector<64x64xf32>
    %207 = math.exp %206 : vector<64x64xf32>
    %cst_62 = arith.constant dense<0.000000e+00> : vector<64xf32>
    %208 = vector.multi_reduction <add>, %207, %cst_62 [1] : vector<64x64xf32> to vector<64xf32>
    %209 = vector.shape_cast %208 : vector<64xf32> to vector<64x1xf32>
    %210 = tpu.reciprocal %209 {approx = true} : vector<64x1xf32> -> vector<64x1xf32>
    %211 = vector.broadcast %210 : vector<64x1xf32> to vector<64x64xf32>
    %212 = arith.mulf %207, %211 : vector<64x64xf32>
    %213 = vector.extract_strided_slice %12 {offsets = [0, 56], sizes = [64, 8], strides = [1, 1]} : vector<64x128xbf16> to vector<64x8xbf16>
    %214 = arith.truncf %212 : vector<64x64xf32> to vector<64x64xbf16>
    %cst_63 = arith.constant dense<0.000000e+00> : vector<64x8xf32>
    %215 = tpu.matmul %214, %213, %cst_63 {dimension_numbers = #tpu.dot_dimension_numbers<[1], [0], [0], [1], [0, 0, 1, 1], [], []>} : vector<64x64xbf16>, vector<64x8xbf16>, vector<64x8xf32> -> vector<64x8xf32>
    %c0_64 = arith.constant 0 : index
    %c56 = arith.constant 56 : index
    %216 = vector.load %arg20[%c0_64, %c56] : memref<64x128xf32, #tpu.memory_space<vmem>>, vector<64x8xf32>
    tpu.vector_store %arg20[%c0_64, %c56], %215 {strides = array<i32>} : memref<64x128xf32, #tpu.memory_space<vmem>>, vector<64x8xf32>,
    %c0_65 = arith.constant 0 : index
    %c0_66 = arith.constant 0 : index
    %217 = vector.load %arg20[%c0_65, %c0_66] : memref<64x128xf32, #tpu.memory_space<vmem>>, vector<64x128xf32>
    %218 = vector.broadcast %8 : vector<1x128xf32> to vector<64x128xf32>
    %219 = arith.addf %217, %218 : vector<64x128xf32>
    %cst_67 = arith.constant 0.000000e+00 : f32
    %220 = vector.broadcast %cst_67 : f32 to vector<64x128xf32>
    %221 = arith.cmpf ogt, %219, %220 : vector<64x128xf32>
    %cst_68 = arith.constant 0.000000e+00 : f32
    %222 = vector.broadcast %cst_68 : f32 to vector<64x128xf32>
    %223 = arith.minimumf %219, %222 : vector<64x128xf32>
    %224 = math.exp %223 : vector<64x128xf32>
    %cst_69 = arith.constant 1.000000e+00 : f32
    %225 = vector.broadcast %cst_69 : f32 to vector<64x128xf32>
    %226 = arith.subf %224, %225 : vector<64x128xf32>
    %227 = arith.select %221, %219, %226 : vector<64x128xi1>, vector<64x128xf32>
    %c0_70 = arith.constant 0 : index
    %c0_71 = arith.constant 0 : index
    %c0_72 = arith.constant 0 : index
    %228 = vector.load %arg7[%c0_70, %c0_71, %c0_72] : memref<2x128x128xf32, #tpu.memory_space<vmem>>, vector<1x128x128xf32>
    %229 = vector.shape_cast %228 : vector<1x128x128xf32> to vector<128x128xf32>
    %c0_73 = arith.constant 0 : index
    %c0_74 = arith.constant 0 : index
    %c0_75 = arith.constant 0 : index
    %230 = vector.load %arg8[%c0_73, %c0_74, %c0_75] : memref<2x8x128xf32, #tpu.memory_space<vmem>>, vector<1x8x128xf32>
    %231 = vector.shape_cast %230 : vector<1x8x128xf32> to vector<8x128xf32>
    %c0_76 = arith.constant 0 : index
    %c0_77 = arith.constant 0 : index
    %c0_78 = arith.constant 0 : index
    %232 = vector.load %arg9[%c0_76, %c0_77, %c0_78] : memref<2x128x8xf32, #tpu.memory_space<vmem>>, vector<1x128x8xf32>
    %233 = vector.shape_cast %232 : vector<1x128x8xf32> to vector<128x8xf32>
    %c0_79 = arith.constant 0 : index
    %c0_80 = arith.constant 0 : index
    %c0_81 = arith.constant 0 : index
    %234 = vector.load %arg10[%c0_79, %c0_80, %c0_81] : memref<2x1x128xf32, #tpu.memory_space<vmem>>, vector<1x1x128xf32>
    %235 = vector.shape_cast %234 : vector<1x1x128xf32> to vector<1x128xf32>
    %236 = arith.truncf %227 : vector<64x128xf32> to vector<64x128xbf16>
    %237 = arith.truncf %229 : vector<128x128xf32> to vector<128x128xbf16>
    %cst_82 = arith.constant dense<0.000000e+00> : vector<64x128xf32>
    %238 = tpu.matmul %236, %237, %cst_82 {dimension_numbers = #tpu.dot_dimension_numbers<[1], [0], [0], [1], [0, 0, 1, 1], [], []>} : vector<64x128xbf16>, vector<128x128xbf16>, vector<64x128xf32> -> vector<64x128xf32>
    %239 = arith.truncf %238 : vector<64x128xf32> to vector<64x128xbf16>
    %240 = arith.truncf %231 : vector<8x128xf32> to vector<8x128xbf16>
    %cst_83 = arith.constant dense<0.000000e+00> : vector<8x64xf32>
    %241 = tpu.matmul %240, %239, %cst_83 {dimension_numbers = #tpu.dot_dimension_numbers<[1], [1], [0], [0], [0, 0, 1, 0], [], []>} : vector<8x128xbf16>, vector<64x128xbf16>, vector<8x64xf32> -> vector<8x64xf32>
    %242 = arith.truncf %233 : vector<128x8xf32> to vector<128x8xbf16>
    %cst_84 = arith.constant dense<0.000000e+00> : vector<64x8xf32>
    %243 = tpu.matmul %239, %242, %cst_84 {dimension_numbers = #tpu.dot_dimension_numbers<[1], [0], [0], [1], [0, 0, 1, 1], [], []>} : vector<64x128xbf16>, vector<128x8xbf16>, vector<64x8xf32> -> vector<64x8xf32>
    %244 = vector.extract_strided_slice %243 {offsets = [0, 0], sizes = [64, 1], strides = [1, 1]} : vector<64x8xf32> to vector<64x1xf32>
    %245 = vector.extract_strided_slice %241 {offsets = [0, 0], sizes = [1, 64], strides = [1, 1]} : vector<8x64xf32> to vector<1x64xf32>
    %246 = vector.broadcast %244 : vector<64x1xf32> to vector<64x64xf32>
    %247 = vector.broadcast %245 : vector<1x64xf32> to vector<64x64xf32>
    %248 = arith.addf %246, %247 : vector<64x64xf32>
    %cst_85 = arith.constant 0.000000e+00 : f32
    %249 = vector.broadcast %cst_85 : f32 to vector<64x64xf32>
    %250 = arith.cmpf ogt, %248, %249 : vector<64x64xf32>
    %cst_86 = arith.constant 2.000000e-01 : f32
    %251 = vector.broadcast %cst_86 : f32 to vector<64x64xf32>
    %252 = arith.mulf %251, %248 : vector<64x64xf32>
    %253 = arith.select %250, %248, %252 : vector<64x64xi1>, vector<64x64xf32>
    %254 = arith.addf %253, %3 : vector<64x64xf32>
    %cst_87 = arith.constant dense<0xFF800000> : vector<64xf32>
    %255 = vector.multi_reduction <maximumf>, %254, %cst_87 [1] : vector<64x64xf32> to vector<64xf32>
    %256 = vector.shape_cast %255 : vector<64xf32> to vector<64x1xf32>
    %257 = vector.broadcast %256 : vector<64x1xf32> to vector<64x64xf32>
    %258 = arith.subf %254, %257 : vector<64x64xf32>
    %259 = math.exp %258 : vector<64x64xf32>
    %cst_88 = arith.constant dense<0.000000e+00> : vector<64xf32>
    %260 = vector.multi_reduction <add>, %259, %cst_88 [1] : vector<64x64xf32> to vector<64xf32>
    %261 = vector.shape_cast %260 : vector<64xf32> to vector<64x1xf32>
    %262 = tpu.reciprocal %261 {approx = true} : vector<64x1xf32> -> vector<64x1xf32>
    %263 = vector.broadcast %262 : vector<64x1xf32> to vector<64x64xf32>
    %264 = arith.mulf %259, %263 : vector<64x64xf32>
    %265 = vector.extract_strided_slice %239 {offsets = [0, 0], sizes = [64, 8], strides = [1, 1]} : vector<64x128xbf16> to vector<64x8xbf16>
    %266 = arith.truncf %264 : vector<64x64xf32> to vector<64x64xbf16>
    %cst_89 = arith.constant dense<0.000000e+00> : vector<64x8xf32>
    %267 = tpu.matmul %266, %265, %cst_89 {dimension_numbers = #tpu.dot_dimension_numbers<[1], [0], [0], [1], [0, 0, 1, 1], [], []>} : vector<64x64xbf16>, vector<64x8xbf16>, vector<64x8xf32> -> vector<64x8xf32>
    %c0_90 = arith.constant 0 : index
    %c0_91 = arith.constant 0 : index
    %268 = vector.load %arg20[%c0_90, %c0_91] : memref<64x128xf32, #tpu.memory_space<vmem>>, vector<64x8xf32>
    tpu.vector_store %arg20[%c0_90, %c0_91], %267 {strides = array<i32>} : memref<64x128xf32, #tpu.memory_space<vmem>>, vector<64x8xf32>,
    %269 = vector.extract_strided_slice %243 {offsets = [0, 1], sizes = [64, 1], strides = [1, 1]} : vector<64x8xf32> to vector<64x1xf32>
    %270 = vector.extract_strided_slice %241 {offsets = [1, 0], sizes = [1, 64], strides = [1, 1]} : vector<8x64xf32> to vector<1x64xf32>
    %271 = vector.broadcast %269 : vector<64x1xf32> to vector<64x64xf32>
    %272 = vector.broadcast %270 : vector<1x64xf32> to vector<64x64xf32>
    %273 = arith.addf %271, %272 : vector<64x64xf32>
    %cst_92 = arith.constant 0.000000e+00 : f32
    %274 = vector.broadcast %cst_92 : f32 to vector<64x64xf32>
    %275 = arith.cmpf ogt, %273, %274 : vector<64x64xf32>
    %cst_93 = arith.constant 2.000000e-01 : f32
    %276 = vector.broadcast %cst_93 : f32 to vector<64x64xf32>
    %277 = arith.mulf %276, %273 : vector<64x64xf32>
    %278 = arith.select %275, %273, %277 : vector<64x64xi1>, vector<64x64xf32>
    %279 = arith.addf %278, %3 : vector<64x64xf32>
    %cst_94 = arith.constant dense<0xFF800000> : vector<64xf32>
    %280 = vector.multi_reduction <maximumf>, %279, %cst_94 [1] : vector<64x64xf32> to vector<64xf32>
    %281 = vector.shape_cast %280 : vector<64xf32> to vector<64x1xf32>
    %282 = vector.broadcast %281 : vector<64x1xf32> to vector<64x64xf32>
    %283 = arith.subf %279, %282 : vector<64x64xf32>
    %284 = math.exp %283 : vector<64x64xf32>
    %cst_95 = arith.constant dense<0.000000e+00> : vector<64xf32>
    %285 = vector.multi_reduction <add>, %284, %cst_95 [1] : vector<64x64xf32> to vector<64xf32>
    %286 = vector.shape_cast %285 : vector<64xf32> to vector<64x1xf32>
    %287 = tpu.reciprocal %286 {approx = true} : vector<64x1xf32> -> vector<64x1xf32>
    %288 = vector.broadcast %287 : vector<64x1xf32> to vector<64x64xf32>
    %289 = arith.mulf %284, %288 : vector<64x64xf32>
    %290 = vector.extract_strided_slice %239 {offsets = [0, 8], sizes = [64, 8], strides = [1, 1]} : vector<64x128xbf16> to vector<64x8xbf16>
    %291 = arith.truncf %289 : vector<64x64xf32> to vector<64x64xbf16>
    %cst_96 = arith.constant dense<0.000000e+00> : vector<64x8xf32>
    %292 = tpu.matmul %291, %290, %cst_96 {dimension_numbers = #tpu.dot_dimension_numbers<[1], [0], [0], [1], [0, 0, 1, 1], [], []>} : vector<64x64xbf16>, vector<64x8xbf16>, vector<64x8xf32> -> vector<64x8xf32>
    %c0_97 = arith.constant 0 : index
    %c8_98 = arith.constant 8 : index
    %293 = vector.load %arg20[%c0_97, %c8_98] : memref<64x128xf32, #tpu.memory_space<vmem>>, vector<64x8xf32>
    tpu.vector_store %arg20[%c0_97, %c8_98], %292 {strides = array<i32>} : memref<64x128xf32, #tpu.memory_space<vmem>>, vector<64x8xf32>,
    %294 = vector.extract_strided_slice %243 {offsets = [0, 2], sizes = [64, 1], strides = [1, 1]} : vector<64x8xf32> to vector<64x1xf32>
    %295 = vector.extract_strided_slice %241 {offsets = [2, 0], sizes = [1, 64], strides = [1, 1]} : vector<8x64xf32> to vector<1x64xf32>
    %296 = vector.broadcast %294 : vector<64x1xf32> to vector<64x64xf32>
    %297 = vector.broadcast %295 : vector<1x64xf32> to vector<64x64xf32>
    %298 = arith.addf %296, %297 : vector<64x64xf32>
    %cst_99 = arith.constant 0.000000e+00 : f32
    %299 = vector.broadcast %cst_99 : f32 to vector<64x64xf32>
    %300 = arith.cmpf ogt, %298, %299 : vector<64x64xf32>
    %cst_100 = arith.constant 2.000000e-01 : f32
    %301 = vector.broadcast %cst_100 : f32 to vector<64x64xf32>
    %302 = arith.mulf %301, %298 : vector<64x64xf32>
    %303 = arith.select %300, %298, %302 : vector<64x64xi1>, vector<64x64xf32>
    %304 = arith.addf %303, %3 : vector<64x64xf32>
    %cst_101 = arith.constant dense<0xFF800000> : vector<64xf32>
    %305 = vector.multi_reduction <maximumf>, %304, %cst_101 [1] : vector<64x64xf32> to vector<64xf32>
    %306 = vector.shape_cast %305 : vector<64xf32> to vector<64x1xf32>
    %307 = vector.broadcast %306 : vector<64x1xf32> to vector<64x64xf32>
    %308 = arith.subf %304, %307 : vector<64x64xf32>
    %309 = math.exp %308 : vector<64x64xf32>
    %cst_102 = arith.constant dense<0.000000e+00> : vector<64xf32>
    %310 = vector.multi_reduction <add>, %309, %cst_102 [1] : vector<64x64xf32> to vector<64xf32>
    %311 = vector.shape_cast %310 : vector<64xf32> to vector<64x1xf32>
    %312 = tpu.reciprocal %311 {approx = true} : vector<64x1xf32> -> vector<64x1xf32>
    %313 = vector.broadcast %312 : vector<64x1xf32> to vector<64x64xf32>
    %314 = arith.mulf %309, %313 : vector<64x64xf32>
    %315 = vector.extract_strided_slice %239 {offsets = [0, 16], sizes = [64, 8], strides = [1, 1]} : vector<64x128xbf16> to vector<64x8xbf16>
    %316 = arith.truncf %314 : vector<64x64xf32> to vector<64x64xbf16>
    %cst_103 = arith.constant dense<0.000000e+00> : vector<64x8xf32>
    %317 = tpu.matmul %316, %315, %cst_103 {dimension_numbers = #tpu.dot_dimension_numbers<[1], [0], [0], [1], [0, 0, 1, 1], [], []>} : vector<64x64xbf16>, vector<64x8xbf16>, vector<64x8xf32> -> vector<64x8xf32>
    %c0_104 = arith.constant 0 : index
    %c16_105 = arith.constant 16 : index
    %318 = vector.load %arg20[%c0_104, %c16_105] : memref<64x128xf32, #tpu.memory_space<vmem>>, vector<64x8xf32>
    tpu.vector_store %arg20[%c0_104, %c16_105], %317 {strides = array<i32>} : memref<64x128xf32, #tpu.memory_space<vmem>>, vector<64x8xf32>,
    %319 = vector.extract_strided_slice %243 {offsets = [0, 3], sizes = [64, 1], strides = [1, 1]} : vector<64x8xf32> to vector<64x1xf32>
    %320 = vector.extract_strided_slice %241 {offsets = [3, 0], sizes = [1, 64], strides = [1, 1]} : vector<8x64xf32> to vector<1x64xf32>
    %321 = vector.broadcast %319 : vector<64x1xf32> to vector<64x64xf32>
    %322 = vector.broadcast %320 : vector<1x64xf32> to vector<64x64xf32>
    %323 = arith.addf %321, %322 : vector<64x64xf32>
    %cst_106 = arith.constant 0.000000e+00 : f32
    %324 = vector.broadcast %cst_106 : f32 to vector<64x64xf32>
    %325 = arith.cmpf ogt, %323, %324 : vector<64x64xf32>
    %cst_107 = arith.constant 2.000000e-01 : f32
    %326 = vector.broadcast %cst_107 : f32 to vector<64x64xf32>
    %327 = arith.mulf %326, %323 : vector<64x64xf32>
    %328 = arith.select %325, %323, %327 : vector<64x64xi1>, vector<64x64xf32>
    %329 = arith.addf %328, %3 : vector<64x64xf32>
    %cst_108 = arith.constant dense<0xFF800000> : vector<64xf32>
    %330 = vector.multi_reduction <maximumf>, %329, %cst_108 [1] : vector<64x64xf32> to vector<64xf32>
    %331 = vector.shape_cast %330 : vector<64xf32> to vector<64x1xf32>
    %332 = vector.broadcast %331 : vector<64x1xf32> to vector<64x64xf32>
    %333 = arith.subf %329, %332 : vector<64x64xf32>
    %334 = math.exp %333 : vector<64x64xf32>
    %cst_109 = arith.constant dense<0.000000e+00> : vector<64xf32>
    %335 = vector.multi_reduction <add>, %334, %cst_109 [1] : vector<64x64xf32> to vector<64xf32>
    %336 = vector.shape_cast %335 : vector<64xf32> to vector<64x1xf32>
    %337 = tpu.reciprocal %336 {approx = true} : vector<64x1xf32> -> vector<64x1xf32>
    %338 = vector.broadcast %337 : vector<64x1xf32> to vector<64x64xf32>
    %339 = arith.mulf %334, %338 : vector<64x64xf32>
    %340 = vector.extract_strided_slice %239 {offsets = [0, 24], sizes = [64, 8], strides = [1, 1]} : vector<64x128xbf16> to vector<64x8xbf16>
    %341 = arith.truncf %339 : vector<64x64xf32> to vector<64x64xbf16>
    %cst_110 = arith.constant dense<0.000000e+00> : vector<64x8xf32>
    %342 = tpu.matmul %341, %340, %cst_110 {dimension_numbers = #tpu.dot_dimension_numbers<[1], [0], [0], [1], [0, 0, 1, 1], [], []>} : vector<64x64xbf16>, vector<64x8xbf16>, vector<64x8xf32> -> vector<64x8xf32>
    %c0_111 = arith.constant 0 : index
    %c24_112 = arith.constant 24 : index
    %343 = vector.load %arg20[%c0_111, %c24_112] : memref<64x128xf32, #tpu.memory_space<vmem>>, vector<64x8xf32>
    tpu.vector_store %arg20[%c0_111, %c24_112], %342 {strides = array<i32>} : memref<64x128xf32, #tpu.memory_space<vmem>>, vector<64x8xf32>,
    %344 = vector.extract_strided_slice %243 {offsets = [0, 4], sizes = [64, 1], strides = [1, 1]} : vector<64x8xf32> to vector<64x1xf32>
    %345 = vector.extract_strided_slice %241 {offsets = [4, 0], sizes = [1, 64], strides = [1, 1]} : vector<8x64xf32> to vector<1x64xf32>
    %346 = vector.broadcast %344 : vector<64x1xf32> to vector<64x64xf32>
    %347 = vector.broadcast %345 : vector<1x64xf32> to vector<64x64xf32>
    %348 = arith.addf %346, %347 : vector<64x64xf32>
    %cst_113 = arith.constant 0.000000e+00 : f32
    %349 = vector.broadcast %cst_113 : f32 to vector<64x64xf32>
    %350 = arith.cmpf ogt, %348, %349 : vector<64x64xf32>
    %cst_114 = arith.constant 2.000000e-01 : f32
    %351 = vector.broadcast %cst_114 : f32 to vector<64x64xf32>
    %352 = arith.mulf %351, %348 : vector<64x64xf32>
    %353 = arith.select %350, %348, %352 : vector<64x64xi1>, vector<64x64xf32>
    %354 = arith.addf %353, %3 : vector<64x64xf32>
    %cst_115 = arith.constant dense<0xFF800000> : vector<64xf32>
    %355 = vector.multi_reduction <maximumf>, %354, %cst_115 [1] : vector<64x64xf32> to vector<64xf32>
    %356 = vector.shape_cast %355 : vector<64xf32> to vector<64x1xf32>
    %357 = vector.broadcast %356 : vector<64x1xf32> to vector<64x64xf32>
    %358 = arith.subf %354, %357 : vector<64x64xf32>
    %359 = math.exp %358 : vector<64x64xf32>
    %cst_116 = arith.constant dense<0.000000e+00> : vector<64xf32>
    %360 = vector.multi_reduction <add>, %359, %cst_116 [1] : vector<64x64xf32> to vector<64xf32>
    %361 = vector.shape_cast %360 : vector<64xf32> to vector<64x1xf32>
    %362 = tpu.reciprocal %361 {approx = true} : vector<64x1xf32> -> vector<64x1xf32>
    %363 = vector.broadcast %362 : vector<64x1xf32> to vector<64x64xf32>
    %364 = arith.mulf %359, %363 : vector<64x64xf32>
    %365 = vector.extract_strided_slice %239 {offsets = [0, 32], sizes = [64, 8], strides = [1, 1]} : vector<64x128xbf16> to vector<64x8xbf16>
    %366 = arith.truncf %364 : vector<64x64xf32> to vector<64x64xbf16>
    %cst_117 = arith.constant dense<0.000000e+00> : vector<64x8xf32>
    %367 = tpu.matmul %366, %365, %cst_117 {dimension_numbers = #tpu.dot_dimension_numbers<[1], [0], [0], [1], [0, 0, 1, 1], [], []>} : vector<64x64xbf16>, vector<64x8xbf16>, vector<64x8xf32> -> vector<64x8xf32>
    %c0_118 = arith.constant 0 : index
    %c32_119 = arith.constant 32 : index
    %368 = vector.load %arg20[%c0_118, %c32_119] : memref<64x128xf32, #tpu.memory_space<vmem>>, vector<64x8xf32>
    tpu.vector_store %arg20[%c0_118, %c32_119], %367 {strides = array<i32>} : memref<64x128xf32, #tpu.memory_space<vmem>>, vector<64x8xf32>,
    %369 = vector.extract_strided_slice %243 {offsets = [0, 5], sizes = [64, 1], strides = [1, 1]} : vector<64x8xf32> to vector<64x1xf32>
    %370 = vector.extract_strided_slice %241 {offsets = [5, 0], sizes = [1, 64], strides = [1, 1]} : vector<8x64xf32> to vector<1x64xf32>
    %371 = vector.broadcast %369 : vector<64x1xf32> to vector<64x64xf32>
    %372 = vector.broadcast %370 : vector<1x64xf32> to vector<64x64xf32>
    %373 = arith.addf %371, %372 : vector<64x64xf32>
    %cst_120 = arith.constant 0.000000e+00 : f32
    %374 = vector.broadcast %cst_120 : f32 to vector<64x64xf32>
    %375 = arith.cmpf ogt, %373, %374 : vector<64x64xf32>
    %cst_121 = arith.constant 2.000000e-01 : f32
    %376 = vector.broadcast %cst_121 : f32 to vector<64x64xf32>
    %377 = arith.mulf %376, %373 : vector<64x64xf32>
    %378 = arith.select %375, %373, %377 : vector<64x64xi1>, vector<64x64xf32>
    %379 = arith.addf %378, %3 : vector<64x64xf32>
    %cst_122 = arith.constant dense<0xFF800000> : vector<64xf32>
    %380 = vector.multi_reduction <maximumf>, %379, %cst_122 [1] : vector<64x64xf32> to vector<64xf32>
    %381 = vector.shape_cast %380 : vector<64xf32> to vector<64x1xf32>
    %382 = vector.broadcast %381 : vector<64x1xf32> to vector<64x64xf32>
    %383 = arith.subf %379, %382 : vector<64x64xf32>
    %384 = math.exp %383 : vector<64x64xf32>
    %cst_123 = arith.constant dense<0.000000e+00> : vector<64xf32>
    %385 = vector.multi_reduction <add>, %384, %cst_123 [1] : vector<64x64xf32> to vector<64xf32>
    %386 = vector.shape_cast %385 : vector<64xf32> to vector<64x1xf32>
    %387 = tpu.reciprocal %386 {approx = true} : vector<64x1xf32> -> vector<64x1xf32>
    %388 = vector.broadcast %387 : vector<64x1xf32> to vector<64x64xf32>
    %389 = arith.mulf %384, %388 : vector<64x64xf32>
    %390 = vector.extract_strided_slice %239 {offsets = [0, 40], sizes = [64, 8], strides = [1, 1]} : vector<64x128xbf16> to vector<64x8xbf16>
    %391 = arith.truncf %389 : vector<64x64xf32> to vector<64x64xbf16>
    %cst_124 = arith.constant dense<0.000000e+00> : vector<64x8xf32>
    %392 = tpu.matmul %391, %390, %cst_124 {dimension_numbers = #tpu.dot_dimension_numbers<[1], [0], [0], [1], [0, 0, 1, 1], [], []>} : vector<64x64xbf16>, vector<64x8xbf16>, vector<64x8xf32> -> vector<64x8xf32>
    %c0_125 = arith.constant 0 : index
    %c40_126 = arith.constant 40 : index
    %393 = vector.load %arg20[%c0_125, %c40_126] : memref<64x128xf32, #tpu.memory_space<vmem>>, vector<64x8xf32>
    tpu.vector_store %arg20[%c0_125, %c40_126], %392 {strides = array<i32>} : memref<64x128xf32, #tpu.memory_space<vmem>>, vector<64x8xf32>,
    %394 = vector.extract_strided_slice %243 {offsets = [0, 6], sizes = [64, 1], strides = [1, 1]} : vector<64x8xf32> to vector<64x1xf32>
    %395 = vector.extract_strided_slice %241 {offsets = [6, 0], sizes = [1, 64], strides = [1, 1]} : vector<8x64xf32> to vector<1x64xf32>
    %396 = vector.broadcast %394 : vector<64x1xf32> to vector<64x64xf32>
    %397 = vector.broadcast %395 : vector<1x64xf32> to vector<64x64xf32>
    %398 = arith.addf %396, %397 : vector<64x64xf32>
    %cst_127 = arith.constant 0.000000e+00 : f32
    %399 = vector.broadcast %cst_127 : f32 to vector<64x64xf32>
    %400 = arith.cmpf ogt, %398, %399 : vector<64x64xf32>
    %cst_128 = arith.constant 2.000000e-01 : f32
    %401 = vector.broadcast %cst_128 : f32 to vector<64x64xf32>
    %402 = arith.mulf %401, %398 : vector<64x64xf32>
    %403 = arith.select %400, %398, %402 : vector<64x64xi1>, vector<64x64xf32>
    %404 = arith.addf %403, %3 : vector<64x64xf32>
    %cst_129 = arith.constant dense<0xFF800000> : vector<64xf32>
    %405 = vector.multi_reduction <maximumf>, %404, %cst_129 [1] : vector<64x64xf32> to vector<64xf32>
    %406 = vector.shape_cast %405 : vector<64xf32> to vector<64x1xf32>
    %407 = vector.broadcast %406 : vector<64x1xf32> to vector<64x64xf32>
    %408 = arith.subf %404, %407 : vector<64x64xf32>
    %409 = math.exp %408 : vector<64x64xf32>
    %cst_130 = arith.constant dense<0.000000e+00> : vector<64xf32>
    %410 = vector.multi_reduction <add>, %409, %cst_130 [1] : vector<64x64xf32> to vector<64xf32>
    %411 = vector.shape_cast %410 : vector<64xf32> to vector<64x1xf32>
    %412 = tpu.reciprocal %411 {approx = true} : vector<64x1xf32> -> vector<64x1xf32>
    %413 = vector.broadcast %412 : vector<64x1xf32> to vector<64x64xf32>
    %414 = arith.mulf %409, %413 : vector<64x64xf32>
    %415 = vector.extract_strided_slice %239 {offsets = [0, 48], sizes = [64, 8], strides = [1, 1]} : vector<64x128xbf16> to vector<64x8xbf16>
    %416 = arith.truncf %414 : vector<64x64xf32> to vector<64x64xbf16>
    %cst_131 = arith.constant dense<0.000000e+00> : vector<64x8xf32>
    %417 = tpu.matmul %416, %415, %cst_131 {dimension_numbers = #tpu.dot_dimension_numbers<[1], [0], [0], [1], [0, 0, 1, 1], [], []>} : vector<64x64xbf16>, vector<64x8xbf16>, vector<64x8xf32> -> vector<64x8xf32>
    %c0_132 = arith.constant 0 : index
    %c48_133 = arith.constant 48 : index
    %418 = vector.load %arg20[%c0_132, %c48_133] : memref<64x128xf32, #tpu.memory_space<vmem>>, vector<64x8xf32>
    tpu.vector_store %arg20[%c0_132, %c48_133], %417 {strides = array<i32>} : memref<64x128xf32, #tpu.memory_space<vmem>>, vector<64x8xf32>,
    %419 = vector.extract_strided_slice %243 {offsets = [0, 7], sizes = [64, 1], strides = [1, 1]} : vector<64x8xf32> to vector<64x1xf32>
    %420 = vector.extract_strided_slice %241 {offsets = [7, 0], sizes = [1, 64], strides = [1, 1]} : vector<8x64xf32> to vector<1x64xf32>
    %421 = vector.broadcast %419 : vector<64x1xf32> to vector<64x64xf32>
    %422 = vector.broadcast %420 : vector<1x64xf32> to vector<64x64xf32>
    %423 = arith.addf %421, %422 : vector<64x64xf32>
    %cst_134 = arith.constant 0.000000e+00 : f32
    %424 = vector.broadcast %cst_134 : f32 to vector<64x64xf32>
    %425 = arith.cmpf ogt, %423, %424 : vector<64x64xf32>
    %cst_135 = arith.constant 2.000000e-01 : f32
    %426 = vector.broadcast %cst_135 : f32 to vector<64x64xf32>
    %427 = arith.mulf %426, %423 : vector<64x64xf32>
    %428 = arith.select %425, %423, %427 : vector<64x64xi1>, vector<64x64xf32>
    %429 = arith.addf %428, %3 : vector<64x64xf32>
    %cst_136 = arith.constant dense<0xFF800000> : vector<64xf32>
    %430 = vector.multi_reduction <maximumf>, %429, %cst_136 [1] : vector<64x64xf32> to vector<64xf32>
    %431 = vector.shape_cast %430 : vector<64xf32> to vector<64x1xf32>
    %432 = vector.broadcast %431 : vector<64x1xf32> to vector<64x64xf32>
    %433 = arith.subf %429, %432 : vector<64x64xf32>
    %434 = math.exp %433 : vector<64x64xf32>
    %cst_137 = arith.constant dense<0.000000e+00> : vector<64xf32>
    %435 = vector.multi_reduction <add>, %434, %cst_137 [1] : vector<64x64xf32> to vector<64xf32>
    %436 = vector.shape_cast %435 : vector<64xf32> to vector<64x1xf32>
    %437 = tpu.reciprocal %436 {approx = true} : vector<64x1xf32> -> vector<64x1xf32>
    %438 = vector.broadcast %437 : vector<64x1xf32> to vector<64x64xf32>
    %439 = arith.mulf %434, %438 : vector<64x64xf32>
    %440 = vector.extract_strided_slice %239 {offsets = [0, 56], sizes = [64, 8], strides = [1, 1]} : vector<64x128xbf16> to vector<64x8xbf16>
    %441 = arith.truncf %439 : vector<64x64xf32> to vector<64x64xbf16>
    %cst_138 = arith.constant dense<0.000000e+00> : vector<64x8xf32>
    %442 = tpu.matmul %441, %440, %cst_138 {dimension_numbers = #tpu.dot_dimension_numbers<[1], [0], [0], [1], [0, 0, 1, 1], [], []>} : vector<64x64xbf16>, vector<64x8xbf16>, vector<64x8xf32> -> vector<64x8xf32>
    %c0_139 = arith.constant 0 : index
    %c56_140 = arith.constant 56 : index
    %443 = vector.load %arg20[%c0_139, %c56_140] : memref<64x128xf32, #tpu.memory_space<vmem>>, vector<64x8xf32>
    tpu.vector_store %arg20[%c0_139, %c56_140], %442 {strides = array<i32>} : memref<64x128xf32, #tpu.memory_space<vmem>>, vector<64x8xf32>,
    %c0_141 = arith.constant 0 : index
    %c0_142 = arith.constant 0 : index
    %444 = vector.load %arg20[%c0_141, %c0_142] : memref<64x128xf32, #tpu.memory_space<vmem>>, vector<64x128xf32>
    %445 = vector.broadcast %235 : vector<1x128xf32> to vector<64x128xf32>
    %446 = arith.addf %444, %445 : vector<64x128xf32>
    %cst_143 = arith.constant 0.000000e+00 : f32
    %447 = vector.broadcast %cst_143 : f32 to vector<64x128xf32>
    %448 = arith.cmpf ogt, %446, %447 : vector<64x128xf32>
    %cst_144 = arith.constant 0.000000e+00 : f32
    %449 = vector.broadcast %cst_144 : f32 to vector<64x128xf32>
    %450 = arith.minimumf %446, %449 : vector<64x128xf32>
    %451 = math.exp %450 : vector<64x128xf32>
    %cst_145 = arith.constant 1.000000e+00 : f32
    %452 = vector.broadcast %cst_145 : f32 to vector<64x128xf32>
    %453 = arith.subf %451, %452 : vector<64x128xf32>
    %454 = arith.select %448, %446, %453 : vector<64x128xi1>, vector<64x128xf32>
    %455 = arith.addf %227, %454 : vector<64x128xf32>
    %c0_146 = arith.constant 0 : index
    %c0_147 = arith.constant 0 : index
    %c0_148 = arith.constant 0 : index
    %456 = vector.load %arg11[%c0_146, %c0_147, %c0_148] : memref<2x1x128xf32, #tpu.memory_space<vmem>>, vector<1x1x128xf32>
    %457 = vector.shape_cast %456 : vector<1x1x128xf32> to vector<1x128xf32>
    %c0_149 = arith.constant 0 : index
    %c0_150 = arith.constant 0 : index
    %c0_151 = arith.constant 0 : index
    %458 = vector.load %arg12[%c0_149, %c0_150, %c0_151] : memref<2x1x128xf32, #tpu.memory_space<vmem>>, vector<1x1x128xf32>
    %459 = vector.shape_cast %458 : vector<1x1x128xf32> to vector<1x128xf32>
    %cst_152 = arith.constant dense<0.000000e+00> : vector<64xf32>
    %460 = vector.multi_reduction <add>, %455, %cst_152 [1] : vector<64x128xf32> to vector<64xf32>
    %461 = vector.shape_cast %460 : vector<64xf32> to vector<64x1xf32>
    %462 = arith.mulf %455, %455 : vector<64x128xf32>
    %cst_153 = arith.constant dense<0.000000e+00> : vector<64xf32>
    %463 = vector.multi_reduction <add>, %462, %cst_153 [1] : vector<64x128xf32> to vector<64xf32>
    %464 = vector.shape_cast %463 : vector<64xf32> to vector<64x1xf32>
    %cst_154 = arith.constant 1.562500e-02 : f32
    %465 = vector.broadcast %cst_154 : f32 to vector<64x1xf32>
    %466 = arith.mulf %461, %465 : vector<64x1xf32>
    %cst_155 = arith.constant 1.562500e-02 : f32
    %467 = vector.broadcast %cst_155 : f32 to vector<64x1xf32>
    %468 = arith.mulf %464, %467 : vector<64x1xf32>
    %469 = arith.mulf %466, %466 : vector<64x1xf32>
    %470 = arith.subf %468, %469 : vector<64x1xf32>
    %cst_156 = arith.constant 9.99999974E-6 : f32
    %471 = vector.broadcast %cst_156 : f32 to vector<64x1xf32>
    %472 = arith.addf %470, %471 : vector<64x1xf32>
    %473 = math.rsqrt %472 : vector<64x1xf32>
    %474 = vector.broadcast %466 : vector<64x1xf32> to vector<64x128xf32>
    %475 = arith.subf %455, %474 : vector<64x128xf32>
    %476 = vector.broadcast %473 : vector<64x1xf32> to vector<64x128xf32>
    %477 = arith.mulf %475, %476 : vector<64x128xf32>
    %478 = vector.broadcast %457 : vector<1x128xf32> to vector<64x128xf32>
    %479 = arith.mulf %477, %478 : vector<64x128xf32>
    %480 = vector.broadcast %459 : vector<1x128xf32> to vector<64x128xf32>
    %481 = arith.addf %479, %480 : vector<64x128xf32>
    %482 = arith.truncf %481 : vector<64x128xf32> to vector<64x128xbf16>
    %c0_157 = arith.constant 0 : index
    %c0_158 = arith.constant 0 : index
    %c0_159 = arith.constant 0 : index
    %483 = vector.load %arg13[%c0_157, %c0_158, %c0_159] : memref<2x128x128xf32, #tpu.memory_space<vmem>>, vector<1x128x128xf32>
    %484 = vector.shape_cast %483 : vector<1x128x128xf32> to vector<128x128xf32>
    %485 = arith.truncf %484 : vector<128x128xf32> to vector<128x128xbf16>
    %cst_160 = arith.constant dense<0.000000e+00> : vector<64x128xf32>
    %486 = tpu.matmul %482, %485, %cst_160 {dimension_numbers = #tpu.dot_dimension_numbers<[1], [0], [0], [1], [0, 0, 1, 1], [], []>} : vector<64x128xbf16>, vector<128x128xbf16>, vector<64x128xf32> -> vector<64x128xf32>
    %c0_161 = arith.constant 0 : index
    %c0_162 = arith.constant 0 : index
    %c0_163 = arith.constant 0 : index
    %487 = vector.load %arg14[%c0_161, %c0_162, %c0_163] : memref<2x1x128xf32, #tpu.memory_space<vmem>>, vector<1x1x128xf32>
    %488 = vector.shape_cast %487 : vector<1x1x128xf32> to vector<1x128xf32>
    %489 = vector.broadcast %488 : vector<1x128xf32> to vector<64x128xf32>
    %490 = arith.addf %486, %489 : vector<64x128xf32>
    %cst_164 = arith.constant 0.000000e+00 : f32
    %491 = vector.broadcast %cst_164 : f32 to vector<64x128xf32>
    %492 = arith.maximumf %490, %491 : vector<64x128xf32>
    %493 = arith.truncf %492 : vector<64x128xf32> to vector<64x128xbf16>
    %c0_165 = arith.constant 0 : index
    %c0_166 = arith.constant 0 : index
    %c0_167 = arith.constant 0 : index
    %494 = vector.load %arg15[%c0_165, %c0_166, %c0_167] : memref<2x128x128xf32, #tpu.memory_space<vmem>>, vector<1x128x128xf32>
    %495 = vector.shape_cast %494 : vector<1x128x128xf32> to vector<128x128xf32>
    %496 = arith.truncf %495 : vector<128x128xf32> to vector<128x128xbf16>
    %cst_168 = arith.constant dense<0.000000e+00> : vector<64x128xf32>
    %497 = tpu.matmul %493, %496, %cst_168 {dimension_numbers = #tpu.dot_dimension_numbers<[1], [0], [0], [1], [0, 0, 1, 1], [], []>} : vector<64x128xbf16>, vector<128x128xbf16>, vector<64x128xf32> -> vector<64x128xf32>
    %c0_169 = arith.constant 0 : index
    %c0_170 = arith.constant 0 : index
    %c0_171 = arith.constant 0 : index
    %498 = vector.load %arg16[%c0_169, %c0_170, %c0_171] : memref<2x1x128xf32, #tpu.memory_space<vmem>>, vector<1x1x128xf32>
    %499 = vector.shape_cast %498 : vector<1x1x128xf32> to vector<1x128xf32>
    %500 = vector.broadcast %499 : vector<1x128xf32> to vector<64x128xf32>
    %501 = arith.addf %497, %500 : vector<64x128xf32>
    %502 = arith.addf %481, %501 : vector<64x128xf32>
    %c0_172 = arith.constant 0 : index
    %c0_173 = arith.constant 0 : index
    %c0_174 = arith.constant 0 : index
    %503 = vector.load %arg17[%c0_172, %c0_173, %c0_174] : memref<2x1x128xf32, #tpu.memory_space<vmem>>, vector<1x1x128xf32>
    %504 = vector.shape_cast %503 : vector<1x1x128xf32> to vector<1x128xf32>
    %c0_175 = arith.constant 0 : index
    %c0_176 = arith.constant 0 : index
    %c0_177 = arith.constant 0 : index
    %505 = vector.load %arg18[%c0_175, %c0_176, %c0_177] : memref<2x1x128xf32, #tpu.memory_space<vmem>>, vector<1x1x128xf32>
    %506 = vector.shape_cast %505 : vector<1x1x128xf32> to vector<1x128xf32>
    %cst_178 = arith.constant dense<0.000000e+00> : vector<64xf32>
    %507 = vector.multi_reduction <add>, %502, %cst_178 [1] : vector<64x128xf32> to vector<64xf32>
    %508 = vector.shape_cast %507 : vector<64xf32> to vector<64x1xf32>
    %509 = arith.mulf %502, %502 : vector<64x128xf32>
    %cst_179 = arith.constant dense<0.000000e+00> : vector<64xf32>
    %510 = vector.multi_reduction <add>, %509, %cst_179 [1] : vector<64x128xf32> to vector<64xf32>
    %511 = vector.shape_cast %510 : vector<64xf32> to vector<64x1xf32>
    %cst_180 = arith.constant 1.562500e-02 : f32
    %512 = vector.broadcast %cst_180 : f32 to vector<64x1xf32>
    %513 = arith.mulf %508, %512 : vector<64x1xf32>
    %cst_181 = arith.constant 1.562500e-02 : f32
    %514 = vector.broadcast %cst_181 : f32 to vector<64x1xf32>
    %515 = arith.mulf %511, %514 : vector<64x1xf32>
    %516 = arith.mulf %513, %513 : vector<64x1xf32>
    %517 = arith.subf %515, %516 : vector<64x1xf32>
    %cst_182 = arith.constant 9.99999974E-6 : f32
    %518 = vector.broadcast %cst_182 : f32 to vector<64x1xf32>
    %519 = arith.addf %517, %518 : vector<64x1xf32>
    %520 = math.rsqrt %519 : vector<64x1xf32>
    %521 = vector.broadcast %513 : vector<64x1xf32> to vector<64x128xf32>
    %522 = arith.subf %502, %521 : vector<64x128xf32>
    %523 = vector.broadcast %520 : vector<64x1xf32> to vector<64x128xf32>
    %524 = arith.mulf %522, %523 : vector<64x128xf32>
    %525 = vector.broadcast %504 : vector<1x128xf32> to vector<64x128xf32>
    %526 = arith.mulf %524, %525 : vector<64x128xf32>
    %527 = vector.broadcast %506 : vector<1x128xf32> to vector<64x128xf32>
    %528 = arith.addf %526, %527 : vector<64x128xf32>
    %c1 = arith.constant 1 : index
    %c0_183 = arith.constant 0 : index
    %c0_184 = arith.constant 0 : index
    %529 = vector.load %arg7[%c1, %c0_183, %c0_184] : memref<2x128x128xf32, #tpu.memory_space<vmem>>, vector<1x128x128xf32>
    %530 = vector.shape_cast %529 : vector<1x128x128xf32> to vector<128x128xf32>
    %c1_185 = arith.constant 1 : index
    %c0_186 = arith.constant 0 : index
    %c0_187 = arith.constant 0 : index
    %531 = vector.load %arg8[%c1_185, %c0_186, %c0_187] : memref<2x8x128xf32, #tpu.memory_space<vmem>>, vector<1x8x128xf32>
    %532 = vector.shape_cast %531 : vector<1x8x128xf32> to vector<8x128xf32>
    %c1_188 = arith.constant 1 : index
    %c0_189 = arith.constant 0 : index
    %c0_190 = arith.constant 0 : index
    %533 = vector.load %arg9[%c1_188, %c0_189, %c0_190] : memref<2x128x8xf32, #tpu.memory_space<vmem>>, vector<1x128x8xf32>
    %534 = vector.shape_cast %533 : vector<1x128x8xf32> to vector<128x8xf32>
    %c1_191 = arith.constant 1 : index
    %c0_192 = arith.constant 0 : index
    %c0_193 = arith.constant 0 : index
    %535 = vector.load %arg10[%c1_191, %c0_192, %c0_193] : memref<2x1x128xf32, #tpu.memory_space<vmem>>, vector<1x1x128xf32>
    %536 = vector.shape_cast %535 : vector<1x1x128xf32> to vector<1x128xf32>
    %537 = arith.truncf %528 : vector<64x128xf32> to vector<64x128xbf16>
    %538 = arith.truncf %530 : vector<128x128xf32> to vector<128x128xbf16>
    %cst_194 = arith.constant dense<0.000000e+00> : vector<64x128xf32>
    %539 = tpu.matmul %537, %538, %cst_194 {dimension_numbers = #tpu.dot_dimension_numbers<[1], [0], [0], [1], [0, 0, 1, 1], [], []>} : vector<64x128xbf16>, vector<128x128xbf16>, vector<64x128xf32> -> vector<64x128xf32>
    %540 = arith.truncf %539 : vector<64x128xf32> to vector<64x128xbf16>
    %541 = arith.truncf %532 : vector<8x128xf32> to vector<8x128xbf16>
    %cst_195 = arith.constant dense<0.000000e+00> : vector<8x64xf32>
    %542 = tpu.matmul %541, %540, %cst_195 {dimension_numbers = #tpu.dot_dimension_numbers<[1], [1], [0], [0], [0, 0, 1, 0], [], []>} : vector<8x128xbf16>, vector<64x128xbf16>, vector<8x64xf32> -> vector<8x64xf32>
    %543 = arith.truncf %534 : vector<128x8xf32> to vector<128x8xbf16>
    %cst_196 = arith.constant dense<0.000000e+00> : vector<64x8xf32>
    %544 = tpu.matmul %540, %543, %cst_196 {dimension_numbers = #tpu.dot_dimension_numbers<[1], [0], [0], [1], [0, 0, 1, 1], [], []>} : vector<64x128xbf16>, vector<128x8xbf16>, vector<64x8xf32> -> vector<64x8xf32>
    %545 = vector.extract_strided_slice %544 {offsets = [0, 0], sizes = [64, 1], strides = [1, 1]} : vector<64x8xf32> to vector<64x1xf32>
    %546 = vector.extract_strided_slice %542 {offsets = [0, 0], sizes = [1, 64], strides = [1, 1]} : vector<8x64xf32> to vector<1x64xf32>
    %547 = vector.broadcast %545 : vector<64x1xf32> to vector<64x64xf32>
    %548 = vector.broadcast %546 : vector<1x64xf32> to vector<64x64xf32>
    %549 = arith.addf %547, %548 : vector<64x64xf32>
    %cst_197 = arith.constant 0.000000e+00 : f32
    %550 = vector.broadcast %cst_197 : f32 to vector<64x64xf32>
    %551 = arith.cmpf ogt, %549, %550 : vector<64x64xf32>
    %cst_198 = arith.constant 2.000000e-01 : f32
    %552 = vector.broadcast %cst_198 : f32 to vector<64x64xf32>
    %553 = arith.mulf %552, %549 : vector<64x64xf32>
    %554 = arith.select %551, %549, %553 : vector<64x64xi1>, vector<64x64xf32>
    %555 = arith.addf %554, %3 : vector<64x64xf32>
    %cst_199 = arith.constant dense<0xFF800000> : vector<64xf32>
    %556 = vector.multi_reduction <maximumf>, %555, %cst_199 [1] : vector<64x64xf32> to vector<64xf32>
    %557 = vector.shape_cast %556 : vector<64xf32> to vector<64x1xf32>
    %558 = vector.broadcast %557 : vector<64x1xf32> to vector<64x64xf32>
    %559 = arith.subf %555, %558 : vector<64x64xf32>
    %560 = math.exp %559 : vector<64x64xf32>
    %cst_200 = arith.constant dense<0.000000e+00> : vector<64xf32>
    %561 = vector.multi_reduction <add>, %560, %cst_200 [1] : vector<64x64xf32> to vector<64xf32>
    %562 = vector.shape_cast %561 : vector<64xf32> to vector<64x1xf32>
    %563 = tpu.reciprocal %562 {approx = true} : vector<64x1xf32> -> vector<64x1xf32>
    %564 = vector.broadcast %563 : vector<64x1xf32> to vector<64x64xf32>
    %565 = arith.mulf %560, %564 : vector<64x64xf32>
    %566 = vector.extract_strided_slice %540 {offsets = [0, 0], sizes = [64, 8], strides = [1, 1]} : vector<64x128xbf16> to vector<64x8xbf16>
    %567 = arith.truncf %565 : vector<64x64xf32> to vector<64x64xbf16>
    %cst_201 = arith.constant dense<0.000000e+00> : vector<64x8xf32>
    %568 = tpu.matmul %567, %566, %cst_201 {dimension_numbers = #tpu.dot_dimension_numbers<[1], [0], [0], [1], [0, 0, 1, 1], [], []>} : vector<64x64xbf16>, vector<64x8xbf16>, vector<64x8xf32> -> vector<64x8xf32>
    %c0_202 = arith.constant 0 : index
    %c0_203 = arith.constant 0 : index
    %569 = vector.load %arg20[%c0_202, %c0_203] : memref<64x128xf32, #tpu.memory_space<vmem>>, vector<64x8xf32>
    tpu.vector_store %arg20[%c0_202, %c0_203], %568 {strides = array<i32>} : memref<64x128xf32, #tpu.memory_space<vmem>>, vector<64x8xf32>,
    %570 = vector.extract_strided_slice %544 {offsets = [0, 1], sizes = [64, 1], strides = [1, 1]} : vector<64x8xf32> to vector<64x1xf32>
    %571 = vector.extract_strided_slice %542 {offsets = [1, 0], sizes = [1, 64], strides = [1, 1]} : vector<8x64xf32> to vector<1x64xf32>
    %572 = vector.broadcast %570 : vector<64x1xf32> to vector<64x64xf32>
    %573 = vector.broadcast %571 : vector<1x64xf32> to vector<64x64xf32>
    %574 = arith.addf %572, %573 : vector<64x64xf32>
    %cst_204 = arith.constant 0.000000e+00 : f32
    %575 = vector.broadcast %cst_204 : f32 to vector<64x64xf32>
    %576 = arith.cmpf ogt, %574, %575 : vector<64x64xf32>
    %cst_205 = arith.constant 2.000000e-01 : f32
    %577 = vector.broadcast %cst_205 : f32 to vector<64x64xf32>
    %578 = arith.mulf %577, %574 : vector<64x64xf32>
    %579 = arith.select %576, %574, %578 : vector<64x64xi1>, vector<64x64xf32>
    %580 = arith.addf %579, %3 : vector<64x64xf32>
    %cst_206 = arith.constant dense<0xFF800000> : vector<64xf32>
    %581 = vector.multi_reduction <maximumf>, %580, %cst_206 [1] : vector<64x64xf32> to vector<64xf32>
    %582 = vector.shape_cast %581 : vector<64xf32> to vector<64x1xf32>
    %583 = vector.broadcast %582 : vector<64x1xf32> to vector<64x64xf32>
    %584 = arith.subf %580, %583 : vector<64x64xf32>
    %585 = math.exp %584 : vector<64x64xf32>
    %cst_207 = arith.constant dense<0.000000e+00> : vector<64xf32>
    %586 = vector.multi_reduction <add>, %585, %cst_207 [1] : vector<64x64xf32> to vector<64xf32>
    %587 = vector.shape_cast %586 : vector<64xf32> to vector<64x1xf32>
    %588 = tpu.reciprocal %587 {approx = true} : vector<64x1xf32> -> vector<64x1xf32>
    %589 = vector.broadcast %588 : vector<64x1xf32> to vector<64x64xf32>
    %590 = arith.mulf %585, %589 : vector<64x64xf32>
    %591 = vector.extract_strided_slice %540 {offsets = [0, 8], sizes = [64, 8], strides = [1, 1]} : vector<64x128xbf16> to vector<64x8xbf16>
    %592 = arith.truncf %590 : vector<64x64xf32> to vector<64x64xbf16>
    %cst_208 = arith.constant dense<0.000000e+00> : vector<64x8xf32>
    %593 = tpu.matmul %592, %591, %cst_208 {dimension_numbers = #tpu.dot_dimension_numbers<[1], [0], [0], [1], [0, 0, 1, 1], [], []>} : vector<64x64xbf16>, vector<64x8xbf16>, vector<64x8xf32> -> vector<64x8xf32>
    %c0_209 = arith.constant 0 : index
    %c8_210 = arith.constant 8 : index
    %594 = vector.load %arg20[%c0_209, %c8_210] : memref<64x128xf32, #tpu.memory_space<vmem>>, vector<64x8xf32>
    tpu.vector_store %arg20[%c0_209, %c8_210], %593 {strides = array<i32>} : memref<64x128xf32, #tpu.memory_space<vmem>>, vector<64x8xf32>,
    %595 = vector.extract_strided_slice %544 {offsets = [0, 2], sizes = [64, 1], strides = [1, 1]} : vector<64x8xf32> to vector<64x1xf32>
    %596 = vector.extract_strided_slice %542 {offsets = [2, 0], sizes = [1, 64], strides = [1, 1]} : vector<8x64xf32> to vector<1x64xf32>
    %597 = vector.broadcast %595 : vector<64x1xf32> to vector<64x64xf32>
    %598 = vector.broadcast %596 : vector<1x64xf32> to vector<64x64xf32>
    %599 = arith.addf %597, %598 : vector<64x64xf32>
    %cst_211 = arith.constant 0.000000e+00 : f32
    %600 = vector.broadcast %cst_211 : f32 to vector<64x64xf32>
    %601 = arith.cmpf ogt, %599, %600 : vector<64x64xf32>
    %cst_212 = arith.constant 2.000000e-01 : f32
    %602 = vector.broadcast %cst_212 : f32 to vector<64x64xf32>
    %603 = arith.mulf %602, %599 : vector<64x64xf32>
    %604 = arith.select %601, %599, %603 : vector<64x64xi1>, vector<64x64xf32>
    %605 = arith.addf %604, %3 : vector<64x64xf32>
    %cst_213 = arith.constant dense<0xFF800000> : vector<64xf32>
    %606 = vector.multi_reduction <maximumf>, %605, %cst_213 [1] : vector<64x64xf32> to vector<64xf32>
    %607 = vector.shape_cast %606 : vector<64xf32> to vector<64x1xf32>
    %608 = vector.broadcast %607 : vector<64x1xf32> to vector<64x64xf32>
    %609 = arith.subf %605, %608 : vector<64x64xf32>
    %610 = math.exp %609 : vector<64x64xf32>
    %cst_214 = arith.constant dense<0.000000e+00> : vector<64xf32>
    %611 = vector.multi_reduction <add>, %610, %cst_214 [1] : vector<64x64xf32> to vector<64xf32>
    %612 = vector.shape_cast %611 : vector<64xf32> to vector<64x1xf32>
    %613 = tpu.reciprocal %612 {approx = true} : vector<64x1xf32> -> vector<64x1xf32>
    %614 = vector.broadcast %613 : vector<64x1xf32> to vector<64x64xf32>
    %615 = arith.mulf %610, %614 : vector<64x64xf32>
    %616 = vector.extract_strided_slice %540 {offsets = [0, 16], sizes = [64, 8], strides = [1, 1]} : vector<64x128xbf16> to vector<64x8xbf16>
    %617 = arith.truncf %615 : vector<64x64xf32> to vector<64x64xbf16>
    %cst_215 = arith.constant dense<0.000000e+00> : vector<64x8xf32>
    %618 = tpu.matmul %617, %616, %cst_215 {dimension_numbers = #tpu.dot_dimension_numbers<[1], [0], [0], [1], [0, 0, 1, 1], [], []>} : vector<64x64xbf16>, vector<64x8xbf16>, vector<64x8xf32> -> vector<64x8xf32>
    %c0_216 = arith.constant 0 : index
    %c16_217 = arith.constant 16 : index
    %619 = vector.load %arg20[%c0_216, %c16_217] : memref<64x128xf32, #tpu.memory_space<vmem>>, vector<64x8xf32>
    tpu.vector_store %arg20[%c0_216, %c16_217], %618 {strides = array<i32>} : memref<64x128xf32, #tpu.memory_space<vmem>>, vector<64x8xf32>,
    %620 = vector.extract_strided_slice %544 {offsets = [0, 3], sizes = [64, 1], strides = [1, 1]} : vector<64x8xf32> to vector<64x1xf32>
    %621 = vector.extract_strided_slice %542 {offsets = [3, 0], sizes = [1, 64], strides = [1, 1]} : vector<8x64xf32> to vector<1x64xf32>
    %622 = vector.broadcast %620 : vector<64x1xf32> to vector<64x64xf32>
    %623 = vector.broadcast %621 : vector<1x64xf32> to vector<64x64xf32>
    %624 = arith.addf %622, %623 : vector<64x64xf32>
    %cst_218 = arith.constant 0.000000e+00 : f32
    %625 = vector.broadcast %cst_218 : f32 to vector<64x64xf32>
    %626 = arith.cmpf ogt, %624, %625 : vector<64x64xf32>
    %cst_219 = arith.constant 2.000000e-01 : f32
    %627 = vector.broadcast %cst_219 : f32 to vector<64x64xf32>
    %628 = arith.mulf %627, %624 : vector<64x64xf32>
    %629 = arith.select %626, %624, %628 : vector<64x64xi1>, vector<64x64xf32>
    %630 = arith.addf %629, %3 : vector<64x64xf32>
    %cst_220 = arith.constant dense<0xFF800000> : vector<64xf32>
    %631 = vector.multi_reduction <maximumf>, %630, %cst_220 [1] : vector<64x64xf32> to vector<64xf32>
    %632 = vector.shape_cast %631 : vector<64xf32> to vector<64x1xf32>
    %633 = vector.broadcast %632 : vector<64x1xf32> to vector<64x64xf32>
    %634 = arith.subf %630, %633 : vector<64x64xf32>
    %635 = math.exp %634 : vector<64x64xf32>
    %cst_221 = arith.constant dense<0.000000e+00> : vector<64xf32>
    %636 = vector.multi_reduction <add>, %635, %cst_221 [1] : vector<64x64xf32> to vector<64xf32>
    %637 = vector.shape_cast %636 : vector<64xf32> to vector<64x1xf32>
    %638 = tpu.reciprocal %637 {approx = true} : vector<64x1xf32> -> vector<64x1xf32>
    %639 = vector.broadcast %638 : vector<64x1xf32> to vector<64x64xf32>
    %640 = arith.mulf %635, %639 : vector<64x64xf32>
    %641 = vector.extract_strided_slice %540 {offsets = [0, 24], sizes = [64, 8], strides = [1, 1]} : vector<64x128xbf16> to vector<64x8xbf16>
    %642 = arith.truncf %640 : vector<64x64xf32> to vector<64x64xbf16>
    %cst_222 = arith.constant dense<0.000000e+00> : vector<64x8xf32>
    %643 = tpu.matmul %642, %641, %cst_222 {dimension_numbers = #tpu.dot_dimension_numbers<[1], [0], [0], [1], [0, 0, 1, 1], [], []>} : vector<64x64xbf16>, vector<64x8xbf16>, vector<64x8xf32> -> vector<64x8xf32>
    %c0_223 = arith.constant 0 : index
    %c24_224 = arith.constant 24 : index
    %644 = vector.load %arg20[%c0_223, %c24_224] : memref<64x128xf32, #tpu.memory_space<vmem>>, vector<64x8xf32>
    tpu.vector_store %arg20[%c0_223, %c24_224], %643 {strides = array<i32>} : memref<64x128xf32, #tpu.memory_space<vmem>>, vector<64x8xf32>,
    %645 = vector.extract_strided_slice %544 {offsets = [0, 4], sizes = [64, 1], strides = [1, 1]} : vector<64x8xf32> to vector<64x1xf32>
    %646 = vector.extract_strided_slice %542 {offsets = [4, 0], sizes = [1, 64], strides = [1, 1]} : vector<8x64xf32> to vector<1x64xf32>
    %647 = vector.broadcast %645 : vector<64x1xf32> to vector<64x64xf32>
    %648 = vector.broadcast %646 : vector<1x64xf32> to vector<64x64xf32>
    %649 = arith.addf %647, %648 : vector<64x64xf32>
    %cst_225 = arith.constant 0.000000e+00 : f32
    %650 = vector.broadcast %cst_225 : f32 to vector<64x64xf32>
    %651 = arith.cmpf ogt, %649, %650 : vector<64x64xf32>
    %cst_226 = arith.constant 2.000000e-01 : f32
    %652 = vector.broadcast %cst_226 : f32 to vector<64x64xf32>
    %653 = arith.mulf %652, %649 : vector<64x64xf32>
    %654 = arith.select %651, %649, %653 : vector<64x64xi1>, vector<64x64xf32>
    %655 = arith.addf %654, %3 : vector<64x64xf32>
    %cst_227 = arith.constant dense<0xFF800000> : vector<64xf32>
    %656 = vector.multi_reduction <maximumf>, %655, %cst_227 [1] : vector<64x64xf32> to vector<64xf32>
    %657 = vector.shape_cast %656 : vector<64xf32> to vector<64x1xf32>
    %658 = vector.broadcast %657 : vector<64x1xf32> to vector<64x64xf32>
    %659 = arith.subf %655, %658 : vector<64x64xf32>
    %660 = math.exp %659 : vector<64x64xf32>
    %cst_228 = arith.constant dense<0.000000e+00> : vector<64xf32>
    %661 = vector.multi_reduction <add>, %660, %cst_228 [1] : vector<64x64xf32> to vector<64xf32>
    %662 = vector.shape_cast %661 : vector<64xf32> to vector<64x1xf32>
    %663 = tpu.reciprocal %662 {approx = true} : vector<64x1xf32> -> vector<64x1xf32>
    %664 = vector.broadcast %663 : vector<64x1xf32> to vector<64x64xf32>
    %665 = arith.mulf %660, %664 : vector<64x64xf32>
    %666 = vector.extract_strided_slice %540 {offsets = [0, 32], sizes = [64, 8], strides = [1, 1]} : vector<64x128xbf16> to vector<64x8xbf16>
    %667 = arith.truncf %665 : vector<64x64xf32> to vector<64x64xbf16>
    %cst_229 = arith.constant dense<0.000000e+00> : vector<64x8xf32>
    %668 = tpu.matmul %667, %666, %cst_229 {dimension_numbers = #tpu.dot_dimension_numbers<[1], [0], [0], [1], [0, 0, 1, 1], [], []>} : vector<64x64xbf16>, vector<64x8xbf16>, vector<64x8xf32> -> vector<64x8xf32>
    %c0_230 = arith.constant 0 : index
    %c32_231 = arith.constant 32 : index
    %669 = vector.load %arg20[%c0_230, %c32_231] : memref<64x128xf32, #tpu.memory_space<vmem>>, vector<64x8xf32>
    tpu.vector_store %arg20[%c0_230, %c32_231], %668 {strides = array<i32>} : memref<64x128xf32, #tpu.memory_space<vmem>>, vector<64x8xf32>,
    %670 = vector.extract_strided_slice %544 {offsets = [0, 5], sizes = [64, 1], strides = [1, 1]} : vector<64x8xf32> to vector<64x1xf32>
    %671 = vector.extract_strided_slice %542 {offsets = [5, 0], sizes = [1, 64], strides = [1, 1]} : vector<8x64xf32> to vector<1x64xf32>
    %672 = vector.broadcast %670 : vector<64x1xf32> to vector<64x64xf32>
    %673 = vector.broadcast %671 : vector<1x64xf32> to vector<64x64xf32>
    %674 = arith.addf %672, %673 : vector<64x64xf32>
    %cst_232 = arith.constant 0.000000e+00 : f32
    %675 = vector.broadcast %cst_232 : f32 to vector<64x64xf32>
    %676 = arith.cmpf ogt, %674, %675 : vector<64x64xf32>
    %cst_233 = arith.constant 2.000000e-01 : f32
    %677 = vector.broadcast %cst_233 : f32 to vector<64x64xf32>
    %678 = arith.mulf %677, %674 : vector<64x64xf32>
    %679 = arith.select %676, %674, %678 : vector<64x64xi1>, vector<64x64xf32>
    %680 = arith.addf %679, %3 : vector<64x64xf32>
    %cst_234 = arith.constant dense<0xFF800000> : vector<64xf32>
    %681 = vector.multi_reduction <maximumf>, %680, %cst_234 [1] : vector<64x64xf32> to vector<64xf32>
    %682 = vector.shape_cast %681 : vector<64xf32> to vector<64x1xf32>
    %683 = vector.broadcast %682 : vector<64x1xf32> to vector<64x64xf32>
    %684 = arith.subf %680, %683 : vector<64x64xf32>
    %685 = math.exp %684 : vector<64x64xf32>
    %cst_235 = arith.constant dense<0.000000e+00> : vector<64xf32>
    %686 = vector.multi_reduction <add>, %685, %cst_235 [1] : vector<64x64xf32> to vector<64xf32>
    %687 = vector.shape_cast %686 : vector<64xf32> to vector<64x1xf32>
    %688 = tpu.reciprocal %687 {approx = true} : vector<64x1xf32> -> vector<64x1xf32>
    %689 = vector.broadcast %688 : vector<64x1xf32> to vector<64x64xf32>
    %690 = arith.mulf %685, %689 : vector<64x64xf32>
    %691 = vector.extract_strided_slice %540 {offsets = [0, 40], sizes = [64, 8], strides = [1, 1]} : vector<64x128xbf16> to vector<64x8xbf16>
    %692 = arith.truncf %690 : vector<64x64xf32> to vector<64x64xbf16>
    %cst_236 = arith.constant dense<0.000000e+00> : vector<64x8xf32>
    %693 = tpu.matmul %692, %691, %cst_236 {dimension_numbers = #tpu.dot_dimension_numbers<[1], [0], [0], [1], [0, 0, 1, 1], [], []>} : vector<64x64xbf16>, vector<64x8xbf16>, vector<64x8xf32> -> vector<64x8xf32>
    %c0_237 = arith.constant 0 : index
    %c40_238 = arith.constant 40 : index
    %694 = vector.load %arg20[%c0_237, %c40_238] : memref<64x128xf32, #tpu.memory_space<vmem>>, vector<64x8xf32>
    tpu.vector_store %arg20[%c0_237, %c40_238], %693 {strides = array<i32>} : memref<64x128xf32, #tpu.memory_space<vmem>>, vector<64x8xf32>,
    %695 = vector.extract_strided_slice %544 {offsets = [0, 6], sizes = [64, 1], strides = [1, 1]} : vector<64x8xf32> to vector<64x1xf32>
    %696 = vector.extract_strided_slice %542 {offsets = [6, 0], sizes = [1, 64], strides = [1, 1]} : vector<8x64xf32> to vector<1x64xf32>
    %697 = vector.broadcast %695 : vector<64x1xf32> to vector<64x64xf32>
    %698 = vector.broadcast %696 : vector<1x64xf32> to vector<64x64xf32>
    %699 = arith.addf %697, %698 : vector<64x64xf32>
    %cst_239 = arith.constant 0.000000e+00 : f32
    %700 = vector.broadcast %cst_239 : f32 to vector<64x64xf32>
    %701 = arith.cmpf ogt, %699, %700 : vector<64x64xf32>
    %cst_240 = arith.constant 2.000000e-01 : f32
    %702 = vector.broadcast %cst_240 : f32 to vector<64x64xf32>
    %703 = arith.mulf %702, %699 : vector<64x64xf32>
    %704 = arith.select %701, %699, %703 : vector<64x64xi1>, vector<64x64xf32>
    %705 = arith.addf %704, %3 : vector<64x64xf32>
    %cst_241 = arith.constant dense<0xFF800000> : vector<64xf32>
    %706 = vector.multi_reduction <maximumf>, %705, %cst_241 [1] : vector<64x64xf32> to vector<64xf32>
    %707 = vector.shape_cast %706 : vector<64xf32> to vector<64x1xf32>
    %708 = vector.broadcast %707 : vector<64x1xf32> to vector<64x64xf32>
    %709 = arith.subf %705, %708 : vector<64x64xf32>
    %710 = math.exp %709 : vector<64x64xf32>
    %cst_242 = arith.constant dense<0.000000e+00> : vector<64xf32>
    %711 = vector.multi_reduction <add>, %710, %cst_242 [1] : vector<64x64xf32> to vector<64xf32>
    %712 = vector.shape_cast %711 : vector<64xf32> to vector<64x1xf32>
    %713 = tpu.reciprocal %712 {approx = true} : vector<64x1xf32> -> vector<64x1xf32>
    %714 = vector.broadcast %713 : vector<64x1xf32> to vector<64x64xf32>
    %715 = arith.mulf %710, %714 : vector<64x64xf32>
    %716 = vector.extract_strided_slice %540 {offsets = [0, 48], sizes = [64, 8], strides = [1, 1]} : vector<64x128xbf16> to vector<64x8xbf16>
    %717 = arith.truncf %715 : vector<64x64xf32> to vector<64x64xbf16>
    %cst_243 = arith.constant dense<0.000000e+00> : vector<64x8xf32>
    %718 = tpu.matmul %717, %716, %cst_243 {dimension_numbers = #tpu.dot_dimension_numbers<[1], [0], [0], [1], [0, 0, 1, 1], [], []>} : vector<64x64xbf16>, vector<64x8xbf16>, vector<64x8xf32> -> vector<64x8xf32>
    %c0_244 = arith.constant 0 : index
    %c48_245 = arith.constant 48 : index
    %719 = vector.load %arg20[%c0_244, %c48_245] : memref<64x128xf32, #tpu.memory_space<vmem>>, vector<64x8xf32>
    tpu.vector_store %arg20[%c0_244, %c48_245], %718 {strides = array<i32>} : memref<64x128xf32, #tpu.memory_space<vmem>>, vector<64x8xf32>,
    %720 = vector.extract_strided_slice %544 {offsets = [0, 7], sizes = [64, 1], strides = [1, 1]} : vector<64x8xf32> to vector<64x1xf32>
    %721 = vector.extract_strided_slice %542 {offsets = [7, 0], sizes = [1, 64], strides = [1, 1]} : vector<8x64xf32> to vector<1x64xf32>
    %722 = vector.broadcast %720 : vector<64x1xf32> to vector<64x64xf32>
    %723 = vector.broadcast %721 : vector<1x64xf32> to vector<64x64xf32>
    %724 = arith.addf %722, %723 : vector<64x64xf32>
    %cst_246 = arith.constant 0.000000e+00 : f32
    %725 = vector.broadcast %cst_246 : f32 to vector<64x64xf32>
    %726 = arith.cmpf ogt, %724, %725 : vector<64x64xf32>
    %cst_247 = arith.constant 2.000000e-01 : f32
    %727 = vector.broadcast %cst_247 : f32 to vector<64x64xf32>
    %728 = arith.mulf %727, %724 : vector<64x64xf32>
    %729 = arith.select %726, %724, %728 : vector<64x64xi1>, vector<64x64xf32>
    %730 = arith.addf %729, %3 : vector<64x64xf32>
    %cst_248 = arith.constant dense<0xFF800000> : vector<64xf32>
    %731 = vector.multi_reduction <maximumf>, %730, %cst_248 [1] : vector<64x64xf32> to vector<64xf32>
    %732 = vector.shape_cast %731 : vector<64xf32> to vector<64x1xf32>
    %733 = vector.broadcast %732 : vector<64x1xf32> to vector<64x64xf32>
    %734 = arith.subf %730, %733 : vector<64x64xf32>
    %735 = math.exp %734 : vector<64x64xf32>
    %cst_249 = arith.constant dense<0.000000e+00> : vector<64xf32>
    %736 = vector.multi_reduction <add>, %735, %cst_249 [1] : vector<64x64xf32> to vector<64xf32>
    %737 = vector.shape_cast %736 : vector<64xf32> to vector<64x1xf32>
    %738 = tpu.reciprocal %737 {approx = true} : vector<64x1xf32> -> vector<64x1xf32>
    %739 = vector.broadcast %738 : vector<64x1xf32> to vector<64x64xf32>
    %740 = arith.mulf %735, %739 : vector<64x64xf32>
    %741 = vector.extract_strided_slice %540 {offsets = [0, 56], sizes = [64, 8], strides = [1, 1]} : vector<64x128xbf16> to vector<64x8xbf16>
    %742 = arith.truncf %740 : vector<64x64xf32> to vector<64x64xbf16>
    %cst_250 = arith.constant dense<0.000000e+00> : vector<64x8xf32>
    %743 = tpu.matmul %742, %741, %cst_250 {dimension_numbers = #tpu.dot_dimension_numbers<[1], [0], [0], [1], [0, 0, 1, 1], [], []>} : vector<64x64xbf16>, vector<64x8xbf16>, vector<64x8xf32> -> vector<64x8xf32>
    %c0_251 = arith.constant 0 : index
    %c56_252 = arith.constant 56 : index
    %744 = vector.load %arg20[%c0_251, %c56_252] : memref<64x128xf32, #tpu.memory_space<vmem>>, vector<64x8xf32>
    tpu.vector_store %arg20[%c0_251, %c56_252], %743 {strides = array<i32>} : memref<64x128xf32, #tpu.memory_space<vmem>>, vector<64x8xf32>,
    %c0_253 = arith.constant 0 : index
    %c0_254 = arith.constant 0 : index
    %745 = vector.load %arg20[%c0_253, %c0_254] : memref<64x128xf32, #tpu.memory_space<vmem>>, vector<64x128xf32>
    %746 = vector.broadcast %536 : vector<1x128xf32> to vector<64x128xf32>
    %747 = arith.addf %745, %746 : vector<64x128xf32>
    %cst_255 = arith.constant 0.000000e+00 : f32
    %748 = vector.broadcast %cst_255 : f32 to vector<64x128xf32>
    %749 = arith.cmpf ogt, %747, %748 : vector<64x128xf32>
    %cst_256 = arith.constant 0.000000e+00 : f32
    %750 = vector.broadcast %cst_256 : f32 to vector<64x128xf32>
    %751 = arith.minimumf %747, %750 : vector<64x128xf32>
    %752 = math.exp %751 : vector<64x128xf32>
    %cst_257 = arith.constant 1.000000e+00 : f32
    %753 = vector.broadcast %cst_257 : f32 to vector<64x128xf32>
    %754 = arith.subf %752, %753 : vector<64x128xf32>
    %755 = arith.select %749, %747, %754 : vector<64x128xi1>, vector<64x128xf32>
    %756 = arith.addf %528, %755 : vector<64x128xf32>
    %c1_258 = arith.constant 1 : index
    %c0_259 = arith.constant 0 : index
    %c0_260 = arith.constant 0 : index
    %757 = vector.load %arg11[%c1_258, %c0_259, %c0_260] : memref<2x1x128xf32, #tpu.memory_space<vmem>>, vector<1x1x128xf32>
    %758 = vector.shape_cast %757 : vector<1x1x128xf32> to vector<1x128xf32>
    %c1_261 = arith.constant 1 : index
    %c0_262 = arith.constant 0 : index
    %c0_263 = arith.constant 0 : index
    %759 = vector.load %arg12[%c1_261, %c0_262, %c0_263] : memref<2x1x128xf32, #tpu.memory_space<vmem>>, vector<1x1x128xf32>
    %760 = vector.shape_cast %759 : vector<1x1x128xf32> to vector<1x128xf32>
    %cst_264 = arith.constant dense<0.000000e+00> : vector<64xf32>
    %761 = vector.multi_reduction <add>, %756, %cst_264 [1] : vector<64x128xf32> to vector<64xf32>
    %762 = vector.shape_cast %761 : vector<64xf32> to vector<64x1xf32>
    %763 = arith.mulf %756, %756 : vector<64x128xf32>
    %cst_265 = arith.constant dense<0.000000e+00> : vector<64xf32>
    %764 = vector.multi_reduction <add>, %763, %cst_265 [1] : vector<64x128xf32> to vector<64xf32>
    %765 = vector.shape_cast %764 : vector<64xf32> to vector<64x1xf32>
    %cst_266 = arith.constant 1.562500e-02 : f32
    %766 = vector.broadcast %cst_266 : f32 to vector<64x1xf32>
    %767 = arith.mulf %762, %766 : vector<64x1xf32>
    %cst_267 = arith.constant 1.562500e-02 : f32
    %768 = vector.broadcast %cst_267 : f32 to vector<64x1xf32>
    %769 = arith.mulf %765, %768 : vector<64x1xf32>
    %770 = arith.mulf %767, %767 : vector<64x1xf32>
    %771 = arith.subf %769, %770 : vector<64x1xf32>
    %cst_268 = arith.constant 9.99999974E-6 : f32
    %772 = vector.broadcast %cst_268 : f32 to vector<64x1xf32>
    %773 = arith.addf %771, %772 : vector<64x1xf32>
    %774 = math.rsqrt %773 : vector<64x1xf32>
    %775 = vector.broadcast %767 : vector<64x1xf32> to vector<64x128xf32>
    %776 = arith.subf %756, %775 : vector<64x128xf32>
    %777 = vector.broadcast %774 : vector<64x1xf32> to vector<64x128xf32>
    %778 = arith.mulf %776, %777 : vector<64x128xf32>
    %779 = vector.broadcast %758 : vector<1x128xf32> to vector<64x128xf32>
    %780 = arith.mulf %778, %779 : vector<64x128xf32>
    %781 = vector.broadcast %760 : vector<1x128xf32> to vector<64x128xf32>
    %782 = arith.addf %780, %781 : vector<64x128xf32>
    %783 = arith.truncf %782 : vector<64x128xf32> to vector<64x128xbf16>
    %c1_269 = arith.constant 1 : index
    %c0_270 = arith.constant 0 : index
    %c0_271 = arith.constant 0 : index
    %784 = vector.load %arg13[%c1_269, %c0_270, %c0_271] : memref<2x128x128xf32, #tpu.memory_space<vmem>>, vector<1x128x128xf32>
    %785 = vector.shape_cast %784 : vector<1x128x128xf32> to vector<128x128xf32>
    %786 = arith.truncf %785 : vector<128x128xf32> to vector<128x128xbf16>
    %cst_272 = arith.constant dense<0.000000e+00> : vector<64x128xf32>
    %787 = tpu.matmul %783, %786, %cst_272 {dimension_numbers = #tpu.dot_dimension_numbers<[1], [0], [0], [1], [0, 0, 1, 1], [], []>} : vector<64x128xbf16>, vector<128x128xbf16>, vector<64x128xf32> -> vector<64x128xf32>
    %c1_273 = arith.constant 1 : index
    %c0_274 = arith.constant 0 : index
    %c0_275 = arith.constant 0 : index
    %788 = vector.load %arg14[%c1_273, %c0_274, %c0_275] : memref<2x1x128xf32, #tpu.memory_space<vmem>>, vector<1x1x128xf32>
    %789 = vector.shape_cast %788 : vector<1x1x128xf32> to vector<1x128xf32>
    %790 = vector.broadcast %789 : vector<1x128xf32> to vector<64x128xf32>
    %791 = arith.addf %787, %790 : vector<64x128xf32>
    %cst_276 = arith.constant 0.000000e+00 : f32
    %792 = vector.broadcast %cst_276 : f32 to vector<64x128xf32>
    %793 = arith.maximumf %791, %792 : vector<64x128xf32>
    %794 = arith.truncf %793 : vector<64x128xf32> to vector<64x128xbf16>
    %c1_277 = arith.constant 1 : index
    %c0_278 = arith.constant 0 : index
    %c0_279 = arith.constant 0 : index
    %795 = vector.load %arg15[%c1_277, %c0_278, %c0_279] : memref<2x128x128xf32, #tpu.memory_space<vmem>>, vector<1x128x128xf32>
    %796 = vector.shape_cast %795 : vector<1x128x128xf32> to vector<128x128xf32>
    %797 = arith.truncf %796 : vector<128x128xf32> to vector<128x128xbf16>
    %cst_280 = arith.constant dense<0.000000e+00> : vector<64x128xf32>
    %798 = tpu.matmul %794, %797, %cst_280 {dimension_numbers = #tpu.dot_dimension_numbers<[1], [0], [0], [1], [0, 0, 1, 1], [], []>} : vector<64x128xbf16>, vector<128x128xbf16>, vector<64x128xf32> -> vector<64x128xf32>
    %c1_281 = arith.constant 1 : index
    %c0_282 = arith.constant 0 : index
    %c0_283 = arith.constant 0 : index
    %799 = vector.load %arg16[%c1_281, %c0_282, %c0_283] : memref<2x1x128xf32, #tpu.memory_space<vmem>>, vector<1x1x128xf32>
    %800 = vector.shape_cast %799 : vector<1x1x128xf32> to vector<1x128xf32>
    %801 = vector.broadcast %800 : vector<1x128xf32> to vector<64x128xf32>
    %802 = arith.addf %798, %801 : vector<64x128xf32>
    %803 = arith.addf %782, %802 : vector<64x128xf32>
    %c1_284 = arith.constant 1 : index
    %c0_285 = arith.constant 0 : index
    %c0_286 = arith.constant 0 : index
    %804 = vector.load %arg17[%c1_284, %c0_285, %c0_286] : memref<2x1x128xf32, #tpu.memory_space<vmem>>, vector<1x1x128xf32>
    %805 = vector.shape_cast %804 : vector<1x1x128xf32> to vector<1x128xf32>
    %c1_287 = arith.constant 1 : index
    %c0_288 = arith.constant 0 : index
    %c0_289 = arith.constant 0 : index
    %806 = vector.load %arg18[%c1_287, %c0_288, %c0_289] : memref<2x1x128xf32, #tpu.memory_space<vmem>>, vector<1x1x128xf32>
    %807 = vector.shape_cast %806 : vector<1x1x128xf32> to vector<1x128xf32>
    %cst_290 = arith.constant dense<0.000000e+00> : vector<64xf32>
    %808 = vector.multi_reduction <add>, %803, %cst_290 [1] : vector<64x128xf32> to vector<64xf32>
    %809 = vector.shape_cast %808 : vector<64xf32> to vector<64x1xf32>
    %810 = arith.mulf %803, %803 : vector<64x128xf32>
    %cst_291 = arith.constant dense<0.000000e+00> : vector<64xf32>
    %811 = vector.multi_reduction <add>, %810, %cst_291 [1] : vector<64x128xf32> to vector<64xf32>
    %812 = vector.shape_cast %811 : vector<64xf32> to vector<64x1xf32>
    %cst_292 = arith.constant 1.562500e-02 : f32
    %813 = vector.broadcast %cst_292 : f32 to vector<64x1xf32>
    %814 = arith.mulf %809, %813 : vector<64x1xf32>
    %cst_293 = arith.constant 1.562500e-02 : f32
    %815 = vector.broadcast %cst_293 : f32 to vector<64x1xf32>
    %816 = arith.mulf %812, %815 : vector<64x1xf32>
    %817 = arith.mulf %814, %814 : vector<64x1xf32>
    %818 = arith.subf %816, %817 : vector<64x1xf32>
    %cst_294 = arith.constant 9.99999974E-6 : f32
    %819 = vector.broadcast %cst_294 : f32 to vector<64x1xf32>
    %820 = arith.addf %818, %819 : vector<64x1xf32>
    %821 = math.rsqrt %820 : vector<64x1xf32>
    %822 = vector.broadcast %814 : vector<64x1xf32> to vector<64x128xf32>
    %823 = arith.subf %803, %822 : vector<64x128xf32>
    %824 = vector.broadcast %821 : vector<64x1xf32> to vector<64x128xf32>
    %825 = arith.mulf %823, %824 : vector<64x128xf32>
    %826 = vector.broadcast %805 : vector<1x128xf32> to vector<64x128xf32>
    %827 = arith.mulf %825, %826 : vector<64x128xf32>
    %828 = vector.broadcast %807 : vector<1x128xf32> to vector<64x128xf32>
    %829 = arith.addf %827, %828 : vector<64x128xf32>
    %c0_295 = arith.constant 0 : index
    %c0_296 = arith.constant 0 : index
    %830 = vector.load %arg19[%c0_295, %c0_296] : memref<64x128xf32, #tpu.memory_space<vmem>>, vector<64x128xf32>
    tpu.vector_store %arg19[%c0_295, %c0_296], %829 {strides = array<i32>} : memref<64x128xf32, #tpu.memory_space<vmem>>, vector<64x128xf32>,
    return
  }
  func.func @transform_0(%arg0: i32) -> (i32, i32) {
    %c0_i32 = arith.constant 0 : i32
    %c0_i32_0 = arith.constant 0 : i32
    %c0_i32_1 = arith.constant 0 : i32
    return %c0_i32, %c0_i32_0 : i32, i32
  }
  func.func @transform_1(%arg0: i32) -> (i32, i32) {
    %c0_i32 = arith.constant 0 : i32
    %c0_i32_0 = arith.constant 0 : i32
    %c0_i32_1 = arith.constant 0 : i32
    return %c0_i32, %c0_i32_0 : i32, i32
  }
  func.func @transform_2(%arg0: i32) -> (i32, i32) {
    %c0_i32 = arith.constant 0 : i32
    %c0_i32_0 = arith.constant 0 : i32
    %c0_i32_1 = arith.constant 0 : i32
    return %c0_i32, %c0_i32_0 : i32, i32
  }
  func.func @transform_3(%arg0: i32) -> (i32, i32) {
    %c0_i32 = arith.constant 0 : i32
    %c0_i32_0 = arith.constant 0 : i32
    %c0_i32_1 = arith.constant 0 : i32
    return %c0_i32, %c0_i32_0 : i32, i32
  }
  func.func @transform_4(%arg0: i32) -> (i32, i32) {
    %c0_i32 = arith.constant 0 : i32
    %c0_i32_0 = arith.constant 0 : i32
    %c0_i32_1 = arith.constant 0 : i32
    return %c0_i32, %c0_i32_0 : i32, i32
  }
  func.func @transform_5(%arg0: i32) -> (i32, i32) {
    %c0_i32 = arith.constant 0 : i32
    %c0_i32_0 = arith.constant 0 : i32
    %c0_i32_1 = arith.constant 0 : i32
    return %c0_i32, %c0_i32_0 : i32, i32
  }
  func.func @transform_6(%arg0: i32) -> (i32, i32, i32) {
    %c0_i32 = arith.constant 0 : i32
    %c0_i32_0 = arith.constant 0 : i32
    %c0_i32_1 = arith.constant 0 : i32
    %c0_i32_2 = arith.constant 0 : i32
    return %c0_i32, %c0_i32_0, %c0_i32_1 : i32, i32, i32
  }
  func.func @transform_7(%arg0: i32) -> (i32, i32, i32) {
    %c0_i32 = arith.constant 0 : i32
    %c0_i32_0 = arith.constant 0 : i32
    %c0_i32_1 = arith.constant 0 : i32
    %c0_i32_2 = arith.constant 0 : i32
    return %c0_i32, %c0_i32_0, %c0_i32_1 : i32, i32, i32
  }
  func.func @transform_8(%arg0: i32) -> (i32, i32, i32) {
    %c0_i32 = arith.constant 0 : i32
    %c0_i32_0 = arith.constant 0 : i32
    %c0_i32_1 = arith.constant 0 : i32
    %c0_i32_2 = arith.constant 0 : i32
    return %c0_i32, %c0_i32_0, %c0_i32_1 : i32, i32, i32
  }
  func.func @transform_9(%arg0: i32) -> (i32, i32, i32) {
    %c0_i32 = arith.constant 0 : i32
    %c0_i32_0 = arith.constant 0 : i32
    %c0_i32_1 = arith.constant 0 : i32
    %c0_i32_2 = arith.constant 0 : i32
    return %c0_i32, %c0_i32_0, %c0_i32_1 : i32, i32, i32
  }
  func.func @transform_10(%arg0: i32) -> (i32, i32, i32) {
    %c0_i32 = arith.constant 0 : i32
    %c0_i32_0 = arith.constant 0 : i32
    %c0_i32_1 = arith.constant 0 : i32
    %c0_i32_2 = arith.constant 0 : i32
    return %c0_i32, %c0_i32_0, %c0_i32_1 : i32, i32, i32
  }
  func.func @transform_11(%arg0: i32) -> (i32, i32, i32) {
    %c0_i32 = arith.constant 0 : i32
    %c0_i32_0 = arith.constant 0 : i32
    %c0_i32_1 = arith.constant 0 : i32
    %c0_i32_2 = arith.constant 0 : i32
    return %c0_i32, %c0_i32_0, %c0_i32_1 : i32, i32, i32
  }
  func.func @transform_12(%arg0: i32) -> (i32, i32, i32) {
    %c0_i32 = arith.constant 0 : i32
    %c0_i32_0 = arith.constant 0 : i32
    %c0_i32_1 = arith.constant 0 : i32
    %c0_i32_2 = arith.constant 0 : i32
    return %c0_i32, %c0_i32_0, %c0_i32_1 : i32, i32, i32
  }
  func.func @transform_13(%arg0: i32) -> (i32, i32, i32) {
    %c0_i32 = arith.constant 0 : i32
    %c0_i32_0 = arith.constant 0 : i32
    %c0_i32_1 = arith.constant 0 : i32
    %c0_i32_2 = arith.constant 0 : i32
    return %c0_i32, %c0_i32_0, %c0_i32_1 : i32, i32, i32
  }
  func.func @transform_14(%arg0: i32) -> (i32, i32, i32) {
    %c0_i32 = arith.constant 0 : i32
    %c0_i32_0 = arith.constant 0 : i32
    %c0_i32_1 = arith.constant 0 : i32
    %c0_i32_2 = arith.constant 0 : i32
    return %c0_i32, %c0_i32_0, %c0_i32_1 : i32, i32, i32
  }
  func.func @transform_15(%arg0: i32) -> (i32, i32, i32) {
    %c0_i32 = arith.constant 0 : i32
    %c0_i32_0 = arith.constant 0 : i32
    %c0_i32_1 = arith.constant 0 : i32
    %c0_i32_2 = arith.constant 0 : i32
    return %c0_i32, %c0_i32_0, %c0_i32_1 : i32, i32, i32
  }
  func.func @transform_16(%arg0: i32) -> (i32, i32, i32) {
    %c0_i32 = arith.constant 0 : i32
    %c0_i32_0 = arith.constant 0 : i32
    %c0_i32_1 = arith.constant 0 : i32
    %c0_i32_2 = arith.constant 0 : i32
    return %c0_i32, %c0_i32_0, %c0_i32_1 : i32, i32, i32
  }
  func.func @transform_17(%arg0: i32) -> (i32, i32, i32) {
    %c0_i32 = arith.constant 0 : i32
    %c0_i32_0 = arith.constant 0 : i32
    %c0_i32_1 = arith.constant 0 : i32
    %c0_i32_2 = arith.constant 0 : i32
    return %c0_i32, %c0_i32_0, %c0_i32_1 : i32, i32, i32
  }
  func.func @transform_18(%arg0: i32) -> (i32, i32) {
    %c0_i32 = arith.constant 0 : i32
    %c0_i32_0 = arith.constant 0 : i32
    %c0_i32_1 = arith.constant 0 : i32
    return %c0_i32, %c0_i32_0 : i32, i32
  }
}

</mosaic_0001>

<llo_original>
// kernel: tpu_custom_call.1
$region0: #{tpu_custom_call.1}
  #allocation0 [shape = 'u32[]', space=smem, size = 0x4, offset = 0x4, fixed_abs, tag = 'smem constant byte address 0x4 - core index']
  #allocation1 [shape = 'u32[144,128]{1,0:T(1,128)}', space=vmem, size = 0x12000, scoped, tag = 'internal scratch']
  #allocation2 [shape = 'f32[64,128]{1,0:T(8,128)}', space=vmem, size = 0x8000, scoped, tag = 'scratch operand']
  %s0 = inlined_call_operand.vmem [shape: bf16[64,64], index: 0, kind: input, shape index: {}]
  %s1 = inlined_call_operand.hbm [shape: f32[64,128], index: 1, kind: input, shape index: {}]
  %s2 = inlined_call_operand.vmem [shape: f32[128,128], index: 2, kind: input, shape index: {}]
  %s3 = inlined_call_operand.hbm [shape: f32[8,128], index: 3, kind: input, shape index: {}]
  %s4 = inlined_call_operand.vmem [shape: f32[128,8], index: 4, kind: input, shape index: {}]
  %s5 = inlined_call_operand.hbm [shape: f32[1,128], index: 5, kind: input, shape index: {}]
  %s6 = inlined_call_operand.vmem [shape: f32[2,128,128], index: 6, kind: input, shape index: {}]
  %s7 = inlined_call_operand.hbm [shape: f32[2,8,128], index: 7, kind: input, shape index: {}]
  %s8 = inlined_call_operand.vmem [shape: f32[2,128,8], index: 8, kind: input, shape index: {}]
  %s9 = inlined_call_operand.vmem [shape: f32[2,1,128], index: 9, kind: input, shape index: {}]
  %s10 = inlined_call_operand.vmem [shape: f32[2,1,128], index: 10, kind: input, shape index: {}]
  %s11 = inlined_call_operand.vmem [shape: f32[2,1,128], index: 11, kind: input, shape index: {}]
  %s12 = inlined_call_operand.hbm [shape: f32[2,128,128], index: 12, kind: input, shape index: {}]
  %s13 = inlined_call_operand.vmem [shape: f32[2,1,128], index: 13, kind: input, shape index: {}]
  %s14 = inlined_call_operand.hbm [shape: f32[2,128,128], index: 14, kind: input, shape index: {}]
  %s15 = inlined_call_operand.vmem [shape: f32[2,1,128], index: 15, kind: input, shape index: {}]
  %s16 = inlined_call_operand.vmem [shape: f32[2,1,128], index: 16, kind: input, shape index: {}]
  %s17 = inlined_call_operand.vmem [shape: f32[2,1,128], index: 17, kind: input, shape index: {}]
  %s18 = inlined_call_operand.hbm [shape: f32[64,128], index: 18, kind: output, shape index: {}]
  %s19 = sld [smem:[#allocation0]]
  $region106: #{tpu_custom_call.1} parent=0
    _
  %s21 = ssub.s32 1, %s19
  %s22 = scalar_select 0, %s21, %s19
  $region1: #{tpu_custom_call.1} parent=0
    #allocation3 [shape = 'u8[32768]{0}', space=vmem, size = 0x8000, scoped, tag = 'input window, operand 1, single buffered']
    #allocation4 [shape = 's32[1]{0}', space=sflag, size = 0x4, scoped, tag = 'scoped memory for tpu_custom_call.1']
    #allocation5 [shape = 's32[1]{0}', space=sflag, size = 0x4, scoped, tag = 'scoped memory for tpu_custom_call.1']
    #allocation6 [shape = 'u8[4096]{0}', space=vmem, size = 0x1000, scoped, tag = 'input window, operand 3, single buffered']
    #allocation7 [shape = 's32[1]{0}', space=sflag, size = 0x4, scoped, tag = 'scoped memory for tpu_custom_call.1']
    #allocation8 [shape = 'u8[512]{0}', space=vmem, size = 0x400, scoped, tag = 'input window, operand 5, single buffered']
    #allocation9 [shape = 'u8[8192]{0}', space=vmem, size = 0x2000, scoped, tag = 'input window, operand 7, single buffered']
    #allocation10 [shape = 's32[1]{0}', space=sflag, size = 0x4, scoped, tag = 'scoped memory for tpu_custom_call.1']
    #allocation11 [shape = 'u8[131072]{0}', space=vmem, size = 0x20000, scoped, tag = 'input window, operand 12, single buffered']
    #allocation12 [shape = 'u8[131072]{0}', space=vmem, size = 0x20000, scoped, tag = 'input window, operand 14, single buffered']
    #allocation13 [shape = 's32[1]{0}', space=sflag, size = 0x4, scoped, tag = 'scoped memory for tpu_custom_call.1']
    #allocation14 [shape = 'u8[32768]{0}', space=vmem, size = 0x8000, scoped, tag = 'output window, operand 0, single buffered']
    %23 = vsyncpa [#allocation4], 0
    %24 = vsyncpa [#allocation7], 0
    %25 = vsyncpa [#allocation10], 0
    %26 = vsyncpa [#allocation13], 0
    %27 = vsyncpa [#allocation5], 0
    // Predicated region
    $region2: #{tpu_custom_call.1} parent=1 // pred_check
      _
    $region3: #{tpu_custom_call.1} parent=1 // pred_check_branch
      %29 = sbr.rel (0) target = $region5
    $region4: #{tpu_custom_call.1} parent=1 // pred_region
      _
    $region5: #{tpu_custom_call.1} parent=1 // pred_fallthru
      _
    // Predicated region
    $region6: #{tpu_custom_call.1} parent=1 // pred_check
      _
    $region7: #{tpu_custom_call.1} parent=1 // pred_check_branch
      %31 = sbr.rel (0) target = $region9
    $region8: #{tpu_custom_call.1} parent=1 // pred_region
      %s33 = ssub.s32 1024, 1024
      %34 = vsyncadd [#allocation4], %s33
      %s35 = sshll.u32 [#allocation3], 4
      %s36 = int_to_ptr.vmem [resolvable:$true] %s35
      %41 = dma.hbm_to_vmem [thread:$0]  %s1, 1024, %s36, [#allocation4], 128, 128, 8
    $region9: #{tpu_custom_call.1} parent=1 // pred_fallthru
      _
    // Predicated region
    $region10: #{tpu_custom_call.1} parent=1 // pred_check
      _
    $region11: #{tpu_custom_call.1} parent=1 // pred_check_branch
      %43 = sbr.rel (0) target = $region13
    $region12: #{tpu_custom_call.1} parent=1 // pred_region
      _
    $region13: #{tpu_custom_call.1} parent=1 // pred_fallthru
      _
    // Predicated region
    $region14: #{tpu_custom_call.1} parent=1 // pred_check
      _
    $region15: #{tpu_custom_call.1} parent=1 // pred_check_branch
      %45 = sbr.rel (0) target = $region17
    $region16: #{tpu_custom_call.1} parent=1 // pred_region
      %s47 = ssub.s32 128, 128
      %48 = vsyncadd [#allocation7], %s47
      %s50 = sshll.u32 [#allocation6], 4
      %s51 = int_to_ptr.vmem [resolvable:$true] %s50
      %53 = dma.hbm_to_vmem [thread:$0]  %s3, 128, %s51, [#allocation7]
    $region17: #{tpu_custom_call.1} parent=1 // pred_fallthru
      _
    // Predicated region
    $region18: #{tpu_custom_call.1} parent=1 // pred_check
      _
    $region19: #{tpu_custom_call.1} parent=1 // pred_check_branch
      %55 = sbr.rel (0) target = $region21
    $region20: #{tpu_custom_call.1} parent=1 // pred_region
      _
    $region21: #{tpu_custom_call.1} parent=1 // pred_fallthru
      _
    // Predicated region
    $region22: #{tpu_custom_call.1} parent=1 // pred_check
      _
    $region23: #{tpu_custom_call.1} parent=1 // pred_check_branch
      %57 = sbr.rel (0) target = $region25
    $region24: #{tpu_custom_call.1} parent=1 // pred_region
      %s59 = ssub.s32 16, 16
      %60 = vsyncadd [#allocation7], %s59
      %s62 = sshll.u32 [#allocation8], 4
      %s63 = int_to_ptr.vmem [resolvable:$true] %s62
      %65 = dma.hbm_to_vmem [thread:$0]  %s5, 16, %s63, [#allocation7]
    $region25: #{tpu_custom_call.1} parent=1 // pred_fallthru
      _
    // Predicated region
    $region26: #{tpu_custom_call.1} parent=1 // pred_check
      _
    $region27: #{tpu_custom_call.1} parent=1 // pred_check_branch
      %67 = sbr.rel (0) target = $region29
    $region28: #{tpu_custom_call.1} parent=1 // pred_region
      _
    $region29: #{tpu_custom_call.1} parent=1 // pred_fallthru
      _
    // Predicated region
    $region30: #{tpu_custom_call.1} parent=1 // pred_check
      _
    $region31: #{tpu_custom_call.1} parent=1 // pred_check_branch
      %69 = sbr.rel (0) target = $region33
    $region32: #{tpu_custom_call.1} parent=1 // pred_region
      %s71 = ssub.s32 256, 256
      %72 = vsyncadd [#allocation10], %s71
      %s73 = sshll.u32 [#allocation9], 4
      %s74 = int_to_ptr.vmem [resolvable:$true] %s73
      %79 = dma.hbm_to_vmem [thread:$0]  %s7, 256, %s74, [#allocation10], 128, 128, 8
    $region33: #{tpu_custom_call.1} parent=1 // pred_fallthru
      _
    // Predicated region
    $region34: #{tpu_custom_call.1} parent=1 // pred_check
      _
    $region35: #{tpu_custom_call.1} parent=1 // pred_check_branch
      %81 = sbr.rel (0) target = $region37
    $region36: #{tpu_custom_call.1} parent=1 // pred_region
      _
    $region37: #{tpu_custom_call.1} parent=1 // pred_fallthru
      _
    // Predicated region
    $region38: #{tpu_custom_call.1} parent=1 // pred_check
      _
    $region39: #{tpu_custom_call.1} parent=1 // pred_check_branch
      %83 = sbr.rel (0) target = $region41
    $region40: #{tpu_custom_call.1} parent=1 // pred_region
      _
    $region41: #{tpu_custom_call.1} parent=1 // pred_fallthru
      _
    // Predicated region
    $region42: #{tpu_custom_call.1} parent=1 // pred_check
      _
    $region43: #{tpu_custom_call.1} parent=1 // pred_check_branch
      %85 = sbr.rel (0) target = $region45
    $region44: #{tpu_custom_call.1} parent=1 // pred_region
      _
    $region45: #{tpu_custom_call.1} parent=1 // pred_fallthru
      _
    // Predicated region
    $region46: #{tpu_custom_call.1} parent=1 // pred_check
      _
    $region47: #{tpu_custom_call.1} parent=1 // pred_check_branch
      %87 = sbr.rel (0) target = $region49
    $region48: #{tpu_custom_call.1} parent=1 // pred_region
      _
    $region49: #{tpu_custom_call.1} parent=1 // pred_fallthru
      _
    // Predicated region
    $region50: #{tpu_custom_call.1} parent=1 // pred_check
      _
    $region51: #{tpu_custom_call.1} parent=1 // pred_check_branch
      %89 = sbr.rel (0) target = $region53
    $region52: #{tpu_custom_call.1} parent=1 // pred_region
      %s91 = ssub.s32 4096, 4096
      %92 = vsyncadd [#allocation10], %s91
      %s93 = sshll.u32 [#allocation11], 4
      %s94 = int_to_ptr.vmem [resolvable:$true] %s93
      %99 = dma.hbm_to_vmem [thread:$0]  %s12, 4096, %s94, [#allocation10], 128, 128, 8
    $region53: #{tpu_custom_call.1} parent=1 // pred_fallthru
      _
    // Predicated region
    $region54: #{tpu_custom_call.1} parent=1 // pred_check
      _
    $region55: #{tpu_custom_call.1} parent=1 // pred_check_branch
      %101 = sbr.rel (0) target = $region57
    $region56: #{tpu_custom_call.1} parent=1 // pred_region
      _
    $region57: #{tpu_custom_call.1} parent=1 // pred_fallthru
      _
    // Predicated region
    $region58: #{tpu_custom_call.1} parent=1 // pred_check
      _
    $region59: #{tpu_custom_call.1} parent=1 // pred_check_branch
      %103 = sbr.rel (0) target = $region61
    $region60: #{tpu_custom_call.1} parent=1 // pred_region
      %s105 = ssub.s32 4096, 4096
      %106 = vsyncadd [#allocation13], %s105
      %s107 = sshll.u32 [#allocation12], 4
      %s108 = int_to_ptr.vmem [resolvable:$true] %s107
      %113 = dma.hbm_to_vmem [thread:$0]  %s14, 4096, %s108, [#allocation13], 128, 128, 8
    $region61: #{tpu_custom_call.1} parent=1 // pred_fallthru
      _
    // Predicated region
    $region62: #{tpu_custom_call.1} parent=1 // pred_check
      _
    $region63: #{tpu_custom_call.1} parent=1 // pred_check_branch
      %115 = sbr.rel (0) target = $region65
    $region64: #{tpu_custom_call.1} parent=1 // pred_region
      _
    $region65: #{tpu_custom_call.1} parent=1 // pred_fallthru
      _
    // Predicated region
    $region66: #{tpu_custom_call.1} parent=1 // pred_check
      _
    $region67: #{tpu_custom_call.1} parent=1 // pred_check_branch
      %117 = sbr.rel (0) target = $region69
    $region68: #{tpu_custom_call.1} parent=1 // pred_region
      _
    $region69: #{tpu_custom_call.1} parent=1 // pred_fallthru
      _
    // Predicated region
    $region70: #{tpu_custom_call.1} parent=1 // pred_check
      _
    $region71: #{tpu_custom_call.1} parent=1 // pred_check_branch
      %119 = sbr.rel (0) target = $region73
    $region72: #{tpu_custom_call.1} parent=1 // pred_region
      _
    $region73: #{tpu_custom_call.1} parent=1 // pred_fallthru
      _
    // Predicated region
    $region74: #{tpu_custom_call.1} parent=1 // pred_check
      _
    $region75: #{tpu_custom_call.1} parent=1 // pred_check_branch
      %121 = sbr.rel (0) target = $region77
    $region76: #{tpu_custom_call.1} parent=1 // pred_region
      %122 = dma.done [#allocation4], 1024
    $region77: #{tpu_custom_call.1} parent=1 // pred_fallthru
      _
    // Predicated region
    $region78: #{tpu_custom_call.1} parent=1 // pred_check
      _
    $region79: #{tpu_custom_call.1} parent=1 // pred_check_branch
      %124 = sbr.rel (0) target = $region81
    $region80: #{tpu_custom_call.1} parent=1 // pred_region
      %125 = dma.done [#allocation7], 128
    $region81: #{tpu_custom_call.1} parent=1 // pred_fallthru
      _
    // Predicated region
    $region82: #{tpu_custom_call.1} parent=1 // pred_check
      _
    $region83: #{tpu_custom_call.1} parent=1 // pred_check_branch
      %127 = sbr.rel (0) target = $region85
    $region84: #{tpu_custom_call.1} parent=1 // pred_region
      %128 = dma.done [#allocation7], 16
    $region85: #{tpu_custom_call.1} parent=1 // pred_fallthru
      _
    // Predicated region
    $region86: #{tpu_custom_call.1} parent=1 // pred_check
      _
    $region87: #{tpu_custom_call.1} parent=1 // pred_check_branch
      %130 = sbr.rel (0) target = $region89
    $region88: #{tpu_custom_call.1} parent=1 // pred_region
      %131 = dma.done [#allocation10], 256
    $region89: #{tpu_custom_call.1} parent=1 // pred_fallthru
      _
    // Predicated region
    $region90: #{tpu_custom_call.1} parent=1 // pred_check
      _
    $region91: #{tpu_custom_call.1} parent=1 // pred_check_branch
      %133 = sbr.rel (0) target = $region93
    $region92: #{tpu_custom_call.1} parent=1 // pred_region
      %134 = dma.done [#allocation10], 4096
    $region93: #{tpu_custom_call.1} parent=1 // pred_fallthru
      _
    // Predicated region
    $region94: #{tpu_custom_call.1} parent=1 // pred_check
      _
    $region95: #{tpu_custom_call.1} parent=1 // pred_check_branch
      %136 = sbr.rel (0) target = $region97
    $region96: #{tpu_custom_call.1} parent=1 // pred_region
      %137 = dma.done [#allocation13], 4096
    $region97: #{tpu_custom_call.1} parent=1 // pred_fallthru
      _
    %139 = vst [vmem:[#allocation2] sm:$0xff] 0.0
    %140 = vst [vmem:[#allocation2 + $0x8] sm:$0xff] 0.0
    %141 = vst [vmem:[#allocation2 + $0x10] sm:$0xff] 0.0
    %142 = vst [vmem:[#allocation2 + $0x18] sm:$0xff] 0.0
    %143 = vst [vmem:[#allocation2 + $0x20] sm:$0xff] 0.0
    %144 = vst [vmem:[#allocation2 + $0x28] sm:$0xff] 0.0
    %145 = vst [vmem:[#allocation2 + $0x30] sm:$0xff] 0.0
    %146 = vst [vmem:[#allocation2 + $0x38] sm:$0xff] 0.0
    %v147 = vld [vmem:[%s0] sm:$0xf]
    %v148 = vld [vmem:[%s0 + $0x4] sm:$0xf]
    %v149 = vld [vmem:[%s0 + $0x8] sm:$0xf]
    %v150 = vld [vmem:[%s0 + $0xc] sm:$0xf]
    %v151 = vld [vmem:[%s0 + $0x10] sm:$0xf]
    %v152 = vld [vmem:[%s0 + $0x14] sm:$0xf]
    %v153 = vld [vmem:[%s0 + $0x18] sm:$0xf]
    %v154 = vld [vmem:[%s0 + $0x1c] sm:$0xf]
    %v155 = vunpack.c.l.bf16 %v147
    %v156 = vunpack.c.l.bf16 %v148
    %v157 = vunpack.c.l.bf16 %v149
    %v158 = vunpack.c.l.bf16 %v150
    %v159 = vunpack.c.l.bf16 %v151
    %v160 = vunpack.c.l.bf16 %v152
    %v161 = vunpack.c.l.bf16 %v153
    %v162 = vunpack.c.l.bf16 %v154
    %v163 = vld [vmem:[#allocation3] sm:$0xff]
    %v164 = vld [vmem:[#allocation3 + $0x8] sm:$0xff]
    %v165 = vld [vmem:[#allocation3 + $0x10] sm:$0xff]
    %v166 = vld [vmem:[#allocation3 + $0x18] sm:$0xff]
    %v167 = vld [vmem:[#allocation3 + $0x20] sm:$0xff]
    %v168 = vld [vmem:[#allocation3 + $0x28] sm:$0xff]
    %v169 = vld [vmem:[#allocation3 + $0x30] sm:$0xff]
    %v170 = vld [vmem:[#allocation3 + $0x38] sm:$0xff]
    %v171 = vld [vmem:[%s2] sm:$0xff]
    %v172 = vld [vmem:[%s2 + $0x8] sm:$0xff]
    %v173 = vld [vmem:[%s2 + $0x10] sm:$0xff]
    %v174 = vld [vmem:[%s2 + $0x18] sm:$0xff]
    %v175 = vld [vmem:[%s2 + $0x20] sm:$0xff]
    %v176 = vld [vmem:[%s2 + $0x28] sm:$0xff]
    %v177 = vld [vmem:[%s2 + $0x30] sm:$0xff]
    %v178 = vld [vmem:[%s2 + $0x38] sm:$0xff]
    %v179 = vld [vmem:[%s2 + $0x40] sm:$0xff]
    %v180 = vld [vmem:[%s2 + $0x48] sm:$0xff]
    %v181 = vld [vmem:[%s2 + $0x50] sm:$0xff]
    %v182 = vld [vmem:[%s2 + $0x58] sm:$0xff]
    %v183 = vld [vmem:[%s2 + $0x60] sm:$0xff]
    %v184 = vld [vmem:[%s2 + $0x68] sm:$0xff]
    %v185 = vld [vmem:[%s2 + $0x70] sm:$0xff]
    %v186 = vld [vmem:[%s2 + $0x78] sm:$0xff]
    %v187 = vld [vmem:[#allocation6] sm:$0xff]
    %v188 = vld [vmem:[%s4] sm:$0xff]
    %v189 = vld [vmem:[%s4 + $0x8] sm:$0xff]
    %v190 = vld [vmem:[%s4 + $0x10] sm:$0xff]
    %v191 = vld [vmem:[%s4 + $0x18] sm:$0xff]
    %v192 = vld [vmem:[%s4 + $0x20] sm:$0xff]
    %v193 = vld [vmem:[%s4 + $0x28] sm:$0xff]
    %v194 = vld [vmem:[%s4 + $0x30] sm:$0xff]
    %v195 = vld [vmem:[%s4 + $0x38] sm:$0xff]
    %v196 = vld [vmem:[%s4 + $0x40] sm:$0xff]
    %v197 = vld [vmem:[%s4 + $0x48] sm:$0xff]
    %v198 = vld [vmem:[%s4 + $0x50] sm:$0xff]
    %v199 = vld [vmem:[%s4 + $0x58] sm:$0xff]
    %v200 = vld [vmem:[%s4 + $0x60] sm:$0xff]
    %v201 = vld [vmem:[%s4 + $0x68] sm:$0xff]
    %v202 = vld [vmem:[%s4 + $0x70] sm:$0xff]
    %v203 = vld [vmem:[%s4 + $0x78] sm:$0xff]
    %v204 = vld [vmem:[#allocation8] sm:$0x1]
    %v205 = vpack.c.bf16 %v164, %v163
    %v206 = vpack.c.bf16 %v166, %v165
    %v207 = vpack.c.bf16 %v168, %v167
    %v208 = vpack.c.bf16 %v170, %v169
    %v209 = vpack.c.bf16 %v172, %v171
    %v210 = vpack.c.bf16 %v174, %v173
    %v211 = vpack.c.bf16 %v176, %v175
    %v212 = vpack.c.bf16 %v178, %v177
    %v213 = vpack.c.bf16 %v180, %v179
    %v214 = vpack.c.bf16 %v182, %v181
    %v215 = vpack.c.bf16 %v184, %v183
    %v216 = vpack.c.bf16 %v186, %v185
    %217 = vmatprep.subr.bf16.mxu0 0
    %218 = vmatpush1.bf16.msra.mxu0 %v209
    %219 = vmatprep.subr.bf16.mxu0 0
    %220 = vmatpush1.bf16.msra.mxu0 %v210
    %221 = vmatprep.subr.bf16.mxu0 0
    %222 = vmatpush1.bf16.msra.mxu0 %v211
    %223 = vmatprep.subr.bf16.mxu0 0
    %224 = vmatpush1.bf16.msra.mxu0 %v212
    %225 = vmatprep.subr.bf16.mxu0 0
    %226 = vmatpush1.bf16.msra.mxu0 %v213
    %227 = vmatprep.subr.bf16.mxu0 0
    %228 = vmatpush1.bf16.msra.mxu0 %v214
    %229 = vmatprep.subr.bf16.mxu0 0
    %230 = vmatpush1.bf16.msra.mxu0 %v215
    %231 = vmatprep.subr.bf16.mxu0 0
    %232 = vmatpush1.bf16.msra.mxu0 %v216
    %233 = vmatprep.subr.bf16.mxu0 0
    %234 = vmatpush1.bf16.msra.mxu0 0
    %235 = vmatprep.subr.bf16.mxu0 0
    %236 = vmatpush1.bf16.msra.mxu0 0
    %237 = vmatprep.subr.bf16.mxu0 0
    %238 = vmatpush1.bf16.msra.mxu0 0
    %239 = vmatprep.subr.bf16.mxu0 0
    %240 = vmatpush1.bf16.msra.mxu0 0
    %241 = vmatprep.subr.bf16.mxu0 0
    %242 = vmatpush1.bf16.msra.mxu0 0
    %243 = vmatprep.subr.bf16.mxu0 0
    %244 = vmatpush1.bf16.msra.mxu0 0
    %245 = vmatprep.subr.bf16.mxu0 0
    %246 = vmatpush1.bf16.msra.mxu0 0
    %247 = vmatprep.subr.bf16.mxu0 0
    %248 = vmatpush1.bf16.msra.mxu0 0
    %249 = vmatprep.mubr.bf16.mxu0 0
    %250 = vmatmul.mubr.bf16.gmra.mrb[0].mxu0 %v205
    %v251 = vpop.f32.mrb[0].mxu0
    %v252 = vadd.f32 0.0, %v251
    %v253 = vpop.f32.mrb[0].mxu0
    %v254 = vpop.f32.mrb[0].mxu0
    %v255 = vadd.f32 0.0, %v254
    %v256 = vpop.f32.mrb[0].mxu0
    %257 = vmatprep.mubr.bf16.mxu0 0
    %258 = vmatmul.mubr.bf16.gmra.mrb[0].mxu0 %v206
    %v259 = vpop.f32.mrb[0].mxu0
    %v260 = vadd.f32 0.0, %v259
    %v261 = vpop.f32.mrb[0].mxu0
    %v262 = vpop.f32.mrb[0].mxu0
    %v263 = vadd.f32 0.0, %v262
    %v264 = vpop.f32.mrb[0].mxu0
    %265 = vmatprep.mubr.bf16.mxu0 0
    %266 = vmatmul.mubr.bf16.gmra.mrb[0].mxu0 %v207
    %v267 = vpop.f32.mrb[0].mxu0
    %v268 = vadd.f32 0.0, %v267
    %v269 = vpop.f32.mrb[0].mxu0
    %v270 = vpop.f32.mrb[0].mxu0
    %v271 = vadd.f32 0.0, %v270
    %v272 = vpop.f32.mrb[0].mxu0
    %273 = vmatprep.mubr.bf16.mxu0 0
    %274 = vmatmul.mubr.bf16.gmra.mrb[0].mxu0 %v208
    %v275 = vpop.f32.mrb[0].mxu0
    %v276 = vadd.f32 0.0, %v275
    %v277 = vpop.f32.mrb[0].mxu0
    %v278 = vpop.f32.mrb[0].mxu0
    %v279 = vadd.f32 0.0, %v278
    %v280 = vpop.f32.mrb[0].mxu0
    %281 = vdwg.mxu0
    %v282 = vpack.c.bf16 %v255, %v252
    %v283 = vpack.c.bf16 %v263, %v260
    %v284 = vpack.c.bf16 %v271, %v268
    %v285 = vpack.c.bf16 %v279, %v276
    %v286 = vpack.c.bf16 %v187, %v187
    %287 = vmatprep.subr.bf16.mxu0 0
    %288 = vmatpush1.bf16.xpose.msra.mxu0 %v282
    %289 = vmatprep.subr.bf16.mxu0 0
    %290 = vmatpush1.bf16.xpose.msra.mxu0 %v283
    %291 = vmatprep.subr.bf16.mxu0 0
    %292 = vmatpush1.bf16.xpose.msra.mxu0 %v284
    %293 = vmatprep.subr.bf16.mxu0 0
    %294 = vmatpush1.bf16.xpose.msra.mxu0 %v285
    %295 = vmatprep.subr.bf16.mxu0 0
    %296 = vmatpush1.bf16.xpose.msra.mxu0 0
    %297 = vmatprep.subr.bf16.mxu0 0
    %298 = vmatpush1.bf16.xpose.msra.mxu0 0
    %299 = vmatprep.subr.bf16.mxu0 0
    %300 = vmatpush1.bf16.xpose.msra.mxu0 0
    %301 = vmatprep.subr.bf16.mxu0 0
    %302 = vmatpush1.bf16.xpose.msra.mxu0 0
    %303 = vmatprep.subr.bf16.mxu0 0
    %304 = vmatpush1.bf16.xpose.msra.mxu0 0
    %305 = vmatprep.subr.bf16.mxu0 0
    %306 = vmatpush1.bf16.xpose.msra.mxu0 0
    %307 = vmatprep.subr.bf16.mxu0 0
    %308 = vmatpush1.bf16.xpose.msra.mxu0 0
    %309 = vmatprep.subr.bf16.mxu0 0
    %310 = vmatpush1.bf16.xpose.msra.mxu0 0
    %311 = vmatprep.subr.bf16.mxu0 0
    %312 = vmatpush1.bf16.xpose.msra.mxu0 0
    %313 = vmatprep.subr.bf16.mxu0 0
    %314 = vmatpush1.bf16.xpose.msra.mxu0 0
    %315 = vmatprep.subr.bf16.mxu0 0
    %316 = vmatpush1.bf16.xpose.msra.mxu0 0
    %317 = vmatprep.subr.bf16.mxu0 0
    %318 = vmatpush1.bf16.xpose.msra.mxu0 0
    %319 = vmatprep.mubr.bf16.mxu0 0
    %320 = vmatmul.mubr.bf16.gmra.mrb[0].mxu0 %v286
    %v321 = vpop.f32.mrb[0].mxu0
    %v322 = vadd.f32 0.0, %v321
    %v323 = vpop.f32.mrb[0].mxu0
    %v324 = vpop.f32.mrb[0].mxu0
    %v325 = vpop.f32.mrb[0].mxu0
    %326 = vdwg.mxu0
    %v327 = vpack.c.bf16 %v189, %v188
    %v328 = vpack.c.bf16 %v191, %v190
    %v329 = vpack.c.bf16 %v193, %v192
    %v330 = vpack.c.bf16 %v195, %v194
    %v331 = vpack.c.bf16 %v197, %v196
    %v332 = vpack.c.bf16 %v199, %v198
    %v333 = vpack.c.bf16 %v201, %v200
    %v334 = vpack.c.bf16 %v203, %v202
    %335 = vmatprep.subr.bf16.mxu0 0
    %336 = vmatpush1.bf16.msra.mxu0 %v327
    %337 = vmatprep.subr.bf16.mxu0 0
    %338 = vmatpush1.bf16.msra.mxu0 %v328
    %339 = vmatprep.subr.bf16.mxu0 0
    %340 = vmatpush1.bf16.msra.mxu0 %v329
    %341 = vmatprep.subr.bf16.mxu0 0
    %342 = vmatpush1.bf16.msra.mxu0 %v330
    %343 = vmatprep.subr.bf16.mxu0 0
    %344 = vmatpush1.bf16.msra.mxu0 %v331
    %345 = vmatprep.subr.bf16.mxu0 0
    %346 = vmatpush1.bf16.msra.mxu0 %v332
    %347 = vmatprep.subr.bf16.mxu0 0
    %348 = vmatpush1.bf16.msra.mxu0 %v333
    %349 = vmatprep.subr.bf16.mxu0 0
    %350 = vmatpush1.bf16.msra.mxu0 %v334
    %351 = vmatprep.subr.bf16.mxu0 0
    %352 = vmatpush1.bf16.msra.mxu0 0
    %353 = vmatprep.subr.bf16.mxu0 0
    %354 = vmatpush1.bf16.msra.mxu0 0
    %355 = vmatprep.subr.bf16.mxu0 0
    %356 = vmatpush1.bf16.msra.mxu0 0
    %357 = vmatprep.subr.bf16.mxu0 0
    %358 = vmatpush1.bf16.msra.mxu0 0
    %359 = vmatprep.subr.bf16.mxu0 0
    %360 = vmatpush1.bf16.msra.mxu0 0
    %361 = vmatprep.subr.bf16.mxu0 0
    %362 = vmatpush1.bf16.msra.mxu0 0
    %363 = vmatprep.subr.bf16.mxu0 0
    %364 = vmatpush1.bf16.msra.mxu0 0
    %365 = vmatprep.subr.bf16.mxu0 0
    %366 = vmatpush1.bf16.msra.mxu0 0
    %367 = vmatprep.mubr.bf16.mxu0 0
    %368 = vmatmul.mubr.bf16.gmra.mrb[0].mxu0 %v282
    %v369 = vpop.f32.mrb[0].mxu0
    %v370 = vadd.f32 0.0, %v369
    %v371 = vpop.f32.mrb[0].mxu0
    %v372 = vpop.f32.mrb[0].mxu0
    %v373 = vadd.f32 0.0, %v372
    %v374 = vpop.f32.mrb[0].mxu0
    %375 = vmatprep.mubr.bf16.mxu0 0
    %376 = vmatmul.mubr.bf16.gmra.mrb[0].mxu0 %v283
    %v377 = vpop.f32.mrb[0].mxu0
    %v378 = vadd.f32 0.0, %v377
    %v379 = vpop.f32.mrb[0].mxu0
    %v380 = vpop.f32.mrb[0].mxu0
    %v381 = vadd.f32 0.0, %v380
    %v382 = vpop.f32.mrb[0].mxu0
    %383 = vmatprep.mubr.bf16.mxu0 0
    %384 = vmatmul.mubr.bf16.gmra.mrb[0].mxu0 %v284
    %v385 = vpop.f32.mrb[0].mxu0
    %v386 = vadd.f32 0.0, %v385
    %v387 = vpop.f32.mrb[0].mxu0
    %v388 = vpop.f32.mrb[0].mxu0
    %v389 = vadd.f32 0.0, %v388
    %v390 = vpop.f32.mrb[0].mxu0
    %391 = vmatprep.mubr.bf16.mxu0 0
    %392 = vmatmul.mubr.bf16.gmra.mrb[0].mxu0 %v285
    %v393 = vpop.f32.mrb[0].mxu0
    %v394 = vadd.f32 0.0, %v393
    %v395 = vpop.f32.mrb[0].mxu0
    %v396 = vpop.f32.mrb[0].mxu0
    %v397 = vadd.f32 0.0, %v396
    %v398 = vpop.f32.mrb[0].mxu0
    %399 = vdwg.mxu0
    %401 = vset.pattern.permute.xlu0 0
    %402 = vperm.xlu0 %401, %v370
    %v403 = vpop.permute.xlu0 %402
    %406 = vset.pattern.permute.xlu0 0
    %407 = vperm.xlu0 %406, %v373
    %v408 = vpop.permute.xlu0 %407
    %411 = vset.pattern.permute.xlu0 0
    %412 = vperm.xlu0 %411, %v378
    %v413 = vpop.permute.xlu0 %412
    %416 = vset.pattern.permute.xlu0 0
    %417 = vperm.xlu0 %416, %v381
    %v418 = vpop.permute.xlu0 %417
    %421 = vset.pattern.permute.xlu0 0
    %422 = vperm.xlu0 %421, %v386
    %v423 = vpop.permute.xlu0 %422
    %426 = vset.pattern.permute.xlu0 0
    %427 = vperm.xlu0 %426, %v389
    %v428 = vpop.permute.xlu0 %427
    %431 = vset.pattern.permute.xlu0 0
    %432 = vperm.xlu0 %431, %v394
    %v433 = vpop.permute.xlu0 %432
    %436 = vset.pattern.permute.xlu0 0
    %437 = vperm.xlu0 %436, %v397
    %v438 = vpop.permute.xlu0 %437
    %v440 = vlaneseq
    %v441 = vshrl.u32 %v440, 7
    %v442 = vsub.s32 0, %v441
    %v443 = vrot.slane %v322, %v442
    %v444 = vadd.f32 %v403, %v443
    %v445 = vadd.f32 %v408, %v443
    %v446 = vadd.f32 %v413, %v443
    %v447 = vadd.f32 %v418, %v443
    %v448 = vadd.f32 %v423, %v443
    %v449 = vadd.f32 %v428, %v443
    %v450 = vadd.f32 %v433, %v443
    %v451 = vadd.f32 %v438, %v443
    %vm452 = vcmp.gt.f32.partialorder %v444, 0.0
    %vm453 = vcmp.gt.f32.partialorder %v445, 0.0
    %vm454 = vcmp.gt.f32.partialorder %v446, 0.0
    %vm455 = vcmp.gt.f32.partialorder %v447, 0.0
    %vm456 = vcmp.gt.f32.partialorder %v448, 0.0
    %vm457 = vcmp.gt.f32.partialorder %v449, 0.0
    %vm458 = vcmp.gt.f32.partialorder %v450, 0.0
    %vm459 = vcmp.gt.f32.partialorder %v451, 0.0
    %v460 = vmul.f32 %v444, 0.2
    %v461 = vmul.f32 %v445, 0.2
    %v462 = vmul.f32 %v446, 0.2
    %v463 = vmul.f32 %v447, 0.2
    %v464 = vmul.f32 %v448, 0.2
    %v465 = vmul.f32 %v449, 0.2
    %v466 = vmul.f32 %v450, 0.2
    %v467 = vmul.f32 %v451, 0.2
    %v468 = vsel %vm452, %v444, %v460
    %v469 = vsel %vm453, %v445, %v461
    %v470 = vsel %vm454, %v446, %v462
    %v471 = vsel %vm455, %v447, %v463
    %v472 = vsel %vm456, %v448, %v464
    %v473 = vsel %vm457, %v449, %v465
    %v474 = vsel %vm458, %v450, %v466
    %v475 = vsel %vm459, %v451, %v467
    %v476 = vadd.f32 %v468, %v155
    %v477 = vadd.f32 %v469, %v156
    %v478 = vadd.f32 %v470, %v157
    %v479 = vadd.f32 %v471, %v158
    %v480 = vadd.f32 %v472, %v159
    %v481 = vadd.f32 %v473, %v160
    %v482 = vadd.f32 %v474, %v161
    %v483 = vadd.f32 %v475, %v162
    %vm484 = vcmask 523264
    %v485 = vsel %vm484, %v476, -inf
    %486 = vmax.xlane.f32.xlu0 %v485
    %v487 = vpop.xlane.xlu0 %486
    %v488 = vsel %vm484, %v477, -inf
    %489 = vmax.xlane.f32.xlu0 %v488
    %v490 = vpop.xlane.xlu0 %489
    %v491 = vsel %vm484, %v478, -inf
    %492 = vmax.xlane.f32.xlu0 %v491
    %v493 = vpop.xlane.xlu0 %492
    %v494 = vsel %vm484, %v479, -inf
    %495 = vmax.xlane.f32.xlu0 %v494
    %v496 = vpop.xlane.xlu0 %495
    %v497 = vsel %vm484, %v480, -inf
    %498 = vmax.xlane.f32.xlu0 %v497
    %v499 = vpop.xlane.xlu0 %498
    %v500 = vsel %vm484, %v481, -inf
    %501 = vmax.xlane.f32.xlu0 %v500
    %v502 = vpop.xlane.xlu0 %501
    %v503 = vsel %vm484, %v482, -inf
    %504 = vmax.xlane.f32.xlu0 %v503
    %v505 = vpop.xlane.xlu0 %504
    %v506 = vsel %vm484, %v483, -inf
    %507 = vmax.xlane.f32.xlu0 %v506
    %v508 = vpop.xlane.xlu0 %507
    %v509 = vsub.f32 %v476, %v487
    %v510 = vsub.f32 %v477, %v490
    %v511 = vsub.f32 %v478, %v493
    %v512 = vsub.f32 %v479, %v496
    %v513 = vsub.f32 %v480, %v499
    %v514 = vsub.f32 %v481, %v502
    %v515 = vsub.f32 %v482, %v505
    %v516 = vsub.f32 %v483, %v508
    %v517 = vmul.f32 %v509, 1.442695
    %v518 = vpow.pop %v517
    %v519 = vmul.f32 %v510, 1.442695
    %v520 = vpow.pop %v519
    %v521 = vmul.f32 %v511, 1.442695
    %v522 = vpow.pop %v521
    %v523 = vmul.f32 %v512, 1.442695
    %v524 = vpow.pop %v523
    %v525 = vmul.f32 %v513, 1.442695
    %v526 = vpow.pop %v525
    %v527 = vmul.f32 %v514, 1.442695
    %v528 = vpow.pop %v527
    %v529 = vmul.f32 %v515, 1.442695
    %v530 = vpow.pop %v529
    %v531 = vmul.f32 %v516, 1.442695
    %v532 = vpow.pop %v531
    %v533 = vsel %vm484, %v518, 0.0
    %534 = vadd.xlane.f32.xlu0 %v533
    %v535 = vpop.xlane.xlu0 %534
    %v536 = vsel %vm484, %v520, 0.0
    %537 = vadd.xlane.f32.xlu0 %v536
    %v538 = vpop.xlane.xlu0 %537
    %v539 = vsel %vm484, %v522, 0.0
    %540 = vadd.xlane.f32.xlu0 %v539
    %v541 = vpop.xlane.xlu0 %540
    %v542 = vsel %vm484, %v524, 0.0
    %543 = vadd.xlane.f32.xlu0 %v542
    %v544 = vpop.xlane.xlu0 %543
    %v545 = vsel %vm484, %v526, 0.0
    %546 = vadd.xlane.f32.xlu0 %v545
    %v547 = vpop.xlane.xlu0 %546
    %v548 = vsel %vm484, %v528, 0.0
    %549 = vadd.xlane.f32.xlu0 %v548
    %v550 = vpop.xlane.xlu0 %549
    %v551 = vsel %vm484, %v530, 0.0
    %552 = vadd.xlane.f32.xlu0 %v551
    %v553 = vpop.xlane.xlu0 %552
    %v554 = vsel %vm484, %v532, 0.0
    %555 = vadd.xlane.f32.xlu0 %v554
    %v556 = vpop.xlane.xlu0 %555
    %v557 = vrcp.pop %v535
    %v558 = vrcp.pop %v538
    %v559 = vrcp.pop %v541
    %v560 = vrcp.pop %v544
    %v561 = vrcp.pop %v547
    %v562 = vrcp.pop %v550
    %v563 = vrcp.pop %v553
    %v564 = vrcp.pop %v556
    %v565 = vmul.f32 %v518, %v557
    %v566 = vmul.f32 %v520, %v558
    %v567 = vmul.f32 %v522, %v559
    %v568 = vmul.f32 %v524, %v560
    %v569 = vmul.f32 %v526, %v561
    %v570 = vmul.f32 %v528, %v562
    %v571 = vmul.f32 %v530, %v563
    %v572 = vmul.f32 %v532, %v564
    %v573 = vpack.c.bf16 %v566, %v565
    %v574 = vpack.c.bf16 %v568, %v567
    %v575 = vpack.c.bf16 %v570, %v569
    %v576 = vpack.c.bf16 %v572, %v571
    %v578 = vsel %vm484, %v573, 0
    %v581 = vsel %vm484, %v574, 0
    %v584 = vsel %vm484, %v575, 0
    %v587 = vsel %vm484, %v576, 0
    %589 = vmatprep.subr.bf16.mxu0 0
    %590 = vmatpush1.bf16.msra.mxu0 %v282
    %591 = vmatprep.subr.bf16.mxu0 0
    %592 = vmatpush1.bf16.msra.mxu0 %v283
    %593 = vmatprep.subr.bf16.mxu0 0
    %594 = vmatpush1.bf16.msra.mxu0 %v284
    %595 = vmatprep.subr.bf16.mxu0 0
    %596 = vmatpush1.bf16.msra.mxu0 %v285
    %597 = vmatprep.subr.bf16.mxu0 0
    %598 = vmatpush1.bf16.msra.mxu0 0
    %599 = vmatprep.subr.bf16.mxu0 0
    %600 = vmatpush1.bf16.msra.mxu0 0
    %601 = vmatprep.subr.bf16.mxu0 0
    %602 = vmatpush1.bf16.msra.mxu0 0
    %603 = vmatprep.subr.bf16.mxu0 0
    %604 = vmatpush1.bf16.msra.mxu0 0
    %605 = vmatprep.subr.bf16.mxu0 0
    %606 = vmatpush1.bf16.msra.mxu0 0
    %607 = vmatprep.subr.bf16.mxu0 0
    %608 = vmatpush1.bf16.msra.mxu0 0
    %609 = vmatprep.subr.bf16.mxu0 0
    %610 = vmatpush1.bf16.msra.mxu0 0
    %611 = vmatprep.subr.bf16.mxu0 0
    %612 = vmatpush1.bf16.msra.mxu0 0
    %613 = vmatprep.subr.bf16.mxu0 0
    %614 = vmatpush1.bf16.msra.mxu0 0
    %615 = vmatprep.subr.bf16.mxu0 0
    %616 = vmatpush1.bf16.msra.mxu0 0
    %617 = vmatprep.subr.bf16.mxu0 0
    %618 = vmatpush1.bf16.msra.mxu0 0
    %619 = vmatprep.subr.bf16.mxu0 0
    %620 = vmatpush1.bf16.msra.mxu0 0
    %621 = vmatprep.mubr.bf16.mxu0 0
    %622 = vmatmul.mubr.bf16.gmra.mrb[0].mxu0 %v578
    %v623 = vpop.f32.mrb[0].mxu0
    %v624 = vadd.f32 0.0, %v623
    %v625 = vpop.f32.mrb[0].mxu0
    %v626 = vpop.f32.mrb[0].mxu0
    %v627 = vadd.f32 0.0, %v626
    %v628 = vpop.f32.mrb[0].mxu0
    %629 = vmatprep.mubr.bf16.mxu0 0
    %630 = vmatmul.mubr.bf16.gmra.mrb[0].mxu0 %v581
    %v631 = vpop.f32.mrb[0].mxu0
    %v632 = vadd.f32 0.0, %v631
    %v633 = vpop.f32.mrb[0].mxu0
    %v634 = vpop.f32.mrb[0].mxu0
    %v635 = vadd.f32 0.0, %v634
    %v636 = vpop.f32.mrb[0].mxu0
    %637 = vmatprep.mubr.bf16.mxu0 0
    %638 = vmatmul.mubr.bf16.gmra.mrb[0].mxu0 %v584
    %v639 = vpop.f32.mrb[0].mxu0
    %v640 = vadd.f32 0.0, %v639
    %v641 = vpop.f32.mrb[0].mxu0
    %v642 = vpop.f32.mrb[0].mxu0
    %v643 = vadd.f32 0.0, %v642
    %v644 = vpop.f32.mrb[0].mxu0
    %645 = vmatprep.mubr.bf16.mxu0 0
    %646 = vmatmul.mubr.bf16.gmra.mrb[0].mxu0 %v587
    %v647 = vpop.f32.mrb[0].mxu0
    %v648 = vadd.f32 0.0, %v647
    %v649 = vpop.f32.mrb[0].mxu0
    %v650 = vpop.f32.mrb[0].mxu0
    %v651 = vadd.f32 0.0, %v650
    %v652 = vpop.f32.mrb[0].mxu0
    %653 = vdwg.mxu0
    %vm654 = vcmask 64512
    %655 = vst.msk [vmem:[#allocation2] sm:$0xff] %vm654, %v624
    %656 = vst.msk [vmem:[#allocation2 + $0x8] sm:$0xff] %vm654, %v627
    %657 = vst.msk [vmem:[#allocation2 + $0x10] sm:$0xff] %vm654, %v632
    %658 = vst.msk [vmem:[#allocation2 + $0x18] sm:$0xff] %vm654, %v635
    %659 = vst.msk [vmem:[#allocation2 + $0x20] sm:$0xff] %vm654, %v640
    %660 = vst.msk [vmem:[#allocation2 + $0x28] sm:$0xff] %vm654, %v643
    %661 = vst.msk [vmem:[#allocation2 + $0x30] sm:$0xff] %vm654, %v648
    %662 = vst.msk [vmem:[#allocation2 + $0x38] sm:$0xff] %vm654, %v651
    %663 = vset.pattern.permute.xlu0 1
    %664 = vperm.xlu0 %663, %v370
    %v665 = vpop.permute.xlu0 %664
    %667 = vset.pattern.permute.xlu0 1
    %668 = vperm.xlu0 %667, %v373
    %v669 = vpop.permute.xlu0 %668
    %671 = vset.pattern.permute.xlu0 1
    %672 = vperm.xlu0 %671, %v378
    %v673 = vpop.permute.xlu0 %672
    %675 = vset.pattern.permute.xlu0 1
    %676 = vperm.xlu0 %675, %v381
    %v677 = vpop.permute.xlu0 %676
    %679 = vset.pattern.permute.xlu0 1
    %680 = vperm.xlu0 %679, %v386
    %v681 = vpop.permute.xlu0 %680
    %683 = vset.pattern.permute.xlu0 1
    %684 = vperm.xlu0 %683, %v389
    %v685 = vpop.permute.xlu0 %684
    %687 = vset.pattern.permute.xlu0 1
    %688 = vperm.xlu0 %687, %v394
    %v689 = vpop.permute.xlu0 %688
    %691 = vset.pattern.permute.xlu0 1
    %692 = vperm.xlu0 %691, %v397
    %v693 = vpop.permute.xlu0 %692
    %v695 = vlaneseq
    %v696 = vshrl.u32 %v695, 7
    %v697 = vsub.s32 1, %v696
    %v698 = vrot.slane %v322, %v697
    %v699 = vadd.f32 %v665, %v698
    %v700 = vadd.f32 %v669, %v698
    %v701 = vadd.f32 %v673, %v698
    %v702 = vadd.f32 %v677, %v698
    %v703 = vadd.f32 %v681, %v698
    %v704 = vadd.f32 %v685, %v698
    %v705 = vadd.f32 %v689, %v698
    %v706 = vadd.f32 %v693, %v698
    %vm707 = vcmp.gt.f32.partialorder %v699, 0.0
    %vm708 = vcmp.gt.f32.partialorder %v700, 0.0
    %vm709 = vcmp.gt.f32.partialorder %v701, 0.0
    %vm710 = vcmp.gt.f32.partialorder %v702, 0.0
    %vm711 = vcmp.gt.f32.partialorder %v703, 0.0
    %vm712 = vcmp.gt.f32.partialorder %v704, 0.0
    %vm713 = vcmp.gt.f32.partialorder %v705, 0.0
    %vm714 = vcmp.gt.f32.partialorder %v706, 0.0
    %v715 = vmul.f32 %v699, 0.2
    %v716 = vmul.f32 %v700, 0.2
    %v717 = vmul.f32 %v701, 0.2
    %v718 = vmul.f32 %v702, 0.2
    %v719 = vmul.f32 %v703, 0.2
    %v720 = vmul.f32 %v704, 0.2
    %v721 = vmul.f32 %v705, 0.2
    %v722 = vmul.f32 %v706, 0.2
    %v723 = vsel %vm707, %v699, %v715
    %v724 = vsel %vm708, %v700, %v716
    %v725 = vsel %vm709, %v701, %v717
    %v726 = vsel %vm710, %v702, %v718
    %v727 = vsel %vm711, %v703, %v719
    %v728 = vsel %vm712, %v704, %v720
    %v729 = vsel %vm713, %v705, %v721
    %v730 = vsel %vm714, %v706, %v722
    %v731 = vadd.f32 %v723, %v155
    %v732 = vadd.f32 %v724, %v156
    %v733 = vadd.f32 %v725, %v157
    %v734 = vadd.f32 %v726, %v158
    %v735 = vadd.f32 %v727, %v159
    %v736 = vadd.f32 %v728, %v160
    %v737 = vadd.f32 %v729, %v161
    %v738 = vadd.f32 %v730, %v162
    %v739 = vsel %vm484, %v731, -inf
    %740 = vmax.xlane.f32.xlu0 %v739
    %v741 = vpop.xlane.xlu0 %740
    %v742 = vsel %vm484, %v732, -inf
    %743 = vmax.xlane.f32.xlu0 %v742
    %v744 = vpop.xlane.xlu0 %743
    %v745 = vsel %vm484, %v733, -inf
    %746 = vmax.xlane.f32.xlu0 %v745
    %v747 = vpop.xlane.xlu0 %746
    %v748 = vsel %vm484, %v734, -inf
    %749 = vmax.xlane.f32.xlu0 %v748
    %v750 = vpop.xlane.xlu0 %749
    %v751 = vsel %vm484, %v735, -inf
    %752 = vmax.xlane.f32.xlu0 %v751
    %v753 = vpop.xlane.xlu0 %752
    %v754 = vsel %vm484, %v736, -inf
    %755 = vmax.xlane.f32.xlu0 %v754
    %v756 = vpop.xlane.xlu0 %755
    %v757 = vsel %vm484, %v737, -inf
    %758 = vmax.xlane.f32.xlu0 %v757
    %v759 = vpop.xlane.xlu0 %758
    %v760 = vsel %vm484, %v738, -inf
    %761 = vmax.xlane.f32.xlu0 %v760
    %v762 = vpop.xlane.xlu0 %761
    %v763 = vsub.f32 %v731, %v741
    %v764 = vsub.f32 %v732, %v744
    %v765 = vsub.f32 %v733, %v747
    %v766 = vsub.f32 %v734, %v750
    %v767 = vsub.f32 %v735, %v753
    %v768 = vsub.f32 %v736, %v756
    %v769 = vsub.f32 %v737, %v759
    %v770 = vsub.f32 %v738, %v762
    %v771 = vmul.f32 %v763, 1.442695
    %v772 = vpow.pop %v771
    %v773 = vmul.f32 %v764, 1.442695
    %v774 = vpow.pop %v773
    %v775 = vmul.f32 %v765, 1.442695
    %v776 = vpow.pop %v775
    %v777 = vmul.f32 %v766, 1.442695
    %v778 = vpow.pop %v777
    %v779 = vmul.f32 %v767, 1.442695
    %v780 = vpow.pop %v779
    %v781 = vmul.f32 %v768, 1.442695
    %v782 = vpow.pop %v781
    %v783 = vmul.f32 %v769, 1.442695
    %v784 = vpow.pop %v783
    %v785 = vmul.f32 %v770, 1.442695
    %v786 = vpow.pop %v785
    %v787 = vsel %vm484, %v772, 0.0
    %788 = vadd.xlane.f32.xlu0 %v787
    %v789 = vpop.xlane.xlu0 %788
    %v790 = vsel %vm484, %v774, 0.0
    %791 = vadd.xlane.f32.xlu0 %v790
    %v792 = vpop.xlane.xlu0 %791
    %v793 = vsel %vm484, %v776, 0.0
    %794 = vadd.xlane.f32.xlu0 %v793
    %v795 = vpop.xlane.xlu0 %794
    %v796 = vsel %vm484, %v778, 0.0
    %797 = vadd.xlane.f32.xlu0 %v796
    %v798 = vpop.xlane.xlu0 %797
    %v799 = vsel %vm484, %v780, 0.0
    %800 = vadd.xlane.f32.xlu0 %v799
    %v801 = vpop.xlane.xlu0 %800
    %v802 = vsel %vm484, %v782, 0.0
    %803 = vadd.xlane.f32.xlu0 %v802
    %v804 = vpop.xlane.xlu0 %803
    %v805 = vsel %vm484, %v784, 0.0
    %806 = vadd.xlane.f32.xlu0 %v805
    %v807 = vpop.xlane.xlu0 %806
    %v808 = vsel %vm484, %v786, 0.0
    %809 = vadd.xlane.f32.xlu0 %v808
    %v810 = vpop.xlane.xlu0 %809
    %v811 = vrcp.pop %v789
    %v812 = vrcp.pop %v792
    %v813 = vrcp.pop %v795
    %v814 = vrcp.pop %v798
    %v815 = vrcp.pop %v801
    %v816 = vrcp.pop %v804
    %v817 = vrcp.pop %v807
    %v818 = vrcp.pop %v810
    %v819 = vmul.f32 %v772, %v811
    %v820 = vmul.f32 %v774, %v812
    %v821 = vmul.f32 %v776, %v813
    %v822 = vmul.f32 %v778, %v814
    %v823 = vmul.f32 %v780, %v815
    %v824 = vmul.f32 %v782, %v816
    %v825 = vmul.f32 %v784, %v817
    %v826 = vmul.f32 %v786, %v818
    %v827 = vpack.c.bf16 %v820, %v819
    %v828 = vpack.c.bf16 %v822, %v821
    %v829 = vpack.c.bf16 %v824, %v823
    %v830 = vpack.c.bf16 %v826, %v825
    %835 = vrot.lane.b32.xlu0 %v282, 120
    %v836 = vpop.permute.xlu0 %835
    %837 = vrot.lane.b32.xlu0 %v283, 120
    %v838 = vpop.permute.xlu0 %837
    %839 = vrot.lane.b32.xlu0 %v284, 120
    %v840 = vpop.permute.xlu0 %839
    %841 = vrot.lane.b32.xlu0 %v285, 120
    %v842 = vpop.permute.xlu0 %841
    %v848 = vsel %vm484, %v827, 0
    %v851 = vsel %vm484, %v828, 0
    %v854 = vsel %vm484, %v829, 0
    %v857 = vsel %vm484, %v830, 0
    %859 = vmatprep.subr.bf16.mxu0 0
    %860 = vmatpush1.bf16.msra.mxu0 %v836
    %861 = vmatprep.subr.bf16.mxu0 0
    %862 = vmatpush1.bf16.msra.mxu0 %v838
    %863 = vmatprep.subr.bf16.mxu0 0
    %864 = vmatpush1.bf16.msra.mxu0 %v840
    %865 = vmatprep.subr.bf16.mxu0 0
    %866 = vmatpush1.bf16.msra.mxu0 %v842
    %867 = vmatprep.subr.bf16.mxu0 0
    %868 = vmatpush1.bf16.msra.mxu0 0
    %869 = vmatprep.subr.bf16.mxu0 0
    %870 = vmatpush1.bf16.msra.mxu0 0
    %871 = vmatprep.subr.bf16.mxu0 0
    %872 = vmatpush1.bf16.msra.mxu0 0
    %873 = vmatprep.subr.bf16.mxu0 0
    %874 = vmatpush1.bf16.msra.mxu0 0
    %875 = vmatprep.subr.bf16.mxu0 0
    %876 = vmatpush1.bf16.msra.mxu0 0
    %877 = vmatprep.subr.bf16.mxu0 0
    %878 = vmatpush1.bf16.msra.mxu0 0
    %879 = vmatprep.subr.bf16.mxu0 0
    %880 = vmatpush1.bf16.msra.mxu0 0
    %881 = vmatprep.subr.bf16.mxu0 0
    %882 = vmatpush1.bf16.msra.mxu0 0
    %883 = vmatprep.subr.bf16.mxu0 0
    %884 = vmatpush1.bf16.msra.mxu0 0
    %885 = vmatprep.subr.bf16.mxu0 0
    %886 = vmatpush1.bf16.msra.mxu0 0
    %887 = vmatprep.subr.bf16.mxu0 0
    %888 = vmatpush1.bf16.msra.mxu0 0
    %889 = vmatprep.subr.bf16.mxu0 0
    %890 = vmatpush1.bf16.msra.mxu0 0
    %891 = vmatprep.mubr.bf16.mxu0 0
    %892 = vmatmul.mubr.bf16.gmra.mrb[0].mxu0 %v848
    %v893 = vpop.f32.mrb[0].mxu0
    %v894 = vadd.f32 0.0, %v893
    %v895 = vpop.f32.mrb[0].mxu0
    %v896 = vpop.f32.mrb[0].mxu0
    %v897 = vadd.f32 0.0, %v896
    %v898 = vpop.f32.mrb[0].mxu0
    %899 = vmatprep.mubr.bf16.mxu0 0
    %900 = vmatmul.mubr.bf16.gmra.mrb[0].mxu0 %v851
    %v901 = vpop.f32.mrb[0].mxu0
    %v902 = vadd.f32 0.0, %v901
    %v903 = vpop.f32.mrb[0].mxu0
    %v904 = vpop.f32.mrb[0].mxu0
    %v905 = vadd.f32 0.0, %v904
    %v906 = vpop.f32.mrb[0].mxu0
    %907 = vmatprep.mubr.bf16.mxu0 0
    %908 = vmatmul.mubr.bf16.gmra.mrb[0].mxu0 %v854
    %v909 = vpop.f32.mrb[0].mxu0
    %v910 = vadd.f32 0.0, %v909
    %v911 = vpop.f32.mrb[0].mxu0
    %v912 = vpop.f32.mrb[0].mxu0
    %v913 = vadd.f32 0.0, %v912
    %v914 = vpop.f32.mrb[0].mxu0
    %915 = vmatprep.mubr.bf16.mxu0 0
    %916 = vmatmul.mubr.bf16.gmra.mrb[0].mxu0 %v857
    %v917 = vpop.f32.mrb[0].mxu0
    %v918 = vadd.f32 0.0, %v917
    %v919 = vpop.f32.mrb[0].mxu0
    %v920 = vpop.f32.mrb[0].mxu0
    %v921 = vadd.f32 0.0, %v920
    %v922 = vpop.f32.mrb[0].mxu0
    %923 = vdwg.mxu0
    %932 = vrot.lane.b32.xlu0 %v894, 8
    %v933 = vpop.permute.xlu0 %932
    %934 = vrot.lane.b32.xlu0 %v897, 8
    %v935 = vpop.permute.xlu0 %934
    %936 = vrot.lane.b32.xlu0 %v902, 8
    %v937 = vpop.permute.xlu0 %936
    %938 = vrot.lane.b32.xlu0 %v905, 8
    %v939 = vpop.permute.xlu0 %938
    %940 = vrot.lane.b32.xlu0 %v910, 8
    %v941 = vpop.permute.xlu0 %940
    %942 = vrot.lane.b32.xlu0 %v913, 8
    %v943 = vpop.permute.xlu0 %942
    %944 = vrot.lane.b32.xlu0 %v918, 8
    %v945 = vpop.permute.xlu0 %944
    %946 = vrot.lane.b32.xlu0 %v921, 8
    %v947 = vpop.permute.xlu0 %946
    %vm956 = vcmask 130112
    %957 = vst.msk [vmem:[#allocation2] sm:$0xff] %vm956, %v933
    %958 = vst.msk [vmem:[#allocation2 + $0x8] sm:$0xff] %vm956, %v935
    %959 = vst.msk [vmem:[#allocation2 + $0x10] sm:$0xff] %vm956, %v937
    %960 = vst.msk [vmem:[#allocation2 + $0x18] sm:$0xff] %vm956, %v939
    %961 = vst.msk [vmem:[#allocation2 + $0x20] sm:$0xff] %vm956, %v941
    %962 = vst.msk [vmem:[#allocation2 + $0x28] sm:$0xff] %vm956, %v943
    %963 = vst.msk [vmem:[#allocation2 + $0x30] sm:$0xff] %vm956, %v945
    %964 = vst.msk [vmem:[#allocation2 + $0x38] sm:$0xff] %vm956, %v947
    %965 = vset.pattern.permute.xlu0 2
    %966 = vperm.xlu0 %965, %v370
    %v967 = vpop.permute.xlu0 %966
    %969 = vset.pattern.permute.xlu0 2
    %970 = vperm.xlu0 %969, %v373
    %v971 = vpop.permute.xlu0 %970
    %973 = vset.pattern.permute.xlu0 2
    %974 = vperm.xlu0 %973, %v378
    %v975 = vpop.permute.xlu0 %974
    %977 = vset.pattern.permute.xlu0 2
    %978 = vperm.xlu0 %977, %v381
    %v979 = vpop.permute.xlu0 %978
    %981 = vset.pattern.permute.xlu0 2
    %982 = vperm.xlu0 %981, %v386
    %v983 = vpop.permute.xlu0 %982
    %985 = vset.pattern.permute.xlu0 2
    %986 = vperm.xlu0 %985, %v389
    %v987 = vpop.permute.xlu0 %986
    %989 = vset.pattern.permute.xlu0 2
    %990 = vperm.xlu0 %989, %v394
    %v991 = vpop.permute.xlu0 %990
    %993 = vset.pattern.permute.xlu0 2
    %994 = vperm.xlu0 %993, %v397
    %v995 = vpop.permute.xlu0 %994
    %v997 = vlaneseq
    %v998 = vshrl.u32 %v997, 7
    %v999 = vsub.s32 2, %v998
    %v1000 = vrot.slane %v322, %v999
    %v1001 = vadd.f32 %v967, %v1000
    %v1002 = vadd.f32 %v971, %v1000
    %v1003 = vadd.f32 %v975, %v1000
    %v1004 = vadd.f32 %v979, %v1000
    %v1005 = vadd.f32 %v983, %v1000
    %v1006 = vadd.f32 %v987, %v1000
    %v1007 = vadd.f32 %v991, %v1000
    %v1008 = vadd.f32 %v995, %v1000
    %vm1009 = vcmp.gt.f32.partialorder %v1001, 0.0
    %vm1010 = vcmp.gt.f32.partialorder %v1002, 0.0
    %vm1011 = vcmp.gt.f32.partialorder %v1003, 0.0
    %vm1012 = vcmp.gt.f32.partialorder %v1004, 0.0
    %vm1013 = vcmp.gt.f32.partialorder %v1005, 0.0
    %vm1014 = vcmp.gt.f32.partialorder %v1006, 0.0
    %vm1015 = vcmp.gt.f32.partialorder %v1007, 0.0
    %vm1016 = vcmp.gt.f32.partialorder %v1008, 0.0
    %v1017 = vmul.f32 %v1001, 0.2
    %v1018 = vmul.f32 %v1002, 0.2
    %v1019 = vmul.f32 %v1003, 0.2
    %v1020 = vmul.f32 %v1004, 0.2
    %v1021 = vmul.f32 %v1005, 0.2
    %v1022 = vmul.f32 %v1006, 0.2
    %v1023 = vmul.f32 %v1007, 0.2
    %v1024 = vmul.f32 %v1008, 0.2
    %v1025 = vsel %vm1009, %v1001, %v1017
    %v1026 = vsel %vm1010, %v1002, %v1018
    %v1027 = vsel %vm1011, %v1003, %v1019
    %v1028 = vsel %vm1012, %v1004, %v1020
    %v1029 = vsel %vm1013, %v1005, %v1021
    %v1030 = vsel %vm1014, %v1006, %v1022
    %v1031 = vsel %vm1015, %v1007, %v1023
    %v1032 = vsel %vm1016, %v1008, %v1024
    %v1033 = vadd.f32 %v1025, %v155
    %v1034 = vadd.f32 %v1026, %v156
    %v1035 = vadd.f32 %v1027, %v157
    %v1036 = vadd.f32 %v1028, %v158
    %v1037 = vadd.f32 %v1029, %v159
    %v1038 = vadd.f32 %v1030, %v160
    %v1039 = vadd.f32 %v1031, %v161
    %v1040 = vadd.f32 %v1032, %v162
    %v1041 = vsel %vm484, %v1033, -inf
    %1042 = vmax.xlane.f32.xlu0 %v1041
    %v1043 = vpop.xlane.xlu0 %1042
    %v1044 = vsel %vm484, %v1034, -inf
    %1045 = vmax.xlane.f32.xlu0 %v1044
    %v1046 = vpop.xlane.xlu0 %1045
    %v1047 = vsel %vm484, %v1035, -inf
    %1048 = vmax.xlane.f32.xlu0 %v1047
    %v1049 = vpop.xlane.xlu0 %1048
    %v1050 = vsel %vm484, %v1036, -inf
    %1051 = vmax.xlane.f32.xlu0 %v1050
    %v1052 = vpop.xlane.xlu0 %1051
    %v1053 = vsel %vm484, %v1037, -inf
    %1054 = vmax.xlane.f32.xlu0 %v1053
    %v1055 = vpop.xlane.xlu0 %1054
    %v1056 = vsel %vm484, %v1038, -inf
    %1057 = vmax.xlane.f32.xlu0 %v1056
    %v1058 = vpop.xlane.xlu0 %1057
    %v1059 = vsel %vm484, %v1039, -inf
    %1060 = vmax.xlane.f32.xlu0 %v1059
    %v1061 = vpop.xlane.xlu0 %1060
    %v1062 = vsel %vm484, %v1040, -inf
    %1063 = vmax.xlane.f32.xlu0 %v1062
    %v1064 = vpop.xlane.xlu0 %1063
    %v1065 = vsub.f32 %v1033, %v1043
    %v1066 = vsub.f32 %v1034, %v1046
    %v1067 = vsub.f32 %v1035, %v1049
    %v1068 = vsub.f32 %v1036, %v1052
    %v1069 = vsub.f32 %v1037, %v1055
    %v1070 = vsub.f32 %v1038, %v1058
    %v1071 = vsub.f32 %v1039, %v1061
    %v1072 = vsub.f32 %v1040, %v1064
    %v1073 = vmul.f32 %v1065, 1.442695
    %v1074 = vpow.pop %v1073
    %v1075 = vmul.f32 %v1066, 1.442695
    %v1076 = vpow.pop %v1075
    %v1077 = vmul.f32 %v1067, 1.442695
    %v1078 = vpow.pop %v1077
    %v1079 = vmul.f32 %v1068, 1.442695
    %v1080 = vpow.pop %v1079
    %v1081 = vmul.f32 %v1069, 1.442695
    %v1082 = vpow.pop %v1081
    %v1083 = vmul.f32 %v1070, 1.442695
    %v1084 = vpow.pop %v1083
    %v1085 = vmul.f32 %v1071, 1.442695
    %v1086 = vpow.pop %v1085
    %v1087 = vmul.f32 %v1072, 1.442695
    %v1088 = vpow.pop %v1087
    %v1089 = vsel %vm484, %v1074, 0.0
    %1090 = vadd.xlane.f32.xlu0 %v1089
    %v1091 = vpop.xlane.xlu0 %1090
    %v1092 = vsel %vm484, %v1076, 0.0
    %1093 = vadd.xlane.f32.xlu0 %v1092
    %v1094 = vpop.xlane.xlu0 %1093
    %v1095 = vsel %vm484, %v1078, 0.0
    %1096 = vadd.xlane.f32.xlu0 %v1095
    %v1097 = vpop.xlane.xlu0 %1096
    %v1098 = vsel %vm484, %v1080, 0.0
    %1099 = vadd.xlane.f32.xlu0 %v1098
    %v1100 = vpop.xlane.xlu0 %1099
    %v1101 = vsel %vm484, %v1082, 0.0
    %1102 = vadd.xlane.f32.xlu0 %v1101
    %v1103 = vpop.xlane.xlu0 %1102
    %v1104 = vsel %vm484, %v1084, 0.0
    %1105 = vadd.xlane.f32.xlu0 %v1104
    %v1106 = vpop.xlane.xlu0 %1105
    %v1107 = vsel %vm484, %v1086, 0.0
    %1108 = vadd.xlane.f32.xlu0 %v1107
    %v1109 = vpop.xlane.xlu0 %1108
    %v1110 = vsel %vm484, %v1088, 0.0
    %1111 = vadd.xlane.f32.xlu0 %v1110
    %v1112 = vpop.xlane.xlu0 %1111
    %v1113 = vrcp.pop %v1091
    %v1114 = vrcp.pop %v1094
    %v1115 = vrcp.pop %v1097
    %v1116 = vrcp.pop %v1100
    %v1117 = vrcp.pop %v1103
    %v1118 = vrcp.pop %v1106
    %v1119 = vrcp.pop %v1109
    %v1120 = vrcp.pop %v1112
    %v1121 = vmul.f32 %v1074, %v1113
    %v1122 = vmul.f32 %v1076, %v1114
    %v1123 = vmul.f32 %v1078, %v1115
    %v1124 = vmul.f32 %v1080, %v1116
    %v1125 = vmul.f32 %v1082, %v1117
    %v1126 = vmul.f32 %v1084, %v1118
    %v1127 = vmul.f32 %v1086, %v1119
    %v1128 = vmul.f32 %v1088, %v1120
    %v1129 = vpack.c.bf16 %v1122, %v1121
    %v1130 = vpack.c.bf16 %v1124, %v1123
    %v1131 = vpack.c.bf16 %v1126, %v1125
    %v1132 = vpack.c.bf16 %v1128, %v1127
    %1133 = vrot.lane.b32.xlu0 %v282, 112
    %v1134 = vpop.permute.xlu0 %1133
    %1135 = vrot.lane.b32.xlu0 %v283, 112
    %v1136 = vpop.permute.xlu0 %1135
    %1137 = vrot.lane.b32.xlu0 %v284, 112
    %v1138 = vpop.permute.xlu0 %1137
    %1139 = vrot.lane.b32.xlu0 %v285, 112
    %v1140 = vpop.permute.xlu0 %1139
    %v1146 = vsel %vm484, %v1129, 0
    %v1149 = vsel %vm484, %v1130, 0
    %v1152 = vsel %vm484, %v1131, 0
    %v1155 = vsel %vm484, %v1132, 0
    %1157 = vmatprep.subr.bf16.mxu0 0
    %1158 = vmatpush1.bf16.msra.mxu0 %v1134
    %1159 = vmatprep.subr.bf16.mxu0 0
    %1160 = vmatpush1.bf16.msra.mxu0 %v1136
    %1161 = vmatprep.subr.bf16.mxu0 0
    %1162 = vmatpush1.bf16.msra.mxu0 %v1138
    %1163 = vmatprep.subr.bf16.mxu0 0
    %1164 = vmatpush1.bf16.msra.mxu0 %v1140
    %1165 = vmatprep.subr.bf16.mxu0 0
    %1166 = vmatpush1.bf16.msra.mxu0 0
    %1167 = vmatprep.subr.bf16.mxu0 0
    %1168 = vmatpush1.bf16.msra.mxu0 0
    %1169 = vmatprep.subr.bf16.mxu0 0
    %1170 = vmatpush1.bf16.msra.mxu0 0
    %1171 = vmatprep.subr.bf16.mxu0 0
    %1172 = vmatpush1.bf16.msra.mxu0 0
    %1173 = vmatprep.subr.bf16.mxu0 0
    %1174 = vmatpush1.bf16.msra.mxu0 0
    %1175 = vmatprep.subr.bf16.mxu0 0
    %1176 = vmatpush1.bf16.msra.mxu0 0
    %1177 = vmatprep.subr.bf16.mxu0 0
    %1178 = vmatpush1.bf16.msra.mxu0 0
    %1179 = vmatprep.subr.bf16.mxu0 0
    %1180 = vmatpush1.bf16.msra.mxu0 0
    %1181 = vmatprep.subr.bf16.mxu0 0
    %1182 = vmatpush1.bf16.msra.mxu0 0
    %1183 = vmatprep.subr.bf16.mxu0 0
    %1184 = vmatpush1.bf16.msra.mxu0 0
    %1185 = vmatprep.subr.bf16.mxu0 0
    %1186 = vmatpush1.bf16.msra.mxu0 0
    %1187 = vmatprep.subr.bf16.mxu0 0
    %1188 = vmatpush1.bf16.msra.mxu0 0
    %1189 = vmatprep.mubr.bf16.mxu0 0
    %1190 = vmatmul.mubr.bf16.gmra.mrb[0].mxu0 %v1146
    %v1191 = vpop.f32.mrb[0].mxu0
    %v1192 = vadd.f32 0.0, %v1191
    %v1193 = vpop.f32.mrb[0].mxu0
    %v1194 = vpop.f32.mrb[0].mxu0
    %v1195 = vadd.f32 0.0, %v1194
    %v1196 = vpop.f32.mrb[0].mxu0
    %1197 = vmatprep.mubr.bf16.mxu0 0
    %1198 = vmatmul.mubr.bf16.gmra.mrb[0].mxu0 %v1149
    %v1199 = vpop.f32.mrb[0].mxu0
    %v1200 = vadd.f32 0.0, %v1199
    %v1201 = vpop.f32.mrb[0].mxu0
    %v1202 = vpop.f32.mrb[0].mxu0
    %v1203 = vadd.f32 0.0, %v1202
    %v1204 = vpop.f32.mrb[0].mxu0
    %1205 = vmatprep.mubr.bf16.mxu0 0
    %1206 = vmatmul.mubr.bf16.gmra.mrb[0].mxu0 %v1152
    %v1207 = vpop.f32.mrb[0].mxu0
    %v1208 = vadd.f32 0.0, %v1207
    %v1209 = vpop.f32.mrb[0].mxu0
    %v1210 = vpop.f32.mrb[0].mxu0
    %v1211 = vadd.f32 0.0, %v1210
    %v1212 = vpop.f32.mrb[0].mxu0
    %1213 = vmatprep.mubr.bf16.mxu0 0
    %1214 = vmatmul.mubr.bf16.gmra.mrb[0].mxu0 %v1155
    %v1215 = vpop.f32.mrb[0].mxu0
    %v1216 = vadd.f32 0.0, %v1215
    %v1217 = vpop.f32.mrb[0].mxu0
    %v1218 = vpop.f32.mrb[0].mxu0
    %v1219 = vadd.f32 0.0, %v1218
    %v1220 = vpop.f32.mrb[0].mxu0
    %1221 = vdwg.mxu0
    %1230 = vrot.lane.b32.xlu0 %v1192, 16
    %v1231 = vpop.permute.xlu0 %1230
    %1232 = vrot.lane.b32.xlu0 %v1195, 16
    %v1233 = vpop.permute.xlu0 %1232
    %1234 = vrot.lane.b32.xlu0 %v1200, 16
    %v1235 = vpop.permute.xlu0 %1234
    %1236 = vrot.lane.b32.xlu0 %v1203, 16
    %v1237 = vpop.permute.xlu0 %1236
    %1238 = vrot.lane.b32.xlu0 %v1208, 16
    %v1239 = vpop.permute.xlu0 %1238
    %1240 = vrot.lane.b32.xlu0 %v1211, 16
    %v1241 = vpop.permute.xlu0 %1240
    %1242 = vrot.lane.b32.xlu0 %v1216, 16
    %v1243 = vpop.permute.xlu0 %1242
    %1244 = vrot.lane.b32.xlu0 %v1219, 16
    %v1245 = vpop.permute.xlu0 %1244
    %vm1254 = vcmask 195712
    %1255 = vst.msk [vmem:[#allocation2] sm:$0xff] %vm1254, %v1231
    %1256 = vst.msk [vmem:[#allocation2 + $0x8] sm:$0xff] %vm1254, %v1233
    %1257 = vst.msk [vmem:[#allocation2 + $0x10] sm:$0xff] %vm1254, %v1235
    %1258 = vst.msk [vmem:[#allocation2 + $0x18] sm:$0xff] %vm1254, %v1237
    %1259 = vst.msk [vmem:[#allocation2 + $0x20] sm:$0xff] %vm1254, %v1239
    %1260 = vst.msk [vmem:[#allocation2 + $0x28] sm:$0xff] %vm1254, %v1241
    %1261 = vst.msk [vmem:[#allocation2 + $0x30] sm:$0xff] %vm1254, %v1243
    %1262 = vst.msk [vmem:[#allocation2 + $0x38] sm:$0xff] %vm1254, %v1245
    %1263 = vset.pattern.permute.xlu0 3
    %1264 = vperm.xlu0 %1263, %v370
    %v1265 = vpop.permute.xlu0 %1264
    %1267 = vset.pattern.permute.xlu0 3
    %1268 = vperm.xlu0 %1267, %v373
    %v1269 = vpop.permute.xlu0 %1268
    %1271 = vset.pattern.permute.xlu0 3
    %1272 = vperm.xlu0 %1271, %v378
    %v1273 = vpop.permute.xlu0 %1272
    %1275 = vset.pattern.permute.xlu0 3
    %1276 = vperm.xlu0 %1275, %v381
    %v1277 = vpop.permute.xlu0 %1276
    %1279 = vset.pattern.permute.xlu0 3
    %1280 = vperm.xlu0 %1279, %v386
    %v1281 = vpop.permute.xlu0 %1280
    %1283 = vset.pattern.permute.xlu0 3
    %1284 = vperm.xlu0 %1283, %v389
    %v1285 = vpop.permute.xlu0 %1284
    %1287 = vset.pattern.permute.xlu0 3
    %1288 = vperm.xlu0 %1287, %v394
    %v1289 = vpop.permute.xlu0 %1288
    %1291 = vset.pattern.permute.xlu0 3
    %1292 = vperm.xlu0 %1291, %v397
    %v1293 = vpop.permute.xlu0 %1292
    %v1295 = vlaneseq
    %v1296 = vshrl.u32 %v1295, 7
    %v1297 = vsub.s32 3, %v1296
    %v1298 = vrot.slane %v322, %v1297
    %v1299 = vadd.f32 %v1265, %v1298
    %v1300 = vadd.f32 %v1269, %v1298
    %v1301 = vadd.f32 %v1273, %v1298
    %v1302 = vadd.f32 %v1277, %v1298
    %v1303 = vadd.f32 %v1281, %v1298
    %v1304 = vadd.f32 %v1285, %v1298
    %v1305 = vadd.f32 %v1289, %v1298
    %v1306 = vadd.f32 %v1293, %v1298
    %vm1307 = vcmp.gt.f32.partialorder %v1299, 0.0
    %vm1308 = vcmp.gt.f32.partialorder %v1300, 0.0
    %vm1309 = vcmp.gt.f32.partialorder %v1301, 0.0
    %vm1310 = vcmp.gt.f32.partialorder %v1302, 0.0
    %vm1311 = vcmp.gt.f32.partialorder %v1303, 0.0
    %vm1312 = vcmp.gt.f32.partialorder %v1304, 0.0
    %vm1313 = vcmp.gt.f32.partialorder %v1305, 0.0
    %vm1314 = vcmp.gt.f32.partialorder %v1306, 0.0
    %v1315 = vmul.f32 %v1299, 0.2
    %v1316 = vmul.f32 %v1300, 0.2
    %v1317 = vmul.f32 %v1301, 0.2
    %v1318 = vmul.f32 %v1302, 0.2
    %v1319 = vmul.f32 %v1303, 0.2
    %v1320 = vmul.f32 %v1304, 0.2
    %v1321 = vmul.f32 %v1305, 0.2
    %v1322 = vmul.f32 %v1306, 0.2
    %v1323 = vsel %vm1307, %v1299, %v1315
    %v1324 = vsel %vm1308, %v1300, %v1316
    %v1325 = vsel %vm1309, %v1301, %v1317
    %v1326 = vsel %vm1310, %v1302, %v1318
    %v1327 = vsel %vm1311, %v1303, %v1319
    %v1328 = vsel %vm1312, %v1304, %v1320
    %v1329 = vsel %vm1313, %v1305, %v1321
    %v1330 = vsel %vm1314, %v1306, %v1322
    %v1331 = vadd.f32 %v1323, %v155
    %v1332 = vadd.f32 %v1324, %v156
    %v1333 = vadd.f32 %v1325, %v157
    %v1334 = vadd.f32 %v1326, %v158
    %v1335 = vadd.f32 %v1327, %v159
    %v1336 = vadd.f32 %v1328, %v160
    %v1337 = vadd.f32 %v1329, %v161
    %v1338 = vadd.f32 %v1330, %v162
    %v1339 = vsel %vm484, %v1331, -inf
    %1340 = vmax.xlane.f32.xlu0 %v1339
    %v1341 = vpop.xlane.xlu0 %1340
    %v1342 = vsel %vm484, %v1332, -inf
    %1343 = vmax.xlane.f32.xlu0 %v1342
    %v1344 = vpop.xlane.xlu0 %1343
    %v1345 = vsel %vm484, %v1333, -inf
    %1346 = vmax.xlane.f32.xlu0 %v1345
    %v1347 = vpop.xlane.xlu0 %1346
    %v1348 = vsel %vm484, %v1334, -inf
    %1349 = vmax.xlane.f32.xlu0 %v1348
    %v1350 = vpop.xlane.xlu0 %1349
    %v1351 = vsel %vm484, %v1335, -inf
    %1352 = vmax.xlane.f32.xlu0 %v1351
    %v1353 = vpop.xlane.xlu0 %1352
    %v1354 = vsel %vm484, %v1336, -inf
    %1355 = vmax.xlane.f32.xlu0 %v1354
    %v1356 = vpop.xlane.xlu0 %1355
    %v1357 = vsel %vm484, %v1337, -inf
    %1358 = vmax.xlane.f32.xlu0 %v1357
    %v1359 = vpop.xlane.xlu0 %1358
    %v1360 = vsel %vm484, %v1338, -inf
    %1361 = vmax.xlane.f32.xlu0 %v1360
    %v1362 = vpop.xlane.xlu0 %1361
    %v1363 = vsub.f32 %v1331, %v1341
    %v1364 = vsub.f32 %v1332, %v1344
    %v1365 = vsub.f32 %v1333, %v1347
    %v1366 = vsub.f32 %v1334, %v1350
    %v1367 = vsub.f32 %v1335, %v1353
    %v1368 = vsub.f32 %v1336, %v1356
    %v1369 = vsub.f32 %v1337, %v1359
    %v1370 = vsub.f32 %v1338, %v1362
    %v1371 = vmul.f32 %v1363, 1.442695
    %v1372 = vpow.pop %v1371
    %v1373 = vmul.f32 %v1364, 1.442695
    %v1374 = vpow.pop %v1373
    %v1375 = vmul.f32 %v1365, 1.442695
    %v1376 = vpow.pop %v1375
    %v1377 = vmul.f32 %v1366, 1.442695
    %v1378 = vpow.pop %v1377
    %v1379 = vmul.f32 %v1367, 1.442695
    %v1380 = vpow.pop %v1379
    %v1381 = vmul.f32 %v1368, 1.442695
    %v1382 = vpow.pop %v1381
    %v1383 = vmul.f32 %v1369, 1.442695
    %v1384 = vpow.pop %v1383
    %v1385 = vmul.f32 %v1370, 1.442695
    %v1386 = vpow.pop %v1385
    %v1387 = vsel %vm484, %v1372, 0.0
    %1388 = vadd.xlane.f32.xlu0 %v1387
    %v1389 = vpop.xlane.xlu0 %1388
    %v1390 = vsel %vm484, %v1374, 0.0
    %1391 = vadd.xlane.f32.xlu0 %v1390
    %v1392 = vpop.xlane.xlu0 %1391
    %v1393 = vsel %vm484, %v1376, 0.0
    %1394 = vadd.xlane.f32.xlu0 %v1393
    %v1395 = vpop.xlane.xlu0 %1394
    %v1396 = vsel %vm484, %v1378, 0.0
    %1397 = vadd.xlane.f32.xlu0 %v1396
    %v1398 = vpop.xlane.xlu0 %1397
    %v1399 = vsel %vm484, %v1380, 0.0
    %1400 = vadd.xlane.f32.xlu0 %v1399
    %v1401 = vpop.xlane.xlu0 %1400
    %v1402 = vsel %vm484, %v1382, 0.0
    %1403 = vadd.xlane.f32.xlu0 %v1402
    %v1404 = vpop.xlane.xlu0 %1403
    %v1405 = vsel %vm484, %v1384, 0.0
    %1406 = vadd.xlane.f32.xlu0 %v1405
    %v1407 = vpop.xlane.xlu0 %1406
    %v1408 = vsel %vm484, %v1386, 0.0
    %1409 = vadd.xlane.f32.xlu0 %v1408
    %v1410 = vpop.xlane.xlu0 %1409
    %v1411 = vrcp.pop %v1389
    %v1412 = vrcp.pop %v1392
    %v1413 = vrcp.pop %v1395
    %v1414 = vrcp.pop %v1398
    %v1415 = vrcp.pop %v1401
    %v1416 = vrcp.pop %v1404
    %v1417 = vrcp.pop %v1407
    %v1418 = vrcp.pop %v1410
    %v1419 = vmul.f32 %v1372, %v1411
    %v1420 = vmul.f32 %v1374, %v1412
    %v1421 = vmul.f32 %v1376, %v1413
    %v1422 = vmul.f32 %v1378, %v1414
    %v1423 = vmul.f32 %v1380, %v1415
    %v1424 = vmul.f32 %v1382, %v1416
    %v1425 = vmul.f32 %v1384, %v1417
    %v1426 = vmul.f32 %v1386, %v1418
    %v1427 = vpack.c.bf16 %v1420, %v1419
    %v1428 = vpack.c.bf16 %v1422, %v1421
    %v1429 = vpack.c.bf16 %v1424, %v1423
    %v1430 = vpack.c.bf16 %v1426, %v1425
    %1431 = vrot.lane.b32.xlu0 %v282, 104
    %v1432 = vpop.permute.xlu0 %1431
    %1433 = vrot.lane.b32.xlu0 %v283, 104
    %v1434 = vpop.permute.xlu0 %1433
    %1435 = vrot.lane.b32.xlu0 %v284, 104
    %v1436 = vpop.permute.xlu0 %1435
    %1437 = vrot.lane.b32.xlu0 %v285, 104
    %v1438 = vpop.permute.xlu0 %1437
    %v1444 = vsel %vm484, %v1427, 0
    %v1447 = vsel %vm484, %v1428, 0
    %v1450 = vsel %vm484, %v1429, 0
    %v1453 = vsel %vm484, %v1430, 0
    %1455 = vmatprep.subr.bf16.mxu0 0
    %1456 = vmatpush1.bf16.msra.mxu0 %v1432
    %1457 = vmatprep.subr.bf16.mxu0 0
    %1458 = vmatpush1.bf16.msra.mxu0 %v1434
    %1459 = vmatprep.subr.bf16.mxu0 0
    %1460 = vmatpush1.bf16.msra.mxu0 %v1436
    %1461 = vmatprep.subr.bf16.mxu0 0
    %1462 = vmatpush1.bf16.msra.mxu0 %v1438
    %1463 = vmatprep.subr.bf16.mxu0 0
    %1464 = vmatpush1.bf16.msra.mxu0 0
    %1465 = vmatprep.subr.bf16.mxu0 0
    %1466 = vmatpush1.bf16.msra.mxu0 0
    %1467 = vmatprep.subr.bf16.mxu0 0
    %1468 = vmatpush1.bf16.msra.mxu0 0
    %1469 = vmatprep.subr.bf16.mxu0 0
    %1470 = vmatpush1.bf16.msra.mxu0 0
    %1471 = vmatprep.subr.bf16.mxu0 0
    %1472 = vmatpush1.bf16.msra.mxu0 0
    %1473 = vmatprep.subr.bf16.mxu0 0
    %1474 = vmatpush1.bf16.msra.mxu0 0
    %1475 = vmatprep.subr.bf16.mxu0 0
    %1476 = vmatpush1.bf16.msra.mxu0 0
    %1477 = vmatprep.subr.bf16.mxu0 0
    %1478 = vmatpush1.bf16.msra.mxu0 0
    %1479 = vmatprep.subr.bf16.mxu0 0
    %1480 = vmatpush1.bf16.msra.mxu0 0
    %1481 = vmatprep.subr.bf16.mxu0 0
    %1482 = vmatpush1.bf16.msra.mxu0 0
    %1483 = vmatprep.subr.bf16.mxu0 0
    %1484 = vmatpush1.bf16.msra.mxu0 0
    %1485 = vmatprep.subr.bf16.mxu0 0
    %1486 = vmatpush1.bf16.msra.mxu0 0
    %1487 = vmatprep.mubr.bf16.mxu0 0
    %1488 = vmatmul.mubr.bf16.gmra.mrb[0].mxu0 %v1444
    %v1489 = vpop.f32.mrb[0].mxu0
    %v1490 = vadd.f32 0.0, %v1489
    %v1491 = vpop.f32.mrb[0].mxu0
    %v1492 = vpop.f32.mrb[0].mxu0
    %v1493 = vadd.f32 0.0, %v1492
    %v1494 = vpop.f32.mrb[0].mxu0
    %1495 = vmatprep.mubr.bf16.mxu0 0
    %1496 = vmatmul.mubr.bf16.gmra.mrb[0].mxu0 %v1447
    %v1497 = vpop.f32.mrb[0].mxu0
    %v1498 = vadd.f32 0.0, %v1497
    %v1499 = vpop.f32.mrb[0].mxu0
    %v1500 = vpop.f32.mrb[0].mxu0
    %v1501 = vadd.f32 0.0, %v1500
    %v1502 = vpop.f32.mrb[0].mxu0
    %1503 = vmatprep.mubr.bf16.mxu0 0
    %1504 = vmatmul.mubr.bf16.gmra.mrb[0].mxu0 %v1450
    %v1505 = vpop.f32.mrb[0].mxu0
    %v1506 = vadd.f32 0.0, %v1505
    %v1507 = vpop.f32.mrb[0].mxu0
    %v1508 = vpop.f32.mrb[0].mxu0
    %v1509 = vadd.f32 0.0, %v1508
    %v1510 = vpop.f32.mrb[0].mxu0
    %1511 = vmatprep.mubr.bf16.mxu0 0
    %1512 = vmatmul.mubr.bf16.gmra.mrb[0].mxu0 %v1453
    %v1513 = vpop.f32.mrb[0].mxu0
    %v1514 = vadd.f32 0.0, %v1513
    %v1515 = vpop.f32.mrb[0].mxu0
    %v1516 = vpop.f32.mrb[0].mxu0
    %v1517 = vadd.f32 0.0, %v1516
    %v1518 = vpop.f32.mrb[0].mxu0
    %1519 = vdwg.mxu0
    %1528 = vrot.lane.b32.xlu0 %v1490, 24
    %v1529 = vpop.permute.xlu0 %1528
    %1530 = vrot.lane.b32.xlu0 %v1493, 24
    %v1531 = vpop.permute.xlu0 %1530
    %1532 = vrot.lane.b32.xlu0 %v1498, 24
    %v1533 = vpop.permute.xlu0 %1532
    %1534 = vrot.lane.b32.xlu0 %v1501, 24
    %v1535 = vpop.permute.xlu0 %1534
    %1536 = vrot.lane.b32.xlu0 %v1506, 24
    %v1537 = vpop.permute.xlu0 %1536
    %1538 = vrot.lane.b32.xlu0 %v1509, 24
    %v1539 = vpop.permute.xlu0 %1538
    %1540 = vrot.lane.b32.xlu0 %v1514, 24
    %v1541 = vpop.permute.xlu0 %1540
    %1542 = vrot.lane.b32.xlu0 %v1517, 24
    %v1543 = vpop.permute.xlu0 %1542
    %vm1552 = vcmask 261312
    %1553 = vst.msk [vmem:[#allocation2] sm:$0xff] %vm1552, %v1529
    %1554 = vst.msk [vmem:[#allocation2 + $0x8] sm:$0xff] %vm1552, %v1531
    %1555 = vst.msk [vmem:[#allocation2 + $0x10] sm:$0xff] %vm1552, %v1533
    %1556 = vst.msk [vmem:[#allocation2 + $0x18] sm:$0xff] %vm1552, %v1535
    %1557 = vst.msk [vmem:[#allocation2 + $0x20] sm:$0xff] %vm1552, %v1537
    %1558 = vst.msk [vmem:[#allocation2 + $0x28] sm:$0xff] %vm1552, %v1539
    %1559 = vst.msk [vmem:[#allocation2 + $0x30] sm:$0xff] %vm1552, %v1541
    %1560 = vst.msk [vmem:[#allocation2 + $0x38] sm:$0xff] %vm1552, %v1543
    %1561 = vset.pattern.permute.xlu0 4
    %1562 = vperm.xlu0 %1561, %v370
    %v1563 = vpop.permute.xlu0 %1562
    %1565 = vset.pattern.permute.xlu0 4
    %1566 = vperm.xlu0 %1565, %v373
    %v1567 = vpop.permute.xlu0 %1566
    %1569 = vset.pattern.permute.xlu0 4
    %1570 = vperm.xlu0 %1569, %v378
    %v1571 = vpop.permute.xlu0 %1570
    %1573 = vset.pattern.permute.xlu0 4
    %1574 = vperm.xlu0 %1573, %v381
    %v1575 = vpop.permute.xlu0 %1574
    %1577 = vset.pattern.permute.xlu0 4
    %1578 = vperm.xlu0 %1577, %v386
    %v1579 = vpop.permute.xlu0 %1578
    %1581 = vset.pattern.permute.xlu0 4
    %1582 = vperm.xlu0 %1581, %v389
    %v1583 = vpop.permute.xlu0 %1582
    %1585 = vset.pattern.permute.xlu0 4
    %1586 = vperm.xlu0 %1585, %v394
    %v1587 = vpop.permute.xlu0 %1586
    %1589 = vset.pattern.permute.xlu0 4
    %1590 = vperm.xlu0 %1589, %v397
    %v1591 = vpop.permute.xlu0 %1590
    %v1593 = vlaneseq
    %v1594 = vshrl.u32 %v1593, 7
    %v1595 = vsub.s32 4, %v1594
    %v1596 = vrot.slane %v322, %v1595
    %v1597 = vadd.f32 %v1563, %v1596
    %v1598 = vadd.f32 %v1567, %v1596
    %v1599 = vadd.f32 %v1571, %v1596
    %v1600 = vadd.f32 %v1575, %v1596
    %v1601 = vadd.f32 %v1579, %v1596
    %v1602 = vadd.f32 %v1583, %v1596
    %v1603 = vadd.f32 %v1587, %v1596
    %v1604 = vadd.f32 %v1591, %v1596
    %vm1605 = vcmp.gt.f32.partialorder %v1597, 0.0
    %vm1606 = vcmp.gt.f32.partialorder %v1598, 0.0
    %vm1607 = vcmp.gt.f32.partialorder %v1599, 0.0
    %vm1608 = vcmp.gt.f32.partialorder %v1600, 0.0
    %vm1609 = vcmp.gt.f32.partialorder %v1601, 0.0
    %vm1610 = vcmp.gt.f32.partialorder %v1602, 0.0
    %vm1611 = vcmp.gt.f32.partialorder %v1603, 0.0
    %vm1612 = vcmp.gt.f32.partialorder %v1604, 0.0
    %v1613 = vmul.f32 %v1597, 0.2
    %v1614 = vmul.f32 %v1598, 0.2
    %v1615 = vmul.f32 %v1599, 0.2
    %v1616 = vmul.f32 %v1600, 0.2
    %v1617 = vmul.f32 %v1601, 0.2
    %v1618 = vmul.f32 %v1602, 0.2
    %v1619 = vmul.f32 %v1603, 0.2
    %v1620 = vmul.f32 %v1604, 0.2
    %v1621 = vsel %vm1605, %v1597, %v1613
    %v1622 = vsel %vm1606, %v1598, %v1614
    %v1623 = vsel %vm1607, %v1599, %v1615
    %v1624 = vsel %vm1608, %v1600, %v1616
    %v1625 = vsel %vm1609, %v1601, %v1617
    %v1626 = vsel %vm1610, %v1602, %v1618
    %v1627 = vsel %vm1611, %v1603, %v1619
    %v1628 = vsel %vm1612, %v1604, %v1620
    %v1629 = vadd.f32 %v1621, %v155
    %v1630 = vadd.f32 %v1622, %v156
    %v1631 = vadd.f32 %v1623, %v157
    %v1632 = vadd.f32 %v1624, %v158
    %v1633 = vadd.f32 %v1625, %v159
    %v1634 = vadd.f32 %v1626, %v160
    %v1635 = vadd.f32 %v1627, %v161
    %v1636 = vadd.f32 %v1628, %v162
    %v1637 = vsel %vm484, %v1629, -inf
    %1638 = vmax.xlane.f32.xlu0 %v1637
    %v1639 = vpop.xlane.xlu0 %1638
    %v1640 = vsel %vm484, %v1630, -inf
    %1641 = vmax.xlane.f32.xlu0 %v1640
    %v1642 = vpop.xlane.xlu0 %1641
    %v1643 = vsel %vm484, %v1631, -inf
    %1644 = vmax.xlane.f32.xlu0 %v1643
    %v1645 = vpop.xlane.xlu0 %1644
    %v1646 = vsel %vm484, %v1632, -inf
    %1647 = vmax.xlane.f32.xlu0 %v1646
    %v1648 = vpop.xlane.xlu0 %1647
    %v1649 = vsel %vm484, %v1633, -inf
    %1650 = vmax.xlane.f32.xlu0 %v1649
    %v1651 = vpop.xlane.xlu0 %1650
    %v1652 = vsel %vm484, %v1634, -inf
    %1653 = vmax.xlane.f32.xlu0 %v1652
    %v1654 = vpop.xlane.xlu0 %1653
    %v1655 = vsel %vm484, %v1635, -inf
    %1656 = vmax.xlane.f32.xlu0 %v1655
    %v1657 = vpop.xlane.xlu0 %1656
    %v1658 = vsel %vm484, %v1636, -inf
    %1659 = vmax.xlane.f32.xlu0 %v1658
    %v1660 = vpop.xlane.xlu0 %1659
    %v1661 = vsub.f32 %v1629, %v1639
    %v1662 = vsub.f32 %v1630, %v1642
    %v1663 = vsub.f32 %v1631, %v1645
    %v1664 = vsub.f32 %v1632, %v1648
    %v1665 = vsub.f32 %v1633, %v1651
    %v1666 = vsub.f32 %v1634, %v1654
    %v1667 = vsub.f32 %v1635, %v1657
    %v1668 = vsub.f32 %v1636, %v1660
    %v1669 = vmul.f32 %v1661, 1.442695
    %v1670 = vpow.pop %v1669
    %v1671 = vmul.f32 %v1662, 1.442695
    %v1672 = vpow.pop %v1671
    %v1673 = vmul.f32 %v1663, 1.442695
    %v1674 = vpow.pop %v1673
    %v1675 = vmul.f32 %v1664, 1.442695
    %v1676 = vpow.pop %v1675
    %v1677 = vmul.f32 %v1665, 1.442695
    %v1678 = vpow.pop %v1677
    %v1679 = vmul.f32 %v1666, 1.442695
    %v1680 = vpow.pop %v1679
    %v1681 = vmul.f32 %v1667, 1.442695
    %v1682 = vpow.pop %v1681
    %v1683 = vmul.f32 %v1668, 1.442695
    %v1684 = vpow.pop %v1683
    %v1685 = vsel %vm484, %v1670, 0.0
    %1686 = vadd.xlane.f32.xlu0 %v1685
    %v1687 = vpop.xlane.xlu0 %1686
    %v1688 = vsel %vm484, %v1672, 0.0
    %1689 = vadd.xlane.f32.xlu0 %v1688
    %v1690 = vpop.xlane.xlu0 %1689
    %v1691 = vsel %vm484, %v1674, 0.0
    %1692 = vadd.xlane.f32.xlu0 %v1691
    %v1693 = vpop.xlane.xlu0 %1692
    %v1694 = vsel %vm484, %v1676, 0.0
    %1695 = vadd.xlane.f32.xlu0 %v1694
    %v1696 = vpop.xlane.xlu0 %1695
    %v1697 = vsel %vm484, %v1678, 0.0
    %1698 = vadd.xlane.f32.xlu0 %v1697
    %v1699 = vpop.xlane.xlu0 %1698
    %v1700 = vsel %vm484, %v1680, 0.0
    %1701 = vadd.xlane.f32.xlu0 %v1700
    %v1702 = vpop.xlane.xlu0 %1701
    %v1703 = vsel %vm484, %v1682, 0.0
    %1704 = vadd.xlane.f32.xlu0 %v1703
    %v1705 = vpop.xlane.xlu0 %1704
    %v1706 = vsel %vm484, %v1684, 0.0
    %1707 = vadd.xlane.f32.xlu0 %v1706
    %v1708 = vpop.xlane.xlu0 %1707
    %v1709 = vrcp.pop %v1687
    %v1710 = vrcp.pop %v1690
    %v1711 = vrcp.pop %v1693
    %v1712 = vrcp.pop %v1696
    %v1713 = vrcp.pop %v1699
    %v1714 = vrcp.pop %v1702
    %v1715 = vrcp.pop %v1705
    %v1716 = vrcp.pop %v1708
    %v1717 = vmul.f32 %v1670, %v1709
    %v1718 = vmul.f32 %v1672, %v1710
    %v1719 = vmul.f32 %v1674, %v1711
    %v1720 = vmul.f32 %v1676, %v1712
    %v1721 = vmul.f32 %v1678, %v1713
    %v1722 = vmul.f32 %v1680, %v1714
    %v1723 = vmul.f32 %v1682, %v1715
    %v1724 = vmul.f32 %v1684, %v1716
    %v1725 = vpack.c.bf16 %v1718, %v1717
    %v1726 = vpack.c.bf16 %v1720, %v1719
    %v1727 = vpack.c.bf16 %v1722, %v1721
    %v1728 = vpack.c.bf16 %v1724, %v1723
    %1729 = vrot.lane.b32.xlu0 %v282, 96
    %v1730 = vpop.permute.xlu0 %1729
    %1731 = vrot.lane.b32.xlu0 %v283, 96
    %v1732 = vpop.permute.xlu0 %1731
    %1733 = vrot.lane.b32.xlu0 %v284, 96
    %v1734 = vpop.permute.xlu0 %1733
    %1735 = vrot.lane.b32.xlu0 %v285, 96
    %v1736 = vpop.permute.xlu0 %1735
    %v1742 = vsel %vm484, %v1725, 0
    %v1745 = vsel %vm484, %v1726, 0
    %v1748 = vsel %vm484, %v1727, 0
    %v1751 = vsel %vm484, %v1728, 0
    %1753 = vmatprep.subr.bf16.mxu0 0
    %1754 = vmatpush1.bf16.msra.mxu0 %v1730
    %1755 = vmatprep.subr.bf16.mxu0 0
    %1756 = vmatpush1.bf16.msra.mxu0 %v1732
    %1757 = vmatprep.subr.bf16.mxu0 0
    %1758 = vmatpush1.bf16.msra.mxu0 %v1734
    %1759 = vmatprep.subr.bf16.mxu0 0
    %1760 = vmatpush1.bf16.msra.mxu0 %v1736
    %1761 = vmatprep.subr.bf16.mxu0 0
    %1762 = vmatpush1.bf16.msra.mxu0 0
    %1763 = vmatprep.subr.bf16.mxu0 0
    %1764 = vmatpush1.bf16.msra.mxu0 0
    %1765 = vmatprep.subr.bf16.mxu0 0
    %1766 = vmatpush1.bf16.msra.mxu0 0
    %1767 = vmatprep.subr.bf16.mxu0 0
    %1768 = vmatpush1.bf16.msra.mxu0 0
    %1769 = vmatprep.subr.bf16.mxu0 0
    %1770 = vmatpush1.bf16.msra.mxu0 0
    %1771 = vmatprep.subr.bf16.mxu0 0
    %1772 = vmatpush1.bf16.msra.mxu0 0
    %1773 = vmatprep.subr.bf16.mxu0 0
    %1774 = vmatpush1.bf16.msra.mxu0 0
    %1775 = vmatprep.subr.bf16.mxu0 0
    %1776 = vmatpush1.bf16.msra.mxu0 0
    %1777 = vmatprep.subr.bf16.mxu0 0
    %1778 = vmatpush1.bf16.msra.mxu0 0
    %1779 = vmatprep.subr.bf16.mxu0 0
    %1780 = vmatpush1.bf16.msra.mxu0 0
    %1781 = vmatprep.subr.bf16.mxu0 0
    %1782 = vmatpush1.bf16.msra.mxu0 0
    %1783 = vmatprep.subr.bf16.mxu0 0
    %1784 = vmatpush1.bf16.msra.mxu0 0
    %1785 = vmatprep.mubr.bf16.mxu0 0
    %1786 = vmatmul.mubr.bf16.gmra.mrb[0].mxu0 %v1742
    %v1787 = vpop.f32.mrb[0].mxu0
    %v1788 = vadd.f32 0.0, %v1787
    %v1789 = vpop.f32.mrb[0].mxu0
    %v1790 = vpop.f32.mrb[0].mxu0
    %v1791 = vadd.f32 0.0, %v1790
    %v1792 = vpop.f32.mrb[0].mxu0
    %1793 = vmatprep.mubr.bf16.mxu0 0
    %1794 = vmatmul.mubr.bf16.gmra.mrb[0].mxu0 %v1745
    %v1795 = vpop.f32.mrb[0].mxu0
    %v1796 = vadd.f32 0.0, %v1795
    %v1797 = vpop.f32.mrb[0].mxu0
    %v1798 = vpop.f32.mrb[0].mxu0
    %v1799 = vadd.f32 0.0, %v1798
    %v1800 = vpop.f32.mrb[0].mxu0
    %1801 = vmatprep.mubr.bf16.mxu0 0
    %1802 = vmatmul.mubr.bf16.gmra.mrb[0].mxu0 %v1748
    %v1803 = vpop.f32.mrb[0].mxu0
    %v1804 = vadd.f32 0.0, %v1803
    %v1805 = vpop.f32.mrb[0].mxu0
    %v1806 = vpop.f32.mrb[0].mxu0
    %v1807 = vadd.f32 0.0, %v1806
    %v1808 = vpop.f32.mrb[0].mxu0
    %1809 = vmatprep.mubr.bf16.mxu0 0
    %1810 = vmatmul.mubr.bf16.gmra.mrb[0].mxu0 %v1751
    %v1811 = vpop.f32.mrb[0].mxu0
    %v1812 = vadd.f32 0.0, %v1811
    %v1813 = vpop.f32.mrb[0].mxu0
    %v1814 = vpop.f32.mrb[0].mxu0
    %v1815 = vadd.f32 0.0, %v1814
    %v1816 = vpop.f32.mrb[0].mxu0
    %1817 = vdwg.mxu0
    %1826 = vrot.lane.b32.xlu0 %v1788, 32
    %v1827 = vpop.permute.xlu0 %1826
    %1828 = vrot.lane.b32.xlu0 %v1791, 32
    %v1829 = vpop.permute.xlu0 %1828
    %1830 = vrot.lane.b32.xlu0 %v1796, 32
    %v1831 = vpop.permute.xlu0 %1830
    %1832 = vrot.lane.b32.xlu0 %v1799, 32
    %v1833 = vpop.permute.xlu0 %1832
    %1834 = vrot.lane.b32.xlu0 %v1804, 32
    %v1835 = vpop.permute.xlu0 %1834
    %1836 = vrot.lane.b32.xlu0 %v1807, 32
    %v1837 = vpop.permute.xlu0 %1836
    %1838 = vrot.lane.b32.xlu0 %v1812, 32
    %v1839 = vpop.permute.xlu0 %1838
    %1840 = vrot.lane.b32.xlu0 %v1815, 32
    %v1841 = vpop.permute.xlu0 %1840
    %vm1850 = vcmask 326912
    %1851 = vst.msk [vmem:[#allocation2] sm:$0xff] %vm1850, %v1827
    %1852 = vst.msk [vmem:[#allocation2 + $0x8] sm:$0xff] %vm1850, %v1829
    %1853 = vst.msk [vmem:[#allocation2 + $0x10] sm:$0xff] %vm1850, %v1831
    %1854 = vst.msk [vmem:[#allocation2 + $0x18] sm:$0xff] %vm1850, %v1833
    %1855 = vst.msk [vmem:[#allocation2 + $0x20] sm:$0xff] %vm1850, %v1835
    %1856 = vst.msk [vmem:[#allocation2 + $0x28] sm:$0xff] %vm1850, %v1837
    %1857 = vst.msk [vmem:[#allocation2 + $0x30] sm:$0xff] %vm1850, %v1839
    %1858 = vst.msk [vmem:[#allocation2 + $0x38] sm:$0xff] %vm1850, %v1841
    %1859 = vset.pattern.permute.xlu0 5
    %1860 = vperm.xlu0 %1859, %v370
    %v1861 = vpop.permute.xlu0 %1860
    %1863 = vset.pattern.permute.xlu0 5
    %1864 = vperm.xlu0 %1863, %v373
    %v1865 = vpop.permute.xlu0 %1864
    %1867 = vset.pattern.permute.xlu0 5
    %1868 = vperm.xlu0 %1867, %v378
    %v1869 = vpop.permute.xlu0 %1868
    %1871 = vset.pattern.permute.xlu0 5
    %1872 = vperm.xlu0 %1871, %v381
    %v1873 = vpop.permute.xlu0 %1872
    %1875 = vset.pattern.permute.xlu0 5
    %1876 = vperm.xlu0 %1875, %v386
    %v1877 = vpop.permute.xlu0 %1876
    %1879 = vset.pattern.permute.xlu0 5
    %1880 = vperm.xlu0 %1879, %v389
    %v1881 = vpop.permute.xlu0 %1880
    %1883 = vset.pattern.permute.xlu0 5
    %1884 = vperm.xlu0 %1883, %v394
    %v1885 = vpop.permute.xlu0 %1884
    %1887 = vset.pattern.permute.xlu0 5
    %1888 = vperm.xlu0 %1887, %v397
    %v1889 = vpop.permute.xlu0 %1888
    %v1891 = vlaneseq
    %v1892 = vshrl.u32 %v1891, 7
    %v1893 = vsub.s32 5, %v1892
    %v1894 = vrot.slane %v322, %v1893
    %v1895 = vadd.f32 %v1861, %v1894
    %v1896 = vadd.f32 %v1865, %v1894
    %v1897 = vadd.f32 %v1869, %v1894
    %v1898 = vadd.f32 %v1873, %v1894
    %v1899 = vadd.f32 %v1877, %v1894
    %v1900 = vadd.f32 %v1881, %v1894
    %v1901 = vadd.f32 %v1885, %v1894
    %v1902 = vadd.f32 %v1889, %v1894
    %vm1903 = vcmp.gt.f32.partialorder %v1895, 0.0
    %vm1904 = vcmp.gt.f32.partialorder %v1896, 0.0
    %vm1905 = vcmp.gt.f32.partialorder %v1897, 0.0
    %vm1906 = vcmp.gt.f32.partialorder %v1898, 0.0
    %vm1907 = vcmp.gt.f32.partialorder %v1899, 0.0
    %vm1908 = vcmp.gt.f32.partialorder %v1900, 0.0
    %vm1909 = vcmp.gt.f32.partialorder %v1901, 0.0
    %vm1910 = vcmp.gt.f32.partialorder %v1902, 0.0
    %v1911 = vmul.f32 %v1895, 0.2
    %v1912 = vmul.f32 %v1896, 0.2
    %v1913 = vmul.f32 %v1897, 0.2
    %v1914 = vmul.f32 %v1898, 0.2
    %v1915 = vmul.f32 %v1899, 0.2
    %v1916 = vmul.f32 %v1900, 0.2
    %v1917 = vmul.f32 %v1901, 0.2
    %v1918 = vmul.f32 %v1902, 0.2
    %v1919 = vsel %vm1903, %v1895, %v1911
    %v1920 = vsel %vm1904, %v1896, %v1912
    %v1921 = vsel %vm1905, %v1897, %v1913
    %v1922 = vsel %vm1906, %v1898, %v1914
    %v1923 = vsel %vm1907, %v1899, %v1915
    %v1924 = vsel %vm1908, %v1900, %v1916
    %v1925 = vsel %vm1909, %v1901, %v1917
    %v1926 = vsel %vm1910, %v1902, %v1918
    %v1927 = vadd.f32 %v1919, %v155
    %v1928 = vadd.f32 %v1920, %v156
    %v1929 = vadd.f32 %v1921, %v157
    %v1930 = vadd.f32 %v1922, %v158
    %v1931 = vadd.f32 %v1923, %v159
    %v1932 = vadd.f32 %v1924, %v160
    %v1933 = vadd.f32 %v1925, %v161
    %v1934 = vadd.f32 %v1926, %v162
    %v1935 = vsel %vm484, %v1927, -inf
    %1936 = vmax.xlane.f32.xlu0 %v1935
    %v1937 = vpop.xlane.xlu0 %1936
    %v1938 = vsel %vm484, %v1928, -inf
    %1939 = vmax.xlane.f32.xlu0 %v1938
    %v1940 = vpop.xlane.xlu0 %1939
    %v1941 = vsel %vm484, %v1929, -inf
    %1942 = vmax.xlane.f32.xlu0 %v1941
    %v1943 = vpop.xlane.xlu0 %1942
    %v1944 = vsel %vm484, %v1930, -inf
    %1945 = vmax.xlane.f32.xlu0 %v1944
    %v1946 = vpop.xlane.xlu0 %1945
    %v1947 = vsel %vm484, %v1931, -inf
    %1948 = vmax.xlane.f32.xlu0 %v1947
    %v1949 = vpop.xlane.xlu0 %1948
    %v1950 = vsel %vm484, %v1932, -inf
    %1951 = vmax.xlane.f32.xlu0 %v1950
    %v1952 = vpop.xlane.xlu0 %1951
    %v1953 = vsel %vm484, %v1933, -inf
    %1954 = vmax.xlane.f32.xlu0 %v1953
    %v1955 = vpop.xlane.xlu0 %1954
    %v1956 = vsel %vm484, %v1934, -inf
    %1957 = vmax.xlane.f32.xlu0 %v1956
    %v1958 = vpop.xlane.xlu0 %1957
    %v1959 = vsub.f32 %v1927, %v1937
    %v1960 = vsub.f32 %v1928, %v1940
    %v1961 = vsub.f32 %v1929, %v1943
    %v1962 = vsub.f32 %v1930, %v1946
    %v1963 = vsub.f32 %v1931, %v1949
    %v1964 = vsub.f32 %v1932, %v1952
    %v1965 = vsub.f32 %v1933, %v1955
    %v1966 = vsub.f32 %v1934, %v1958
    %v1967 = vmul.f32 %v1959, 1.442695
    %v1968 = vpow.pop %v1967
    %v1969 = vmul.f32 %v1960, 1.442695
    %v1970 = vpow.pop %v1969
    %v1971 = vmul.f32 %v1961, 1.442695
    %v1972 = vpow.pop %v1971
    %v1973 = vmul.f32 %v1962, 1.442695
    %v1974 = vpow.pop %v1973
    %v1975 = vmul.f32 %v1963, 1.442695
    %v1976 = vpow.pop %v1975
    %v1977 = vmul.f32 %v1964, 1.442695
    %v1978 = vpow.pop %v1977
    %v1979 = vmul.f32 %v1965, 1.442695
    %v1980 = vpow.pop %v1979
    %v1981 = vmul.f32 %v1966, 1.442695
    %v1982 = vpow.pop %v1981
    %v1983 = vsel %vm484, %v1968, 0.0
    %1984 = vadd.xlane.f32.xlu0 %v1983
    %v1985 = vpop.xlane.xlu0 %1984
    %v1986 = vsel %vm484, %v1970, 0.0
    %1987 = vadd.xlane.f32.xlu0 %v1986
    %v1988 = vpop.xlane.xlu0 %1987
    %v1989 = vsel %vm484, %v1972, 0.0
    %1990 = vadd.xlane.f32.xlu0 %v1989
    %v1991 = vpop.xlane.xlu0 %1990
    %v1992 = vsel %vm484, %v1974, 0.0
    %1993 = vadd.xlane.f32.xlu0 %v1992
    %v1994 = vpop.xlane.xlu0 %1993
    %v1995 = vsel %vm484, %v1976, 0.0
    %1996 = vadd.xlane.f32.xlu0 %v1995
    %v1997 = vpop.xlane.xlu0 %1996
    %v1998 = vsel %vm484, %v1978, 0.0
    %1999 = vadd.xlane.f32.xlu0 %v1998
    %v2000 = vpop.xlane.xlu0 %1999
    %v2001 = vsel %vm484, %v1980, 0.0
    %2002 = vadd.xlane.f32.xlu0 %v2001
    %v2003 = vpop.xlane.xlu0 %2002
    %v2004 = vsel %vm484, %v1982, 0.0
    %2005 = vadd.xlane.f32.xlu0 %v2004
    %v2006 = vpop.xlane.xlu0 %2005
    %v2007 = vrcp.pop %v1985
    %v2008 = vrcp.pop %v1988
    %v2009 = vrcp.pop %v1991
    %v2010 = vrcp.pop %v1994
    %v2011 = vrcp.pop %v1997
    %v2012 = vrcp.pop %v2000
    %v2013 = vrcp.pop %v2003
    %v2014 = vrcp.pop %v2006
    %v2015 = vmul.f32 %v1968, %v2007
    %v2016 = vmul.f32 %v1970, %v2008
    %v2017 = vmul.f32 %v1972, %v2009
    %v2018 = vmul.f32 %v1974, %v2010
    %v2019 = vmul.f32 %v1976, %v2011
    %v2020 = vmul.f32 %v1978, %v2012
    %v2021 = vmul.f32 %v1980, %v2013
    %v2022 = vmul.f32 %v1982, %v2014
    %v2023 = vpack.c.bf16 %v2016, %v2015
    %v2024 = vpack.c.bf16 %v2018, %v2017
    %v2025 = vpack.c.bf16 %v2020, %v2019
    %v2026 = vpack.c.bf16 %v2022, %v2021
    %2027 = vrot.lane.b32.xlu0 %v282, 88
    %v2028 = vpop.permute.xlu0 %2027
    %2029 = vrot.lane.b32.xlu0 %v283, 88
    %v2030 = vpop.permute.xlu0 %2029
    %2031 = vrot.lane.b32.xlu0 %v284, 88
    %v2032 = vpop.permute.xlu0 %2031
    %2033 = vrot.lane.b32.xlu0 %v285, 88
    %v2034 = vpop.permute.xlu0 %2033
    %v2040 = vsel %vm484, %v2023, 0
    %v2043 = vsel %vm484, %v2024, 0
    %v2046 = vsel %vm484, %v2025, 0
    %v2049 = vsel %vm484, %v2026, 0
    %2051 = vmatprep.subr.bf16.mxu0 0
    %2052 = vmatpush1.bf16.msra.mxu0 %v2028
    %2053 = vmatprep.subr.bf16.mxu0 0
    %2054 = vmatpush1.bf16.msra.mxu0 %v2030
    %2055 = vmatprep.subr.bf16.mxu0 0
    %2056 = vmatpush1.bf16.msra.mxu0 %v2032
    %2057 = vmatprep.subr.bf16.mxu0 0
    %2058 = vmatpush1.bf16.msra.mxu0 %v2034
    %2059 = vmatprep.subr.bf16.mxu0 0
    %2060 = vmatpush1.bf16.msra.mxu0 0
    %2061 = vmatprep.subr.bf16.mxu0 0
    %2062 = vmatpush1.bf16.msra.mxu0 0
    %2063 = vmatprep.subr.bf16.mxu0 0
    %2064 = vmatpush1.bf16.msra.mxu0 0
    %2065 = vmatprep.subr.bf16.mxu0 0
    %2066 = vmatpush1.bf16.msra.mxu0 0
    %2067 = vmatprep.subr.bf16.mxu0 0
    %2068 = vmatpush1.bf16.msra.mxu0 0
    %2069 = vmatprep.subr.bf16.mxu0 0
    %2070 = vmatpush1.bf16.msra.mxu0 0
    %2071 = vmatprep.subr.bf16.mxu0 0
    %2072 = vmatpush1.bf16.msra.mxu0 0
    %2073 = vmatprep.subr.bf16.mxu0 0
    %2074 = vmatpush1.bf16.msra.mxu0 0
    %2075 = vmatprep.subr.bf16.mxu0 0
    %2076 = vmatpush1.bf16.msra.mxu0 0
    %2077 = vmatprep.subr.bf16.mxu0 0
    %2078 = vmatpush1.bf16.msra.mxu0 0
    %2079 = vmatprep.subr.bf16.mxu0 0
    %2080 = vmatpush1.bf16.msra.mxu0 0
    %2081 = vmatprep.subr.bf16.mxu0 0
    %2082 = vmatpush1.bf16.msra.mxu0 0
    %2083 = vmatprep.mubr.bf16.mxu0 0
    %2084 = vmatmul.mubr.bf16.gmra.mrb[0].mxu0 %v2040
    %v2085 = vpop.f32.mrb[0].mxu0
    %v2086 = vadd.f32 0.0, %v2085
    %v2087 = vpop.f32.mrb[0].mxu0
    %v2088 = vpop.f32.mrb[0].mxu0
    %v2089 = vadd.f32 0.0, %v2088
    %v2090 = vpop.f32.mrb[0].mxu0
    %2091 = vmatprep.mubr.bf16.mxu0 0
    %2092 = vmatmul.mubr.bf16.gmra.mrb[0].mxu0 %v2043
    %v2093 = vpop.f32.mrb[0].mxu0
    %v2094 = vadd.f32 0.0, %v2093
    %v2095 = vpop.f32.mrb[0].mxu0
    %v2096 = vpop.f32.mrb[0].mxu0
    %v2097 = vadd.f32 0.0, %v2096
    %v2098 = vpop.f32.mrb[0].mxu0
    %2099 = vmatprep.mubr.bf16.mxu0 0
    %2100 = vmatmul.mubr.bf16.gmra.mrb[0].mxu0 %v2046
    %v2101 = vpop.f32.mrb[0].mxu0
    %v2102 = vadd.f32 0.0, %v2101
    %v2103 = vpop.f32.mrb[0].mxu0
    %v2104 = vpop.f32.mrb[0].mxu0
    %v2105 = vadd.f32 0.0, %v2104
    %v2106 = vpop.f32.mrb[0].mxu0
    %2107 = vmatprep.mubr.bf16.mxu0 0
    %2108 = vmatmul.mubr.bf16.gmra.mrb[0].mxu0 %v2049
    %v2109 = vpop.f32.mrb[0].mxu0
    %v2110 = vadd.f32 0.0, %v2109
    %v2111 = vpop.f32.mrb[0].mxu0
    %v2112 = vpop.f32.mrb[0].mxu0
    %v2113 = vadd.f32 0.0, %v2112
    %v2114 = vpop.f32.mrb[0].mxu0
    %2115 = vdwg.mxu0
    %2124 = vrot.lane.b32.xlu0 %v2086, 40
    %v2125 = vpop.permute.xlu0 %2124
    %2126 = vrot.lane.b32.xlu0 %v2089, 40
    %v2127 = vpop.permute.xlu0 %2126
    %2128 = vrot.lane.b32.xlu0 %v2094, 40
    %v2129 = vpop.permute.xlu0 %2128
    %2130 = vrot.lane.b32.xlu0 %v2097, 40
    %v2131 = vpop.permute.xlu0 %2130
    %2132 = vrot.lane.b32.xlu0 %v2102, 40
    %v2133 = vpop.permute.xlu0 %2132
    %2134 = vrot.lane.b32.xlu0 %v2105, 40
    %v2135 = vpop.permute.xlu0 %2134
    %2136 = vrot.lane.b32.xlu0 %v2110, 40
    %v2137 = vpop.permute.xlu0 %2136
    %2138 = vrot.lane.b32.xlu0 %v2113, 40
    %v2139 = vpop.permute.xlu0 %2138
    %vm2148 = vcmask 392512
    %2149 = vst.msk [vmem:[#allocation2] sm:$0xff] %vm2148, %v2125
    %2150 = vst.msk [vmem:[#allocation2 + $0x8] sm:$0xff] %vm2148, %v2127
    %2151 = vst.msk [vmem:[#allocation2 + $0x10] sm:$0xff] %vm2148, %v2129
    %2152 = vst.msk [vmem:[#allocation2 + $0x18] sm:$0xff] %vm2148, %v2131
    %2153 = vst.msk [vmem:[#allocation2 + $0x20] sm:$0xff] %vm2148, %v2133
    %2154 = vst.msk [vmem:[#allocation2 + $0x28] sm:$0xff] %vm2148, %v2135
    %2155 = vst.msk [vmem:[#allocation2 + $0x30] sm:$0xff] %vm2148, %v2137
    %2156 = vst.msk [vmem:[#allocation2 + $0x38] sm:$0xff] %vm2148, %v2139
    %2157 = vset.pattern.permute.xlu0 6
    %2158 = vperm.xlu0 %2157, %v370
    %v2159 = vpop.permute.xlu0 %2158
    %2161 = vset.pattern.permute.xlu0 6
    %2162 = vperm.xlu0 %2161, %v373
    %v2163 = vpop.permute.xlu0 %2162
    %2165 = vset.pattern.permute.xlu0 6
    %2166 = vperm.xlu0 %2165, %v378
    %v2167 = vpop.permute.xlu0 %2166
    %2169 = vset.pattern.permute.xlu0 6
    %2170 = vperm.xlu0 %2169, %v381
    %v2171 = vpop.permute.xlu0 %2170
    %2173 = vset.pattern.permute.xlu0 6
    %2174 = vperm.xlu0 %2173, %v386
    %v2175 = vpop.permute.xlu0 %2174
    %2177 = vset.pattern.permute.xlu0 6
    %2178 = vperm.xlu0 %2177, %v389
    %v2179 = vpop.permute.xlu0 %2178
    %2181 = vset.pattern.permute.xlu0 6
    %2182 = vperm.xlu0 %2181, %v394
    %v2183 = vpop.permute.xlu0 %2182
    %2185 = vset.pattern.permute.xlu0 6
    %2186 = vperm.xlu0 %2185, %v397
    %v2187 = vpop.permute.xlu0 %2186
    %v2189 = vlaneseq
    %v2190 = vshrl.u32 %v2189, 7
    %v2191 = vsub.s32 6, %v2190
    %v2192 = vrot.slane %v322, %v2191
    %v2193 = vadd.f32 %v2159, %v2192
    %v2194 = vadd.f32 %v2163, %v2192
    %v2195 = vadd.f32 %v2167, %v2192
    %v2196 = vadd.f32 %v2171, %v2192
    %v2197 = vadd.f32 %v2175, %v2192
    %v2198 = vadd.f32 %v2179, %v2192
    %v2199 = vadd.f32 %v2183, %v2192
    %v2200 = vadd.f32 %v2187, %v2192
    %vm2201 = vcmp.gt.f32.partialorder %v2193, 0.0
    %vm2202 = vcmp.gt.f32.partialorder %v2194, 0.0
    %vm2203 = vcmp.gt.f32.partialorder %v2195, 0.0
    %vm2204 = vcmp.gt.f32.partialorder %v2196, 0.0
    %vm2205 = vcmp.gt.f32.partialorder %v2197, 0.0
    %vm2206 = vcmp.gt.f32.partialorder %v2198, 0.0
    %vm2207 = vcmp.gt.f32.partialorder %v2199, 0.0
    %vm2208 = vcmp.gt.f32.partialorder %v2200, 0.0
    %v2209 = vmul.f32 %v2193, 0.2
    %v2210 = vmul.f32 %v2194, 0.2
    %v2211 = vmul.f32 %v2195, 0.2
    %v2212 = vmul.f32 %v2196, 0.2
    %v2213 = vmul.f32 %v2197, 0.2
    %v2214 = vmul.f32 %v2198, 0.2
    %v2215 = vmul.f32 %v2199, 0.2
    %v2216 = vmul.f32 %v2200, 0.2
    %v2217 = vsel %vm2201, %v2193, %v2209
    %v2218 = vsel %vm2202, %v2194, %v2210
    %v2219 = vsel %vm2203, %v2195, %v2211
    %v2220 = vsel %vm2204, %v2196, %v2212
    %v2221 = vsel %vm2205, %v2197, %v2213
    %v2222 = vsel %vm2206, %v2198, %v2214
    %v2223 = vsel %vm2207, %v2199, %v2215
    %v2224 = vsel %vm2208, %v2200, %v2216
    %v2225 = vadd.f32 %v2217, %v155
    %v2226 = vadd.f32 %v2218, %v156
    %v2227 = vadd.f32 %v2219, %v157
    %v2228 = vadd.f32 %v2220, %v158
    %v2229 = vadd.f32 %v2221, %v159
    %v2230 = vadd.f32 %v2222, %v160
    %v2231 = vadd.f32 %v2223, %v161
    %v2232 = vadd.f32 %v2224, %v162
    %v2233 = vsel %vm484, %v2225, -inf
    %2234 = vmax.xlane.f32.xlu0 %v2233
    %v2235 = vpop.xlane.xlu0 %2234
    %v2236 = vsel %vm484, %v2226, -inf
    %2237 = vmax.xlane.f32.xlu0 %v2236
    %v2238 = vpop.xlane.xlu0 %2237
    %v2239 = vsel %vm484, %v2227, -inf
    %2240 = vmax.xlane.f32.xlu0 %v2239
    %v2241 = vpop.xlane.xlu0 %2240
    %v2242 = vsel %vm484, %v2228, -inf
    %2243 = vmax.xlane.f32.xlu0 %v2242
    %v2244 = vpop.xlane.xlu0 %2243
    %v2245 = vsel %vm484, %v2229, -inf
    %2246 = vmax.xlane.f32.xlu0 %v2245
    %v2247 = vpop.xlane.xlu0 %2246
    %v2248 = vsel %vm484, %v2230, -inf
    %2249 = vmax.xlane.f32.xlu0 %v2248
    %v2250 = vpop.xlane.xlu0 %2249
    %v2251 = vsel %vm484, %v2231, -inf
    %2252 = vmax.xlane.f32.xlu0 %v2251
    %v2253 = vpop.xlane.xlu0 %2252
    %v2254 = vsel %vm484, %v2232, -inf
    %2255 = vmax.xlane.f32.xlu0 %v2254
    %v2256 = vpop.xlane.xlu0 %2255
    %v2257 = vsub.f32 %v2225, %v2235
    %v2258 = vsub.f32 %v2226, %v2238
    %v2259 = vsub.f32 %v2227, %v2241
    %v2260 = vsub.f32 %v2228, %v2244
    %v2261 = vsub.f32 %v2229, %v2247
    %v2262 = vsub.f32 %v2230, %v2250
    %v2263 = vsub.f32 %v2231, %v2253
    %v2264 = vsub.f32 %v2232, %v2256
    %v2265 = vmul.f32 %v2257, 1.442695
    %v2266 = vpow.pop %v2265
    %v2267 = vmul.f32 %v2258, 1.442695
    %v2268 = vpow.pop %v2267
    %v2269 = vmul.f32 %v2259, 1.442695
    %v2270 = vpow.pop %v2269
    %v2271 = vmul.f32 %v2260, 1.442695
    %v2272 = vpow.pop %v2271
    %v2273 = vmul.f32 %v2261, 1.442695
    %v2274 = vpow.pop %v2273
    %v2275 = vmul.f32 %v2262, 1.442695
    %v2276 = vpow.pop %v2275
    %v2277 = vmul.f32 %v2263, 1.442695
    %v2278 = vpow.pop %v2277
    %v2279 = vmul.f32 %v2264, 1.442695
    %v2280 = vpow.pop %v2279
    %v2281 = vsel %vm484, %v2266, 0.0
    %2282 = vadd.xlane.f32.xlu0 %v2281
    %v2283 = vpop.xlane.xlu0 %2282
    %v2284 = vsel %vm484, %v2268, 0.0
    %2285 = vadd.xlane.f32.xlu0 %v2284
    %v2286 = vpop.xlane.xlu0 %2285
    %v2287 = vsel %vm484, %v2270, 0.0
    %2288 = vadd.xlane.f32.xlu0 %v2287
    %v2289 = vpop.xlane.xlu0 %2288
    %v2290 = vsel %vm484, %v2272, 0.0
    %2291 = vadd.xlane.f32.xlu0 %v2290
    %v2292 = vpop.xlane.xlu0 %2291
    %v2293 = vsel %vm484, %v2274, 0.0
    %2294 = vadd.xlane.f32.xlu0 %v2293
    %v2295 = vpop.xlane.xlu0 %2294
    %v2296 = vsel %vm484, %v2276, 0.0
    %2297 = vadd.xlane.f32.xlu0 %v2296
    %v2298 = vpop.xlane.xlu0 %2297
    %v2299 = vsel %vm484, %v2278, 0.0
    %2300 = vadd.xlane.f32.xlu0 %v2299
    %v2301 = vpop.xlane.xlu0 %2300
    %v2302 = vsel %vm484, %v2280, 0.0
    %2303 = vadd.xlane.f32.xlu0 %v2302
    %v2304 = vpop.xlane.xlu0 %2303
    %v2305 = vrcp.pop %v2283
    %v2306 = vrcp.pop %v2286
    %v2307 = vrcp.pop %v2289
    %v2308 = vrcp.pop %v2292
    %v2309 = vrcp.pop %v2295
    %v2310 = vrcp.pop %v2298
    %v2311 = vrcp.pop %v2301
    %v2312 = vrcp.pop %v2304
    %v2313 = vmul.f32 %v2266, %v2305
    %v2314 = vmul.f32 %v2268, %v2306
    %v2315 = vmul.f32 %v2270, %v2307
    %v2316 = vmul.f32 %v2272, %v2308
    %v2317 = vmul.f32 %v2274, %v2309
    %v2318 = vmul.f32 %v2276, %v2310
    %v2319 = vmul.f32 %v2278, %v2311
    %v2320 = vmul.f32 %v2280, %v2312
    %v2321 = vpack.c.bf16 %v2314, %v2313
    %v2322 = vpack.c.bf16 %v2316, %v2315
    %v2323 = vpack.c.bf16 %v2318, %v2317
    %v2324 = vpack.c.bf16 %v2320, %v2319
    %2325 = vrot.lane.b32.xlu0 %v282, 80
    %v2326 = vpop.permute.xlu0 %2325
    %2327 = vrot.lane.b32.xlu0 %v283, 80
    %v2328 = vpop.permute.xlu0 %2327
    %2329 = vrot.lane.b32.xlu0 %v284, 80
    %v2330 = vpop.permute.xlu0 %2329
    %2331 = vrot.lane.b32.xlu0 %v285, 80
    %v2332 = vpop.permute.xlu0 %2331
    %v2338 = vsel %vm484, %v2321, 0
    %v2341 = vsel %vm484, %v2322, 0
    %v2344 = vsel %vm484, %v2323, 0
    %v2347 = vsel %vm484, %v2324, 0
    %2349 = vmatprep.subr.bf16.mxu0 0
    %2350 = vmatpush1.bf16.msra.mxu0 %v2326
    %2351 = vmatprep.subr.bf16.mxu0 0
    %2352 = vmatpush1.bf16.msra.mxu0 %v2328
    %2353 = vmatprep.subr.bf16.mxu0 0
    %2354 = vmatpush1.bf16.msra.mxu0 %v2330
    %2355 = vmatprep.subr.bf16.mxu0 0
    %2356 = vmatpush1.bf16.msra.mxu0 %v2332
    %2357 = vmatprep.subr.bf16.mxu0 0
    %2358 = vmatpush1.bf16.msra.mxu0 0
    %2359 = vmatprep.subr.bf16.mxu0 0
    %2360 = vmatpush1.bf16.msra.mxu0 0
    %2361 = vmatprep.subr.bf16.mxu0 0
    %2362 = vmatpush1.bf16.msra.mxu0 0
    %2363 = vmatprep.subr.bf16.mxu0 0
    %2364 = vmatpush1.bf16.msra.mxu0 0
    %2365 = vmatprep.subr.bf16.mxu0 0
    %2366 = vmatpush1.bf16.msra.mxu0 0
    %2367 = vmatprep.subr.bf16.mxu0 0
    %2368 = vmatpush1.bf16.msra.mxu0 0
    %2369 = vmatprep.subr.bf16.mxu0 0
    %2370 = vmatpush1.bf16.msra.mxu0 0
    %2371 = vmatprep.subr.bf16.mxu0 0
    %2372 = vmatpush1.bf16.msra.mxu0 0
    %2373 = vmatprep.subr.bf16.mxu0 0
    %2374 = vmatpush1.bf16.msra.mxu0 0
    %2375 = vmatprep.subr.bf16.mxu0 0
    %2376 = vmatpush1.bf16.msra.mxu0 0
    %2377 = vmatprep.subr.bf16.mxu0 0
    %2378 = vmatpush1.bf16.msra.mxu0 0
    %2379 = vmatprep.subr.bf16.mxu0 0
    %2380 = vmatpush1.bf16.msra.mxu0 0
    %2381 = vmatprep.mubr.bf16.mxu0 0
    %2382 = vmatmul.mubr.bf16.gmra.mrb[0].mxu0 %v2338
    %v2383 = vpop.f32.mrb[0].mxu0
    %v2384 = vadd.f32 0.0, %v2383
    %v2385 = vpop.f32.mrb[0].mxu0
    %v2386 = vpop.f32.mrb[0].mxu0
    %v2387 = vadd.f32 0.0, %v2386
    %v2388 = vpop.f32.mrb[0].mxu0
    %2389 = vmatprep.mubr.bf16.mxu0 0
    %2390 = vmatmul.mubr.bf16.gmra.mrb[0].mxu0 %v2341
    %v2391 = vpop.f32.mrb[0].mxu0
    %v2392 = vadd.f32 0.0, %v2391
    %v2393 = vpop.f32.mrb[0].mxu0
    %v2394 = vpop.f32.mrb[0].mxu0
    %v2395 = vadd.f32 0.0, %v2394
    %v2396 = vpop.f32.mrb[0].mxu0
    %2397 = vmatprep.mubr.bf16.mxu0 0
    %2398 = vmatmul.mubr.bf16.gmra.mrb[0].mxu0 %v2344
    %v2399 = vpop.f32.mrb[0].mxu0
    %v2400 = vadd.f32 0.0, %v2399
    %v2401 = vpop.f32.mrb[0].mxu0
    %v2402 = vpop.f32.mrb[0].mxu0
    %v2403 = vadd.f32 0.0, %v2402
    %v2404 = vpop.f32.mrb[0].mxu0
    %2405 = vmatprep.mubr.bf16.mxu0 0
    %2406 = vmatmul.mubr.bf16.gmra.mrb[0].mxu0 %v2347
    %v2407 = vpop.f32.mrb[0].mxu0
    %v2408 = vadd.f32 0.0, %v2407
    %v2409 = vpop.f32.mrb[0].mxu0
    %v2410 = vpop.f32.mrb[0].mxu0
    %v2411 = vadd.f32 0.0, %v2410
    %v2412 = vpop.f32.mrb[0].mxu0
    %2413 = vdwg.mxu0
    %2422 = vrot.lane.b32.xlu0 %v2384, 48
    %v2423 = vpop.permute.xlu0 %2422
    %2424 = vrot.lane.b32.xlu0 %v2387, 48
    %v2425 = vpop.permute.xlu0 %2424
    %2426 = vrot.lane.b32.xlu0 %v2392, 48
    %v2427 = vpop.permute.xlu0 %2426
    %2428 = vrot.lane.b32.xlu0 %v2395, 48
    %v2429 = vpop.permute.xlu0 %2428
    %2430 = vrot.lane.b32.xlu0 %v2400, 48
    %v2431 = vpop.permute.xlu0 %2430
    %2432 = vrot.lane.b32.xlu0 %v2403, 48
    %v2433 = vpop.permute.xlu0 %2432
    %2434 = vrot.lane.b32.xlu0 %v2408, 48
    %v2435 = vpop.permute.xlu0 %2434
    %2436 = vrot.lane.b32.xlu0 %v2411, 48
    %v2437 = vpop.permute.xlu0 %2436
    %vm2446 = vcmask 458112
    %2447 = vst.msk [vmem:[#allocation2] sm:$0xff] %vm2446, %v2423
    %2448 = vst.msk [vmem:[#allocation2 + $0x8] sm:$0xff] %vm2446, %v2425
    %2449 = vst.msk [vmem:[#allocation2 + $0x10] sm:$0xff] %vm2446, %v2427
    %2450 = vst.msk [vmem:[#allocation2 + $0x18] sm:$0xff] %vm2446, %v2429
    %2451 = vst.msk [vmem:[#allocation2 + $0x20] sm:$0xff] %vm2446, %v2431
    %2452 = vst.msk [vmem:[#allocation2 + $0x28] sm:$0xff] %vm2446, %v2433
    %2453 = vst.msk [vmem:[#allocation2 + $0x30] sm:$0xff] %vm2446, %v2435
    %2454 = vst.msk [vmem:[#allocation2 + $0x38] sm:$0xff] %vm2446, %v2437
    %2455 = vset.pattern.permute.xlu0 7
    %2456 = vperm.xlu0 %2455, %v370
    %v2457 = vpop.permute.xlu0 %2456
    %2459 = vset.pattern.permute.xlu0 7
    %2460 = vperm.xlu0 %2459, %v373
    %v2461 = vpop.permute.xlu0 %2460
    %2463 = vset.pattern.permute.xlu0 7
    %2464 = vperm.xlu0 %2463, %v378
    %v2465 = vpop.permute.xlu0 %2464
    %2467 = vset.pattern.permute.xlu0 7
    %2468 = vperm.xlu0 %2467, %v381
    %v2469 = vpop.permute.xlu0 %2468
    %2471 = vset.pattern.permute.xlu0 7
    %2472 = vperm.xlu0 %2471, %v386
    %v2473 = vpop.permute.xlu0 %2472
    %2475 = vset.pattern.permute.xlu0 7
    %2476 = vperm.xlu0 %2475, %v389
    %v2477 = vpop.permute.xlu0 %2476
    %2479 = vset.pattern.permute.xlu0 7
    %2480 = vperm.xlu0 %2479, %v394
    %v2481 = vpop.permute.xlu0 %2480
    %2483 = vset.pattern.permute.xlu0 7
    %2484 = vperm.xlu0 %2483, %v397
    %v2485 = vpop.permute.xlu0 %2484
    %v2487 = vlaneseq
    %v2488 = vshrl.u32 %v2487, 7
    %v2489 = vsub.s32 7, %v2488
    %v2490 = vrot.slane %v322, %v2489
    %v2491 = vadd.f32 %v2457, %v2490
    %v2492 = vadd.f32 %v2461, %v2490
    %v2493 = vadd.f32 %v2465, %v2490
    %v2494 = vadd.f32 %v2469, %v2490
    %v2495 = vadd.f32 %v2473, %v2490
    %v2496 = vadd.f32 %v2477, %v2490
    %v2497 = vadd.f32 %v2481, %v2490
    %v2498 = vadd.f32 %v2485, %v2490
    %vm2499 = vcmp.gt.f32.partialorder %v2491, 0.0
    %vm2500 = vcmp.gt.f32.partialorder %v2492, 0.0
    %vm2501 = vcmp.gt.f32.partialorder %v2493, 0.0
    %vm2502 = vcmp.gt.f32.partialorder %v2494, 0.0
    %vm2503 = vcmp.gt.f32.partialorder %v2495, 0.0
    %vm2504 = vcmp.gt.f32.partialorder %v2496, 0.0
    %vm2505 = vcmp.gt.f32.partialorder %v2497, 0.0
    %vm2506 = vcmp.gt.f32.partialorder %v2498, 0.0
    %v2507 = vmul.f32 %v2491, 0.2
    %v2508 = vmul.f32 %v2492, 0.2
    %v2509 = vmul.f32 %v2493, 0.2
    %v2510 = vmul.f32 %v2494, 0.2
    %v2511 = vmul.f32 %v2495, 0.2
    %v2512 = vmul.f32 %v2496, 0.2
    %v2513 = vmul.f32 %v2497, 0.2
    %v2514 = vmul.f32 %v2498, 0.2
    %v2515 = vsel %vm2499, %v2491, %v2507
    %v2516 = vsel %vm2500, %v2492, %v2508
    %v2517 = vsel %vm2501, %v2493, %v2509
    %v2518 = vsel %vm2502, %v2494, %v2510
    %v2519 = vsel %vm2503, %v2495, %v2511
    %v2520 = vsel %vm2504, %v2496, %v2512
    %v2521 = vsel %vm2505, %v2497, %v2513
    %v2522 = vsel %vm2506, %v2498, %v2514
    %v2523 = vadd.f32 %v2515, %v155
    %v2524 = vadd.f32 %v2516, %v156
    %v2525 = vadd.f32 %v2517, %v157
    %v2526 = vadd.f32 %v2518, %v158
    %v2527 = vadd.f32 %v2519, %v159
    %v2528 = vadd.f32 %v2520, %v160
    %v2529 = vadd.f32 %v2521, %v161
    %v2530 = vadd.f32 %v2522, %v162
    %v2531 = vsel %vm484, %v2523, -inf
    %2532 = vmax.xlane.f32.xlu0 %v2531
    %v2533 = vpop.xlane.xlu0 %2532
    %v2534 = vsel %vm484, %v2524, -inf
    %2535 = vmax.xlane.f32.xlu0 %v2534
    %v2536 = vpop.xlane.xlu0 %2535
    %v2537 = vsel %vm484, %v2525, -inf
    %2538 = vmax.xlane.f32.xlu0 %v2537
    %v2539 = vpop.xlane.xlu0 %2538
    %v2540 = vsel %vm484, %v2526, -inf
    %2541 = vmax.xlane.f32.xlu0 %v2540
    %v2542 = vpop.xlane.xlu0 %2541
    %v2543 = vsel %vm484, %v2527, -inf
    %2544 = vmax.xlane.f32.xlu0 %v2543
    %v2545 = vpop.xlane.xlu0 %2544
    %v2546 = vsel %vm484, %v2528, -inf
    %2547 = vmax.xlane.f32.xlu0 %v2546
    %v2548 = vpop.xlane.xlu0 %2547
    %v2549 = vsel %vm484, %v2529, -inf
    %2550 = vmax.xlane.f32.xlu0 %v2549
    %v2551 = vpop.xlane.xlu0 %2550
    %v2552 = vsel %vm484, %v2530, -inf
    %2553 = vmax.xlane.f32.xlu0 %v2552
    %v2554 = vpop.xlane.xlu0 %2553
    %v2555 = vsub.f32 %v2523, %v2533
    %v2556 = vsub.f32 %v2524, %v2536
    %v2557 = vsub.f32 %v2525, %v2539
    %v2558 = vsub.f32 %v2526, %v2542
    %v2559 = vsub.f32 %v2527, %v2545
    %v2560 = vsub.f32 %v2528, %v2548
    %v2561 = vsub.f32 %v2529, %v2551
    %v2562 = vsub.f32 %v2530, %v2554
    %v2563 = vmul.f32 %v2555, 1.442695
    %v2564 = vpow.pop %v2563
    %v2565 = vmul.f32 %v2556, 1.442695
    %v2566 = vpow.pop %v2565
    %v2567 = vmul.f32 %v2557, 1.442695
    %v2568 = vpow.pop %v2567
    %v2569 = vmul.f32 %v2558, 1.442695
    %v2570 = vpow.pop %v2569
    %v2571 = vmul.f32 %v2559, 1.442695
    %v2572 = vpow.pop %v2571
    %v2573 = vmul.f32 %v2560, 1.442695
    %v2574 = vpow.pop %v2573
    %v2575 = vmul.f32 %v2561, 1.442695
    %v2576 = vpow.pop %v2575
    %v2577 = vmul.f32 %v2562, 1.442695
    %v2578 = vpow.pop %v2577
    %v2579 = vsel %vm484, %v2564, 0.0
    %2580 = vadd.xlane.f32.xlu0 %v2579
    %v2581 = vpop.xlane.xlu0 %2580
    %v2582 = vsel %vm484, %v2566, 0.0
    %2583 = vadd.xlane.f32.xlu0 %v2582
    %v2584 = vpop.xlane.xlu0 %2583
    %v2585 = vsel %vm484, %v2568, 0.0
    %2586 = vadd.xlane.f32.xlu0 %v2585
    %v2587 = vpop.xlane.xlu0 %2586
    %v2588 = vsel %vm484, %v2570, 0.0
    %2589 = vadd.xlane.f32.xlu0 %v2588
    %v2590 = vpop.xlane.xlu0 %2589
    %v2591 = vsel %vm484, %v2572, 0.0
    %2592 = vadd.xlane.f32.xlu0 %v2591
    %v2593 = vpop.xlane.xlu0 %2592
    %v2594 = vsel %vm484, %v2574, 0.0
    %2595 = vadd.xlane.f32.xlu0 %v2594
    %v2596 = vpop.xlane.xlu0 %2595
    %v2597 = vsel %vm484, %v2576, 0.0
    %2598 = vadd.xlane.f32.xlu0 %v2597
    %v2599 = vpop.xlane.xlu0 %2598
    %v2600 = vsel %vm484, %v2578, 0.0
    %2601 = vadd.xlane.f32.xlu0 %v2600
    %v2602 = vpop.xlane.xlu0 %2601
    %v2603 = vrcp.pop %v2581
    %v2604 = vrcp.pop %v2584
    %v2605 = vrcp.pop %v2587
    %v2606 = vrcp.pop %v2590
    %v2607 = vrcp.pop %v2593
    %v2608 = vrcp.pop %v2596
    %v2609 = vrcp.pop %v2599
    %v2610 = vrcp.pop %v2602
    %v2611 = vmul.f32 %v2564, %v2603
    %v2612 = vmul.f32 %v2566, %v2604
    %v2613 = vmul.f32 %v2568, %v2605
    %v2614 = vmul.f32 %v2570, %v2606
    %v2615 = vmul.f32 %v2572, %v2607
    %v2616 = vmul.f32 %v2574, %v2608
    %v2617 = vmul.f32 %v2576, %v2609
    %v2618 = vmul.f32 %v2578, %v2610
    %v2619 = vpack.c.bf16 %v2612, %v2611
    %v2620 = vpack.c.bf16 %v2614, %v2613
    %v2621 = vpack.c.bf16 %v2616, %v2615
    %v2622 = vpack.c.bf16 %v2618, %v2617
    %2623 = vrot.lane.b32.xlu0 %v282, 72
    %v2624 = vpop.permute.xlu0 %2623
    %2625 = vrot.lane.b32.xlu0 %v283, 72
    %v2626 = vpop.permute.xlu0 %2625
    %2627 = vrot.lane.b32.xlu0 %v284, 72
    %v2628 = vpop.permute.xlu0 %2627
    %2629 = vrot.lane.b32.xlu0 %v285, 72
    %v2630 = vpop.permute.xlu0 %2629
    %v2636 = vsel %vm484, %v2619, 0
    %v2639 = vsel %vm484, %v2620, 0
    %v2642 = vsel %vm484, %v2621, 0
    %v2645 = vsel %vm484, %v2622, 0
    %2647 = vmatprep.subr.bf16.mxu0 0
    %2648 = vmatpush1.bf16.msra.mxu0 %v2624
    %2649 = vmatprep.subr.bf16.mxu0 0
    %2650 = vmatpush1.bf16.msra.mxu0 %v2626
    %2651 = vmatprep.subr.bf16.mxu0 0
    %2652 = vmatpush1.bf16.msra.mxu0 %v2628
    %2653 = vmatprep.subr.bf16.mxu0 0
    %2654 = vmatpush1.bf16.msra.mxu0 %v2630
    %2655 = vmatprep.subr.bf16.mxu0 0
    %2656 = vmatpush1.bf16.msra.mxu0 0
    %2657 = vmatprep.subr.bf16.mxu0 0
    %2658 = vmatpush1.bf16.msra.mxu0 0
    %2659 = vmatprep.subr.bf16.mxu0 0
    %2660 = vmatpush1.bf16.msra.mxu0 0
    %2661 = vmatprep.subr.bf16.mxu0 0
    %2662 = vmatpush1.bf16.msra.mxu0 0
    %2663 = vmatprep.subr.bf16.mxu0 0
    %2664 = vmatpush1.bf16.msra.mxu0 0
    %2665 = vmatprep.subr.bf16.mxu0 0
    %2666 = vmatpush1.bf16.msra.mxu0 0
    %2667 = vmatprep.subr.bf16.mxu0 0
    %2668 = vmatpush1.bf16.msra.mxu0 0
    %2669 = vmatprep.subr.bf16.mxu0 0
    %2670 = vmatpush1.bf16.msra.mxu0 0
    %2671 = vmatprep.subr.bf16.mxu0 0
    %2672 = vmatpush1.bf16.msra.mxu0 0
    %2673 = vmatprep.subr.bf16.mxu0 0
    %2674 = vmatpush1.bf16.msra.mxu0 0
    %2675 = vmatprep.subr.bf16.mxu0 0
    %2676 = vmatpush1.bf16.msra.mxu0 0
    %2677 = vmatprep.subr.bf16.mxu0 0
    %2678 = vmatpush1.bf16.msra.mxu0 0
    %2679 = vmatprep.mubr.bf16.mxu0 0
    %2680 = vmatmul.mubr.bf16.gmra.mrb[0].mxu0 %v2636
    %v2681 = vpop.f32.mrb[0].mxu0
    %v2682 = vadd.f32 0.0, %v2681
    %v2683 = vpop.f32.mrb[0].mxu0
    %v2684 = vpop.f32.mrb[0].mxu0
    %v2685 = vadd.f32 0.0, %v2684
    %v2686 = vpop.f32.mrb[0].mxu0
    %2687 = vmatprep.mubr.bf16.mxu0 0
    %2688 = vmatmul.mubr.bf16.gmra.mrb[0].mxu0 %v2639
    %v2689 = vpop.f32.mrb[0].mxu0
    %v2690 = vadd.f32 0.0, %v2689
    %v2691 = vpop.f32.mrb[0].mxu0
    %v2692 = vpop.f32.mrb[0].mxu0
    %v2693 = vadd.f32 0.0, %v2692
    %v2694 = vpop.f32.mrb[0].mxu0
    %2695 = vmatprep.mubr.bf16.mxu0 0
    %2696 = vmatmul.mubr.bf16.gmra.mrb[0].mxu0 %v2642
    %v2697 = vpop.f32.mrb[0].mxu0
    %v2698 = vadd.f32 0.0, %v2697
    %v2699 = vpop.f32.mrb[0].mxu0
    %v2700 = vpop.f32.mrb[0].mxu0
    %v2701 = vadd.f32 0.0, %v2700
    %v2702 = vpop.f32.mrb[0].mxu0
    %2703 = vmatprep.mubr.bf16.mxu0 0
    %2704 = vmatmul.mubr.bf16.gmra.mrb[0].mxu0 %v2645
    %v2705 = vpop.f32.mrb[0].mxu0
    %v2706 = vadd.f32 0.0, %v2705
    %v2707 = vpop.f32.mrb[0].mxu0
    %v2708 = vpop.f32.mrb[0].mxu0
    %v2709 = vadd.f32 0.0, %v2708
    %v2710 = vpop.f32.mrb[0].mxu0
    %2711 = vdwg.mxu0
    %2720 = vrot.lane.b32.xlu0 %v2682, 56
    %v2721 = vpop.permute.xlu0 %2720
    %2722 = vrot.lane.b32.xlu0 %v2685, 56
    %v2723 = vpop.permute.xlu0 %2722
    %2724 = vrot.lane.b32.xlu0 %v2690, 56
    %v2725 = vpop.permute.xlu0 %2724
    %2726 = vrot.lane.b32.xlu0 %v2693, 56
    %v2727 = vpop.permute.xlu0 %2726
    %2728 = vrot.lane.b32.xlu0 %v2698, 56
    %v2729 = vpop.permute.xlu0 %2728
    %2730 = vrot.lane.b32.xlu0 %v2701, 56
    %v2731 = vpop.permute.xlu0 %2730
    %2732 = vrot.lane.b32.xlu0 %v2706, 56
    %v2733 = vpop.permute.xlu0 %2732
    %2734 = vrot.lane.b32.xlu0 %v2709, 56
    %v2735 = vpop.permute.xlu0 %2734
    %vm2744 = vcmask 523712
    %2745 = vst.msk [vmem:[#allocation2] sm:$0xff] %vm2744, %v2721
    %2746 = vst.msk [vmem:[#allocation2 + $0x8] sm:$0xff] %vm2744, %v2723
    %2747 = vst.msk [vmem:[#allocation2 + $0x10] sm:$0xff] %vm2744, %v2725
    %2748 = vst.msk [vmem:[#allocation2 + $0x18] sm:$0xff] %vm2744, %v2727
    %2749 = vst.msk [vmem:[#allocation2 + $0x20] sm:$0xff] %vm2744, %v2729
    %2750 = vst.msk [vmem:[#allocation2 + $0x28] sm:$0xff] %vm2744, %v2731
    %2751 = vst.msk [vmem:[#allocation2 + $0x30] sm:$0xff] %vm2744, %v2733
    %2752 = vst.msk [vmem:[#allocation2 + $0x38] sm:$0xff] %vm2744, %v2735
    %v2753 = vld [vmem:[#allocation2] sm:$0xff]
    %v2754 = vld [vmem:[#allocation2 + $0x8] sm:$0xff]
    %v2755 = vld [vmem:[#allocation2 + $0x10] sm:$0xff]
    %v2756 = vld [vmem:[#allocation2 + $0x18] sm:$0xff]
    %v2757 = vld [vmem:[#allocation2 + $0x20] sm:$0xff]
    %v2758 = vld [vmem:[#allocation2 + $0x28] sm:$0xff]
    %v2759 = vld [vmem:[#allocation2 + $0x30] sm:$0xff]
    %v2760 = vld [vmem:[#allocation2 + $0x38] sm:$0xff]
    %v2762 = vlaneseq
    %v2763 = vshrl.u32 %v2762, 7
    %v2764 = vsub.s32 0, %v2763
    %v2765 = vrot.slane %v204, %v2764
    %v2767 = vadd.f32 %v2753, %v2765
    %v2768 = vadd.f32 %v2754, %v2765
    %v2769 = vadd.f32 %v2755, %v2765
    %v2770 = vadd.f32 %v2756, %v2765
    %v2771 = vadd.f32 %v2757, %v2765
    %v2772 = vadd.f32 %v2758, %v2765
    %v2773 = vadd.f32 %v2759, %v2765
    %v2774 = vadd.f32 %v2760, %v2765
    %vm2775 = vcmp.gt.f32.partialorder %v2767, 0.0
    %vm2776 = vcmp.gt.f32.partialorder %v2768, 0.0
    %vm2777 = vcmp.gt.f32.partialorder %v2769, 0.0
    %vm2778 = vcmp.gt.f32.partialorder %v2770, 0.0
    %vm2779 = vcmp.gt.f32.partialorder %v2771, 0.0
    %vm2780 = vcmp.gt.f32.partialorder %v2772, 0.0
    %vm2781 = vcmp.gt.f32.partialorder %v2773, 0.0
    %vm2782 = vcmp.gt.f32.partialorder %v2774, 0.0
    %v2783 = vmin.f32 %v2767, 0.0
    %v2784 = vmin.f32 %v2768, 0.0
    %v2785 = vmin.f32 %v2769, 0.0
    %v2786 = vmin.f32 %v2770, 0.0
    %v2787 = vmin.f32 %v2771, 0.0
    %v2788 = vmin.f32 %v2772, 0.0
    %v2789 = vmin.f32 %v2773, 0.0
    %v2790 = vmin.f32 %v2774, 0.0
    %v2791 = vmul.f32 %v2783, 1.442695
    %v2792 = vpow.pop %v2791
    %v2793 = vmul.f32 %v2784, 1.442695
    %v2794 = vpow.pop %v2793
    %v2795 = vmul.f32 %v2785, 1.442695
    %v2796 = vpow.pop %v2795
    %v2797 = vmul.f32 %v2786, 1.442695
    %v2798 = vpow.pop %v2797
    %v2799 = vmul.f32 %v2787, 1.442695
    %v2800 = vpow.pop %v2799
    %v2801 = vmul.f32 %v2788, 1.442695
    %v2802 = vpow.pop %v2801
    %v2803 = vmul.f32 %v2789, 1.442695
    %v2804 = vpow.pop %v2803
    %v2805 = vmul.f32 %v2790, 1.442695
    %v2806 = vpow.pop %v2805
    %v2807 = vsub.f32 %v2792, 1.0
    %v2808 = vsub.f32 %v2794, 1.0
    %v2809 = vsub.f32 %v2796, 1.0
    %v2810 = vsub.f32 %v2798, 1.0
    %v2811 = vsub.f32 %v2800, 1.0
    %v2812 = vsub.f32 %v2802, 1.0
    %v2813 = vsub.f32 %v2804, 1.0
    %v2814 = vsub.f32 %v2806, 1.0
    %v2815 = vsel %vm2775, %v2767, %v2807
    %v2816 = vsel %vm2776, %v2768, %v2808
    %v2817 = vsel %vm2777, %v2769, %v2809
    %v2818 = vsel %vm2778, %v2770, %v2810
    %v2819 = vsel %vm2779, %v2771, %v2811
    %v2820 = vsel %vm2780, %v2772, %v2812
    %v2821 = vsel %vm2781, %v2773, %v2813
    %v2822 = vsel %vm2782, %v2774, %v2814
    %v2823 = vld [vmem:[%s6] sm:$0xff]
    %v2824 = vld [vmem:[%s6 + $0x8] sm:$0xff]
    %v2825 = vld [vmem:[%s6 + $0x10] sm:$0xff]
    %v2826 = vld [vmem:[%s6 + $0x18] sm:$0xff]
    %v2827 = vld [vmem:[%s6 + $0x20] sm:$0xff]
    %v2828 = vld [vmem:[%s6 + $0x28] sm:$0xff]
    %v2829 = vld [vmem:[%s6 + $0x30] sm:$0xff]
    %v2830 = vld [vmem:[%s6 + $0x38] sm:$0xff]
    %v2831 = vld [vmem:[%s6 + $0x40] sm:$0xff]
    %v2832 = vld [vmem:[%s6 + $0x48] sm:$0xff]
    %v2833 = vld [vmem:[%s6 + $0x50] sm:$0xff]
    %v2834 = vld [vmem:[%s6 + $0x58] sm:$0xff]
    %v2835 = vld [vmem:[%s6 + $0x60] sm:$0xff]
    %v2836 = vld [vmem:[%s6 + $0x68] sm:$0xff]
    %v2837 = vld [vmem:[%s6 + $0x70] sm:$0xff]
    %v2838 = vld [vmem:[%s6 + $0x78] sm:$0xff]
    %v2839 = vld [vmem:[#allocation9] sm:$0xff]
    %v2840 = vld [vmem:[%s8] sm:$0xff]
    %v2841 = vld [vmem:[%s8 + $0x8] sm:$0xff]
    %v2842 = vld [vmem:[%s8 + $0x10] sm:$0xff]
    %v2843 = vld [vmem:[%s8 + $0x18] sm:$0xff]
    %v2844 = vld [vmem:[%s8 + $0x20] sm:$0xff]
    %v2845 = vld [vmem:[%s8 + $0x28] sm:$0xff]
    %v2846 = vld [vmem:[%s8 + $0x30] sm:$0xff]
    %v2847 = vld [vmem:[%s8 + $0x38] sm:$0xff]
    %v2848 = vld [vmem:[%s8 + $0x40] sm:$0xff]
    %v2849 = vld [vmem:[%s8 + $0x48] sm:$0xff]
    %v2850 = vld [vmem:[%s8 + $0x50] sm:$0xff]
    %v2851 = vld [vmem:[%s8 + $0x58] sm:$0xff]
    %v2852 = vld [vmem:[%s8 + $0x60] sm:$0xff]
    %v2853 = vld [vmem:[%s8 + $0x68] sm:$0xff]
    %v2854 = vld [vmem:[%s8 + $0x70] sm:$0xff]
    %v2855 = vld [vmem:[%s8 + $0x78] sm:$0xff]
    %v2856 = vld [vmem:[%s9] sm:$0x1]
    %v2857 = vpack.c.bf16 %v2816, %v2815
    %v2858 = vpack.c.bf16 %v2818, %v2817
    %v2859 = vpack.c.bf16 %v2820, %v2819
    %v2860 = vpack.c.bf16 %v2822, %v2821
    %v2861 = vpack.c.bf16 %v2824, %v2823
    %v2862 = vpack.c.bf16 %v2826, %v2825
    %v2863 = vpack.c.bf16 %v2828, %v2827
    %v2864 = vpack.c.bf16 %v2830, %v2829
    %v2865 = vpack.c.bf16 %v2832, %v2831
    %v2866 = vpack.c.bf16 %v2834, %v2833
    %v2867 = vpack.c.bf16 %v2836, %v2835
    %v2868 = vpack.c.bf16 %v2838, %v2837
    %2869 = vmatprep.subr.bf16.mxu0 0
    %2870 = vmatpush1.bf16.msra.mxu0 %v2861
    %2871 = vmatprep.subr.bf16.mxu0 0
    %2872 = vmatpush1.bf16.msra.mxu0 %v2862
    %2873 = vmatprep.subr.bf16.mxu0 0
    %2874 = vmatpush1.bf16.msra.mxu0 %v2863
    %2875 = vmatprep.subr.bf16.mxu0 0
    %2876 = vmatpush1.bf16.msra.mxu0 %v2864
    %2877 = vmatprep.subr.bf16.mxu0 0
    %2878 = vmatpush1.bf16.msra.mxu0 %v2865
    %2879 = vmatprep.subr.bf16.mxu0 0
    %2880 = vmatpush1.bf16.msra.mxu0 %v2866
    %2881 = vmatprep.subr.bf16.mxu0 0
    %2882 = vmatpush1.bf16.msra.mxu0 %v2867
    %2883 = vmatprep.subr.bf16.mxu0 0
    %2884 = vmatpush1.bf16.msra.mxu0 %v2868
    %2885 = vmatprep.subr.bf16.mxu0 0
    %2886 = vmatpush1.bf16.msra.mxu0 0
    %2887 = vmatprep.subr.bf16.mxu0 0
    %2888 = vmatpush1.bf16.msra.mxu0 0
    %2889 = vmatprep.subr.bf16.mxu0 0
    %2890 = vmatpush1.bf16.msra.mxu0 0
    %2891 = vmatprep.subr.bf16.mxu0 0
    %2892 = vmatpush1.bf16.msra.mxu0 0
    %2893 = vmatprep.subr.bf16.mxu0 0
    %2894 = vmatpush1.bf16.msra.mxu0 0
    %2895 = vmatprep.subr.bf16.mxu0 0
    %2896 = vmatpush1.bf16.msra.mxu0 0
    %2897 = vmatprep.subr.bf16.mxu0 0
    %2898 = vmatpush1.bf16.msra.mxu0 0
    %2899 = vmatprep.subr.bf16.mxu0 0
    %2900 = vmatpush1.bf16.msra.mxu0 0
    %2901 = vmatprep.mubr.bf16.mxu0 0
    %2902 = vmatmul.mubr.bf16.gmra.mrb[0].mxu0 %v2857
    %v2903 = vpop.f32.mrb[0].mxu0
    %v2904 = vadd.f32 0.0, %v2903
    %v2905 = vpop.f32.mrb[0].mxu0
    %v2906 = vpop.f32.mrb[0].mxu0
    %v2907 = vadd.f32 0.0, %v2906
    %v2908 = vpop.f32.mrb[0].mxu0
    %2909 = vmatprep.mubr.bf16.mxu0 0
    %2910 = vmatmul.mubr.bf16.gmra.mrb[0].mxu0 %v2858
    %v2911 = vpop.f32.mrb[0].mxu0
    %v2912 = vadd.f32 0.0, %v2911
    %v2913 = vpop.f32.mrb[0].mxu0
    %v2914 = vpop.f32.mrb[0].mxu0
    %v2915 = vadd.f32 0.0, %v2914
    %v2916 = vpop.f32.mrb[0].mxu0
    %2917 = vmatprep.mubr.bf16.mxu0 0
    %2918 = vmatmul.mubr.bf16.gmra.mrb[0].mxu0 %v2859
    %v2919 = vpop.f32.mrb[0].mxu0
    %v2920 = vadd.f32 0.0, %v2919
    %v2921 = vpop.f32.mrb[0].mxu0
    %v2922 = vpop.f32.mrb[0].mxu0
    %v2923 = vadd.f32 0.0, %v2922
    %v2924 = vpop.f32.mrb[0].mxu0
    %2925 = vmatprep.mubr.bf16.mxu0 0
    %2926 = vmatmul.mubr.bf16.gmra.mrb[0].mxu0 %v2860
    %v2927 = vpop.f32.mrb[0].mxu0
    %v2928 = vadd.f32 0.0, %v2927
    %v2929 = vpop.f32.mrb[0].mxu0
    %v2930 = vpop.f32.mrb[0].mxu0
    %v2931 = vadd.f32 0.0, %v2930
    %v2932 = vpop.f32.mrb[0].mxu0
    %2933 = vdwg.mxu0
    %v2934 = vpack.c.bf16 %v2907, %v2904
    %v2935 = vpack.c.bf16 %v2915, %v2912
    %v2936 = vpack.c.bf16 %v2923, %v2920
    %v2937 = vpack.c.bf16 %v2931, %v2928
    %v2938 = vpack.c.bf16 %v2839, %v2839
    %2939 = vmatprep.subr.bf16.mxu0 0
    %2940 = vmatpush1.bf16.xpose.msra.mxu0 %v2934
    %2941 = vmatprep.subr.bf16.mxu0 0
    %2942 = vmatpush1.bf16.xpose.msra.mxu0 %v2935
    %2943 = vmatprep.subr.bf16.mxu0 0
    %2944 = vmatpush1.bf16.xpose.msra.mxu0 %v2936
    %2945 = vmatprep.subr.bf16.mxu0 0
    %2946 = vmatpush1.bf16.xpose.msra.mxu0 %v2937
    %2947 = vmatprep.subr.bf16.mxu0 0
    %2948 = vmatpush1.bf16.xpose.msra.mxu0 0
    %2949 = vmatprep.subr.bf16.mxu0 0
    %2950 = vmatpush1.bf16.xpose.msra.mxu0 0
    %2951 = vmatprep.subr.bf16.mxu0 0
    %2952 = vmatpush1.bf16.xpose.msra.mxu0 0
    %2953 = vmatprep.subr.bf16.mxu0 0
    %2954 = vmatpush1.bf16.xpose.msra.mxu0 0
    %2955 = vmatprep.subr.bf16.mxu0 0
    %2956 = vmatpush1.bf16.xpose.msra.mxu0 0
    %2957 = vmatprep.subr.bf16.mxu0 0
    %2958 = vmatpush1.bf16.xpose.msra.mxu0 0
    %2959 = vmatprep.subr.bf16.mxu0 0
    %2960 = vmatpush1.bf16.xpose.msra.mxu0 0
    %2961 = vmatprep.subr.bf16.mxu0 0
    %2962 = vmatpush1.bf16.xpose.msra.mxu0 0
    %2963 = vmatprep.subr.bf16.mxu0 0
    %2964 = vmatpush1.bf16.xpose.msra.mxu0 0
    %2965 = vmatprep.subr.bf16.mxu0 0
    %2966 = vmatpush1.bf16.xpose.msra.mxu0 0
    %2967 = vmatprep.subr.bf16.mxu0 0
    %2968 = vmatpush1.bf16.xpose.msra.mxu0 0
    %2969 = vmatprep.subr.bf16.mxu0 0
    %2970 = vmatpush1.bf16.xpose.msra.mxu0 0
    %2971 = vmatprep.mubr.bf16.mxu0 0
    %2972 = vmatmul.mubr.bf16.gmra.mrb[0].mxu0 %v2938
    %v2973 = vpop.f32.mrb[0].mxu0
    %v2974 = vadd.f32 0.0, %v2973
    %v2975 = vpop.f32.mrb[0].mxu0
    %v2976 = vpop.f32.mrb[0].mxu0
    %v2977 = vpop.f32.mrb[0].mxu0
    %2978 = vdwg.mxu0
    %v2979 = vpack.c.bf16 %v2841, %v2840
    %v2980 = vpack.c.bf16 %v2843, %v2842
    %v2981 = vpack.c.bf16 %v2845, %v2844
    %v2982 = vpack.c.bf16 %v2847, %v2846
    %v2983 = vpack.c.bf16 %v2849, %v2848
    %v2984 = vpack.c.bf16 %v2851, %v2850
    %v2985 = vpack.c.bf16 %v2853, %v2852
    %v2986 = vpack.c.bf16 %v2855, %v2854
    %2987 = vmatprep.subr.bf16.mxu0 0
    %2988 = vmatpush1.bf16.msra.mxu0 %v2979
    %2989 = vmatprep.subr.bf16.mxu0 0
    %2990 = vmatpush1.bf16.msra.mxu0 %v2980
    %2991 = vmatprep.subr.bf16.mxu0 0
    %2992 = vmatpush1.bf16.msra.mxu0 %v2981
    %2993 = vmatprep.subr.bf16.mxu0 0
    %2994 = vmatpush1.bf16.msra.mxu0 %v2982
    %2995 = vmatprep.subr.bf16.mxu0 0
    %2996 = vmatpush1.bf16.msra.mxu0 %v2983
    %2997 = vmatprep.subr.bf16.mxu0 0
    %2998 = vmatpush1.bf16.msra.mxu0 %v2984
    %2999 = vmatprep.subr.bf16.mxu0 0
    %3000 = vmatpush1.bf16.msra.mxu0 %v2985
    %3001 = vmatprep.subr.bf16.mxu0 0
    %3002 = vmatpush1.bf16.msra.mxu0 %v2986
    %3003 = vmatprep.subr.bf16.mxu0 0
    %3004 = vmatpush1.bf16.msra.mxu0 0
    %3005 = vmatprep.subr.bf16.mxu0 0
    %3006 = vmatpush1.bf16.msra.mxu0 0
    %3007 = vmatprep.subr.bf16.mxu0 0
    %3008 = vmatpush1.bf16.msra.mxu0 0
    %3009 = vmatprep.subr.bf16.mxu0 0
    %3010 = vmatpush1.bf16.msra.mxu0 0
    %3011 = vmatprep.subr.bf16.mxu0 0
    %3012 = vmatpush1.bf16.msra.mxu0 0
    %3013 = vmatprep.subr.bf16.mxu0 0
    %3014 = vmatpush1.bf16.msra.mxu0 0
    %3015 = vmatprep.subr.bf16.mxu0 0
    %3016 = vmatpush1.bf16.msra.mxu0 0
    %3017 = vmatprep.subr.bf16.mxu0 0
    %3018 = vmatpush1.bf16.msra.mxu0 0
    %3019 = vmatprep.mubr.bf16.mxu0 0
    %3020 = vmatmul.mubr.bf16.gmra.mrb[0].mxu0 %v2934
    %v3021 = vpop.f32.mrb[0].mxu0
    %v3022 = vadd.f32 0.0, %v3021
    %v3023 = vpop.f32.mrb[0].mxu0
    %v3024 = vpop.f32.mrb[0].mxu0
    %v3025 = vadd.f32 0.0, %v3024
    %v3026 = vpop.f32.mrb[0].mxu0
    %3027 = vmatprep.mubr.bf16.mxu0 0
    %3028 = vmatmul.mubr.bf16.gmra.mrb[0].mxu0 %v2935
    %v3029 = vpop.f32.mrb[0].mxu0
    %v3030 = vadd.f32 0.0, %v3029
    %v3031 = vpop.f32.mrb[0].mxu0
    %v3032 = vpop.f32.mrb[0].mxu0
    %v3033 = vadd.f32 0.0, %v3032
    %v3034 = vpop.f32.mrb[0].mxu0
    %3035 = vmatprep.mubr.bf16.mxu0 0
    %3036 = vmatmul.mubr.bf16.gmra.mrb[0].mxu0 %v2936
    %v3037 = vpop.f32.mrb[0].mxu0
    %v3038 = vadd.f32 0.0, %v3037
    %v3039 = vpop.f32.mrb[0].mxu0
    %v3040 = vpop.f32.mrb[0].mxu0
    %v3041 = vadd.f32 0.0, %v3040
    %v3042 = vpop.f32.mrb[0].mxu0
    %3043 = vmatprep.mubr.bf16.mxu0 0
    %3044 = vmatmul.mubr.bf16.gmra.mrb[0].mxu0 %v2937
    %v3045 = vpop.f32.mrb[0].mxu0
    %v3046 = vadd.f32 0.0, %v3045
    %v3047 = vpop.f32.mrb[0].mxu0
    %v3048 = vpop.f32.mrb[0].mxu0
    %v3049 = vadd.f32 0.0, %v3048
    %v3050 = vpop.f32.mrb[0].mxu0
    %3051 = vdwg.mxu0
    %3053 = vset.pattern.permute.xlu0 0
    %3054 = vperm.xlu0 %3053, %v3022
    %v3055 = vpop.permute.xlu0 %3054
    %3058 = vset.pattern.permute.xlu0 0
    %3059 = vperm.xlu0 %3058, %v3025
    %v3060 = vpop.permute.xlu0 %3059
    %3063 = vset.pattern.permute.xlu0 0
    %3064 = vperm.xlu0 %3063, %v3030
    %v3065 = vpop.permute.xlu0 %3064
    %3068 = vset.pattern.permute.xlu0 0
    %3069 = vperm.xlu0 %3068, %v3033
    %v3070 = vpop.permute.xlu0 %3069
    %3073 = vset.pattern.permute.xlu0 0
    %3074 = vperm.xlu0 %3073, %v3038
    %v3075 = vpop.permute.xlu0 %3074
    %3078 = vset.pattern.permute.xlu0 0
    %3079 = vperm.xlu0 %3078, %v3041
    %v3080 = vpop.permute.xlu0 %3079
    %3083 = vset.pattern.permute.xlu0 0
    %3084 = vperm.xlu0 %3083, %v3046
    %v3085 = vpop.permute.xlu0 %3084
    %3088 = vset.pattern.permute.xlu0 0
    %3089 = vperm.xlu0 %3088, %v3049
    %v3090 = vpop.permute.xlu0 %3089
    %v3092 = vlaneseq
    %v3093 = vshrl.u32 %v3092, 7
    %v3094 = vsub.s32 0, %v3093
    %v3095 = vrot.slane %v2974, %v3094
    %v3096 = vadd.f32 %v3055, %v3095
    %v3097 = vadd.f32 %v3060, %v3095
    %v3098 = vadd.f32 %v3065, %v3095
    %v3099 = vadd.f32 %v3070, %v3095
    %v3100 = vadd.f32 %v3075, %v3095
    %v3101 = vadd.f32 %v3080, %v3095
    %v3102 = vadd.f32 %v3085, %v3095
    %v3103 = vadd.f32 %v3090, %v3095
    %vm3104 = vcmp.gt.f32.partialorder %v3096, 0.0
    %vm3105 = vcmp.gt.f32.partialorder %v3097, 0.0
    %vm3106 = vcmp.gt.f32.partialorder %v3098, 0.0
    %vm3107 = vcmp.gt.f32.partialorder %v3099, 0.0
    %vm3108 = vcmp.gt.f32.partialorder %v3100, 0.0
    %vm3109 = vcmp.gt.f32.partialorder %v3101, 0.0
    %vm3110 = vcmp.gt.f32.partialorder %v3102, 0.0
    %vm3111 = vcmp.gt.f32.partialorder %v3103, 0.0
    %v3112 = vmul.f32 %v3096, 0.2
    %v3113 = vmul.f32 %v3097, 0.2
    %v3114 = vmul.f32 %v3098, 0.2
    %v3115 = vmul.f32 %v3099, 0.2
    %v3116 = vmul.f32 %v3100, 0.2
    %v3117 = vmul.f32 %v3101, 0.2
    %v3118 = vmul.f32 %v3102, 0.2
    %v3119 = vmul.f32 %v3103, 0.2
    %v3120 = vsel %vm3104, %v3096, %v3112
    %v3121 = vsel %vm3105, %v3097, %v3113
    %v3122 = vsel %vm3106, %v3098, %v3114
    %v3123 = vsel %vm3107, %v3099, %v3115
    %v3124 = vsel %vm3108, %v3100, %v3116
    %v3125 = vsel %vm3109, %v3101, %v3117
    %v3126 = vsel %vm3110, %v3102, %v3118
    %v3127 = vsel %vm3111, %v3103, %v3119
    %v3128 = vadd.f32 %v3120, %v155
    %v3129 = vadd.f32 %v3121, %v156
    %v3130 = vadd.f32 %v3122, %v157
    %v3131 = vadd.f32 %v3123, %v158
    %v3132 = vadd.f32 %v3124, %v159
    %v3133 = vadd.f32 %v3125, %v160
    %v3134 = vadd.f32 %v3126, %v161
    %v3135 = vadd.f32 %v3127, %v162
    %v3136 = vsel %vm484, %v3128, -inf
    %3137 = vmax.xlane.f32.xlu0 %v3136
    %v3138 = vpop.xlane.xlu0 %3137
    %v3139 = vsel %vm484, %v3129, -inf
    %3140 = vmax.xlane.f32.xlu0 %v3139
    %v3141 = vpop.xlane.xlu0 %3140
    %v3142 = vsel %vm484, %v3130, -inf
    %3143 = vmax.xlane.f32.xlu0 %v3142
    %v3144 = vpop.xlane.xlu0 %3143
    %v3145 = vsel %vm484, %v3131, -inf
    %3146 = vmax.xlane.f32.xlu0 %v3145
    %v3147 = vpop.xlane.xlu0 %3146
    %v3148 = vsel %vm484, %v3132, -inf
    %3149 = vmax.xlane.f32.xlu0 %v3148
    %v3150 = vpop.xlane.xlu0 %3149
    %v3151 = vsel %vm484, %v3133, -inf
    %3152 = vmax.xlane.f32.xlu0 %v3151
    %v3153 = vpop.xlane.xlu0 %3152
    %v3154 = vsel %vm484, %v3134, -inf
    %3155 = vmax.xlane.f32.xlu0 %v3154
    %v3156 = vpop.xlane.xlu0 %3155
    %v3157 = vsel %vm484, %v3135, -inf
    %3158 = vmax.xlane.f32.xlu0 %v3157
    %v3159 = vpop.xlane.xlu0 %3158
    %v3160 = vsub.f32 %v3128, %v3138
    %v3161 = vsub.f32 %v3129, %v3141
    %v3162 = vsub.f32 %v3130, %v3144
    %v3163 = vsub.f32 %v3131, %v3147
    %v3164 = vsub.f32 %v3132, %v3150
    %v3165 = vsub.f32 %v3133, %v3153
    %v3166 = vsub.f32 %v3134, %v3156
    %v3167 = vsub.f32 %v3135, %v3159
    %v3168 = vmul.f32 %v3160, 1.442695
    %v3169 = vpow.pop %v3168
    %v3170 = vmul.f32 %v3161, 1.442695
    %v3171 = vpow.pop %v3170
    %v3172 = vmul.f32 %v3162, 1.442695
    %v3173 = vpow.pop %v3172
    %v3174 = vmul.f32 %v3163, 1.442695
    %v3175 = vpow.pop %v3174
    %v3176 = vmul.f32 %v3164, 1.442695
    %v3177 = vpow.pop %v3176
    %v3178 = vmul.f32 %v3165, 1.442695
    %v3179 = vpow.pop %v3178
    %v3180 = vmul.f32 %v3166, 1.442695
    %v3181 = vpow.pop %v3180
    %v3182 = vmul.f32 %v3167, 1.442695
    %v3183 = vpow.pop %v3182
    %v3184 = vsel %vm484, %v3169, 0.0
    %3185 = vadd.xlane.f32.xlu0 %v3184
    %v3186 = vpop.xlane.xlu0 %3185
    %v3187 = vsel %vm484, %v3171, 0.0
    %3188 = vadd.xlane.f32.xlu0 %v3187
    %v3189 = vpop.xlane.xlu0 %3188
    %v3190 = vsel %vm484, %v3173, 0.0
    %3191 = vadd.xlane.f32.xlu0 %v3190
    %v3192 = vpop.xlane.xlu0 %3191
    %v3193 = vsel %vm484, %v3175, 0.0
    %3194 = vadd.xlane.f32.xlu0 %v3193
    %v3195 = vpop.xlane.xlu0 %3194
    %v3196 = vsel %vm484, %v3177, 0.0
    %3197 = vadd.xlane.f32.xlu0 %v3196
    %v3198 = vpop.xlane.xlu0 %3197
    %v3199 = vsel %vm484, %v3179, 0.0
    %3200 = vadd.xlane.f32.xlu0 %v3199
    %v3201 = vpop.xlane.xlu0 %3200
    %v3202 = vsel %vm484, %v3181, 0.0
    %3203 = vadd.xlane.f32.xlu0 %v3202
    %v3204 = vpop.xlane.xlu0 %3203
    %v3205 = vsel %vm484, %v3183, 0.0
    %3206 = vadd.xlane.f32.xlu0 %v3205
    %v3207 = vpop.xlane.xlu0 %3206
    %v3208 = vrcp.pop %v3186
    %v3209 = vrcp.pop %v3189
    %v3210 = vrcp.pop %v3192
    %v3211 = vrcp.pop %v3195
    %v3212 = vrcp.pop %v3198
    %v3213 = vrcp.pop %v3201
    %v3214 = vrcp.pop %v3204
    %v3215 = vrcp.pop %v3207
    %v3216 = vmul.f32 %v3169, %v3208
    %v3217 = vmul.f32 %v3171, %v3209
    %v3218 = vmul.f32 %v3173, %v3210
    %v3219 = vmul.f32 %v3175, %v3211
    %v3220 = vmul.f32 %v3177, %v3212
    %v3221 = vmul.f32 %v3179, %v3213
    %v3222 = vmul.f32 %v3181, %v3214
    %v3223 = vmul.f32 %v3183, %v3215
    %v3224 = vpack.c.bf16 %v3217, %v3216
    %v3225 = vpack.c.bf16 %v3219, %v3218
    %v3226 = vpack.c.bf16 %v3221, %v3220
    %v3227 = vpack.c.bf16 %v3223, %v3222
    %v3229 = vsel %vm484, %v3224, 0
    %v3232 = vsel %vm484, %v3225, 0
    %v3235 = vsel %vm484, %v3226, 0
    %v3238 = vsel %vm484, %v3227, 0
    %3240 = vmatprep.subr.bf16.mxu0 0
    %3241 = vmatpush1.bf16.msra.mxu0 %v2934
    %3242 = vmatprep.subr.bf16.mxu0 0
    %3243 = vmatpush1.bf16.msra.mxu0 %v2935
    %3244 = vmatprep.subr.bf16.mxu0 0
    %3245 = vmatpush1.bf16.msra.mxu0 %v2936
    %3246 = vmatprep.subr.bf16.mxu0 0
    %3247 = vmatpush1.bf16.msra.mxu0 %v2937
    %3248 = vmatprep.subr.bf16.mxu0 0
    %3249 = vmatpush1.bf16.msra.mxu0 0
    %3250 = vmatprep.subr.bf16.mxu0 0
    %3251 = vmatpush1.bf16.msra.mxu0 0
    %3252 = vmatprep.subr.bf16.mxu0 0
    %3253 = vmatpush1.bf16.msra.mxu0 0
    %3254 = vmatprep.subr.bf16.mxu0 0
    %3255 = vmatpush1.bf16.msra.mxu0 0
    %3256 = vmatprep.subr.bf16.mxu0 0
    %3257 = vmatpush1.bf16.msra.mxu0 0
    %3258 = vmatprep.subr.bf16.mxu0 0
    %3259 = vmatpush1.bf16.msra.mxu0 0
    %3260 = vmatprep.subr.bf16.mxu0 0
    %3261 = vmatpush1.bf16.msra.mxu0 0
    %3262 = vmatprep.subr.bf16.mxu0 0
    %3263 = vmatpush1.bf16.msra.mxu0 0
    %3264 = vmatprep.subr.bf16.mxu0 0
    %3265 = vmatpush1.bf16.msra.mxu0 0
    %3266 = vmatprep.subr.bf16.mxu0 0
    %3267 = vmatpush1.bf16.msra.mxu0 0
    %3268 = vmatprep.subr.bf16.mxu0 0
    %3269 = vmatpush1.bf16.msra.mxu0 0
    %3270 = vmatprep.subr.bf16.mxu0 0
    %3271 = vmatpush1.bf16.msra.mxu0 0
    %3272 = vmatprep.mubr.bf16.mxu0 0
    %3273 = vmatmul.mubr.bf16.gmra.mrb[0].mxu0 %v3229
    %v3274 = vpop.f32.mrb[0].mxu0
    %v3275 = vadd.f32 0.0, %v3274
    %v3276 = vpop.f32.mrb[0].mxu0
    %v3277 = vpop.f32.mrb[0].mxu0
    %v3278 = vadd.f32 0.0, %v3277
    %v3279 = vpop.f32.mrb[0].mxu0
    %3280 = vmatprep.mubr.bf16.mxu0 0
    %3281 = vmatmul.mubr.bf16.gmra.mrb[0].mxu0 %v3232
    %v3282 = vpop.f32.mrb[0].mxu0
    %v3283 = vadd.f32 0.0, %v3282
    %v3284 = vpop.f32.mrb[0].mxu0
    %v3285 = vpop.f32.mrb[0].mxu0
    %v3286 = vadd.f32 0.0, %v3285
    %v3287 = vpop.f32.mrb[0].mxu0
    %3288 = vmatprep.mubr.bf16.mxu0 0
    %3289 = vmatmul.mubr.bf16.gmra.mrb[0].mxu0 %v3235
    %v3290 = vpop.f32.mrb[0].mxu0
    %v3291 = vadd.f32 0.0, %v3290
    %v3292 = vpop.f32.mrb[0].mxu0
    %v3293 = vpop.f32.mrb[0].mxu0
    %v3294 = vadd.f32 0.0, %v3293
    %v3295 = vpop.f32.mrb[0].mxu0
    %3296 = vmatprep.mubr.bf16.mxu0 0
    %3297 = vmatmul.mubr.bf16.gmra.mrb[0].mxu0 %v3238
    %v3298 = vpop.f32.mrb[0].mxu0
    %v3299 = vadd.f32 0.0, %v3298
    %v3300 = vpop.f32.mrb[0].mxu0
    %v3301 = vpop.f32.mrb[0].mxu0
    %v3302 = vadd.f32 0.0, %v3301
    %v3303 = vpop.f32.mrb[0].mxu0
    %3304 = vdwg.mxu0
    %3305 = vst.msk [vmem:[#allocation2] sm:$0xff] %vm654, %v3275
    %3306 = vst.msk [vmem:[#allocation2 + $0x8] sm:$0xff] %vm654, %v3278
    %3307 = vst.msk [vmem:[#allocation2 + $0x10] sm:$0xff] %vm654, %v3283
    %3308 = vst.msk [vmem:[#allocation2 + $0x18] sm:$0xff] %vm654, %v3286
    %3309 = vst.msk [vmem:[#allocation2 + $0x20] sm:$0xff] %vm654, %v3291
    %3310 = vst.msk [vmem:[#allocation2 + $0x28] sm:$0xff] %vm654, %v3294
    %3311 = vst.msk [vmem:[#allocation2 + $0x30] sm:$0xff] %vm654, %v3299
    %3312 = vst.msk [vmem:[#allocation2 + $0x38] sm:$0xff] %vm654, %v3302
    %3313 = vset.pattern.permute.xlu0 1
    %3314 = vperm.xlu0 %3313, %v3022
    %v3315 = vpop.permute.xlu0 %3314
    %3317 = vset.pattern.permute.xlu0 1
    %3318 = vperm.xlu0 %3317, %v3025
    %v3319 = vpop.permute.xlu0 %3318
    %3321 = vset.pattern.permute.xlu0 1
    %3322 = vperm.xlu0 %3321, %v3030
    %v3323 = vpop.permute.xlu0 %3322
    %3325 = vset.pattern.permute.xlu0 1
    %3326 = vperm.xlu0 %3325, %v3033
    %v3327 = vpop.permute.xlu0 %3326
    %3329 = vset.pattern.permute.xlu0 1
    %3330 = vperm.xlu0 %3329, %v3038
    %v3331 = vpop.permute.xlu0 %3330
    %3333 = vset.pattern.permute.xlu0 1
    %3334 = vperm.xlu0 %3333, %v3041
    %v3335 = vpop.permute.xlu0 %3334
    %3337 = vset.pattern.permute.xlu0 1
    %3338 = vperm.xlu0 %3337, %v3046
    %v3339 = vpop.permute.xlu0 %3338
    %3341 = vset.pattern.permute.xlu0 1
    %3342 = vperm.xlu0 %3341, %v3049
    %v3343 = vpop.permute.xlu0 %3342
    %v3345 = vlaneseq
    %v3346 = vshrl.u32 %v3345, 7
    %v3347 = vsub.s32 1, %v3346
    %v3348 = vrot.slane %v2974, %v3347
    %v3349 = vadd.f32 %v3315, %v3348
    %v3350 = vadd.f32 %v3319, %v3348
    %v3351 = vadd.f32 %v3323, %v3348
    %v3352 = vadd.f32 %v3327, %v3348
    %v3353 = vadd.f32 %v3331, %v3348
    %v3354 = vadd.f32 %v3335, %v3348
    %v3355 = vadd.f32 %v3339, %v3348
    %v3356 = vadd.f32 %v3343, %v3348
    %vm3357 = vcmp.gt.f32.partialorder %v3349, 0.0
    %vm3358 = vcmp.gt.f32.partialorder %v3350, 0.0
    %vm3359 = vcmp.gt.f32.partialorder %v3351, 0.0
    %vm3360 = vcmp.gt.f32.partialorder %v3352, 0.0
    %vm3361 = vcmp.gt.f32.partialorder %v3353, 0.0
    %vm3362 = vcmp.gt.f32.partialorder %v3354, 0.0
    %vm3363 = vcmp.gt.f32.partialorder %v3355, 0.0
    %vm3364 = vcmp.gt.f32.partialorder %v3356, 0.0
    %v3365 = vmul.f32 %v3349, 0.2
    %v3366 = vmul.f32 %v3350, 0.2
    %v3367 = vmul.f32 %v3351, 0.2
    %v3368 = vmul.f32 %v3352, 0.2
    %v3369 = vmul.f32 %v3353, 0.2
    %v3370 = vmul.f32 %v3354, 0.2
    %v3371 = vmul.f32 %v3355, 0.2
    %v3372 = vmul.f32 %v3356, 0.2
    %v3373 = vsel %vm3357, %v3349, %v3365
    %v3374 = vsel %vm3358, %v3350, %v3366
    %v3375 = vsel %vm3359, %v3351, %v3367
    %v3376 = vsel %vm3360, %v3352, %v3368
    %v3377 = vsel %vm3361, %v3353, %v3369
    %v3378 = vsel %vm3362, %v3354, %v3370
    %v3379 = vsel %vm3363, %v3355, %v3371
    %v3380 = vsel %vm3364, %v3356, %v3372
    %v3381 = vadd.f32 %v3373, %v155
    %v3382 = vadd.f32 %v3374, %v156
    %v3383 = vadd.f32 %v3375, %v157
    %v3384 = vadd.f32 %v3376, %v158
    %v3385 = vadd.f32 %v3377, %v159
    %v3386 = vadd.f32 %v3378, %v160
    %v3387 = vadd.f32 %v3379, %v161
    %v3388 = vadd.f32 %v3380, %v162
    %v3389 = vsel %vm484, %v3381, -inf
    %3390 = vmax.xlane.f32.xlu0 %v3389
    %v3391 = vpop.xlane.xlu0 %3390
    %v3392 = vsel %vm484, %v3382, -inf
    %3393 = vmax.xlane.f32.xlu0 %v3392
    %v3394 = vpop.xlane.xlu0 %3393
    %v3395 = vsel %vm484, %v3383, -inf
    %3396 = vmax.xlane.f32.xlu0 %v3395
    %v3397 = vpop.xlane.xlu0 %3396
    %v3398 = vsel %vm484, %v3384, -inf
    %3399 = vmax.xlane.f32.xlu0 %v3398
    %v3400 = vpop.xlane.xlu0 %3399
    %v3401 = vsel %vm484, %v3385, -inf
    %3402 = vmax.xlane.f32.xlu0 %v3401
    %v3403 = vpop.xlane.xlu0 %3402
    %v3404 = vsel %vm484, %v3386, -inf
    %3405 = vmax.xlane.f32.xlu0 %v3404
    %v3406 = vpop.xlane.xlu0 %3405
    %v3407 = vsel %vm484, %v3387, -inf
    %3408 = vmax.xlane.f32.xlu0 %v3407
    %v3409 = vpop.xlane.xlu0 %3408
    %v3410 = vsel %vm484, %v3388, -inf
    %3411 = vmax.xlane.f32.xlu0 %v3410
    %v3412 = vpop.xlane.xlu0 %3411
    %v3413 = vsub.f32 %v3381, %v3391
    %v3414 = vsub.f32 %v3382, %v3394
    %v3415 = vsub.f32 %v3383, %v3397
    %v3416 = vsub.f32 %v3384, %v3400
    %v3417 = vsub.f32 %v3385, %v3403
    %v3418 = vsub.f32 %v3386, %v3406
    %v3419 = vsub.f32 %v3387, %v3409
    %v3420 = vsub.f32 %v3388, %v3412
    %v3421 = vmul.f32 %v3413, 1.442695
    %v3422 = vpow.pop %v3421
    %v3423 = vmul.f32 %v3414, 1.442695
    %v3424 = vpow.pop %v3423
    %v3425 = vmul.f32 %v3415, 1.442695
    %v3426 = vpow.pop %v3425
    %v3427 = vmul.f32 %v3416, 1.442695
    %v3428 = vpow.pop %v3427
    %v3429 = vmul.f32 %v3417, 1.442695
    %v3430 = vpow.pop %v3429
    %v3431 = vmul.f32 %v3418, 1.442695
    %v3432 = vpow.pop %v3431
    %v3433 = vmul.f32 %v3419, 1.442695
    %v3434 = vpow.pop %v3433
    %v3435 = vmul.f32 %v3420, 1.442695
    %v3436 = vpow.pop %v3435
    %v3437 = vsel %vm484, %v3422, 0.0
    %3438 = vadd.xlane.f32.xlu0 %v3437
    %v3439 = vpop.xlane.xlu0 %3438
    %v3440 = vsel %vm484, %v3424, 0.0
    %3441 = vadd.xlane.f32.xlu0 %v3440
    %v3442 = vpop.xlane.xlu0 %3441
    %v3443 = vsel %vm484, %v3426, 0.0
    %3444 = vadd.xlane.f32.xlu0 %v3443
    %v3445 = vpop.xlane.xlu0 %3444
    %v3446 = vsel %vm484, %v3428, 0.0
    %3447 = vadd.xlane.f32.xlu0 %v3446
    %v3448 = vpop.xlane.xlu0 %3447
    %v3449 = vsel %vm484, %v3430, 0.0
    %3450 = vadd.xlane.f32.xlu0 %v3449
    %v3451 = vpop.xlane.xlu0 %3450
    %v3452 = vsel %vm484, %v3432, 0.0
    %3453 = vadd.xlane.f32.xlu0 %v3452
    %v3454 = vpop.xlane.xlu0 %3453
    %v3455 = vsel %vm484, %v3434, 0.0
    %3456 = vadd.xlane.f32.xlu0 %v3455
    %v3457 = vpop.xlane.xlu0 %3456
    %v3458 = vsel %vm484, %v3436, 0.0
    %3459 = vadd.xlane.f32.xlu0 %v3458
    %v3460 = vpop.xlane.xlu0 %3459
    %v3461 = vrcp.pop %v3439
    %v3462 = vrcp.pop %v3442
    %v3463 = vrcp.pop %v3445
    %v3464 = vrcp.pop %v3448
    %v3465 = vrcp.pop %v3451
    %v3466 = vrcp.pop %v3454
    %v3467 = vrcp.pop %v3457
    %v3468 = vrcp.pop %v3460
    %v3469 = vmul.f32 %v3422, %v3461
    %v3470 = vmul.f32 %v3424, %v3462
    %v3471 = vmul.f32 %v3426, %v3463
    %v3472 = vmul.f32 %v3428, %v3464
    %v3473 = vmul.f32 %v3430, %v3465
    %v3474 = vmul.f32 %v3432, %v3466
    %v3475 = vmul.f32 %v3434, %v3467
    %v3476 = vmul.f32 %v3436, %v3468
    %v3477 = vpack.c.bf16 %v3470, %v3469
    %v3478 = vpack.c.bf16 %v3472, %v3471
    %v3479 = vpack.c.bf16 %v3474, %v3473
    %v3480 = vpack.c.bf16 %v3476, %v3475
    %3485 = vrot.lane.b32.xlu0 %v2934, 120
    %v3486 = vpop.permute.xlu0 %3485
    %3487 = vrot.lane.b32.xlu0 %v2935, 120
    %v3488 = vpop.permute.xlu0 %3487
    %3489 = vrot.lane.b32.xlu0 %v2936, 120
    %v3490 = vpop.permute.xlu0 %3489
    %3491 = vrot.lane.b32.xlu0 %v2937, 120
    %v3492 = vpop.permute.xlu0 %3491
    %v3498 = vsel %vm484, %v3477, 0
    %v3501 = vsel %vm484, %v3478, 0
    %v3504 = vsel %vm484, %v3479, 0
    %v3507 = vsel %vm484, %v3480, 0
    %3509 = vmatprep.subr.bf16.mxu0 0
    %3510 = vmatpush1.bf16.msra.mxu0 %v3486
    %3511 = vmatprep.subr.bf16.mxu0 0
    %3512 = vmatpush1.bf16.msra.mxu0 %v3488
    %3513 = vmatprep.subr.bf16.mxu0 0
    %3514 = vmatpush1.bf16.msra.mxu0 %v3490
    %3515 = vmatprep.subr.bf16.mxu0 0
    %3516 = vmatpush1.bf16.msra.mxu0 %v3492
    %3517 = vmatprep.subr.bf16.mxu0 0
    %3518 = vmatpush1.bf16.msra.mxu0 0
    %3519 = vmatprep.subr.bf16.mxu0 0
    %3520 = vmatpush1.bf16.msra.mxu0 0
    %3521 = vmatprep.subr.bf16.mxu0 0
    %3522 = vmatpush1.bf16.msra.mxu0 0
    %3523 = vmatprep.subr.bf16.mxu0 0
    %3524 = vmatpush1.bf16.msra.mxu0 0
    %3525 = vmatprep.subr.bf16.mxu0 0
    %3526 = vmatpush1.bf16.msra.mxu0 0
    %3527 = vmatprep.subr.bf16.mxu0 0
    %3528 = vmatpush1.bf16.msra.mxu0 0
    %3529 = vmatprep.subr.bf16.mxu0 0
    %3530 = vmatpush1.bf16.msra.mxu0 0
    %3531 = vmatprep.subr.bf16.mxu0 0
    %3532 = vmatpush1.bf16.msra.mxu0 0
    %3533 = vmatprep.subr.bf16.mxu0 0
    %3534 = vmatpush1.bf16.msra.mxu0 0
    %3535 = vmatprep.subr.bf16.mxu0 0
    %3536 = vmatpush1.bf16.msra.mxu0 0
    %3537 = vmatprep.subr.bf16.mxu0 0
    %3538 = vmatpush1.bf16.msra.mxu0 0
    %3539 = vmatprep.subr.bf16.mxu0 0
    %3540 = vmatpush1.bf16.msra.mxu0 0
    %3541 = vmatprep.mubr.bf16.mxu0 0
    %3542 = vmatmul.mubr.bf16.gmra.mrb[0].mxu0 %v3498
    %v3543 = vpop.f32.mrb[0].mxu0
    %v3544 = vadd.f32 0.0, %v3543
    %v3545 = vpop.f32.mrb[0].mxu0
    %v3546 = vpop.f32.mrb[0].mxu0
    %v3547 = vadd.f32 0.0, %v3546
    %v3548 = vpop.f32.mrb[0].mxu0
    %3549 = vmatprep.mubr.bf16.mxu0 0
    %3550 = vmatmul.mubr.bf16.gmra.mrb[0].mxu0 %v3501
    %v3551 = vpop.f32.mrb[0].mxu0
    %v3552 = vadd.f32 0.0, %v3551
    %v3553 = vpop.f32.mrb[0].mxu0
    %v3554 = vpop.f32.mrb[0].mxu0
    %v3555 = vadd.f32 0.0, %v3554
    %v3556 = vpop.f32.mrb[0].mxu0
    %3557 = vmatprep.mubr.bf16.mxu0 0
    %3558 = vmatmul.mubr.bf16.gmra.mrb[0].mxu0 %v3504
    %v3559 = vpop.f32.mrb[0].mxu0
    %v3560 = vadd.f32 0.0, %v3559
    %v3561 = vpop.f32.mrb[0].mxu0
    %v3562 = vpop.f32.mrb[0].mxu0
    %v3563 = vadd.f32 0.0, %v3562
    %v3564 = vpop.f32.mrb[0].mxu0
    %3565 = vmatprep.mubr.bf16.mxu0 0
    %3566 = vmatmul.mubr.bf16.gmra.mrb[0].mxu0 %v3507
    %v3567 = vpop.f32.mrb[0].mxu0
    %v3568 = vadd.f32 0.0, %v3567
    %v3569 = vpop.f32.mrb[0].mxu0
    %v3570 = vpop.f32.mrb[0].mxu0
    %v3571 = vadd.f32 0.0, %v3570
    %v3572 = vpop.f32.mrb[0].mxu0
    %3573 = vdwg.mxu0
    %3582 = vrot.lane.b32.xlu0 %v3544, 8
    %v3583 = vpop.permute.xlu0 %3582
    %3584 = vrot.lane.b32.xlu0 %v3547, 8
    %v3585 = vpop.permute.xlu0 %3584
    %3586 = vrot.lane.b32.xlu0 %v3552, 8
    %v3587 = vpop.permute.xlu0 %3586
    %3588 = vrot.lane.b32.xlu0 %v3555, 8
    %v3589 = vpop.permute.xlu0 %3588
    %3590 = vrot.lane.b32.xlu0 %v3560, 8
    %v3591 = vpop.permute.xlu0 %3590
    %3592 = vrot.lane.b32.xlu0 %v3563, 8
    %v3593 = vpop.permute.xlu0 %3592
    %3594 = vrot.lane.b32.xlu0 %v3568, 8
    %v3595 = vpop.permute.xlu0 %3594
    %3596 = vrot.lane.b32.xlu0 %v3571, 8
    %v3597 = vpop.permute.xlu0 %3596
    %3606 = vst.msk [vmem:[#allocation2] sm:$0xff] %vm956, %v3583
    %3607 = vst.msk [vmem:[#allocation2 + $0x8] sm:$0xff] %vm956, %v3585
    %3608 = vst.msk [vmem:[#allocation2 + $0x10] sm:$0xff] %vm956, %v3587
    %3609 = vst.msk [vmem:[#allocation2 + $0x18] sm:$0xff] %vm956, %v3589
    %3610 = vst.msk [vmem:[#allocation2 + $0x20] sm:$0xff] %vm956, %v3591
    %3611 = vst.msk [vmem:[#allocation2 + $0x28] sm:$0xff] %vm956, %v3593
    %3612 = vst.msk [vmem:[#allocation2 + $0x30] sm:$0xff] %vm956, %v3595
    %3613 = vst.msk [vmem:[#allocation2 + $0x38] sm:$0xff] %vm956, %v3597
    %3614 = vset.pattern.permute.xlu0 2
    %3615 = vperm.xlu0 %3614, %v3022
    %v3616 = vpop.permute.xlu0 %3615
    %3618 = vset.pattern.permute.xlu0 2
    %3619 = vperm.xlu0 %3618, %v3025
    %v3620 = vpop.permute.xlu0 %3619
    %3622 = vset.pattern.permute.xlu0 2
    %3623 = vperm.xlu0 %3622, %v3030
    %v3624 = vpop.permute.xlu0 %3623
    %3626 = vset.pattern.permute.xlu0 2
    %3627 = vperm.xlu0 %3626, %v3033
    %v3628 = vpop.permute.xlu0 %3627
    %3630 = vset.pattern.permute.xlu0 2
    %3631 = vperm.xlu0 %3630, %v3038
    %v3632 = vpop.permute.xlu0 %3631
    %3634 = vset.pattern.permute.xlu0 2
    %3635 = vperm.xlu0 %3634, %v3041
    %v3636 = vpop.permute.xlu0 %3635
    %3638 = vset.pattern.permute.xlu0 2
    %3639 = vperm.xlu0 %3638, %v3046
    %v3640 = vpop.permute.xlu0 %3639
    %3642 = vset.pattern.permute.xlu0 2
    %3643 = vperm.xlu0 %3642, %v3049
    %v3644 = vpop.permute.xlu0 %3643
    %v3646 = vlaneseq
    %v3647 = vshrl.u32 %v3646, 7
    %v3648 = vsub.s32 2, %v3647
    %v3649 = vrot.slane %v2974, %v3648
    %v3650 = vadd.f32 %v3616, %v3649
    %v3651 = vadd.f32 %v3620, %v3649
    %v3652 = vadd.f32 %v3624, %v3649
    %v3653 = vadd.f32 %v3628, %v3649
    %v3654 = vadd.f32 %v3632, %v3649
    %v3655 = vadd.f32 %v3636, %v3649
    %v3656 = vadd.f32 %v3640, %v3649
    %v3657 = vadd.f32 %v3644, %v3649
    %vm3658 = vcmp.gt.f32.partialorder %v3650, 0.0
    %vm3659 = vcmp.gt.f32.partialorder %v3651, 0.0
    %vm3660 = vcmp.gt.f32.partialorder %v3652, 0.0
    %vm3661 = vcmp.gt.f32.partialorder %v3653, 0.0
    %vm3662 = vcmp.gt.f32.partialorder %v3654, 0.0
    %vm3663 = vcmp.gt.f32.partialorder %v3655, 0.0
    %vm3664 = vcmp.gt.f32.partialorder %v3656, 0.0
    %vm3665 = vcmp.gt.f32.partialorder %v3657, 0.0
    %v3666 = vmul.f32 %v3650, 0.2
    %v3667 = vmul.f32 %v3651, 0.2
    %v3668 = vmul.f32 %v3652, 0.2
    %v3669 = vmul.f32 %v3653, 0.2
    %v3670 = vmul.f32 %v3654, 0.2
    %v3671 = vmul.f32 %v3655, 0.2
    %v3672 = vmul.f32 %v3656, 0.2
    %v3673 = vmul.f32 %v3657, 0.2
    %v3674 = vsel %vm3658, %v3650, %v3666
    %v3675 = vsel %vm3659, %v3651, %v3667
    %v3676 = vsel %vm3660, %v3652, %v3668
    %v3677 = vsel %vm3661, %v3653, %v3669
    %v3678 = vsel %vm3662, %v3654, %v3670
    %v3679 = vsel %vm3663, %v3655, %v3671
    %v3680 = vsel %vm3664, %v3656, %v3672
    %v3681 = vsel %vm3665, %v3657, %v3673
    %v3682 = vadd.f32 %v3674, %v155
    %v3683 = vadd.f32 %v3675, %v156
    %v3684 = vadd.f32 %v3676, %v157
    %v3685 = vadd.f32 %v3677, %v158
    %v3686 = vadd.f32 %v3678, %v159
    %v3687 = vadd.f32 %v3679, %v160
    %v3688 = vadd.f32 %v3680, %v161
    %v3689 = vadd.f32 %v3681, %v162
    %v3690 = vsel %vm484, %v3682, -inf
    %3691 = vmax.xlane.f32.xlu0 %v3690
    %v3692 = vpop.xlane.xlu0 %3691
    %v3693 = vsel %vm484, %v3683, -inf
    %3694 = vmax.xlane.f32.xlu0 %v3693
    %v3695 = vpop.xlane.xlu0 %3694
    %v3696 = vsel %vm484, %v3684, -inf
    %3697 = vmax.xlane.f32.xlu0 %v3696
    %v3698 = vpop.xlane.xlu0 %3697
    %v3699 = vsel %vm484, %v3685, -inf
    %3700 = vmax.xlane.f32.xlu0 %v3699
    %v3701 = vpop.xlane.xlu0 %3700
    %v3702 = vsel %vm484, %v3686, -inf
    %3703 = vmax.xlane.f32.xlu0 %v3702
    %v3704 = vpop.xlane.xlu0 %3703
    %v3705 = vsel %vm484, %v3687, -inf
    %3706 = vmax.xlane.f32.xlu0 %v3705
    %v3707 = vpop.xlane.xlu0 %3706
    %v3708 = vsel %vm484, %v3688, -inf
    %3709 = vmax.xlane.f32.xlu0 %v3708
    %v3710 = vpop.xlane.xlu0 %3709
    %v3711 = vsel %vm484, %v3689, -inf
    %3712 = vmax.xlane.f32.xlu0 %v3711
    %v3713 = vpop.xlane.xlu0 %3712
    %v3714 = vsub.f32 %v3682, %v3692
    %v3715 = vsub.f32 %v3683, %v3695
    %v3716 = vsub.f32 %v3684, %v3698
    %v3717 = vsub.f32 %v3685, %v3701
    %v3718 = vsub.f32 %v3686, %v3704
    %v3719 = vsub.f32 %v3687, %v3707
    %v3720 = vsub.f32 %v3688, %v3710
    %v3721 = vsub.f32 %v3689, %v3713
    %v3722 = vmul.f32 %v3714, 1.442695
    %v3723 = vpow.pop %v3722
    %v3724 = vmul.f32 %v3715, 1.442695
    %v3725 = vpow.pop %v3724
    %v3726 = vmul.f32 %v3716, 1.442695
    %v3727 = vpow.pop %v3726
    %v3728 = vmul.f32 %v3717, 1.442695
    %v3729 = vpow.pop %v3728
    %v3730 = vmul.f32 %v3718, 1.442695
    %v3731 = vpow.pop %v3730
    %v3732 = vmul.f32 %v3719, 1.442695
    %v3733 = vpow.pop %v3732
    %v3734 = vmul.f32 %v3720, 1.442695
    %v3735 = vpow.pop %v3734
    %v3736 = vmul.f32 %v3721, 1.442695
    %v3737 = vpow.pop %v3736
    %v3738 = vsel %vm484, %v3723, 0.0
    %3739 = vadd.xlane.f32.xlu0 %v3738
    %v3740 = vpop.xlane.xlu0 %3739
    %v3741 = vsel %vm484, %v3725, 0.0
    %3742 = vadd.xlane.f32.xlu0 %v3741
    %v3743 = vpop.xlane.xlu0 %3742
    %v3744 = vsel %vm484, %v3727, 0.0
    %3745 = vadd.xlane.f32.xlu0 %v3744
    %v3746 = vpop.xlane.xlu0 %3745
    %v3747 = vsel %vm484, %v3729, 0.0
    %3748 = vadd.xlane.f32.xlu0 %v3747
    %v3749 = vpop.xlane.xlu0 %3748
    %v3750 = vsel %vm484, %v3731, 0.0
    %3751 = vadd.xlane.f32.xlu0 %v3750
    %v3752 = vpop.xlane.xlu0 %3751
    %v3753 = vsel %vm484, %v3733, 0.0
    %3754 = vadd.xlane.f32.xlu0 %v3753
    %v3755 = vpop.xlane.xlu0 %3754
    %v3756 = vsel %vm484, %v3735, 0.0
    %3757 = vadd.xlane.f32.xlu0 %v3756
    %v3758 = vpop.xlane.xlu0 %3757
    %v3759 = vsel %vm484, %v3737, 0.0
    %3760 = vadd.xlane.f32.xlu0 %v3759
    %v3761 = vpop.xlane.xlu0 %3760
    %v3762 = vrcp.pop %v3740
    %v3763 = vrcp.pop %v3743
    %v3764 = vrcp.pop %v3746
    %v3765 = vrcp.pop %v3749
    %v3766 = vrcp.pop %v3752
    %v3767 = vrcp.pop %v3755
    %v3768 = vrcp.pop %v3758
    %v3769 = vrcp.pop %v3761
    %v3770 = vmul.f32 %v3723, %v3762
    %v3771 = vmul.f32 %v3725, %v3763
    %v3772 = vmul.f32 %v3727, %v3764
    %v3773 = vmul.f32 %v3729, %v3765
    %v3774 = vmul.f32 %v3731, %v3766
    %v3775 = vmul.f32 %v3733, %v3767
    %v3776 = vmul.f32 %v3735, %v3768
    %v3777 = vmul.f32 %v3737, %v3769
    %v3778 = vpack.c.bf16 %v3771, %v3770
    %v3779 = vpack.c.bf16 %v3773, %v3772
    %v3780 = vpack.c.bf16 %v3775, %v3774
    %v3781 = vpack.c.bf16 %v3777, %v3776
    %3782 = vrot.lane.b32.xlu0 %v2934, 112
    %v3783 = vpop.permute.xlu0 %3782
    %3784 = vrot.lane.b32.xlu0 %v2935, 112
    %v3785 = vpop.permute.xlu0 %3784
    %3786 = vrot.lane.b32.xlu0 %v2936, 112
    %v3787 = vpop.permute.xlu0 %3786
    %3788 = vrot.lane.b32.xlu0 %v2937, 112
    %v3789 = vpop.permute.xlu0 %3788
    %v3795 = vsel %vm484, %v3778, 0
    %v3798 = vsel %vm484, %v3779, 0
    %v3801 = vsel %vm484, %v3780, 0
    %v3804 = vsel %vm484, %v3781, 0
    %3806 = vmatprep.subr.bf16.mxu0 0
    %3807 = vmatpush1.bf16.msra.mxu0 %v3783
    %3808 = vmatprep.subr.bf16.mxu0 0
    %3809 = vmatpush1.bf16.msra.mxu0 %v3785
    %3810 = vmatprep.subr.bf16.mxu0 0
    %3811 = vmatpush1.bf16.msra.mxu0 %v3787
    %3812 = vmatprep.subr.bf16.mxu0 0
    %3813 = vmatpush1.bf16.msra.mxu0 %v3789
    %3814 = vmatprep.subr.bf16.mxu0 0
    %3815 = vmatpush1.bf16.msra.mxu0 0
    %3816 = vmatprep.subr.bf16.mxu0 0
    %3817 = vmatpush1.bf16.msra.mxu0 0
    %3818 = vmatprep.subr.bf16.mxu0 0
    %3819 = vmatpush1.bf16.msra.mxu0 0
    %3820 = vmatprep.subr.bf16.mxu0 0
    %3821 = vmatpush1.bf16.msra.mxu0 0
    %3822 = vmatprep.subr.bf16.mxu0 0
    %3823 = vmatpush1.bf16.msra.mxu0 0
    %3824 = vmatprep.subr.bf16.mxu0 0
    %3825 = vmatpush1.bf16.msra.mxu0 0
    %3826 = vmatprep.subr.bf16.mxu0 0
    %3827 = vmatpush1.bf16.msra.mxu0 0
    %3828 = vmatprep.subr.bf16.mxu0 0
    %3829 = vmatpush1.bf16.msra.mxu0 0
    %3830 = vmatprep.subr.bf16.mxu0 0
    %3831 = vmatpush1.bf16.msra.mxu0 0
    %3832 = vmatprep.subr.bf16.mxu0 0
    %3833 = vmatpush1.bf16.msra.mxu0 0
    %3834 = vmatprep.subr.bf16.mxu0 0
    %3835 = vmatpush1.bf16.msra.mxu0 0
    %3836 = vmatprep.subr.bf16.mxu0 0
    %3837 = vmatpush1.bf16.msra.mxu0 0
    %3838 = vmatprep.mubr.bf16.mxu0 0
    %3839 = vmatmul.mubr.bf16.gmra.mrb[0].mxu0 %v3795
    %v3840 = vpop.f32.mrb[0].mxu0
    %v3841 = vadd.f32 0.0, %v3840
    %v3842 = vpop.f32.mrb[0].mxu0
    %v3843 = vpop.f32.mrb[0].mxu0
    %v3844 = vadd.f32 0.0, %v3843
    %v3845 = vpop.f32.mrb[0].mxu0
    %3846 = vmatprep.mubr.bf16.mxu0 0
    %3847 = vmatmul.mubr.bf16.gmra.mrb[0].mxu0 %v3798
    %v3848 = vpop.f32.mrb[0].mxu0
    %v3849 = vadd.f32 0.0, %v3848
    %v3850 = vpop.f32.mrb[0].mxu0
    %v3851 = vpop.f32.mrb[0].mxu0
    %v3852 = vadd.f32 0.0, %v3851
    %v3853 = vpop.f32.mrb[0].mxu0
    %3854 = vmatprep.mubr.bf16.mxu0 0
    %3855 = vmatmul.mubr.bf16.gmra.mrb[0].mxu0 %v3801
    %v3856 = vpop.f32.mrb[0].mxu0
    %v3857 = vadd.f32 0.0, %v3856
    %v3858 = vpop.f32.mrb[0].mxu0
    %v3859 = vpop.f32.mrb[0].mxu0
    %v3860 = vadd.f32 0.0, %v3859
    %v3861 = vpop.f32.mrb[0].mxu0
    %3862 = vmatprep.mubr.bf16.mxu0 0
    %3863 = vmatmul.mubr.bf16.gmra.mrb[0].mxu0 %v3804
    %v3864 = vpop.f32.mrb[0].mxu0
    %v3865 = vadd.f32 0.0, %v3864
    %v3866 = vpop.f32.mrb[0].mxu0
    %v3867 = vpop.f32.mrb[0].mxu0
    %v3868 = vadd.f32 0.0, %v3867
    %v3869 = vpop.f32.mrb[0].mxu0
    %3870 = vdwg.mxu0
    %3879 = vrot.lane.b32.xlu0 %v3841, 16
    %v3880 = vpop.permute.xlu0 %3879
    %3881 = vrot.lane.b32.xlu0 %v3844, 16
    %v3882 = vpop.permute.xlu0 %3881
    %3883 = vrot.lane.b32.xlu0 %v3849, 16
    %v3884 = vpop.permute.xlu0 %3883
    %3885 = vrot.lane.b32.xlu0 %v3852, 16
    %v3886 = vpop.permute.xlu0 %3885
    %3887 = vrot.lane.b32.xlu0 %v3857, 16
    %v3888 = vpop.permute.xlu0 %3887
    %3889 = vrot.lane.b32.xlu0 %v3860, 16
    %v3890 = vpop.permute.xlu0 %3889
    %3891 = vrot.lane.b32.xlu0 %v3865, 16
    %v3892 = vpop.permute.xlu0 %3891
    %3893 = vrot.lane.b32.xlu0 %v3868, 16
    %v3894 = vpop.permute.xlu0 %3893
    %3903 = vst.msk [vmem:[#allocation2] sm:$0xff] %vm1254, %v3880
    %3904 = vst.msk [vmem:[#allocation2 + $0x8] sm:$0xff] %vm1254, %v3882
    %3905 = vst.msk [vmem:[#allocation2 + $0x10] sm:$0xff] %vm1254, %v3884
    %3906 = vst.msk [vmem:[#allocation2 + $0x18] sm:$0xff] %vm1254, %v3886
    %3907 = vst.msk [vmem:[#allocation2 + $0x20] sm:$0xff] %vm1254, %v3888
    %3908 = vst.msk [vmem:[#allocation2 + $0x28] sm:$0xff] %vm1254, %v3890
    %3909 = vst.msk [vmem:[#allocation2 + $0x30] sm:$0xff] %vm1254, %v3892
    %3910 = vst.msk [vmem:[#allocation2 + $0x38] sm:$0xff] %vm1254, %v3894
    %3911 = vset.pattern.permute.xlu0 3
    %3912 = vperm.xlu0 %3911, %v3022
    %v3913 = vpop.permute.xlu0 %3912
    %3915 = vset.pattern.permute.xlu0 3
    %3916 = vperm.xlu0 %3915, %v3025
    %v3917 = vpop.permute.xlu0 %3916
    %3919 = vset.pattern.permute.xlu0 3
    %3920 = vperm.xlu0 %3919, %v3030
    %v3921 = vpop.permute.xlu0 %3920
    %3923 = vset.pattern.permute.xlu0 3
    %3924 = vperm.xlu0 %3923, %v3033
    %v3925 = vpop.permute.xlu0 %3924
    %3927 = vset.pattern.permute.xlu0 3
    %3928 = vperm.xlu0 %3927, %v3038
    %v3929 = vpop.permute.xlu0 %3928
    %3931 = vset.pattern.permute.xlu0 3
    %3932 = vperm.xlu0 %3931, %v3041
    %v3933 = vpop.permute.xlu0 %3932
    %3935 = vset.pattern.permute.xlu0 3
    %3936 = vperm.xlu0 %3935, %v3046
    %v3937 = vpop.permute.xlu0 %3936
    %3939 = vset.pattern.permute.xlu0 3
    %3940 = vperm.xlu0 %3939, %v3049
    %v3941 = vpop.permute.xlu0 %3940
    %v3943 = vlaneseq
    %v3944 = vshrl.u32 %v3943, 7
    %v3945 = vsub.s32 3, %v3944
    %v3946 = vrot.slane %v2974, %v3945
    %v3947 = vadd.f32 %v3913, %v3946
    %v3948 = vadd.f32 %v3917, %v3946
    %v3949 = vadd.f32 %v3921, %v3946
    %v3950 = vadd.f32 %v3925, %v3946
    %v3951 = vadd.f32 %v3929, %v3946
    %v3952 = vadd.f32 %v3933, %v3946
    %v3953 = vadd.f32 %v3937, %v3946
    %v3954 = vadd.f32 %v3941, %v3946
    %vm3955 = vcmp.gt.f32.partialorder %v3947, 0.0
    %vm3956 = vcmp.gt.f32.partialorder %v3948, 0.0
    %vm3957 = vcmp.gt.f32.partialorder %v3949, 0.0
    %vm3958 = vcmp.gt.f32.partialorder %v3950, 0.0
    %vm3959 = vcmp.gt.f32.partialorder %v3951, 0.0
    %vm3960 = vcmp.gt.f32.partialorder %v3952, 0.0
    %vm3961 = vcmp.gt.f32.partialorder %v3953, 0.0
    %vm3962 = vcmp.gt.f32.partialorder %v3954, 0.0
    %v3963 = vmul.f32 %v3947, 0.2
    %v3964 = vmul.f32 %v3948, 0.2
    %v3965 = vmul.f32 %v3949, 0.2
    %v3966 = vmul.f32 %v3950, 0.2
    %v3967 = vmul.f32 %v3951, 0.2
    %v3968 = vmul.f32 %v3952, 0.2
    %v3969 = vmul.f32 %v3953, 0.2
    %v3970 = vmul.f32 %v3954, 0.2
    %v3971 = vsel %vm3955, %v3947, %v3963
    %v3972 = vsel %vm3956, %v3948, %v3964
    %v3973 = vsel %vm3957, %v3949, %v3965
    %v3974 = vsel %vm3958, %v3950, %v3966
    %v3975 = vsel %vm3959, %v3951, %v3967
    %v3976 = vsel %vm3960, %v3952, %v3968
    %v3977 = vsel %vm3961, %v3953, %v3969
    %v3978 = vsel %vm3962, %v3954, %v3970
    %v3979 = vadd.f32 %v3971, %v155
    %v3980 = vadd.f32 %v3972, %v156
    %v3981 = vadd.f32 %v3973, %v157
    %v3982 = vadd.f32 %v3974, %v158
    %v3983 = vadd.f32 %v3975, %v159
    %v3984 = vadd.f32 %v3976, %v160
    %v3985 = vadd.f32 %v3977, %v161
    %v3986 = vadd.f32 %v3978, %v162
    %v3987 = vsel %vm484, %v3979, -inf
    %3988 = vmax.xlane.f32.xlu0 %v3987
    %v3989 = vpop.xlane.xlu0 %3988
    %v3990 = vsel %vm484, %v3980, -inf
    %3991 = vmax.xlane.f32.xlu0 %v3990
    %v3992 = vpop.xlane.xlu0 %3991
    %v3993 = vsel %vm484, %v3981, -inf
    %3994 = vmax.xlane.f32.xlu0 %v3993
    %v3995 = vpop.xlane.xlu0 %3994
    %v3996 = vsel %vm484, %v3982, -inf
    %3997 = vmax.xlane.f32.xlu0 %v3996
    %v3998 = vpop.xlane.xlu0 %3997
    %v3999 = vsel %vm484, %v3983, -inf
    %4000 = vmax.xlane.f32.xlu0 %v3999
    %v4001 = vpop.xlane.xlu0 %4000
    %v4002 = vsel %vm484, %v3984, -inf
    %4003 = vmax.xlane.f32.xlu0 %v4002
    %v4004 = vpop.xlane.xlu0 %4003
    %v4005 = vsel %vm484, %v3985, -inf
    %4006 = vmax.xlane.f32.xlu0 %v4005
    %v4007 = vpop.xlane.xlu0 %4006
    %v4008 = vsel %vm484, %v3986, -inf
    %4009 = vmax.xlane.f32.xlu0 %v4008
    %v4010 = vpop.xlane.xlu0 %4009
    %v4011 = vsub.f32 %v3979, %v3989
    %v4012 = vsub.f32 %v3980, %v3992
    %v4013 = vsub.f32 %v3981, %v3995
    %v4014 = vsub.f32 %v3982, %v3998
    %v4015 = vsub.f32 %v3983, %v4001
    %v4016 = vsub.f32 %v3984, %v4004
    %v4017 = vsub.f32 %v3985, %v4007
    %v4018 = vsub.f32 %v3986, %v4010
    %v4019 = vmul.f32 %v4011, 1.442695
    %v4020 = vpow.pop %v4019
    %v4021 = vmul.f32 %v4012, 1.442695
    %v4022 = vpow.pop %v4021
    %v4023 = vmul.f32 %v4013, 1.442695
    %v4024 = vpow.pop %v4023
    %v4025 = vmul.f32 %v4014, 1.442695
    %v4026 = vpow.pop %v4025
    %v4027 = vmul.f32 %v4015, 1.442695
    %v4028 = vpow.pop %v4027
    %v4029 = vmul.f32 %v4016, 1.442695
    %v4030 = vpow.pop %v4029
    %v4031 = vmul.f32 %v4017, 1.442695
    %v4032 = vpow.pop %v4031
    %v4033 = vmul.f32 %v4018, 1.442695
    %v4034 = vpow.pop %v4033
    %v4035 = vsel %vm484, %v4020, 0.0
    %4036 = vadd.xlane.f32.xlu0 %v4035
    %v4037 = vpop.xlane.xlu0 %4036
    %v4038 = vsel %vm484, %v4022, 0.0
    %4039 = vadd.xlane.f32.xlu0 %v4038
    %v4040 = vpop.xlane.xlu0 %4039
    %v4041 = vsel %vm484, %v4024, 0.0
    %4042 = vadd.xlane.f32.xlu0 %v4041
    %v4043 = vpop.xlane.xlu0 %4042
    %v4044 = vsel %vm484, %v4026, 0.0
    %4045 = vadd.xlane.f32.xlu0 %v4044
    %v4046 = vpop.xlane.xlu0 %4045
    %v4047 = vsel %vm484, %v4028, 0.0
    %4048 = vadd.xlane.f32.xlu0 %v4047
    %v4049 = vpop.xlane.xlu0 %4048
    %v4050 = vsel %vm484, %v4030, 0.0
    %4051 = vadd.xlane.f32.xlu0 %v4050
    %v4052 = vpop.xlane.xlu0 %4051
    %v4053 = vsel %vm484, %v4032, 0.0
    %4054 = vadd.xlane.f32.xlu0 %v4053
    %v4055 = vpop.xlane.xlu0 %4054
    %v4056 = vsel %vm484, %v4034, 0.0
    %4057 = vadd.xlane.f32.xlu0 %v4056
    %v4058 = vpop.xlane.xlu0 %4057
    %v4059 = vrcp.pop %v4037
    %v4060 = vrcp.pop %v4040
    %v4061 = vrcp.pop %v4043
    %v4062 = vrcp.pop %v4046
    %v4063 = vrcp.pop %v4049
    %v4064 = vrcp.pop %v4052
    %v4065 = vrcp.pop %v4055
    %v4066 = vrcp.pop %v4058
    %v4067 = vmul.f32 %v4020, %v4059
    %v4068 = vmul.f32 %v4022, %v4060
    %v4069 = vmul.f32 %v4024, %v4061
    %v4070 = vmul.f32 %v4026, %v4062
    %v4071 = vmul.f32 %v4028, %v4063
    %v4072 = vmul.f32 %v4030, %v4064
    %v4073 = vmul.f32 %v4032, %v4065
    %v4074 = vmul.f32 %v4034, %v4066
    %v4075 = vpack.c.bf16 %v4068, %v4067
    %v4076 = vpack.c.bf16 %v4070, %v4069
    %v4077 = vpack.c.bf16 %v4072, %v4071
    %v4078 = vpack.c.bf16 %v4074, %v4073
    %4079 = vrot.lane.b32.xlu0 %v2934, 104
    %v4080 = vpop.permute.xlu0 %4079
    %4081 = vrot.lane.b32.xlu0 %v2935, 104
    %v4082 = vpop.permute.xlu0 %4081
    %4083 = vrot.lane.b32.xlu0 %v2936, 104
    %v4084 = vpop.permute.xlu0 %4083
    %4085 = vrot.lane.b32.xlu0 %v2937, 104
    %v4086 = vpop.permute.xlu0 %4085
    %v4092 = vsel %vm484, %v4075, 0
    %v4095 = vsel %vm484, %v4076, 0
    %v4098 = vsel %vm484, %v4077, 0
    %v4101 = vsel %vm484, %v4078, 0
    %4103 = vmatprep.subr.bf16.mxu0 0
    %4104 = vmatpush1.bf16.msra.mxu0 %v4080
    %4105 = vmatprep.subr.bf16.mxu0 0
    %4106 = vmatpush1.bf16.msra.mxu0 %v4082
    %4107 = vmatprep.subr.bf16.mxu0 0
    %4108 = vmatpush1.bf16.msra.mxu0 %v4084
    %4109 = vmatprep.subr.bf16.mxu0 0
    %4110 = vmatpush1.bf16.msra.mxu0 %v4086
    %4111 = vmatprep.subr.bf16.mxu0 0
    %4112 = vmatpush1.bf16.msra.mxu0 0
    %4113 = vmatprep.subr.bf16.mxu0 0
    %4114 = vmatpush1.bf16.msra.mxu0 0
    %4115 = vmatprep.subr.bf16.mxu0 0
    %4116 = vmatpush1.bf16.msra.mxu0 0
    %4117 = vmatprep.subr.bf16.mxu0 0
    %4118 = vmatpush1.bf16.msra.mxu0 0
    %4119 = vmatprep.subr.bf16.mxu0 0
    %4120 = vmatpush1.bf16.msra.mxu0 0
    %4121 = vmatprep.subr.bf16.mxu0 0
    %4122 = vmatpush1.bf16.msra.mxu0 0
    %4123 = vmatprep.subr.bf16.mxu0 0
    %4124 = vmatpush1.bf16.msra.mxu0 0
    %4125 = vmatprep.subr.bf16.mxu0 0
    %4126 = vmatpush1.bf16.msra.mxu0 0
    %4127 = vmatprep.subr.bf16.mxu0 0
    %4128 = vmatpush1.bf16.msra.mxu0 0
    %4129 = vmatprep.subr.bf16.mxu0 0
    %4130 = vmatpush1.bf16.msra.mxu0 0
    %4131 = vmatprep.subr.bf16.mxu0 0
    %4132 = vmatpush1.bf16.msra.mxu0 0
    %4133 = vmatprep.subr.bf16.mxu0 0
    %4134 = vmatpush1.bf16.msra.mxu0 0
    %4135 = vmatprep.mubr.bf16.mxu0 0
    %4136 = vmatmul.mubr.bf16.gmra.mrb[0].mxu0 %v4092
    %v4137 = vpop.f32.mrb[0].mxu0
    %v4138 = vadd.f32 0.0, %v4137
    %v4139 = vpop.f32.mrb[0].mxu0
    %v4140 = vpop.f32.mrb[0].mxu0
    %v4141 = vadd.f32 0.0, %v4140
    %v4142 = vpop.f32.mrb[0].mxu0
    %4143 = vmatprep.mubr.bf16.mxu0 0
    %4144 = vmatmul.mubr.bf16.gmra.mrb[0].mxu0 %v4095
    %v4145 = vpop.f32.mrb[0].mxu0
    %v4146 = vadd.f32 0.0, %v4145
    %v4147 = vpop.f32.mrb[0].mxu0
    %v4148 = vpop.f32.mrb[0].mxu0
    %v4149 = vadd.f32 0.0, %v4148
    %v4150 = vpop.f32.mrb[0].mxu0
    %4151 = vmatprep.mubr.bf16.mxu0 0
    %4152 = vmatmul.mubr.bf16.gmra.mrb[0].mxu0 %v4098
    %v4153 = vpop.f32.mrb[0].mxu0
    %v4154 = vadd.f32 0.0, %v4153
    %v4155 = vpop.f32.mrb[0].mxu0
    %v4156 = vpop.f32.mrb[0].mxu0
    %v4157 = vadd.f32 0.0, %v4156
    %v4158 = vpop.f32.mrb[0].mxu0
    %4159 = vmatprep.mubr.bf16.mxu0 0
    %4160 = vmatmul.mubr.bf16.gmra.mrb[0].mxu0 %v4101
    %v4161 = vpop.f32.mrb[0].mxu0
    %v4162 = vadd.f32 0.0, %v4161
    %v4163 = vpop.f32.mrb[0].mxu0
    %v4164 = vpop.f32.mrb[0].mxu0
    %v4165 = vadd.f32 0.0, %v4164
    %v4166 = vpop.f32.mrb[0].mxu0
    %4167 = vdwg.mxu0
    %4176 = vrot.lane.b32.xlu0 %v4138, 24
    %v4177 = vpop.permute.xlu0 %4176
    %4178 = vrot.lane.b32.xlu0 %v4141, 24
    %v4179 = vpop.permute.xlu0 %4178
    %4180 = vrot.lane.b32.xlu0 %v4146, 24
    %v4181 = vpop.permute.xlu0 %4180
    %4182 = vrot.lane.b32.xlu0 %v4149, 24
    %v4183 = vpop.permute.xlu0 %4182
    %4184 = vrot.lane.b32.xlu0 %v4154, 24
    %v4185 = vpop.permute.xlu0 %4184
    %4186 = vrot.lane.b32.xlu0 %v4157, 24
    %v4187 = vpop.permute.xlu0 %4186
    %4188 = vrot.lane.b32.xlu0 %v4162, 24
    %v4189 = vpop.permute.xlu0 %4188
    %4190 = vrot.lane.b32.xlu0 %v4165, 24
    %v4191 = vpop.permute.xlu0 %4190
    %4200 = vst.msk [vmem:[#allocation2] sm:$0xff] %vm1552, %v4177
    %4201 = vst.msk [vmem:[#allocation2 + $0x8] sm:$0xff] %vm1552, %v4179
    %4202 = vst.msk [vmem:[#allocation2 + $0x10] sm:$0xff] %vm1552, %v4181
    %4203 = vst.msk [vmem:[#allocation2 + $0x18] sm:$0xff] %vm1552, %v4183
    %4204 = vst.msk [vmem:[#allocation2 + $0x20] sm:$0xff] %vm1552, %v4185
    %4205 = vst.msk [vmem:[#allocation2 + $0x28] sm:$0xff] %vm1552, %v4187
    %4206 = vst.msk [vmem:[#allocation2 + $0x30] sm:$0xff] %vm1552, %v4189
    %4207 = vst.msk [vmem:[#allocation2 + $0x38] sm:$0xff] %vm1552, %v4191
    %4208 = vset.pattern.permute.xlu0 4
    %4209 = vperm.xlu0 %4208, %v3022
    %v4210 = vpop.permute.xlu0 %4209
    %4212 = vset.pattern.permute.xlu0 4
    %4213 = vperm.xlu0 %4212, %v3025
    %v4214 = vpop.permute.xlu0 %4213
    %4216 = vset.pattern.permute.xlu0 4
    %4217 = vperm.xlu0 %4216, %v3030
    %v4218 = vpop.permute.xlu0 %4217
    %4220 = vset.pattern.permute.xlu0 4
    %4221 = vperm.xlu0 %4220, %v3033
    %v4222 = vpop.permute.xlu0 %4221
    %4224 = vset.pattern.permute.xlu0 4
    %4225 = vperm.xlu0 %4224, %v3038
    %v4226 = vpop.permute.xlu0 %4225
    %4228 = vset.pattern.permute.xlu0 4
    %4229 = vperm.xlu0 %4228, %v3041
    %v4230 = vpop.permute.xlu0 %4229
    %4232 = vset.pattern.permute.xlu0 4
    %4233 = vperm.xlu0 %4232, %v3046
    %v4234 = vpop.permute.xlu0 %4233
    %4236 = vset.pattern.permute.xlu0 4
    %4237 = vperm.xlu0 %4236, %v3049
    %v4238 = vpop.permute.xlu0 %4237
    %v4240 = vlaneseq
    %v4241 = vshrl.u32 %v4240, 7
    %v4242 = vsub.s32 4, %v4241
    %v4243 = vrot.slane %v2974, %v4242
    %v4244 = vadd.f32 %v4210, %v4243
    %v4245 = vadd.f32 %v4214, %v4243
    %v4246 = vadd.f32 %v4218, %v4243
    %v4247 = vadd.f32 %v4222, %v4243
    %v4248 = vadd.f32 %v4226, %v4243
    %v4249 = vadd.f32 %v4230, %v4243
    %v4250 = vadd.f32 %v4234, %v4243
    %v4251 = vadd.f32 %v4238, %v4243
    %vm4252 = vcmp.gt.f32.partialorder %v4244, 0.0
    %vm4253 = vcmp.gt.f32.partialorder %v4245, 0.0
    %vm4254 = vcmp.gt.f32.partialorder %v4246, 0.0
    %vm4255 = vcmp.gt.f32.partialorder %v4247, 0.0
    %vm4256 = vcmp.gt.f32.partialorder %v4248, 0.0
    %vm4257 = vcmp.gt.f32.partialorder %v4249, 0.0
    %vm4258 = vcmp.gt.f32.partialorder %v4250, 0.0
    %vm4259 = vcmp.gt.f32.partialorder %v4251, 0.0
    %v4260 = vmul.f32 %v4244, 0.2
    %v4261 = vmul.f32 %v4245, 0.2
    %v4262 = vmul.f32 %v4246, 0.2
    %v4263 = vmul.f32 %v4247, 0.2
    %v4264 = vmul.f32 %v4248, 0.2
    %v4265 = vmul.f32 %v4249, 0.2
    %v4266 = vmul.f32 %v4250, 0.2
    %v4267 = vmul.f32 %v4251, 0.2
    %v4268 = vsel %vm4252, %v4244, %v4260
    %v4269 = vsel %vm4253, %v4245, %v4261
    %v4270 = vsel %vm4254, %v4246, %v4262
    %v4271 = vsel %vm4255, %v4247, %v4263
    %v4272 = vsel %vm4256, %v4248, %v4264
    %v4273 = vsel %vm4257, %v4249, %v4265
    %v4274 = vsel %vm4258, %v4250, %v4266
    %v4275 = vsel %vm4259, %v4251, %v4267
    %v4276 = vadd.f32 %v4268, %v155
    %v4277 = vadd.f32 %v4269, %v156
    %v4278 = vadd.f32 %v4270, %v157
    %v4279 = vadd.f32 %v4271, %v158
    %v4280 = vadd.f32 %v4272, %v159
    %v4281 = vadd.f32 %v4273, %v160
    %v4282 = vadd.f32 %v4274, %v161
    %v4283 = vadd.f32 %v4275, %v162
    %v4284 = vsel %vm484, %v4276, -inf
    %4285 = vmax.xlane.f32.xlu0 %v4284
    %v4286 = vpop.xlane.xlu0 %4285
    %v4287 = vsel %vm484, %v4277, -inf
    %4288 = vmax.xlane.f32.xlu0 %v4287
    %v4289 = vpop.xlane.xlu0 %4288
    %v4290 = vsel %vm484, %v4278, -inf
    %4291 = vmax.xlane.f32.xlu0 %v4290
    %v4292 = vpop.xlane.xlu0 %4291
    %v4293 = vsel %vm484, %v4279, -inf
    %4294 = vmax.xlane.f32.xlu0 %v4293
    %v4295 = vpop.xlane.xlu0 %4294
    %v4296 = vsel %vm484, %v4280, -inf
    %4297 = vmax.xlane.f32.xlu0 %v4296
    %v4298 = vpop.xlane.xlu0 %4297
    %v4299 = vsel %vm484, %v4281, -inf
    %4300 = vmax.xlane.f32.xlu0 %v4299
    %v4301 = vpop.xlane.xlu0 %4300
    %v4302 = vsel %vm484, %v4282, -inf
    %4303 = vmax.xlane.f32.xlu0 %v4302
    %v4304 = vpop.xlane.xlu0 %4303
    %v4305 = vsel %vm484, %v4283, -inf
    %4306 = vmax.xlane.f32.xlu0 %v4305
    %v4307 = vpop.xlane.xlu0 %4306
    %v4308 = vsub.f32 %v4276, %v4286
    %v4309 = vsub.f32 %v4277, %v4289
    %v4310 = vsub.f32 %v4278, %v4292
    %v4311 = vsub.f32 %v4279, %v4295
    %v4312 = vsub.f32 %v4280, %v4298
    %v4313 = vsub.f32 %v4281, %v4301
    %v4314 = vsub.f32 %v4282, %v4304
    %v4315 = vsub.f32 %v4283, %v4307
    %v4316 = vmul.f32 %v4308, 1.442695
    %v4317 = vpow.pop %v4316
    %v4318 = vmul.f32 %v4309, 1.442695
    %v4319 = vpow.pop %v4318
    %v4320 = vmul.f32 %v4310, 1.442695
    %v4321 = vpow.pop %v4320
    %v4322 = vmul.f32 %v4311, 1.442695
    %v4323 = vpow.pop %v4322
    %v4324 = vmul.f32 %v4312, 1.442695
    %v4325 = vpow.pop %v4324
    %v4326 = vmul.f32 %v4313, 1.442695
    %v4327 = vpow.pop %v4326
    %v4328 = vmul.f32 %v4314, 1.442695
    %v4329 = vpow.pop %v4328
    %v4330 = vmul.f32 %v4315, 1.442695
    %v4331 = vpow.pop %v4330
    %v4332 = vsel %vm484, %v4317, 0.0
    %4333 = vadd.xlane.f32.xlu0 %v4332
    %v4334 = vpop.xlane.xlu0 %4333
    %v4335 = vsel %vm484, %v4319, 0.0
    %4336 = vadd.xlane.f32.xlu0 %v4335
    %v4337 = vpop.xlane.xlu0 %4336
    %v4338 = vsel %vm484, %v4321, 0.0
    %4339 = vadd.xlane.f32.xlu0 %v4338
    %v4340 = vpop.xlane.xlu0 %4339
    %v4341 = vsel %vm484, %v4323, 0.0
    %4342 = vadd.xlane.f32.xlu0 %v4341
    %v4343 = vpop.xlane.xlu0 %4342
    %v4344 = vsel %vm484, %v4325, 0.0
    %4345 = vadd.xlane.f32.xlu0 %v4344
    %v4346 = vpop.xlane.xlu0 %4345
    %v4347 = vsel %vm484, %v4327, 0.0
    %4348 = vadd.xlane.f32.xlu0 %v4347
    %v4349 = vpop.xlane.xlu0 %4348
    %v4350 = vsel %vm484, %v4329, 0.0
    %4351 = vadd.xlane.f32.xlu0 %v4350
    %v4352 = vpop.xlane.xlu0 %4351
    %v4353 = vsel %vm484, %v4331, 0.0
    %4354 = vadd.xlane.f32.xlu0 %v4353
    %v4355 = vpop.xlane.xlu0 %4354
    %v4356 = vrcp.pop %v4334
    %v4357 = vrcp.pop %v4337
    %v4358 = vrcp.pop %v4340
    %v4359 = vrcp.pop %v4343
    %v4360 = vrcp.pop %v4346
    %v4361 = vrcp.pop %v4349
    %v4362 = vrcp.pop %v4352
    %v4363 = vrcp.pop %v4355
    %v4364 = vmul.f32 %v4317, %v4356
    %v4365 = vmul.f32 %v4319, %v4357
    %v4366 = vmul.f32 %v4321, %v4358
    %v4367 = vmul.f32 %v4323, %v4359
    %v4368 = vmul.f32 %v4325, %v4360
    %v4369 = vmul.f32 %v4327, %v4361
    %v4370 = vmul.f32 %v4329, %v4362
    %v4371 = vmul.f32 %v4331, %v4363
    %v4372 = vpack.c.bf16 %v4365, %v4364
    %v4373 = vpack.c.bf16 %v4367, %v4366
    %v4374 = vpack.c.bf16 %v4369, %v4368
    %v4375 = vpack.c.bf16 %v4371, %v4370
    %4376 = vrot.lane.b32.xlu0 %v2934, 96
    %v4377 = vpop.permute.xlu0 %4376
    %4378 = vrot.lane.b32.xlu0 %v2935, 96
    %v4379 = vpop.permute.xlu0 %4378
    %4380 = vrot.lane.b32.xlu0 %v2936, 96
    %v4381 = vpop.permute.xlu0 %4380
    %4382 = vrot.lane.b32.xlu0 %v2937, 96
    %v4383 = vpop.permute.xlu0 %4382
    %v4389 = vsel %vm484, %v4372, 0
    %v4392 = vsel %vm484, %v4373, 0
    %v4395 = vsel %vm484, %v4374, 0
    %v4398 = vsel %vm484, %v4375, 0
    %4400 = vmatprep.subr.bf16.mxu0 0
    %4401 = vmatpush1.bf16.msra.mxu0 %v4377
    %4402 = vmatprep.subr.bf16.mxu0 0
    %4403 = vmatpush1.bf16.msra.mxu0 %v4379
    %4404 = vmatprep.subr.bf16.mxu0 0
    %4405 = vmatpush1.bf16.msra.mxu0 %v4381
    %4406 = vmatprep.subr.bf16.mxu0 0
    %4407 = vmatpush1.bf16.msra.mxu0 %v4383
    %4408 = vmatprep.subr.bf16.mxu0 0
    %4409 = vmatpush1.bf16.msra.mxu0 0
    %4410 = vmatprep.subr.bf16.mxu0 0
    %4411 = vmatpush1.bf16.msra.mxu0 0
    %4412 = vmatprep.subr.bf16.mxu0 0
    %4413 = vmatpush1.bf16.msra.mxu0 0
    %4414 = vmatprep.subr.bf16.mxu0 0
    %4415 = vmatpush1.bf16.msra.mxu0 0
    %4416 = vmatprep.subr.bf16.mxu0 0
    %4417 = vmatpush1.bf16.msra.mxu0 0
    %4418 = vmatprep.subr.bf16.mxu0 0
    %4419 = vmatpush1.bf16.msra.mxu0 0
    %4420 = vmatprep.subr.bf16.mxu0 0
    %4421 = vmatpush1.bf16.msra.mxu0 0
    %4422 = vmatprep.subr.bf16.mxu0 0
    %4423 = vmatpush1.bf16.msra.mxu0 0
    %4424 = vmatprep.subr.bf16.mxu0 0
    %4425 = vmatpush1.bf16.msra.mxu0 0
    %4426 = vmatprep.subr.bf16.mxu0 0
    %4427 = vmatpush1.bf16.msra.mxu0 0
    %4428 = vmatprep.subr.bf16.mxu0 0
    %4429 = vmatpush1.bf16.msra.mxu0 0
    %4430 = vmatprep.subr.bf16.mxu0 0
    %4431 = vmatpush1.bf16.msra.mxu0 0
    %4432 = vmatprep.mubr.bf16.mxu0 0
    %4433 = vmatmul.mubr.bf16.gmra.mrb[0].mxu0 %v4389
    %v4434 = vpop.f32.mrb[0].mxu0
    %v4435 = vadd.f32 0.0, %v4434
    %v4436 = vpop.f32.mrb[0].mxu0
    %v4437 = vpop.f32.mrb[0].mxu0
    %v4438 = vadd.f32 0.0, %v4437
    %v4439 = vpop.f32.mrb[0].mxu0
    %4440 = vmatprep.mubr.bf16.mxu0 0
    %4441 = vmatmul.mubr.bf16.gmra.mrb[0].mxu0 %v4392
    %v4442 = vpop.f32.mrb[0].mxu0
    %v4443 = vadd.f32 0.0, %v4442
    %v4444 = vpop.f32.mrb[0].mxu0
    %v4445 = vpop.f32.mrb[0].mxu0
    %v4446 = vadd.f32 0.0, %v4445
    %v4447 = vpop.f32.mrb[0].mxu0
    %4448 = vmatprep.mubr.bf16.mxu0 0
    %4449 = vmatmul.mubr.bf16.gmra.mrb[0].mxu0 %v4395
    %v4450 = vpop.f32.mrb[0].mxu0
    %v4451 = vadd.f32 0.0, %v4450
    %v4452 = vpop.f32.mrb[0].mxu0
    %v4453 = vpop.f32.mrb[0].mxu0
    %v4454 = vadd.f32 0.0, %v4453
    %v4455 = vpop.f32.mrb[0].mxu0
    %4456 = vmatprep.mubr.bf16.mxu0 0
    %4457 = vmatmul.mubr.bf16.gmra.mrb[0].mxu0 %v4398
    %v4458 = vpop.f32.mrb[0].mxu0
    %v4459 = vadd.f32 0.0, %v4458
    %v4460 = vpop.f32.mrb[0].mxu0
    %v4461 = vpop.f32.mrb[0].mxu0
    %v4462 = vadd.f32 0.0, %v4461
    %v4463 = vpop.f32.mrb[0].mxu0
    %4464 = vdwg.mxu0
    %4473 = vrot.lane.b32.xlu0 %v4435, 32
    %v4474 = vpop.permute.xlu0 %4473
    %4475 = vrot.lane.b32.xlu0 %v4438, 32
    %v4476 = vpop.permute.xlu0 %4475
    %4477 = vrot.lane.b32.xlu0 %v4443, 32
    %v4478 = vpop.permute.xlu0 %4477
    %4479 = vrot.lane.b32.xlu0 %v4446, 32
    %v4480 = vpop.permute.xlu0 %4479
    %4481 = vrot.lane.b32.xlu0 %v4451, 32
    %v4482 = vpop.permute.xlu0 %4481
    %4483 = vrot.lane.b32.xlu0 %v4454, 32
    %v4484 = vpop.permute.xlu0 %4483
    %4485 = vrot.lane.b32.xlu0 %v4459, 32
    %v4486 = vpop.permute.xlu0 %4485
    %4487 = vrot.lane.b32.xlu0 %v4462, 32
    %v4488 = vpop.permute.xlu0 %4487
    %4497 = vst.msk [vmem:[#allocation2] sm:$0xff] %vm1850, %v4474
    %4498 = vst.msk [vmem:[#allocation2 + $0x8] sm:$0xff] %vm1850, %v4476
    %4499 = vst.msk [vmem:[#allocation2 + $0x10] sm:$0xff] %vm1850, %v4478
    %4500 = vst.msk [vmem:[#allocation2 + $0x18] sm:$0xff] %vm1850, %v4480
    %4501 = vst.msk [vmem:[#allocation2 + $0x20] sm:$0xff] %vm1850, %v4482
    %4502 = vst.msk [vmem:[#allocation2 + $0x28] sm:$0xff] %vm1850, %v4484
    %4503 = vst.msk [vmem:[#allocation2 + $0x30] sm:$0xff] %vm1850, %v4486
    %4504 = vst.msk [vmem:[#allocation2 + $0x38] sm:$0xff] %vm1850, %v4488
    %4505 = vset.pattern.permute.xlu0 5
    %4506 = vperm.xlu0 %4505, %v3022
    %v4507 = vpop.permute.xlu0 %4506
    %4509 = vset.pattern.permute.xlu0 5
    %4510 = vperm.xlu0 %4509, %v3025
    %v4511 = vpop.permute.xlu0 %4510
    %4513 = vset.pattern.permute.xlu0 5
    %4514 = vperm.xlu0 %4513, %v3030
    %v4515 = vpop.permute.xlu0 %4514
    %4517 = vset.pattern.permute.xlu0 5
    %4518 = vperm.xlu0 %4517, %v3033
    %v4519 = vpop.permute.xlu0 %4518
    %4521 = vset.pattern.permute.xlu0 5
    %4522 = vperm.xlu0 %4521, %v3038
    %v4523 = vpop.permute.xlu0 %4522
    %4525 = vset.pattern.permute.xlu0 5
    %4526 = vperm.xlu0 %4525, %v3041
    %v4527 = vpop.permute.xlu0 %4526
    %4529 = vset.pattern.permute.xlu0 5
    %4530 = vperm.xlu0 %4529, %v3046
    %v4531 = vpop.permute.xlu0 %4530
    %4533 = vset.pattern.permute.xlu0 5
    %4534 = vperm.xlu0 %4533, %v3049
    %v4535 = vpop.permute.xlu0 %4534
    %v4537 = vlaneseq
    %v4538 = vshrl.u32 %v4537, 7
    %v4539 = vsub.s32 5, %v4538
    %v4540 = vrot.slane %v2974, %v4539
    %v4541 = vadd.f32 %v4507, %v4540
    %v4542 = vadd.f32 %v4511, %v4540
    %v4543 = vadd.f32 %v4515, %v4540
    %v4544 = vadd.f32 %v4519, %v4540
    %v4545 = vadd.f32 %v4523, %v4540
    %v4546 = vadd.f32 %v4527, %v4540
    %v4547 = vadd.f32 %v4531, %v4540
    %v4548 = vadd.f32 %v4535, %v4540
    %vm4549 = vcmp.gt.f32.partialorder %v4541, 0.0
    %vm4550 = vcmp.gt.f32.partialorder %v4542, 0.0
    %vm4551 = vcmp.gt.f32.partialorder %v4543, 0.0
    %vm4552 = vcmp.gt.f32.partialorder %v4544, 0.0
    %vm4553 = vcmp.gt.f32.partialorder %v4545, 0.0
    %vm4554 = vcmp.gt.f32.partialorder %v4546, 0.0
    %vm4555 = vcmp.gt.f32.partialorder %v4547, 0.0
    %vm4556 = vcmp.gt.f32.partialorder %v4548, 0.0
    %v4557 = vmul.f32 %v4541, 0.2
    %v4558 = vmul.f32 %v4542, 0.2
    %v4559 = vmul.f32 %v4543, 0.2
    %v4560 = vmul.f32 %v4544, 0.2
    %v4561 = vmul.f32 %v4545, 0.2
    %v4562 = vmul.f32 %v4546, 0.2
    %v4563 = vmul.f32 %v4547, 0.2
    %v4564 = vmul.f32 %v4548, 0.2
    %v4565 = vsel %vm4549, %v4541, %v4557
    %v4566 = vsel %vm4550, %v4542, %v4558
    %v4567 = vsel %vm4551, %v4543, %v4559
    %v4568 = vsel %vm4552, %v4544, %v4560
    %v4569 = vsel %vm4553, %v4545, %v4561
    %v4570 = vsel %vm4554, %v4546, %v4562
    %v4571 = vsel %vm4555, %v4547, %v4563
    %v4572 = vsel %vm4556, %v4548, %v4564
    %v4573 = vadd.f32 %v4565, %v155
    %v4574 = vadd.f32 %v4566, %v156
    %v4575 = vadd.f32 %v4567, %v157
    %v4576 = vadd.f32 %v4568, %v158
    %v4577 = vadd.f32 %v4569, %v159
    %v4578 = vadd.f32 %v4570, %v160
    %v4579 = vadd.f32 %v4571, %v161
    %v4580 = vadd.f32 %v4572, %v162
    %v4581 = vsel %vm484, %v4573, -inf
    %4582 = vmax.xlane.f32.xlu0 %v4581
    %v4583 = vpop.xlane.xlu0 %4582
    %v4584 = vsel %vm484, %v4574, -inf
    %4585 = vmax.xlane.f32.xlu0 %v4584
    %v4586 = vpop.xlane.xlu0 %4585
    %v4587 = vsel %vm484, %v4575, -inf
    %4588 = vmax.xlane.f32.xlu0 %v4587
    %v4589 = vpop.xlane.xlu0 %4588
    %v4590 = vsel %vm484, %v4576, -inf
    %4591 = vmax.xlane.f32.xlu0 %v4590
    %v4592 = vpop.xlane.xlu0 %4591
    %v4593 = vsel %vm484, %v4577, -inf
    %4594 = vmax.xlane.f32.xlu0 %v4593
    %v4595 = vpop.xlane.xlu0 %4594
    %v4596 = vsel %vm484, %v4578, -inf
    %4597 = vmax.xlane.f32.xlu0 %v4596
    %v4598 = vpop.xlane.xlu0 %4597
    %v4599 = vsel %vm484, %v4579, -inf
    %4600 = vmax.xlane.f32.xlu0 %v4599
    %v4601 = vpop.xlane.xlu0 %4600
    %v4602 = vsel %vm484, %v4580, -inf
    %4603 = vmax.xlane.f32.xlu0 %v4602
    %v4604 = vpop.xlane.xlu0 %4603
    %v4605 = vsub.f32 %v4573, %v4583
    %v4606 = vsub.f32 %v4574, %v4586
    %v4607 = vsub.f32 %v4575, %v4589
    %v4608 = vsub.f32 %v4576, %v4592
    %v4609 = vsub.f32 %v4577, %v4595
    %v4610 = vsub.f32 %v4578, %v4598
    %v4611 = vsub.f32 %v4579, %v4601
    %v4612 = vsub.f32 %v4580, %v4604
    %v4613 = vmul.f32 %v4605, 1.442695
    %v4614 = vpow.pop %v4613
    %v4615 = vmul.f32 %v4606, 1.442695
    %v4616 = vpow.pop %v4615
    %v4617 = vmul.f32 %v4607, 1.442695
    %v4618 = vpow.pop %v4617
    %v4619 = vmul.f32 %v4608, 1.442695
    %v4620 = vpow.pop %v4619
    %v4621 = vmul.f32 %v4609, 1.442695
    %v4622 = vpow.pop %v4621
    %v4623 = vmul.f32 %v4610, 1.442695
    %v4624 = vpow.pop %v4623
    %v4625 = vmul.f32 %v4611, 1.442695
    %v4626 = vpow.pop %v4625
    %v4627 = vmul.f32 %v4612, 1.442695
    %v4628 = vpow.pop %v4627
    %v4629 = vsel %vm484, %v4614, 0.0
    %4630 = vadd.xlane.f32.xlu0 %v4629
    %v4631 = vpop.xlane.xlu0 %4630
    %v4632 = vsel %vm484, %v4616, 0.0
    %4633 = vadd.xlane.f32.xlu0 %v4632
    %v4634 = vpop.xlane.xlu0 %4633
    %v4635 = vsel %vm484, %v4618, 0.0
    %4636 = vadd.xlane.f32.xlu0 %v4635
    %v4637 = vpop.xlane.xlu0 %4636
    %v4638 = vsel %vm484, %v4620, 0.0
    %4639 = vadd.xlane.f32.xlu0 %v4638
    %v4640 = vpop.xlane.xlu0 %4639
    %v4641 = vsel %vm484, %v4622, 0.0
    %4642 = vadd.xlane.f32.xlu0 %v4641
    %v4643 = vpop.xlane.xlu0 %4642
    %v4644 = vsel %vm484, %v4624, 0.0
    %4645 = vadd.xlane.f32.xlu0 %v4644
    %v4646 = vpop.xlane.xlu0 %4645
    %v4647 = vsel %vm484, %v4626, 0.0
    %4648 = vadd.xlane.f32.xlu0 %v4647
    %v4649 = vpop.xlane.xlu0 %4648
    %v4650 = vsel %vm484, %v4628, 0.0
    %4651 = vadd.xlane.f32.xlu0 %v4650
    %v4652 = vpop.xlane.xlu0 %4651
    %v4653 = vrcp.pop %v4631
    %v4654 = vrcp.pop %v4634
    %v4655 = vrcp.pop %v4637
    %v4656 = vrcp.pop %v4640
    %v4657 = vrcp.pop %v4643
    %v4658 = vrcp.pop %v4646
    %v4659 = vrcp.pop %v4649
    %v4660 = vrcp.pop %v4652
    %v4661 = vmul.f32 %v4614, %v4653
    %v4662 = vmul.f32 %v4616, %v4654
    %v4663 = vmul.f32 %v4618, %v4655
    %v4664 = vmul.f32 %v4620, %v4656
    %v4665 = vmul.f32 %v4622, %v4657
    %v4666 = vmul.f32 %v4624, %v4658
    %v4667 = vmul.f32 %v4626, %v4659
    %v4668 = vmul.f32 %v4628, %v4660
    %v4669 = vpack.c.bf16 %v4662, %v4661
    %v4670 = vpack.c.bf16 %v4664, %v4663
    %v4671 = vpack.c.bf16 %v4666, %v4665
    %v4672 = vpack.c.bf16 %v4668, %v4667
    %4673 = vrot.lane.b32.xlu0 %v2934, 88
    %v4674 = vpop.permute.xlu0 %4673
    %4675 = vrot.lane.b32.xlu0 %v2935, 88
    %v4676 = vpop.permute.xlu0 %4675
    %4677 = vrot.lane.b32.xlu0 %v2936, 88
    %v4678 = vpop.permute.xlu0 %4677
    %4679 = vrot.lane.b32.xlu0 %v2937, 88
    %v4680 = vpop.permute.xlu0 %4679
    %v4686 = vsel %vm484, %v4669, 0
    %v4689 = vsel %vm484, %v4670, 0
    %v4692 = vsel %vm484, %v4671, 0
    %v4695 = vsel %vm484, %v4672, 0
    %4697 = vmatprep.subr.bf16.mxu0 0
    %4698 = vmatpush1.bf16.msra.mxu0 %v4674
    %4699 = vmatprep.subr.bf16.mxu0 0
    %4700 = vmatpush1.bf16.msra.mxu0 %v4676
    %4701 = vmatprep.subr.bf16.mxu0 0
    %4702 = vmatpush1.bf16.msra.mxu0 %v4678
    %4703 = vmatprep.subr.bf16.mxu0 0
    %4704 = vmatpush1.bf16.msra.mxu0 %v4680
    %4705 = vmatprep.subr.bf16.mxu0 0
    %4706 = vmatpush1.bf16.msra.mxu0 0
    %4707 = vmatprep.subr.bf16.mxu0 0
    %4708 = vmatpush1.bf16.msra.mxu0 0
    %4709 = vmatprep.subr.bf16.mxu0 0
    %4710 = vmatpush1.bf16.msra.mxu0 0
    %4711 = vmatprep.subr.bf16.mxu0 0
    %4712 = vmatpush1.bf16.msra.mxu0 0
    %4713 = vmatprep.subr.bf16.mxu0 0
    %4714 = vmatpush1.bf16.msra.mxu0 0
    %4715 = vmatprep.subr.bf16.mxu0 0
    %4716 = vmatpush1.bf16.msra.mxu0 0
    %4717 = vmatprep.subr.bf16.mxu0 0
    %4718 = vmatpush1.bf16.msra.mxu0 0
    %4719 = vmatprep.subr.bf16.mxu0 0
    %4720 = vmatpush1.bf16.msra.mxu0 0
    %4721 = vmatprep.subr.bf16.mxu0 0
    %4722 = vmatpush1.bf16.msra.mxu0 0
    %4723 = vmatprep.subr.bf16.mxu0 0
    %4724 = vmatpush1.bf16.msra.mxu0 0
    %4725 = vmatprep.subr.bf16.mxu0 0
    %4726 = vmatpush1.bf16.msra.mxu0 0
    %4727 = vmatprep.subr.bf16.mxu0 0
    %4728 = vmatpush1.bf16.msra.mxu0 0
    %4729 = vmatprep.mubr.bf16.mxu0 0
    %4730 = vmatmul.mubr.bf16.gmra.mrb[0].mxu0 %v4686
    %v4731 = vpop.f32.mrb[0].mxu0
    %v4732 = vadd.f32 0.0, %v4731
    %v4733 = vpop.f32.mrb[0].mxu0
    %v4734 = vpop.f32.mrb[0].mxu0
    %v4735 = vadd.f32 0.0, %v4734
    %v4736 = vpop.f32.mrb[0].mxu0
    %4737 = vmatprep.mubr.bf16.mxu0 0
    %4738 = vmatmul.mubr.bf16.gmra.mrb[0].mxu0 %v4689
    %v4739 = vpop.f32.mrb[0].mxu0
    %v4740 = vadd.f32 0.0, %v4739
    %v4741 = vpop.f32.mrb[0].mxu0
    %v4742 = vpop.f32.mrb[0].mxu0
    %v4743 = vadd.f32 0.0, %v4742
    %v4744 = vpop.f32.mrb[0].mxu0
    %4745 = vmatprep.mubr.bf16.mxu0 0
    %4746 = vmatmul.mubr.bf16.gmra.mrb[0].mxu0 %v4692
    %v4747 = vpop.f32.mrb[0].mxu0
    %v4748 = vadd.f32 0.0, %v4747
    %v4749 = vpop.f32.mrb[0].mxu0
    %v4750 = vpop.f32.mrb[0].mxu0
    %v4751 = vadd.f32 0.0, %v4750
    %v4752 = vpop.f32.mrb[0].mxu0
    %4753 = vmatprep.mubr.bf16.mxu0 0
    %4754 = vmatmul.mubr.bf16.gmra.mrb[0].mxu0 %v4695
    %v4755 = vpop.f32.mrb[0].mxu0
    %v4756 = vadd.f32 0.0, %v4755
    %v4757 = vpop.f32.mrb[0].mxu0
    %v4758 = vpop.f32.mrb[0].mxu0
    %v4759 = vadd.f32 0.0, %v4758
    %v4760 = vpop.f32.mrb[0].mxu0
    %4761 = vdwg.mxu0
    %4770 = vrot.lane.b32.xlu0 %v4732, 40
    %v4771 = vpop.permute.xlu0 %4770
    %4772 = vrot.lane.b32.xlu0 %v4735, 40
    %v4773 = vpop.permute.xlu0 %4772
    %4774 = vrot.lane.b32.xlu0 %v4740, 40
    %v4775 = vpop.permute.xlu0 %4774
    %4776 = vrot.lane.b32.xlu0 %v4743, 40
    %v4777 = vpop.permute.xlu0 %4776
    %4778 = vrot.lane.b32.xlu0 %v4748, 40
    %v4779 = vpop.permute.xlu0 %4778
    %4780 = vrot.lane.b32.xlu0 %v4751, 40
    %v4781 = vpop.permute.xlu0 %4780
    %4782 = vrot.lane.b32.xlu0 %v4756, 40
    %v4783 = vpop.permute.xlu0 %4782
    %4784 = vrot.lane.b32.xlu0 %v4759, 40
    %v4785 = vpop.permute.xlu0 %4784
    %4794 = vst.msk [vmem:[#allocation2] sm:$0xff] %vm2148, %v4771
    %4795 = vst.msk [vmem:[#allocation2 + $0x8] sm:$0xff] %vm2148, %v4773
    %4796 = vst.msk [vmem:[#allocation2 + $0x10] sm:$0xff] %vm2148, %v4775
    %4797 = vst.msk [vmem:[#allocation2 + $0x18] sm:$0xff] %vm2148, %v4777
    %4798 = vst.msk [vmem:[#allocation2 + $0x20] sm:$0xff] %vm2148, %v4779
    %4799 = vst.msk [vmem:[#allocation2 + $0x28] sm:$0xff] %vm2148, %v4781
    %4800 = vst.msk [vmem:[#allocation2 + $0x30] sm:$0xff] %vm2148, %v4783
    %4801 = vst.msk [vmem:[#allocation2 + $0x38] sm:$0xff] %vm2148, %v4785
    %4802 = vset.pattern.permute.xlu0 6
    %4803 = vperm.xlu0 %4802, %v3022
    %v4804 = vpop.permute.xlu0 %4803
    %4806 = vset.pattern.permute.xlu0 6
    %4807 = vperm.xlu0 %4806, %v3025
    %v4808 = vpop.permute.xlu0 %4807
    %4810 = vset.pattern.permute.xlu0 6
    %4811 = vperm.xlu0 %4810, %v3030
    %v4812 = vpop.permute.xlu0 %4811
    %4814 = vset.pattern.permute.xlu0 6
    %4815 = vperm.xlu0 %4814, %v3033
    %v4816 = vpop.permute.xlu0 %4815
    %4818 = vset.pattern.permute.xlu0 6
    %4819 = vperm.xlu0 %4818, %v3038
    %v4820 = vpop.permute.xlu0 %4819
    %4822 = vset.pattern.permute.xlu0 6
    %4823 = vperm.xlu0 %4822, %v3041
    %v4824 = vpop.permute.xlu0 %4823
    %4826 = vset.pattern.permute.xlu0 6
    %4827 = vperm.xlu0 %4826, %v3046
    %v4828 = vpop.permute.xlu0 %4827
    %4830 = vset.pattern.permute.xlu0 6
    %4831 = vperm.xlu0 %4830, %v3049
    %v4832 = vpop.permute.xlu0 %4831
    %v4834 = vlaneseq
    %v4835 = vshrl.u32 %v4834, 7
    %v4836 = vsub.s32 6, %v4835
    %v4837 = vrot.slane %v2974, %v4836
    %v4838 = vadd.f32 %v4804, %v4837
    %v4839 = vadd.f32 %v4808, %v4837
    %v4840 = vadd.f32 %v4812, %v4837
    %v4841 = vadd.f32 %v4816, %v4837
    %v4842 = vadd.f32 %v4820, %v4837
    %v4843 = vadd.f32 %v4824, %v4837
    %v4844 = vadd.f32 %v4828, %v4837
    %v4845 = vadd.f32 %v4832, %v4837
    %vm4846 = vcmp.gt.f32.partialorder %v4838, 0.0
    %vm4847 = vcmp.gt.f32.partialorder %v4839, 0.0
    %vm4848 = vcmp.gt.f32.partialorder %v4840, 0.0
    %vm4849 = vcmp.gt.f32.partialorder %v4841, 0.0
    %vm4850 = vcmp.gt.f32.partialorder %v4842, 0.0
    %vm4851 = vcmp.gt.f32.partialorder %v4843, 0.0
    %vm4852 = vcmp.gt.f32.partialorder %v4844, 0.0
    %vm4853 = vcmp.gt.f32.partialorder %v4845, 0.0
    %v4854 = vmul.f32 %v4838, 0.2
    %v4855 = vmul.f32 %v4839, 0.2
    %v4856 = vmul.f32 %v4840, 0.2
    %v4857 = vmul.f32 %v4841, 0.2
    %v4858 = vmul.f32 %v4842, 0.2
    %v4859 = vmul.f32 %v4843, 0.2
    %v4860 = vmul.f32 %v4844, 0.2
    %v4861 = vmul.f32 %v4845, 0.2
    %v4862 = vsel %vm4846, %v4838, %v4854
    %v4863 = vsel %vm4847, %v4839, %v4855
    %v4864 = vsel %vm4848, %v4840, %v4856
    %v4865 = vsel %vm4849, %v4841, %v4857
    %v4866 = vsel %vm4850, %v4842, %v4858
    %v4867 = vsel %vm4851, %v4843, %v4859
    %v4868 = vsel %vm4852, %v4844, %v4860
    %v4869 = vsel %vm4853, %v4845, %v4861
    %v4870 = vadd.f32 %v4862, %v155
    %v4871 = vadd.f32 %v4863, %v156
    %v4872 = vadd.f32 %v4864, %v157
    %v4873 = vadd.f32 %v4865, %v158
    %v4874 = vadd.f32 %v4866, %v159
    %v4875 = vadd.f32 %v4867, %v160
    %v4876 = vadd.f32 %v4868, %v161
    %v4877 = vadd.f32 %v4869, %v162
    %v4878 = vsel %vm484, %v4870, -inf
    %4879 = vmax.xlane.f32.xlu0 %v4878
    %v4880 = vpop.xlane.xlu0 %4879
    %v4881 = vsel %vm484, %v4871, -inf
    %4882 = vmax.xlane.f32.xlu0 %v4881
    %v4883 = vpop.xlane.xlu0 %4882
    %v4884 = vsel %vm484, %v4872, -inf
    %4885 = vmax.xlane.f32.xlu0 %v4884
    %v4886 = vpop.xlane.xlu0 %4885
    %v4887 = vsel %vm484, %v4873, -inf
    %4888 = vmax.xlane.f32.xlu0 %v4887
    %v4889 = vpop.xlane.xlu0 %4888
    %v4890 = vsel %vm484, %v4874, -inf
    %4891 = vmax.xlane.f32.xlu0 %v4890
    %v4892 = vpop.xlane.xlu0 %4891
    %v4893 = vsel %vm484, %v4875, -inf
    %4894 = vmax.xlane.f32.xlu0 %v4893
    %v4895 = vpop.xlane.xlu0 %4894
    %v4896 = vsel %vm484, %v4876, -inf
    %4897 = vmax.xlane.f32.xlu0 %v4896
    %v4898 = vpop.xlane.xlu0 %4897
    %v4899 = vsel %vm484, %v4877, -inf
    %4900 = vmax.xlane.f32.xlu0 %v4899
    %v4901 = vpop.xlane.xlu0 %4900
    %v4902 = vsub.f32 %v4870, %v4880
    %v4903 = vsub.f32 %v4871, %v4883
    %v4904 = vsub.f32 %v4872, %v4886
    %v4905 = vsub.f32 %v4873, %v4889
    %v4906 = vsub.f32 %v4874, %v4892
    %v4907 = vsub.f32 %v4875, %v4895
    %v4908 = vsub.f32 %v4876, %v4898
    %v4909 = vsub.f32 %v4877, %v4901
    %v4910 = vmul.f32 %v4902, 1.442695
    %v4911 = vpow.pop %v4910
    %v4912 = vmul.f32 %v4903, 1.442695
    %v4913 = vpow.pop %v4912
    %v4914 = vmul.f32 %v4904, 1.442695
    %v4915 = vpow.pop %v4914
    %v4916 = vmul.f32 %v4905, 1.442695
    %v4917 = vpow.pop %v4916
    %v4918 = vmul.f32 %v4906, 1.442695
    %v4919 = vpow.pop %v4918
    %v4920 = vmul.f32 %v4907, 1.442695
    %v4921 = vpow.pop %v4920
    %v4922 = vmul.f32 %v4908, 1.442695
    %v4923 = vpow.pop %v4922
    %v4924 = vmul.f32 %v4909, 1.442695
    %v4925 = vpow.pop %v4924
    %v4926 = vsel %vm484, %v4911, 0.0
    %4927 = vadd.xlane.f32.xlu0 %v4926
    %v4928 = vpop.xlane.xlu0 %4927
    %v4929 = vsel %vm484, %v4913, 0.0
    %4930 = vadd.xlane.f32.xlu0 %v4929
    %v4931 = vpop.xlane.xlu0 %4930
    %v4932 = vsel %vm484, %v4915, 0.0
    %4933 = vadd.xlane.f32.xlu0 %v4932
    %v4934 = vpop.xlane.xlu0 %4933
    %v4935 = vsel %vm484, %v4917, 0.0
    %4936 = vadd.xlane.f32.xlu0 %v4935
    %v4937 = vpop.xlane.xlu0 %4936
    %v4938 = vsel %vm484, %v4919, 0.0
    %4939 = vadd.xlane.f32.xlu0 %v4938
    %v4940 = vpop.xlane.xlu0 %4939
    %v4941 = vsel %vm484, %v4921, 0.0
    %4942 = vadd.xlane.f32.xlu0 %v4941
    %v4943 = vpop.xlane.xlu0 %4942
    %v4944 = vsel %vm484, %v4923, 0.0
    %4945 = vadd.xlane.f32.xlu0 %v4944
    %v4946 = vpop.xlane.xlu0 %4945
    %v4947 = vsel %vm484, %v4925, 0.0
    %4948 = vadd.xlane.f32.xlu0 %v4947
    %v4949 = vpop.xlane.xlu0 %4948
    %v4950 = vrcp.pop %v4928
    %v4951 = vrcp.pop %v4931
    %v4952 = vrcp.pop %v4934
    %v4953 = vrcp.pop %v4937
    %v4954 = vrcp.pop %v4940
    %v4955 = vrcp.pop %v4943
    %v4956 = vrcp.pop %v4946
    %v4957 = vrcp.pop %v4949
    %v4958 = vmul.f32 %v4911, %v4950
    %v4959 = vmul.f32 %v4913, %v4951
    %v4960 = vmul.f32 %v4915, %v4952
    %v4961 = vmul.f32 %v4917, %v4953
    %v4962 = vmul.f32 %v4919, %v4954
    %v4963 = vmul.f32 %v4921, %v4955
    %v4964 = vmul.f32 %v4923, %v4956
    %v4965 = vmul.f32 %v4925, %v4957
    %v4966 = vpack.c.bf16 %v4959, %v4958
    %v4967 = vpack.c.bf16 %v4961, %v4960
    %v4968 = vpack.c.bf16 %v4963, %v4962
    %v4969 = vpack.c.bf16 %v4965, %v4964
    %4970 = vrot.lane.b32.xlu0 %v2934, 80
    %v4971 = vpop.permute.xlu0 %4970
    %4972 = vrot.lane.b32.xlu0 %v2935, 80
    %v4973 = vpop.permute.xlu0 %4972
    %4974 = vrot.lane.b32.xlu0 %v2936, 80
    %v4975 = vpop.permute.xlu0 %4974
    %4976 = vrot.lane.b32.xlu0 %v2937, 80
    %v4977 = vpop.permute.xlu0 %4976
    %v4983 = vsel %vm484, %v4966, 0
    %v4986 = vsel %vm484, %v4967, 0
    %v4989 = vsel %vm484, %v4968, 0
    %v4992 = vsel %vm484, %v4969, 0
    %4994 = vmatprep.subr.bf16.mxu0 0
    %4995 = vmatpush1.bf16.msra.mxu0 %v4971
    %4996 = vmatprep.subr.bf16.mxu0 0
    %4997 = vmatpush1.bf16.msra.mxu0 %v4973
    %4998 = vmatprep.subr.bf16.mxu0 0
    %4999 = vmatpush1.bf16.msra.mxu0 %v4975
    %5000 = vmatprep.subr.bf16.mxu0 0
    %5001 = vmatpush1.bf16.msra.mxu0 %v4977
    %5002 = vmatprep.subr.bf16.mxu0 0
    %5003 = vmatpush1.bf16.msra.mxu0 0
    %5004 = vmatprep.subr.bf16.mxu0 0
    %5005 = vmatpush1.bf16.msra.mxu0 0
    %5006 = vmatprep.subr.bf16.mxu0 0
    %5007 = vmatpush1.bf16.msra.mxu0 0
    %5008 = vmatprep.subr.bf16.mxu0 0
    %5009 = vmatpush1.bf16.msra.mxu0 0
    %5010 = vmatprep.subr.bf16.mxu0 0
    %5011 = vmatpush1.bf16.msra.mxu0 0
    %5012 = vmatprep.subr.bf16.mxu0 0
    %5013 = vmatpush1.bf16.msra.mxu0 0
    %5014 = vmatprep.subr.bf16.mxu0 0
    %5015 = vmatpush1.bf16.msra.mxu0 0
    %5016 = vmatprep.subr.bf16.mxu0 0
    %5017 = vmatpush1.bf16.msra.mxu0 0
    %5018 = vmatprep.subr.bf16.mxu0 0
    %5019 = vmatpush1.bf16.msra.mxu0 0
    %5020 = vmatprep.subr.bf16.mxu0 0
    %5021 = vmatpush1.bf16.msra.mxu0 0
    %5022 = vmatprep.subr.bf16.mxu0 0
    %5023 = vmatpush1.bf16.msra.mxu0 0
    %5024 = vmatprep.subr.bf16.mxu0 0
    %5025 = vmatpush1.bf16.msra.mxu0 0
    %5026 = vmatprep.mubr.bf16.mxu0 0
    %5027 = vmatmul.mubr.bf16.gmra.mrb[0].mxu0 %v4983
    %v5028 = vpop.f32.mrb[0].mxu0
    %v5029 = vadd.f32 0.0, %v5028
    %v5030 = vpop.f32.mrb[0].mxu0
    %v5031 = vpop.f32.mrb[0].mxu0
    %v5032 = vadd.f32 0.0, %v5031
    %v5033 = vpop.f32.mrb[0].mxu0
    %5034 = vmatprep.mubr.bf16.mxu0 0
    %5035 = vmatmul.mubr.bf16.gmra.mrb[0].mxu0 %v4986
    %v5036 = vpop.f32.mrb[0].mxu0
    %v5037 = vadd.f32 0.0, %v5036
    %v5038 = vpop.f32.mrb[0].mxu0
    %v5039 = vpop.f32.mrb[0].mxu0
    %v5040 = vadd.f32 0.0, %v5039
    %v5041 = vpop.f32.mrb[0].mxu0
    %5042 = vmatprep.mubr.bf16.mxu0 0
    %5043 = vmatmul.mubr.bf16.gmra.mrb[0].mxu0 %v4989
    %v5044 = vpop.f32.mrb[0].mxu0
    %v5045 = vadd.f32 0.0, %v5044
    %v5046 = vpop.f32.mrb[0].mxu0
    %v5047 = vpop.f32.mrb[0].mxu0
    %v5048 = vadd.f32 0.0, %v5047
    %v5049 = vpop.f32.mrb[0].mxu0
    %5050 = vmatprep.mubr.bf16.mxu0 0
    %5051 = vmatmul.mubr.bf16.gmra.mrb[0].mxu0 %v4992
    %v5052 = vpop.f32.mrb[0].mxu0
    %v5053 = vadd.f32 0.0, %v5052
    %v5054 = vpop.f32.mrb[0].mxu0
    %v5055 = vpop.f32.mrb[0].mxu0
    %v5056 = vadd.f32 0.0, %v5055
    %v5057 = vpop.f32.mrb[0].mxu0
    %5058 = vdwg.mxu0
    %5067 = vrot.lane.b32.xlu0 %v5029, 48
    %v5068 = vpop.permute.xlu0 %5067
    %5069 = vrot.lane.b32.xlu0 %v5032, 48
    %v5070 = vpop.permute.xlu0 %5069
    %5071 = vrot.lane.b32.xlu0 %v5037, 48
    %v5072 = vpop.permute.xlu0 %5071
    %5073 = vrot.lane.b32.xlu0 %v5040, 48
    %v5074 = vpop.permute.xlu0 %5073
    %5075 = vrot.lane.b32.xlu0 %v5045, 48
    %v5076 = vpop.permute.xlu0 %5075
    %5077 = vrot.lane.b32.xlu0 %v5048, 48
    %v5078 = vpop.permute.xlu0 %5077
    %5079 = vrot.lane.b32.xlu0 %v5053, 48
    %v5080 = vpop.permute.xlu0 %5079
    %5081 = vrot.lane.b32.xlu0 %v5056, 48
    %v5082 = vpop.permute.xlu0 %5081
    %5091 = vst.msk [vmem:[#allocation2] sm:$0xff] %vm2446, %v5068
    %5092 = vst.msk [vmem:[#allocation2 + $0x8] sm:$0xff] %vm2446, %v5070
    %5093 = vst.msk [vmem:[#allocation2 + $0x10] sm:$0xff] %vm2446, %v5072
    %5094 = vst.msk [vmem:[#allocation2 + $0x18] sm:$0xff] %vm2446, %v5074
    %5095 = vst.msk [vmem:[#allocation2 + $0x20] sm:$0xff] %vm2446, %v5076
    %5096 = vst.msk [vmem:[#allocation2 + $0x28] sm:$0xff] %vm2446, %v5078
    %5097 = vst.msk [vmem:[#allocation2 + $0x30] sm:$0xff] %vm2446, %v5080
    %5098 = vst.msk [vmem:[#allocation2 + $0x38] sm:$0xff] %vm2446, %v5082
    %5099 = vset.pattern.permute.xlu0 7
    %5100 = vperm.xlu0 %5099, %v3022
    %v5101 = vpop.permute.xlu0 %5100
    %5103 = vset.pattern.permute.xlu0 7
    %5104 = vperm.xlu0 %5103, %v3025
    %v5105 = vpop.permute.xlu0 %5104
    %5107 = vset.pattern.permute.xlu0 7
    %5108 = vperm.xlu0 %5107, %v3030
    %v5109 = vpop.permute.xlu0 %5108
    %5111 = vset.pattern.permute.xlu0 7
    %5112 = vperm.xlu0 %5111, %v3033
    %v5113 = vpop.permute.xlu0 %5112
    %5115 = vset.pattern.permute.xlu0 7
    %5116 = vperm.xlu0 %5115, %v3038
    %v5117 = vpop.permute.xlu0 %5116
    %5119 = vset.pattern.permute.xlu0 7
    %5120 = vperm.xlu0 %5119, %v3041
    %v5121 = vpop.permute.xlu0 %5120
    %5123 = vset.pattern.permute.xlu0 7
    %5124 = vperm.xlu0 %5123, %v3046
    %v5125 = vpop.permute.xlu0 %5124
    %5127 = vset.pattern.permute.xlu0 7
    %5128 = vperm.xlu0 %5127, %v3049
    %v5129 = vpop.permute.xlu0 %5128
    %v5131 = vlaneseq
    %v5132 = vshrl.u32 %v5131, 7
    %v5133 = vsub.s32 7, %v5132
    %v5134 = vrot.slane %v2974, %v5133
    %v5135 = vadd.f32 %v5101, %v5134
    %v5136 = vadd.f32 %v5105, %v5134
    %v5137 = vadd.f32 %v5109, %v5134
    %v5138 = vadd.f32 %v5113, %v5134
    %v5139 = vadd.f32 %v5117, %v5134
    %v5140 = vadd.f32 %v5121, %v5134
    %v5141 = vadd.f32 %v5125, %v5134
    %v5142 = vadd.f32 %v5129, %v5134
    %vm5143 = vcmp.gt.f32.partialorder %v5135, 0.0
    %vm5144 = vcmp.gt.f32.partialorder %v5136, 0.0
    %vm5145 = vcmp.gt.f32.partialorder %v5137, 0.0
    %vm5146 = vcmp.gt.f32.partialorder %v5138, 0.0
    %vm5147 = vcmp.gt.f32.partialorder %v5139, 0.0
    %vm5148 = vcmp.gt.f32.partialorder %v5140, 0.0
    %vm5149 = vcmp.gt.f32.partialorder %v5141, 0.0
    %vm5150 = vcmp.gt.f32.partialorder %v5142, 0.0
    %v5151 = vmul.f32 %v5135, 0.2
    %v5152 = vmul.f32 %v5136, 0.2
    %v5153 = vmul.f32 %v5137, 0.2
    %v5154 = vmul.f32 %v5138, 0.2
    %v5155 = vmul.f32 %v5139, 0.2
    %v5156 = vmul.f32 %v5140, 0.2
    %v5157 = vmul.f32 %v5141, 0.2
    %v5158 = vmul.f32 %v5142, 0.2
    %v5159 = vsel %vm5143, %v5135, %v5151
    %v5160 = vsel %vm5144, %v5136, %v5152
    %v5161 = vsel %vm5145, %v5137, %v5153
    %v5162 = vsel %vm5146, %v5138, %v5154
    %v5163 = vsel %vm5147, %v5139, %v5155
    %v5164 = vsel %vm5148, %v5140, %v5156
    %v5165 = vsel %vm5149, %v5141, %v5157
    %v5166 = vsel %vm5150, %v5142, %v5158
    %v5167 = vadd.f32 %v5159, %v155
    %v5168 = vadd.f32 %v5160, %v156
    %v5169 = vadd.f32 %v5161, %v157
    %v5170 = vadd.f32 %v5162, %v158
    %v5171 = vadd.f32 %v5163, %v159
    %v5172 = vadd.f32 %v5164, %v160
    %v5173 = vadd.f32 %v5165, %v161
    %v5174 = vadd.f32 %v5166, %v162
    %v5175 = vsel %vm484, %v5167, -inf
    %5176 = vmax.xlane.f32.xlu0 %v5175
    %v5177 = vpop.xlane.xlu0 %5176
    %v5178 = vsel %vm484, %v5168, -inf
    %5179 = vmax.xlane.f32.xlu0 %v5178
    %v5180 = vpop.xlane.xlu0 %5179
    %v5181 = vsel %vm484, %v5169, -inf
    %5182 = vmax.xlane.f32.xlu0 %v5181
    %v5183 = vpop.xlane.xlu0 %5182
    %v5184 = vsel %vm484, %v5170, -inf
    %5185 = vmax.xlane.f32.xlu0 %v5184
    %v5186 = vpop.xlane.xlu0 %5185
    %v5187 = vsel %vm484, %v5171, -inf
    %5188 = vmax.xlane.f32.xlu0 %v5187
    %v5189 = vpop.xlane.xlu0 %5188
    %v5190 = vsel %vm484, %v5172, -inf
    %5191 = vmax.xlane.f32.xlu0 %v5190
    %v5192 = vpop.xlane.xlu0 %5191
    %v5193 = vsel %vm484, %v5173, -inf
    %5194 = vmax.xlane.f32.xlu0 %v5193
    %v5195 = vpop.xlane.xlu0 %5194
    %v5196 = vsel %vm484, %v5174, -inf
    %5197 = vmax.xlane.f32.xlu0 %v5196
    %v5198 = vpop.xlane.xlu0 %5197
    %v5199 = vsub.f32 %v5167, %v5177
    %v5200 = vsub.f32 %v5168, %v5180
    %v5201 = vsub.f32 %v5169, %v5183
    %v5202 = vsub.f32 %v5170, %v5186
    %v5203 = vsub.f32 %v5171, %v5189
    %v5204 = vsub.f32 %v5172, %v5192
    %v5205 = vsub.f32 %v5173, %v5195
    %v5206 = vsub.f32 %v5174, %v5198
    %v5207 = vmul.f32 %v5199, 1.442695
    %v5208 = vpow.pop %v5207
    %v5209 = vmul.f32 %v5200, 1.442695
    %v5210 = vpow.pop %v5209
    %v5211 = vmul.f32 %v5201, 1.442695
    %v5212 = vpow.pop %v5211
    %v5213 = vmul.f32 %v5202, 1.442695
    %v5214 = vpow.pop %v5213
    %v5215 = vmul.f32 %v5203, 1.442695
    %v5216 = vpow.pop %v5215
    %v5217 = vmul.f32 %v5204, 1.442695
    %v5218 = vpow.pop %v5217
    %v5219 = vmul.f32 %v5205, 1.442695
    %v5220 = vpow.pop %v5219
    %v5221 = vmul.f32 %v5206, 1.442695
    %v5222 = vpow.pop %v5221
    %v5223 = vsel %vm484, %v5208, 0.0
    %5224 = vadd.xlane.f32.xlu0 %v5223
    %v5225 = vpop.xlane.xlu0 %5224
    %v5226 = vsel %vm484, %v5210, 0.0
    %5227 = vadd.xlane.f32.xlu0 %v5226
    %v5228 = vpop.xlane.xlu0 %5227
    %v5229 = vsel %vm484, %v5212, 0.0
    %5230 = vadd.xlane.f32.xlu0 %v5229
    %v5231 = vpop.xlane.xlu0 %5230
    %v5232 = vsel %vm484, %v5214, 0.0
    %5233 = vadd.xlane.f32.xlu0 %v5232
    %v5234 = vpop.xlane.xlu0 %5233
    %v5235 = vsel %vm484, %v5216, 0.0
    %5236 = vadd.xlane.f32.xlu0 %v5235
    %v5237 = vpop.xlane.xlu0 %5236
    %v5238 = vsel %vm484, %v5218, 0.0
    %5239 = vadd.xlane.f32.xlu0 %v5238
    %v5240 = vpop.xlane.xlu0 %5239
    %v5241 = vsel %vm484, %v5220, 0.0
    %5242 = vadd.xlane.f32.xlu0 %v5241
    %v5243 = vpop.xlane.xlu0 %5242
    %v5244 = vsel %vm484, %v5222, 0.0
    %5245 = vadd.xlane.f32.xlu0 %v5244
    %v5246 = vpop.xlane.xlu0 %5245
    %v5247 = vrcp.pop %v5225
    %v5248 = vrcp.pop %v5228
    %v5249 = vrcp.pop %v5231
    %v5250 = vrcp.pop %v5234
    %v5251 = vrcp.pop %v5237
    %v5252 = vrcp.pop %v5240
    %v5253 = vrcp.pop %v5243
    %v5254 = vrcp.pop %v5246
    %v5255 = vmul.f32 %v5208, %v5247
    %v5256 = vmul.f32 %v5210, %v5248
    %v5257 = vmul.f32 %v5212, %v5249
    %v5258 = vmul.f32 %v5214, %v5250
    %v5259 = vmul.f32 %v5216, %v5251
    %v5260 = vmul.f32 %v5218, %v5252
    %v5261 = vmul.f32 %v5220, %v5253
    %v5262 = vmul.f32 %v5222, %v5254
    %v5263 = vpack.c.bf16 %v5256, %v5255
    %v5264 = vpack.c.bf16 %v5258, %v5257
    %v5265 = vpack.c.bf16 %v5260, %v5259
    %v5266 = vpack.c.bf16 %v5262, %v5261
    %5267 = vrot.lane.b32.xlu0 %v2934, 72
    %v5268 = vpop.permute.xlu0 %5267
    %5269 = vrot.lane.b32.xlu0 %v2935, 72
    %v5270 = vpop.permute.xlu0 %5269
    %5271 = vrot.lane.b32.xlu0 %v2936, 72
    %v5272 = vpop.permute.xlu0 %5271
    %5273 = vrot.lane.b32.xlu0 %v2937, 72
    %v5274 = vpop.permute.xlu0 %5273
    %v5280 = vsel %vm484, %v5263, 0
    %v5283 = vsel %vm484, %v5264, 0
    %v5286 = vsel %vm484, %v5265, 0
    %v5289 = vsel %vm484, %v5266, 0
    %5291 = vmatprep.subr.bf16.mxu0 0
    %5292 = vmatpush1.bf16.msra.mxu0 %v5268
    %5293 = vmatprep.subr.bf16.mxu0 0
    %5294 = vmatpush1.bf16.msra.mxu0 %v5270
    %5295 = vmatprep.subr.bf16.mxu0 0
    %5296 = vmatpush1.bf16.msra.mxu0 %v5272
    %5297 = vmatprep.subr.bf16.mxu0 0
    %5298 = vmatpush1.bf16.msra.mxu0 %v5274
    %5299 = vmatprep.subr.bf16.mxu0 0
    %5300 = vmatpush1.bf16.msra.mxu0 0
    %5301 = vmatprep.subr.bf16.mxu0 0
    %5302 = vmatpush1.bf16.msra.mxu0 0
    %5303 = vmatprep.subr.bf16.mxu0 0
    %5304 = vmatpush1.bf16.msra.mxu0 0
    %5305 = vmatprep.subr.bf16.mxu0 0
    %5306 = vmatpush1.bf16.msra.mxu0 0
    %5307 = vmatprep.subr.bf16.mxu0 0
    %5308 = vmatpush1.bf16.msra.mxu0 0
    %5309 = vmatprep.subr.bf16.mxu0 0
    %5310 = vmatpush1.bf16.msra.mxu0 0
    %5311 = vmatprep.subr.bf16.mxu0 0
    %5312 = vmatpush1.bf16.msra.mxu0 0
    %5313 = vmatprep.subr.bf16.mxu0 0
    %5314 = vmatpush1.bf16.msra.mxu0 0
    %5315 = vmatprep.subr.bf16.mxu0 0
    %5316 = vmatpush1.bf16.msra.mxu0 0
    %5317 = vmatprep.subr.bf16.mxu0 0
    %5318 = vmatpush1.bf16.msra.mxu0 0
    %5319 = vmatprep.subr.bf16.mxu0 0
    %5320 = vmatpush1.bf16.msra.mxu0 0
    %5321 = vmatprep.subr.bf16.mxu0 0
    %5322 = vmatpush1.bf16.msra.mxu0 0
    %5323 = vmatprep.mubr.bf16.mxu0 0
    %5324 = vmatmul.mubr.bf16.gmra.mrb[0].mxu0 %v5280
    %v5325 = vpop.f32.mrb[0].mxu0
    %v5326 = vadd.f32 0.0, %v5325
    %v5327 = vpop.f32.mrb[0].mxu0
    %v5328 = vpop.f32.mrb[0].mxu0
    %v5329 = vadd.f32 0.0, %v5328
    %v5330 = vpop.f32.mrb[0].mxu0
    %5331 = vmatprep.mubr.bf16.mxu0 0
    %5332 = vmatmul.mubr.bf16.gmra.mrb[0].mxu0 %v5283
    %v5333 = vpop.f32.mrb[0].mxu0
    %v5334 = vadd.f32 0.0, %v5333
    %v5335 = vpop.f32.mrb[0].mxu0
    %v5336 = vpop.f32.mrb[0].mxu0
    %v5337 = vadd.f32 0.0, %v5336
    %v5338 = vpop.f32.mrb[0].mxu0
    %5339 = vmatprep.mubr.bf16.mxu0 0
    %5340 = vmatmul.mubr.bf16.gmra.mrb[0].mxu0 %v5286
    %v5341 = vpop.f32.mrb[0].mxu0
    %v5342 = vadd.f32 0.0, %v5341
    %v5343 = vpop.f32.mrb[0].mxu0
    %v5344 = vpop.f32.mrb[0].mxu0
    %v5345 = vadd.f32 0.0, %v5344
    %v5346 = vpop.f32.mrb[0].mxu0
    %5347 = vmatprep.mubr.bf16.mxu0 0
    %5348 = vmatmul.mubr.bf16.gmra.mrb[0].mxu0 %v5289
    %v5349 = vpop.f32.mrb[0].mxu0
    %v5350 = vadd.f32 0.0, %v5349
    %v5351 = vpop.f32.mrb[0].mxu0
    %v5352 = vpop.f32.mrb[0].mxu0
    %v5353 = vadd.f32 0.0, %v5352
    %v5354 = vpop.f32.mrb[0].mxu0
    %5355 = vdwg.mxu0
    %5364 = vrot.lane.b32.xlu0 %v5326, 56
    %v5365 = vpop.permute.xlu0 %5364
    %5366 = vrot.lane.b32.xlu0 %v5329, 56
    %v5367 = vpop.permute.xlu0 %5366
    %5368 = vrot.lane.b32.xlu0 %v5334, 56
    %v5369 = vpop.permute.xlu0 %5368
    %5370 = vrot.lane.b32.xlu0 %v5337, 56
    %v5371 = vpop.permute.xlu0 %5370
    %5372 = vrot.lane.b32.xlu0 %v5342, 56
    %v5373 = vpop.permute.xlu0 %5372
    %5374 = vrot.lane.b32.xlu0 %v5345, 56
    %v5375 = vpop.permute.xlu0 %5374
    %5376 = vrot.lane.b32.xlu0 %v5350, 56
    %v5377 = vpop.permute.xlu0 %5376
    %5378 = vrot.lane.b32.xlu0 %v5353, 56
    %v5379 = vpop.permute.xlu0 %5378
    %5388 = vst.msk [vmem:[#allocation2] sm:$0xff] %vm2744, %v5365
    %5389 = vst.msk [vmem:[#allocation2 + $0x8] sm:$0xff] %vm2744, %v5367
    %5390 = vst.msk [vmem:[#allocation2 + $0x10] sm:$0xff] %vm2744, %v5369
    %5391 = vst.msk [vmem:[#allocation2 + $0x18] sm:$0xff] %vm2744, %v5371
    %5392 = vst.msk [vmem:[#allocation2 + $0x20] sm:$0xff] %vm2744, %v5373
    %5393 = vst.msk [vmem:[#allocation2 + $0x28] sm:$0xff] %vm2744, %v5375
    %5394 = vst.msk [vmem:[#allocation2 + $0x30] sm:$0xff] %vm2744, %v5377
    %5395 = vst.msk [vmem:[#allocation2 + $0x38] sm:$0xff] %vm2744, %v5379
    %v5396 = vld [vmem:[#allocation2] sm:$0xff]
    %v5397 = vld [vmem:[#allocation2 + $0x8] sm:$0xff]
    %v5398 = vld [vmem:[#allocation2 + $0x10] sm:$0xff]
    %v5399 = vld [vmem:[#allocation2 + $0x18] sm:$0xff]
    %v5400 = vld [vmem:[#allocation2 + $0x20] sm:$0xff]
    %v5401 = vld [vmem:[#allocation2 + $0x28] sm:$0xff]
    %v5402 = vld [vmem:[#allocation2 + $0x30] sm:$0xff]
    %v5403 = vld [vmem:[#allocation2 + $0x38] sm:$0xff]
    %v5405 = vlaneseq
    %v5406 = vshrl.u32 %v5405, 7
    %v5407 = vsub.s32 0, %v5406
    %v5408 = vrot.slane %v2856, %v5407
    %v5410 = vadd.f32 %v5396, %v5408
    %v5411 = vadd.f32 %v5397, %v5408
    %v5412 = vadd.f32 %v5398, %v5408
    %v5413 = vadd.f32 %v5399, %v5408
    %v5414 = vadd.f32 %v5400, %v5408
    %v5415 = vadd.f32 %v5401, %v5408
    %v5416 = vadd.f32 %v5402, %v5408
    %v5417 = vadd.f32 %v5403, %v5408
    %vm5418 = vcmp.gt.f32.partialorder %v5410, 0.0
    %vm5419 = vcmp.gt.f32.partialorder %v5411, 0.0
    %vm5420 = vcmp.gt.f32.partialorder %v5412, 0.0
    %vm5421 = vcmp.gt.f32.partialorder %v5413, 0.0
    %vm5422 = vcmp.gt.f32.partialorder %v5414, 0.0
    %vm5423 = vcmp.gt.f32.partialorder %v5415, 0.0
    %vm5424 = vcmp.gt.f32.partialorder %v5416, 0.0
    %vm5425 = vcmp.gt.f32.partialorder %v5417, 0.0
    %v5426 = vmin.f32 %v5410, 0.0
    %v5427 = vmin.f32 %v5411, 0.0
    %v5428 = vmin.f32 %v5412, 0.0
    %v5429 = vmin.f32 %v5413, 0.0
    %v5430 = vmin.f32 %v5414, 0.0
    %v5431 = vmin.f32 %v5415, 0.0
    %v5432 = vmin.f32 %v5416, 0.0
    %v5433 = vmin.f32 %v5417, 0.0
    %v5434 = vmul.f32 %v5426, 1.442695
    %v5435 = vpow.pop %v5434
    %v5436 = vmul.f32 %v5427, 1.442695
    %v5437 = vpow.pop %v5436
    %v5438 = vmul.f32 %v5428, 1.442695
    %v5439 = vpow.pop %v5438
    %v5440 = vmul.f32 %v5429, 1.442695
    %v5441 = vpow.pop %v5440
    %v5442 = vmul.f32 %v5430, 1.442695
    %v5443 = vpow.pop %v5442
    %v5444 = vmul.f32 %v5431, 1.442695
    %v5445 = vpow.pop %v5444
    %v5446 = vmul.f32 %v5432, 1.442695
    %v5447 = vpow.pop %v5446
    %v5448 = vmul.f32 %v5433, 1.442695
    %v5449 = vpow.pop %v5448
    %v5450 = vsub.f32 %v5435, 1.0
    %v5451 = vsub.f32 %v5437, 1.0
    %v5452 = vsub.f32 %v5439, 1.0
    %v5453 = vsub.f32 %v5441, 1.0
    %v5454 = vsub.f32 %v5443, 1.0
    %v5455 = vsub.f32 %v5445, 1.0
    %v5456 = vsub.f32 %v5447, 1.0
    %v5457 = vsub.f32 %v5449, 1.0
    %v5458 = vsel %vm5418, %v5410, %v5450
    %v5459 = vsel %vm5419, %v5411, %v5451
    %v5460 = vsel %vm5420, %v5412, %v5452
    %v5461 = vsel %vm5421, %v5413, %v5453
    %v5462 = vsel %vm5422, %v5414, %v5454
    %v5463 = vsel %vm5423, %v5415, %v5455
    %v5464 = vsel %vm5424, %v5416, %v5456
    %v5465 = vsel %vm5425, %v5417, %v5457
    %v5466 = vadd.f32 %v2815, %v5458
    %v5467 = vadd.f32 %v2816, %v5459
    %v5468 = vadd.f32 %v2817, %v5460
    %v5469 = vadd.f32 %v2818, %v5461
    %v5470 = vadd.f32 %v2819, %v5462
    %v5471 = vadd.f32 %v2820, %v5463
    %v5472 = vadd.f32 %v2821, %v5464
    %v5473 = vadd.f32 %v2822, %v5465
    %v5474 = vld [vmem:[%s10] sm:$0x1]
    %v5475 = vld [vmem:[%s11] sm:$0x1]
    %5476 = vadd.xlane.f32.xlu0 %v5466
    %v5477 = vpop.xlane.xlu0 %5476
    %5478 = vadd.xlane.f32.xlu0 %v5467
    %v5479 = vpop.xlane.xlu0 %5478
    %5480 = vadd.xlane.f32.xlu0 %v5468
    %v5481 = vpop.xlane.xlu0 %5480
    %5482 = vadd.xlane.f32.xlu0 %v5469
    %v5483 = vpop.xlane.xlu0 %5482
    %5484 = vadd.xlane.f32.xlu0 %v5470
    %v5485 = vpop.xlane.xlu0 %5484
    %5486 = vadd.xlane.f32.xlu0 %v5471
    %v5487 = vpop.xlane.xlu0 %5486
    %5488 = vadd.xlane.f32.xlu0 %v5472
    %v5489 = vpop.xlane.xlu0 %5488
    %5490 = vadd.xlane.f32.xlu0 %v5473
    %v5491 = vpop.xlane.xlu0 %5490
    %v5492 = vmul.f32 %v5466, %v5466
    %v5493 = vmul.f32 %v5467, %v5467
    %v5494 = vmul.f32 %v5468, %v5468
    %v5495 = vmul.f32 %v5469, %v5469
    %v5496 = vmul.f32 %v5470, %v5470
    %v5497 = vmul.f32 %v5471, %v5471
    %v5498 = vmul.f32 %v5472, %v5472
    %v5499 = vmul.f32 %v5473, %v5473
    %5500 = vadd.xlane.f32.xlu0 %v5492
    %v5501 = vpop.xlane.xlu0 %5500
    %5502 = vadd.xlane.f32.xlu0 %v5493
    %v5503 = vpop.xlane.xlu0 %5502
    %5504 = vadd.xlane.f32.xlu0 %v5494
    %v5505 = vpop.xlane.xlu0 %5504
    %5506 = vadd.xlane.f32.xlu0 %v5495
    %v5507 = vpop.xlane.xlu0 %5506
    %5508 = vadd.xlane.f32.xlu0 %v5496
    %v5509 = vpop.xlane.xlu0 %5508
    %5510 = vadd.xlane.f32.xlu0 %v5497
    %v5511 = vpop.xlane.xlu0 %5510
    %5512 = vadd.xlane.f32.xlu0 %v5498
    %v5513 = vpop.xlane.xlu0 %5512
    %5514 = vadd.xlane.f32.xlu0 %v5499
    %v5515 = vpop.xlane.xlu0 %5514
    %v5516 = vmul.f32 %v5477, 0.015625
    %v5517 = vmul.f32 %v5479, 0.015625
    %v5518 = vmul.f32 %v5481, 0.015625
    %v5519 = vmul.f32 %v5483, 0.015625
    %v5520 = vmul.f32 %v5485, 0.015625
    %v5521 = vmul.f32 %v5487, 0.015625
    %v5522 = vmul.f32 %v5489, 0.015625
    %v5523 = vmul.f32 %v5491, 0.015625
    %v5524 = vmul.f32 %v5501, 0.015625
    %v5525 = vmul.f32 %v5503, 0.015625
    %v5526 = vmul.f32 %v5505, 0.015625
    %v5527 = vmul.f32 %v5507, 0.015625
    %v5528 = vmul.f32 %v5509, 0.015625
    %v5529 = vmul.f32 %v5511, 0.015625
    %v5530 = vmul.f32 %v5513, 0.015625
    %v5531 = vmul.f32 %v5515, 0.015625
    %v5532 = vmul.f32 %v5516, %v5516
    %v5533 = vmul.f32 %v5517, %v5517
    %v5534 = vmul.f32 %v5518, %v5518
    %v5535 = vmul.f32 %v5519, %v5519
    %v5536 = vmul.f32 %v5520, %v5520
    %v5537 = vmul.f32 %v5521, %v5521
    %v5538 = vmul.f32 %v5522, %v5522
    %v5539 = vmul.f32 %v5523, %v5523
    %v5540 = vsub.f32 %v5524, %v5532
    %v5541 = vsub.f32 %v5525, %v5533
    %v5542 = vsub.f32 %v5526, %v5534
    %v5543 = vsub.f32 %v5527, %v5535
    %v5544 = vsub.f32 %v5528, %v5536
    %v5545 = vsub.f32 %v5529, %v5537
    %v5546 = vsub.f32 %v5530, %v5538
    %v5547 = vsub.f32 %v5531, %v5539
    %v5548 = vadd.f32 %v5540, 1e-05
    %v5549 = vadd.f32 %v5541, 1e-05
    %v5550 = vadd.f32 %v5542, 1e-05
    %v5551 = vadd.f32 %v5543, 1e-05
    %v5552 = vadd.f32 %v5544, 1e-05
    %v5553 = vadd.f32 %v5545, 1e-05
    %v5554 = vadd.f32 %v5546, 1e-05
    %v5555 = vadd.f32 %v5547, 1e-05
    %v5556 = vrsqrt.pop %v5548
    %v5557 = vrsqrt.pop %v5549
    %v5558 = vrsqrt.pop %v5550
    %v5559 = vrsqrt.pop %v5551
    %v5560 = vrsqrt.pop %v5552
    %v5561 = vrsqrt.pop %v5553
    %v5562 = vrsqrt.pop %v5554
    %v5563 = vrsqrt.pop %v5555
    %v5564 = vsub.f32 %v5466, %v5516
    %v5565 = vsub.f32 %v5467, %v5517
    %v5566 = vsub.f32 %v5468, %v5518
    %v5567 = vsub.f32 %v5469, %v5519
    %v5568 = vsub.f32 %v5470, %v5520
    %v5569 = vsub.f32 %v5471, %v5521
    %v5570 = vsub.f32 %v5472, %v5522
    %v5571 = vsub.f32 %v5473, %v5523
    %v5572 = vmul.f32 %v5564, %v5556
    %v5573 = vmul.f32 %v5565, %v5557
    %v5574 = vmul.f32 %v5566, %v5558
    %v5575 = vmul.f32 %v5567, %v5559
    %v5576 = vmul.f32 %v5568, %v5560
    %v5577 = vmul.f32 %v5569, %v5561
    %v5578 = vmul.f32 %v5570, %v5562
    %v5579 = vmul.f32 %v5571, %v5563
    %v5581 = vlaneseq
    %v5582 = vshrl.u32 %v5581, 7
    %v5583 = vsub.s32 0, %v5582
    %v5584 = vrot.slane %v5474, %v5583
    %v5586 = vmul.f32 %v5572, %v5584
    %v5587 = vmul.f32 %v5573, %v5584
    %v5588 = vmul.f32 %v5574, %v5584
    %v5589 = vmul.f32 %v5575, %v5584
    %v5590 = vmul.f32 %v5576, %v5584
    %v5591 = vmul.f32 %v5577, %v5584
    %v5592 = vmul.f32 %v5578, %v5584
    %v5593 = vmul.f32 %v5579, %v5584
    %v5595 = vlaneseq
    %v5596 = vshrl.u32 %v5595, 7
    %v5597 = vsub.s32 0, %v5596
    %v5598 = vrot.slane %v5475, %v5597
    %v5600 = vadd.f32 %v5586, %v5598
    %v5601 = vadd.f32 %v5587, %v5598
    %v5602 = vadd.f32 %v5588, %v5598
    %v5603 = vadd.f32 %v5589, %v5598
    %v5604 = vadd.f32 %v5590, %v5598
    %v5605 = vadd.f32 %v5591, %v5598
    %v5606 = vadd.f32 %v5592, %v5598
    %v5607 = vadd.f32 %v5593, %v5598
    %v5608 = vpack.c.bf16 %v5601, %v5600
    %v5609 = vpack.c.bf16 %v5603, %v5602
    %v5610 = vpack.c.bf16 %v5605, %v5604
    %v5611 = vpack.c.bf16 %v5607, %v5606
    %v5612 = vld [vmem:[#allocation11] sm:$0xff]
    %v5613 = vld [vmem:[#allocation11 + $0x8] sm:$0xff]
    %v5614 = vld [vmem:[#allocation11 + $0x10] sm:$0xff]
    %v5615 = vld [vmem:[#allocation11 + $0x18] sm:$0xff]
    %v5616 = vld [vmem:[#allocation11 + $0x20] sm:$0xff]
    %v5617 = vld [vmem:[#allocation11 + $0x28] sm:$0xff]
    %v5618 = vld [vmem:[#allocation11 + $0x30] sm:$0xff]
    %v5619 = vld [vmem:[#allocation11 + $0x38] sm:$0xff]
    %v5620 = vld [vmem:[#allocation11 + $0x40] sm:$0xff]
    %v5621 = vld [vmem:[#allocation11 + $0x48] sm:$0xff]
    %v5622 = vld [vmem:[#allocation11 + $0x50] sm:$0xff]
    %v5623 = vld [vmem:[#allocation11 + $0x58] sm:$0xff]
    %v5624 = vld [vmem:[#allocation11 + $0x60] sm:$0xff]
    %v5625 = vld [vmem:[#allocation11 + $0x68] sm:$0xff]
    %v5626 = vld [vmem:[#allocation11 + $0x70] sm:$0xff]
    %v5627 = vld [vmem:[#allocation11 + $0x78] sm:$0xff]
    %v5628 = vpack.c.bf16 %v5613, %v5612
    %v5629 = vpack.c.bf16 %v5615, %v5614
    %v5630 = vpack.c.bf16 %v5617, %v5616
    %v5631 = vpack.c.bf16 %v5619, %v5618
    %v5632 = vpack.c.bf16 %v5621, %v5620
    %v5633 = vpack.c.bf16 %v5623, %v5622
    %v5634 = vpack.c.bf16 %v5625, %v5624
    %v5635 = vpack.c.bf16 %v5627, %v5626
    %v5636 = vld [vmem:[%s13] sm:$0x1]
    %v5638 = vlaneseq
    %v5639 = vshrl.u32 %v5638, 7
    %v5640 = vsub.s32 0, %v5639
    %v5641 = vrot.slane %v5636, %v5640
    %5643 = vmatprep.subr.bf16.mxu0 0
    %5644 = vmatpush1.bf16.msra.mxu0 %v5628
    %5645 = vmatprep.subr.bf16.mxu0 0
    %5646 = vmatpush1.bf16.msra.mxu0 %v5629
    %5647 = vmatprep.subr.bf16.mxu0 0
    %5648 = vmatpush1.bf16.msra.mxu0 %v5630
    %5649 = vmatprep.subr.bf16.mxu0 0
    %5650 = vmatpush1.bf16.msra.mxu0 %v5631
    %5651 = vmatprep.subr.bf16.mxu0 0
    %5652 = vmatpush1.bf16.msra.mxu0 %v5632
    %5653 = vmatprep.subr.bf16.mxu0 0
    %5654 = vmatpush1.bf16.msra.mxu0 %v5633
    %5655 = vmatprep.subr.bf16.mxu0 0
    %5656 = vmatpush1.bf16.msra.mxu0 %v5634
    %5657 = vmatprep.subr.bf16.mxu0 0
    %5658 = vmatpush1.bf16.msra.mxu0 %v5635
    %5659 = vmatprep.subr.bf16.mxu0 0
    %5660 = vmatpush1.bf16.msra.mxu0 0
    %5661 = vmatprep.subr.bf16.mxu0 0
    %5662 = vmatpush1.bf16.msra.mxu0 0
    %5663 = vmatprep.subr.bf16.mxu0 0
    %5664 = vmatpush1.bf16.msra.mxu0 0
    %5665 = vmatprep.subr.bf16.mxu0 0
    %5666 = vmatpush1.bf16.msra.mxu0 0
    %5667 = vmatprep.subr.bf16.mxu0 0
    %5668 = vmatpush1.bf16.msra.mxu0 0
    %5669 = vmatprep.subr.bf16.mxu0 0
    %5670 = vmatpush1.bf16.msra.mxu0 0
    %5671 = vmatprep.subr.bf16.mxu0 0
    %5672 = vmatpush1.bf16.msra.mxu0 0
    %5673 = vmatprep.subr.bf16.mxu0 0
    %5674 = vmatpush1.bf16.msra.mxu0 0
    %5675 = vmatprep.mubr.bf16.mxu0 0
    %5676 = vmatmul.mubr.bf16.gmra.mrb[0].mxu0 %v5608
    %v5677 = vpop.f32.mrb[0].mxu0
    %v5678 = vadd.f32 %v5641, %v5677
    %v5679 = vpop.f32.mrb[0].mxu0
    %v5680 = vpop.f32.mrb[0].mxu0
    %v5681 = vadd.f32 %v5641, %v5680
    %v5682 = vpop.f32.mrb[0].mxu0
    %5683 = vmatprep.mubr.bf16.mxu0 0
    %5684 = vmatmul.mubr.bf16.gmra.mrb[0].mxu0 %v5609
    %v5685 = vpop.f32.mrb[0].mxu0
    %v5686 = vadd.f32 %v5641, %v5685
    %v5687 = vpop.f32.mrb[0].mxu0
    %v5688 = vpop.f32.mrb[0].mxu0
    %v5689 = vadd.f32 %v5641, %v5688
    %v5690 = vpop.f32.mrb[0].mxu0
    %5691 = vmatprep.mubr.bf16.mxu0 0
    %5692 = vmatmul.mubr.bf16.gmra.mrb[0].mxu0 %v5610
    %v5693 = vpop.f32.mrb[0].mxu0
    %v5694 = vadd.f32 %v5641, %v5693
    %v5695 = vpop.f32.mrb[0].mxu0
    %v5696 = vpop.f32.mrb[0].mxu0
    %v5697 = vadd.f32 %v5641, %v5696
    %v5698 = vpop.f32.mrb[0].mxu0
    %5699 = vmatprep.mubr.bf16.mxu0 0
    %5700 = vmatmul.mubr.bf16.gmra.mrb[0].mxu0 %v5611
    %v5701 = vpop.f32.mrb[0].mxu0
    %v5702 = vadd.f32 %v5641, %v5701
    %v5703 = vpop.f32.mrb[0].mxu0
    %v5704 = vpop.f32.mrb[0].mxu0
    %v5705 = vadd.f32 %v5641, %v5704
    %v5706 = vpop.f32.mrb[0].mxu0
    %5707 = vdwg.mxu0
    %v5708 = vmax.f32 %v5678, 0.0
    %v5709 = vmax.f32 %v5681, 0.0
    %v5710 = vmax.f32 %v5686, 0.0
    %v5711 = vmax.f32 %v5689, 0.0
    %v5712 = vmax.f32 %v5694, 0.0
    %v5713 = vmax.f32 %v5697, 0.0
    %v5714 = vmax.f32 %v5702, 0.0
    %v5715 = vmax.f32 %v5705, 0.0
    %v5716 = vpack.c.bf16 %v5709, %v5708
    %v5717 = vpack.c.bf16 %v5711, %v5710
    %v5718 = vpack.c.bf16 %v5713, %v5712
    %v5719 = vpack.c.bf16 %v5715, %v5714
    %v5720 = vld [vmem:[#allocation12] sm:$0xff]
    %v5721 = vld [vmem:[#allocation12 + $0x8] sm:$0xff]
    %v5722 = vld [vmem:[#allocation12 + $0x10] sm:$0xff]
    %v5723 = vld [vmem:[#allocation12 + $0x18] sm:$0xff]
    %v5724 = vld [vmem:[#allocation12 + $0x20] sm:$0xff]
    %v5725 = vld [vmem:[#allocation12 + $0x28] sm:$0xff]
    %v5726 = vld [vmem:[#allocation12 + $0x30] sm:$0xff]
    %v5727 = vld [vmem:[#allocation12 + $0x38] sm:$0xff]
    %v5728 = vld [vmem:[#allocation12 + $0x40] sm:$0xff]
    %v5729 = vld [vmem:[#allocation12 + $0x48] sm:$0xff]
    %v5730 = vld [vmem:[#allocation12 + $0x50] sm:$0xff]
    %v5731 = vld [vmem:[#allocation12 + $0x58] sm:$0xff]
    %v5732 = vld [vmem:[#allocation12 + $0x60] sm:$0xff]
    %v5733 = vld [vmem:[#allocation12 + $0x68] sm:$0xff]
    %v5734 = vld [vmem:[#allocation12 + $0x70] sm:$0xff]
    %v5735 = vld [vmem:[#allocation12 + $0x78] sm:$0xff]
    %v5736 = vpack.c.bf16 %v5721, %v5720
    %v5737 = vpack.c.bf16 %v5723, %v5722
    %v5738 = vpack.c.bf16 %v5725, %v5724
    %v5739 = vpack.c.bf16 %v5727, %v5726
    %v5740 = vpack.c.bf16 %v5729, %v5728
    %v5741 = vpack.c.bf16 %v5731, %v5730
    %v5742 = vpack.c.bf16 %v5733, %v5732
    %v5743 = vpack.c.bf16 %v5735, %v5734
    %v5744 = vld [vmem:[%s15] sm:$0x1]
    %v5746 = vlaneseq
    %v5747 = vshrl.u32 %v5746, 7
    %v5748 = vsub.s32 0, %v5747
    %v5749 = vrot.slane %v5744, %v5748
    %5751 = vmatprep.subr.bf16.mxu0 0
    %5752 = vmatpush1.bf16.msra.mxu0 %v5736
    %5753 = vmatprep.subr.bf16.mxu0 0
    %5754 = vmatpush1.bf16.msra.mxu0 %v5737
    %5755 = vmatprep.subr.bf16.mxu0 0
    %5756 = vmatpush1.bf16.msra.mxu0 %v5738
    %5757 = vmatprep.subr.bf16.mxu0 0
    %5758 = vmatpush1.bf16.msra.mxu0 %v5739
    %5759 = vmatprep.subr.bf16.mxu0 0
    %5760 = vmatpush1.bf16.msra.mxu0 %v5740
    %5761 = vmatprep.subr.bf16.mxu0 0
    %5762 = vmatpush1.bf16.msra.mxu0 %v5741
    %5763 = vmatprep.subr.bf16.mxu0 0
    %5764 = vmatpush1.bf16.msra.mxu0 %v5742
    %5765 = vmatprep.subr.bf16.mxu0 0
    %5766 = vmatpush1.bf16.msra.mxu0 %v5743
    %5767 = vmatprep.subr.bf16.mxu0 0
    %5768 = vmatpush1.bf16.msra.mxu0 0
    %5769 = vmatprep.subr.bf16.mxu0 0
    %5770 = vmatpush1.bf16.msra.mxu0 0
    %5771 = vmatprep.subr.bf16.mxu0 0
    %5772 = vmatpush1.bf16.msra.mxu0 0
    %5773 = vmatprep.subr.bf16.mxu0 0
    %5774 = vmatpush1.bf16.msra.mxu0 0
    %5775 = vmatprep.subr.bf16.mxu0 0
    %5776 = vmatpush1.bf16.msra.mxu0 0
    %5777 = vmatprep.subr.bf16.mxu0 0
    %5778 = vmatpush1.bf16.msra.mxu0 0
    %5779 = vmatprep.subr.bf16.mxu0 0
    %5780 = vmatpush1.bf16.msra.mxu0 0
    %5781 = vmatprep.subr.bf16.mxu0 0
    %5782 = vmatpush1.bf16.msra.mxu0 0
    %5783 = vmatprep.mubr.bf16.mxu0 0
    %5784 = vmatmul.mubr.bf16.gmra.mrb[0].mxu0 %v5716
    %v5785 = vpop.f32.mrb[0].mxu0
    %v5786 = vadd.f32 %v5749, %v5785
    %v5787 = vpop.f32.mrb[0].mxu0
    %v5788 = vpop.f32.mrb[0].mxu0
    %v5789 = vadd.f32 %v5749, %v5788
    %v5790 = vpop.f32.mrb[0].mxu0
    %5791 = vmatprep.mubr.bf16.mxu0 0
    %5792 = vmatmul.mubr.bf16.gmra.mrb[0].mxu0 %v5717
    %v5793 = vpop.f32.mrb[0].mxu0
    %v5794 = vadd.f32 %v5749, %v5793
    %v5795 = vpop.f32.mrb[0].mxu0
    %v5796 = vpop.f32.mrb[0].mxu0
    %v5797 = vadd.f32 %v5749, %v5796
    %v5798 = vpop.f32.mrb[0].mxu0
    %5799 = vmatprep.mubr.bf16.mxu0 0
    %5800 = vmatmul.mubr.bf16.gmra.mrb[0].mxu0 %v5718
    %v5801 = vpop.f32.mrb[0].mxu0
    %v5802 = vadd.f32 %v5749, %v5801
    %v5803 = vpop.f32.mrb[0].mxu0
    %v5804 = vpop.f32.mrb[0].mxu0
    %v5805 = vadd.f32 %v5749, %v5804
    %v5806 = vpop.f32.mrb[0].mxu0
    %5807 = vmatprep.mubr.bf16.mxu0 0
    %5808 = vmatmul.mubr.bf16.gmra.mrb[0].mxu0 %v5719
    %v5809 = vpop.f32.mrb[0].mxu0
    %v5810 = vadd.f32 %v5749, %v5809
    %v5811 = vpop.f32.mrb[0].mxu0
    %v5812 = vpop.f32.mrb[0].mxu0
    %v5813 = vadd.f32 %v5749, %v5812
    %v5814 = vpop.f32.mrb[0].mxu0
    %5815 = vdwg.mxu0
    %v5816 = vadd.f32 %v5600, %v5786
    %v5817 = vadd.f32 %v5601, %v5789
    %v5818 = vadd.f32 %v5602, %v5794
    %v5819 = vadd.f32 %v5603, %v5797
    %v5820 = vadd.f32 %v5604, %v5802
    %v5821 = vadd.f32 %v5605, %v5805
    %v5822 = vadd.f32 %v5606, %v5810
    %v5823 = vadd.f32 %v5607, %v5813
    %v5824 = vld [vmem:[%s16] sm:$0x1]
    %v5825 = vld [vmem:[%s17] sm:$0x1]
    %5826 = vadd.xlane.f32.xlu0 %v5816
    %v5827 = vpop.xlane.xlu0 %5826
    %5828 = vadd.xlane.f32.xlu0 %v5817
    %v5829 = vpop.xlane.xlu0 %5828
    %5830 = vadd.xlane.f32.xlu0 %v5818
    %v5831 = vpop.xlane.xlu0 %5830
    %5832 = vadd.xlane.f32.xlu0 %v5819
    %v5833 = vpop.xlane.xlu0 %5832
    %5834 = vadd.xlane.f32.xlu0 %v5820
    %v5835 = vpop.xlane.xlu0 %5834
    %5836 = vadd.xlane.f32.xlu0 %v5821
    %v5837 = vpop.xlane.xlu0 %5836
    %5838 = vadd.xlane.f32.xlu0 %v5822
    %v5839 = vpop.xlane.xlu0 %5838
    %5840 = vadd.xlane.f32.xlu0 %v5823
    %v5841 = vpop.xlane.xlu0 %5840
    %v5842 = vmul.f32 %v5816, %v5816
    %v5843 = vmul.f32 %v5817, %v5817
    %v5844 = vmul.f32 %v5818, %v5818
    %v5845 = vmul.f32 %v5819, %v5819
    %v5846 = vmul.f32 %v5820, %v5820
    %v5847 = vmul.f32 %v5821, %v5821
    %v5848 = vmul.f32 %v5822, %v5822
    %v5849 = vmul.f32 %v5823, %v5823
    %5850 = vadd.xlane.f32.xlu0 %v5842
    %v5851 = vpop.xlane.xlu0 %5850
    %5852 = vadd.xlane.f32.xlu0 %v5843
    %v5853 = vpop.xlane.xlu0 %5852
    %5854 = vadd.xlane.f32.xlu0 %v5844
    %v5855 = vpop.xlane.xlu0 %5854
    %5856 = vadd.xlane.f32.xlu0 %v5845
    %v5857 = vpop.xlane.xlu0 %5856
    %5858 = vadd.xlane.f32.xlu0 %v5846
    %v5859 = vpop.xlane.xlu0 %5858
    %5860 = vadd.xlane.f32.xlu0 %v5847
    %v5861 = vpop.xlane.xlu0 %5860
    %5862 = vadd.xlane.f32.xlu0 %v5848
    %v5863 = vpop.xlane.xlu0 %5862
    %5864 = vadd.xlane.f32.xlu0 %v5849
    %v5865 = vpop.xlane.xlu0 %5864
    %v5866 = vmul.f32 %v5827, 0.015625
    %v5867 = vmul.f32 %v5829, 0.015625
    %v5868 = vmul.f32 %v5831, 0.015625
    %v5869 = vmul.f32 %v5833, 0.015625
    %v5870 = vmul.f32 %v5835, 0.015625
    %v5871 = vmul.f32 %v5837, 0.015625
    %v5872 = vmul.f32 %v5839, 0.015625
    %v5873 = vmul.f32 %v5841, 0.015625
    %v5874 = vmul.f32 %v5851, 0.015625
    %v5875 = vmul.f32 %v5853, 0.015625
    %v5876 = vmul.f32 %v5855, 0.015625
    %v5877 = vmul.f32 %v5857, 0.015625
    %v5878 = vmul.f32 %v5859, 0.015625
    %v5879 = vmul.f32 %v5861, 0.015625
    %v5880 = vmul.f32 %v5863, 0.015625
    %v5881 = vmul.f32 %v5865, 0.015625
    %v5882 = vmul.f32 %v5866, %v5866
    %v5883 = vmul.f32 %v5867, %v5867
    %v5884 = vmul.f32 %v5868, %v5868
    %v5885 = vmul.f32 %v5869, %v5869
    %v5886 = vmul.f32 %v5870, %v5870
    %v5887 = vmul.f32 %v5871, %v5871
    %v5888 = vmul.f32 %v5872, %v5872
    %v5889 = vmul.f32 %v5873, %v5873
    %v5890 = vsub.f32 %v5874, %v5882
    %v5891 = vsub.f32 %v5875, %v5883
    %v5892 = vsub.f32 %v5876, %v5884
    %v5893 = vsub.f32 %v5877, %v5885
    %v5894 = vsub.f32 %v5878, %v5886
    %v5895 = vsub.f32 %v5879, %v5887
    %v5896 = vsub.f32 %v5880, %v5888
    %v5897 = vsub.f32 %v5881, %v5889
    %v5898 = vadd.f32 %v5890, 1e-05
    %v5899 = vadd.f32 %v5891, 1e-05
    %v5900 = vadd.f32 %v5892, 1e-05
    %v5901 = vadd.f32 %v5893, 1e-05
    %v5902 = vadd.f32 %v5894, 1e-05
    %v5903 = vadd.f32 %v5895, 1e-05
    %v5904 = vadd.f32 %v5896, 1e-05
    %v5905 = vadd.f32 %v5897, 1e-05
    %v5906 = vrsqrt.pop %v5898
    %v5907 = vrsqrt.pop %v5899
    %v5908 = vrsqrt.pop %v5900
    %v5909 = vrsqrt.pop %v5901
    %v5910 = vrsqrt.pop %v5902
    %v5911 = vrsqrt.pop %v5903
    %v5912 = vrsqrt.pop %v5904
    %v5913 = vrsqrt.pop %v5905
    %v5914 = vsub.f32 %v5816, %v5866
    %v5915 = vsub.f32 %v5817, %v5867
    %v5916 = vsub.f32 %v5818, %v5868
    %v5917 = vsub.f32 %v5819, %v5869
    %v5918 = vsub.f32 %v5820, %v5870
    %v5919 = vsub.f32 %v5821, %v5871
    %v5920 = vsub.f32 %v5822, %v5872
    %v5921 = vsub.f32 %v5823, %v5873
    %v5922 = vmul.f32 %v5914, %v5906
    %v5923 = vmul.f32 %v5915, %v5907
    %v5924 = vmul.f32 %v5916, %v5908
    %v5925 = vmul.f32 %v5917, %v5909
    %v5926 = vmul.f32 %v5918, %v5910
    %v5927 = vmul.f32 %v5919, %v5911
    %v5928 = vmul.f32 %v5920, %v5912
    %v5929 = vmul.f32 %v5921, %v5913
    %v5931 = vlaneseq
    %v5932 = vshrl.u32 %v5931, 7
    %v5933 = vsub.s32 0, %v5932
    %v5934 = vrot.slane %v5824, %v5933
    %v5936 = vmul.f32 %v5922, %v5934
    %v5937 = vmul.f32 %v5923, %v5934
    %v5938 = vmul.f32 %v5924, %v5934
    %v5939 = vmul.f32 %v5925, %v5934
    %v5940 = vmul.f32 %v5926, %v5934
    %v5941 = vmul.f32 %v5927, %v5934
    %v5942 = vmul.f32 %v5928, %v5934
    %v5943 = vmul.f32 %v5929, %v5934
    %v5945 = vlaneseq
    %v5946 = vshrl.u32 %v5945, 7
    %v5947 = vsub.s32 0, %v5946
    %v5948 = vrot.slane %v5825, %v5947
    %v5950 = vadd.f32 %v5936, %v5948
    %v5951 = vadd.f32 %v5937, %v5948
    %v5952 = vadd.f32 %v5938, %v5948
    %v5953 = vadd.f32 %v5939, %v5948
    %v5954 = vadd.f32 %v5940, %v5948
    %v5955 = vadd.f32 %v5941, %v5948
    %v5956 = vadd.f32 %v5942, %v5948
    %v5957 = vadd.f32 %v5943, %v5948
    %s5958 = scalar_lea.vmem %s6, 128
    %v5959 = vld [vmem:[%s5958] sm:$0xff]
    %v5960 = vld [vmem:[%s5958 + $0x8] sm:$0xff]
    %v5961 = vld [vmem:[%s5958 + $0x10] sm:$0xff]
    %v5962 = vld [vmem:[%s5958 + $0x18] sm:$0xff]
    %v5963 = vld [vmem:[%s5958 + $0x20] sm:$0xff]
    %v5964 = vld [vmem:[%s5958 + $0x28] sm:$0xff]
    %v5965 = vld [vmem:[%s5958 + $0x30] sm:$0xff]
    %v5966 = vld [vmem:[%s5958 + $0x38] sm:$0xff]
    %v5967 = vld [vmem:[%s5958 + $0x40] sm:$0xff]
    %v5968 = vld [vmem:[%s5958 + $0x48] sm:$0xff]
    %v5969 = vld [vmem:[%s5958 + $0x50] sm:$0xff]
    %v5970 = vld [vmem:[%s5958 + $0x58] sm:$0xff]
    %v5971 = vld [vmem:[%s5958 + $0x60] sm:$0xff]
    %v5972 = vld [vmem:[%s5958 + $0x68] sm:$0xff]
    %v5973 = vld [vmem:[%s5958 + $0x70] sm:$0xff]
    %v5974 = vld [vmem:[%s5958 + $0x78] sm:$0xff]
    %s5975 = scalar_lea.vmem [#allocation9], 8
    %v5976 = vld [vmem:[%s5975] sm:$0xff]
    %s5977 = scalar_lea.vmem %s8, 128
    %v5978 = vld [vmem:[%s5977] sm:$0xff]
    %v5979 = vld [vmem:[%s5977 + $0x8] sm:$0xff]
    %v5980 = vld [vmem:[%s5977 + $0x10] sm:$0xff]
    %v5981 = vld [vmem:[%s5977 + $0x18] sm:$0xff]
    %v5982 = vld [vmem:[%s5977 + $0x20] sm:$0xff]
    %v5983 = vld [vmem:[%s5977 + $0x28] sm:$0xff]
    %v5984 = vld [vmem:[%s5977 + $0x30] sm:$0xff]
    %v5985 = vld [vmem:[%s5977 + $0x38] sm:$0xff]
    %v5986 = vld [vmem:[%s5977 + $0x40] sm:$0xff]
    %v5987 = vld [vmem:[%s5977 + $0x48] sm:$0xff]
    %v5988 = vld [vmem:[%s5977 + $0x50] sm:$0xff]
    %v5989 = vld [vmem:[%s5977 + $0x58] sm:$0xff]
    %v5990 = vld [vmem:[%s5977 + $0x60] sm:$0xff]
    %v5991 = vld [vmem:[%s5977 + $0x68] sm:$0xff]
    %v5992 = vld [vmem:[%s5977 + $0x70] sm:$0xff]
    %v5993 = vld [vmem:[%s5977 + $0x78] sm:$0xff]
    %s5994 = scalar_lea.vmem %s9, 1
    %v5995 = vld [vmem:[%s5994] sm:$0x1]
    %v5996 = vpack.c.bf16 %v5951, %v5950
    %v5997 = vpack.c.bf16 %v5953, %v5952
    %v5998 = vpack.c.bf16 %v5955, %v5954
    %v5999 = vpack.c.bf16 %v5957, %v5956
    %v6000 = vpack.c.bf16 %v5960, %v5959
    %v6001 = vpack.c.bf16 %v5962, %v5961
    %v6002 = vpack.c.bf16 %v5964, %v5963
    %v6003 = vpack.c.bf16 %v5966, %v5965
    %v6004 = vpack.c.bf16 %v5968, %v5967
    %v6005 = vpack.c.bf16 %v5970, %v5969
    %v6006 = vpack.c.bf16 %v5972, %v5971
    %v6007 = vpack.c.bf16 %v5974, %v5973
    %6008 = vmatprep.subr.bf16.mxu0 0
    %6009 = vmatpush1.bf16.msra.mxu0 %v6000
    %6010 = vmatprep.subr.bf16.mxu0 0
    %6011 = vmatpush1.bf16.msra.mxu0 %v6001
    %6012 = vmatprep.subr.bf16.mxu0 0
    %6013 = vmatpush1.bf16.msra.mxu0 %v6002
    %6014 = vmatprep.subr.bf16.mxu0 0
    %6015 = vmatpush1.bf16.msra.mxu0 %v6003
    %6016 = vmatprep.subr.bf16.mxu0 0
    %6017 = vmatpush1.bf16.msra.mxu0 %v6004
    %6018 = vmatprep.subr.bf16.mxu0 0
    %6019 = vmatpush1.bf16.msra.mxu0 %v6005
    %6020 = vmatprep.subr.bf16.mxu0 0
    %6021 = vmatpush1.bf16.msra.mxu0 %v6006
    %6022 = vmatprep.subr.bf16.mxu0 0
    %6023 = vmatpush1.bf16.msra.mxu0 %v6007
    %6024 = vmatprep.subr.bf16.mxu0 0
    %6025 = vmatpush1.bf16.msra.mxu0 0
    %6026 = vmatprep.subr.bf16.mxu0 0
    %6027 = vmatpush1.bf16.msra.mxu0 0
    %6028 = vmatprep.subr.bf16.mxu0 0
    %6029 = vmatpush1.bf16.msra.mxu0 0
    %6030 = vmatprep.subr.bf16.mxu0 0
    %6031 = vmatpush1.bf16.msra.mxu0 0
    %6032 = vmatprep.subr.bf16.mxu0 0
    %6033 = vmatpush1.bf16.msra.mxu0 0
    %6034 = vmatprep.subr.bf16.mxu0 0
    %6035 = vmatpush1.bf16.msra.mxu0 0
    %6036 = vmatprep.subr.bf16.mxu0 0
    %6037 = vmatpush1.bf16.msra.mxu0 0
    %6038 = vmatprep.subr.bf16.mxu0 0
    %6039 = vmatpush1.bf16.msra.mxu0 0
    %6040 = vmatprep.mubr.bf16.mxu0 0
    %6041 = vmatmul.mubr.bf16.gmra.mrb[0].mxu0 %v5996
    %v6042 = vpop.f32.mrb[0].mxu0
    %v6043 = vadd.f32 0.0, %v6042
    %v6044 = vpop.f32.mrb[0].mxu0
    %v6045 = vpop.f32.mrb[0].mxu0
    %v6046 = vadd.f32 0.0, %v6045
    %v6047 = vpop.f32.mrb[0].mxu0
    %6048 = vmatprep.mubr.bf16.mxu0 0
    %6049 = vmatmul.mubr.bf16.gmra.mrb[0].mxu0 %v5997
    %v6050 = vpop.f32.mrb[0].mxu0
    %v6051 = vadd.f32 0.0, %v6050
    %v6052 = vpop.f32.mrb[0].mxu0
    %v6053 = vpop.f32.mrb[0].mxu0
    %v6054 = vadd.f32 0.0, %v6053
    %v6055 = vpop.f32.mrb[0].mxu0
    %6056 = vmatprep.mubr.bf16.mxu0 0
    %6057 = vmatmul.mubr.bf16.gmra.mrb[0].mxu0 %v5998
    %v6058 = vpop.f32.mrb[0].mxu0
    %v6059 = vadd.f32 0.0, %v6058
    %v6060 = vpop.f32.mrb[0].mxu0
    %v6061 = vpop.f32.mrb[0].mxu0
    %v6062 = vadd.f32 0.0, %v6061
    %v6063 = vpop.f32.mrb[0].mxu0
    %6064 = vmatprep.mubr.bf16.mxu0 0
    %6065 = vmatmul.mubr.bf16.gmra.mrb[0].mxu0 %v5999
    %v6066 = vpop.f32.mrb[0].mxu0
    %v6067 = vadd.f32 0.0, %v6066
    %v6068 = vpop.f32.mrb[0].mxu0
    %v6069 = vpop.f32.mrb[0].mxu0
    %v6070 = vadd.f32 0.0, %v6069
    %v6071 = vpop.f32.mrb[0].mxu0
    %6072 = vdwg.mxu0
    %v6073 = vpack.c.bf16 %v6046, %v6043
    %v6074 = vpack.c.bf16 %v6054, %v6051
    %v6075 = vpack.c.bf16 %v6062, %v6059
    %v6076 = vpack.c.bf16 %v6070, %v6067
    %v6077 = vpack.c.bf16 %v5976, %v5976
    %6078 = vmatprep.subr.bf16.mxu0 0
    %6079 = vmatpush1.bf16.xpose.msra.mxu0 %v6073
    %6080 = vmatprep.subr.bf16.mxu0 0
    %6081 = vmatpush1.bf16.xpose.msra.mxu0 %v6074
    %6082 = vmatprep.subr.bf16.mxu0 0
    %6083 = vmatpush1.bf16.xpose.msra.mxu0 %v6075
    %6084 = vmatprep.subr.bf16.mxu0 0
    %6085 = vmatpush1.bf16.xpose.msra.mxu0 %v6076
    %6086 = vmatprep.subr.bf16.mxu0 0
    %6087 = vmatpush1.bf16.xpose.msra.mxu0 0
    %6088 = vmatprep.subr.bf16.mxu0 0
    %6089 = vmatpush1.bf16.xpose.msra.mxu0 0
    %6090 = vmatprep.subr.bf16.mxu0 0
    %6091 = vmatpush1.bf16.xpose.msra.mxu0 0
    %6092 = vmatprep.subr.bf16.mxu0 0
    %6093 = vmatpush1.bf16.xpose.msra.mxu0 0
    %6094 = vmatprep.subr.bf16.mxu0 0
    %6095 = vmatpush1.bf16.xpose.msra.mxu0 0
    %6096 = vmatprep.subr.bf16.mxu0 0
    %6097 = vmatpush1.bf16.xpose.msra.mxu0 0
    %6098 = vmatprep.subr.bf16.mxu0 0
    %6099 = vmatpush1.bf16.xpose.msra.mxu0 0
    %6100 = vmatprep.subr.bf16.mxu0 0
    %6101 = vmatpush1.bf16.xpose.msra.mxu0 0
    %6102 = vmatprep.subr.bf16.mxu0 0
    %6103 = vmatpush1.bf16.xpose.msra.mxu0 0
    %6104 = vmatprep.subr.bf16.mxu0 0
    %6105 = vmatpush1.bf16.xpose.msra.mxu0 0
    %6106 = vmatprep.subr.bf16.mxu0 0
    %6107 = vmatpush1.bf16.xpose.msra.mxu0 0
    %6108 = vmatprep.subr.bf16.mxu0 0
    %6109 = vmatpush1.bf16.xpose.msra.mxu0 0
    %6110 = vmatprep.mubr.bf16.mxu0 0
    %6111 = vmatmul.mubr.bf16.gmra.mrb[0].mxu0 %v6077
    %v6112 = vpop.f32.mrb[0].mxu0
    %v6113 = vadd.f32 0.0, %v6112
    %v6114 = vpop.f32.mrb[0].mxu0
    %v6115 = vpop.f32.mrb[0].mxu0
    %v6116 = vpop.f32.mrb[0].mxu0
    %6117 = vdwg.mxu0
    %v6118 = vpack.c.bf16 %v5979, %v5978
    %v6119 = vpack.c.bf16 %v5981, %v5980
    %v6120 = vpack.c.bf16 %v5983, %v5982
    %v6121 = vpack.c.bf16 %v5985, %v5984
    %v6122 = vpack.c.bf16 %v5987, %v5986
    %v6123 = vpack.c.bf16 %v5989, %v5988
    %v6124 = vpack.c.bf16 %v5991, %v5990
    %v6125 = vpack.c.bf16 %v5993, %v5992
    %6126 = vmatprep.subr.bf16.mxu0 0
    %6127 = vmatpush1.bf16.msra.mxu0 %v6118
    %6128 = vmatprep.subr.bf16.mxu0 0
    %6129 = vmatpush1.bf16.msra.mxu0 %v6119
    %6130 = vmatprep.subr.bf16.mxu0 0
    %6131 = vmatpush1.bf16.msra.mxu0 %v6120
    %6132 = vmatprep.subr.bf16.mxu0 0
    %6133 = vmatpush1.bf16.msra.mxu0 %v6121
    %6134 = vmatprep.subr.bf16.mxu0 0
    %6135 = vmatpush1.bf16.msra.mxu0 %v6122
    %6136 = vmatprep.subr.bf16.mxu0 0
    %6137 = vmatpush1.bf16.msra.mxu0 %v6123
    %6138 = vmatprep.subr.bf16.mxu0 0
    %6139 = vmatpush1.bf16.msra.mxu0 %v6124
    %6140 = vmatprep.subr.bf16.mxu0 0
    %6141 = vmatpush1.bf16.msra.mxu0 %v6125
    %6142 = vmatprep.subr.bf16.mxu0 0
    %6143 = vmatpush1.bf16.msra.mxu0 0
    %6144 = vmatprep.subr.bf16.mxu0 0
    %6145 = vmatpush1.bf16.msra.mxu0 0
    %6146 = vmatprep.subr.bf16.mxu0 0
    %6147 = vmatpush1.bf16.msra.mxu0 0
    %6148 = vmatprep.subr.bf16.mxu0 0
    %6149 = vmatpush1.bf16.msra.mxu0 0
    %6150 = vmatprep.subr.bf16.mxu0 0
    %6151 = vmatpush1.bf16.msra.mxu0 0
    %6152 = vmatprep.subr.bf16.mxu0 0
    %6153 = vmatpush1.bf16.msra.mxu0 0
    %6154 = vmatprep.subr.bf16.mxu0 0
    %6155 = vmatpush1.bf16.msra.mxu0 0
    %6156 = vmatprep.subr.bf16.mxu0 0
    %6157 = vmatpush1.bf16.msra.mxu0 0
    %6158 = vmatprep.mubr.bf16.mxu0 0
    %6159 = vmatmul.mubr.bf16.gmra.mrb[0].mxu0 %v6073
    %v6160 = vpop.f32.mrb[0].mxu0
    %v6161 = vadd.f32 0.0, %v6160
    %v6162 = vpop.f32.mrb[0].mxu0
    %v6163 = vpop.f32.mrb[0].mxu0
    %v6164 = vadd.f32 0.0, %v6163
    %v6165 = vpop.f32.mrb[0].mxu0
    %6166 = vmatprep.mubr.bf16.mxu0 0
    %6167 = vmatmul.mubr.bf16.gmra.mrb[0].mxu0 %v6074
    %v6168 = vpop.f32.mrb[0].mxu0
    %v6169 = vadd.f32 0.0, %v6168
    %v6170 = vpop.f32.mrb[0].mxu0
    %v6171 = vpop.f32.mrb[0].mxu0
    %v6172 = vadd.f32 0.0, %v6171
    %v6173 = vpop.f32.mrb[0].mxu0
    %6174 = vmatprep.mubr.bf16.mxu0 0
    %6175 = vmatmul.mubr.bf16.gmra.mrb[0].mxu0 %v6075
    %v6176 = vpop.f32.mrb[0].mxu0
    %v6177 = vadd.f32 0.0, %v6176
    %v6178 = vpop.f32.mrb[0].mxu0
    %v6179 = vpop.f32.mrb[0].mxu0
    %v6180 = vadd.f32 0.0, %v6179
    %v6181 = vpop.f32.mrb[0].mxu0
    %6182 = vmatprep.mubr.bf16.mxu0 0
    %6183 = vmatmul.mubr.bf16.gmra.mrb[0].mxu0 %v6076
    %v6184 = vpop.f32.mrb[0].mxu0
    %v6185 = vadd.f32 0.0, %v6184
    %v6186 = vpop.f32.mrb[0].mxu0
    %v6187 = vpop.f32.mrb[0].mxu0
    %v6188 = vadd.f32 0.0, %v6187
    %v6189 = vpop.f32.mrb[0].mxu0
    %6190 = vdwg.mxu0
    %6192 = vset.pattern.permute.xlu0 0
    %6193 = vperm.xlu0 %6192, %v6161
    %v6194 = vpop.permute.xlu0 %6193
    %6197 = vset.pattern.permute.xlu0 0
    %6198 = vperm.xlu0 %6197, %v6164
    %v6199 = vpop.permute.xlu0 %6198
    %6202 = vset.pattern.permute.xlu0 0
    %6203 = vperm.xlu0 %6202, %v6169
    %v6204 = vpop.permute.xlu0 %6203
    %6207 = vset.pattern.permute.xlu0 0
    %6208 = vperm.xlu0 %6207, %v6172
    %v6209 = vpop.permute.xlu0 %6208
    %6212 = vset.pattern.permute.xlu0 0
    %6213 = vperm.xlu0 %6212, %v6177
    %v6214 = vpop.permute.xlu0 %6213
    %6217 = vset.pattern.permute.xlu0 0
    %6218 = vperm.xlu0 %6217, %v6180
    %v6219 = vpop.permute.xlu0 %6218
    %6222 = vset.pattern.permute.xlu0 0
    %6223 = vperm.xlu0 %6222, %v6185
    %v6224 = vpop.permute.xlu0 %6223
    %6227 = vset.pattern.permute.xlu0 0
    %6228 = vperm.xlu0 %6227, %v6188
    %v6229 = vpop.permute.xlu0 %6228
    %v6231 = vlaneseq
    %v6232 = vshrl.u32 %v6231, 7
    %v6233 = vsub.s32 0, %v6232
    %v6234 = vrot.slane %v6113, %v6233
    %v6235 = vadd.f32 %v6194, %v6234
    %v6236 = vadd.f32 %v6199, %v6234
    %v6237 = vadd.f32 %v6204, %v6234
    %v6238 = vadd.f32 %v6209, %v6234
    %v6239 = vadd.f32 %v6214, %v6234
    %v6240 = vadd.f32 %v6219, %v6234
    %v6241 = vadd.f32 %v6224, %v6234
    %v6242 = vadd.f32 %v6229, %v6234
    %vm6243 = vcmp.gt.f32.partialorder %v6235, 0.0
    %vm6244 = vcmp.gt.f32.partialorder %v6236, 0.0
    %vm6245 = vcmp.gt.f32.partialorder %v6237, 0.0
    %vm6246 = vcmp.gt.f32.partialorder %v6238, 0.0
    %vm6247 = vcmp.gt.f32.partialorder %v6239, 0.0
    %vm6248 = vcmp.gt.f32.partialorder %v6240, 0.0
    %vm6249 = vcmp.gt.f32.partialorder %v6241, 0.0
    %vm6250 = vcmp.gt.f32.partialorder %v6242, 0.0
    %v6251 = vmul.f32 %v6235, 0.2
    %v6252 = vmul.f32 %v6236, 0.2
    %v6253 = vmul.f32 %v6237, 0.2
    %v6254 = vmul.f32 %v6238, 0.2
    %v6255 = vmul.f32 %v6239, 0.2
    %v6256 = vmul.f32 %v6240, 0.2
    %v6257 = vmul.f32 %v6241, 0.2
    %v6258 = vmul.f32 %v6242, 0.2
    %v6259 = vsel %vm6243, %v6235, %v6251
    %v6260 = vsel %vm6244, %v6236, %v6252
    %v6261 = vsel %vm6245, %v6237, %v6253
    %v6262 = vsel %vm6246, %v6238, %v6254
    %v6263 = vsel %vm6247, %v6239, %v6255
    %v6264 = vsel %vm6248, %v6240, %v6256
    %v6265 = vsel %vm6249, %v6241, %v6257
    %v6266 = vsel %vm6250, %v6242, %v6258
    %v6267 = vadd.f32 %v6259, %v155
    %v6268 = vadd.f32 %v6260, %v156
    %v6269 = vadd.f32 %v6261, %v157
    %v6270 = vadd.f32 %v6262, %v158
    %v6271 = vadd.f32 %v6263, %v159
    %v6272 = vadd.f32 %v6264, %v160
    %v6273 = vadd.f32 %v6265, %v161
    %v6274 = vadd.f32 %v6266, %v162
    %v6275 = vsel %vm484, %v6267, -inf
    %6276 = vmax.xlane.f32.xlu0 %v6275
    %v6277 = vpop.xlane.xlu0 %6276
    %v6278 = vsel %vm484, %v6268, -inf
    %6279 = vmax.xlane.f32.xlu0 %v6278
    %v6280 = vpop.xlane.xlu0 %6279
    %v6281 = vsel %vm484, %v6269, -inf
    %6282 = vmax.xlane.f32.xlu0 %v6281
    %v6283 = vpop.xlane.xlu0 %6282
    %v6284 = vsel %vm484, %v6270, -inf
    %6285 = vmax.xlane.f32.xlu0 %v6284
    %v6286 = vpop.xlane.xlu0 %6285
    %v6287 = vsel %vm484, %v6271, -inf
    %6288 = vmax.xlane.f32.xlu0 %v6287
    %v6289 = vpop.xlane.xlu0 %6288
    %v6290 = vsel %vm484, %v6272, -inf
    %6291 = vmax.xlane.f32.xlu0 %v6290
    %v6292 = vpop.xlane.xlu0 %6291
    %v6293 = vsel %vm484, %v6273, -inf
    %6294 = vmax.xlane.f32.xlu0 %v6293
    %v6295 = vpop.xlane.xlu0 %6294
    %v6296 = vsel %vm484, %v6274, -inf
    %6297 = vmax.xlane.f32.xlu0 %v6296
    %v6298 = vpop.xlane.xlu0 %6297
    %v6299 = vsub.f32 %v6267, %v6277
    %v6300 = vsub.f32 %v6268, %v6280
    %v6301 = vsub.f32 %v6269, %v6283
    %v6302 = vsub.f32 %v6270, %v6286
    %v6303 = vsub.f32 %v6271, %v6289
    %v6304 = vsub.f32 %v6272, %v6292
    %v6305 = vsub.f32 %v6273, %v6295
    %v6306 = vsub.f32 %v6274, %v6298
    %v6307 = vmul.f32 %v6299, 1.442695
    %v6308 = vpow.pop %v6307
    %v6309 = vmul.f32 %v6300, 1.442695
    %v6310 = vpow.pop %v6309
    %v6311 = vmul.f32 %v6301, 1.442695
    %v6312 = vpow.pop %v6311
    %v6313 = vmul.f32 %v6302, 1.442695
    %v6314 = vpow.pop %v6313
    %v6315 = vmul.f32 %v6303, 1.442695
    %v6316 = vpow.pop %v6315
    %v6317 = vmul.f32 %v6304, 1.442695
    %v6318 = vpow.pop %v6317
    %v6319 = vmul.f32 %v6305, 1.442695
    %v6320 = vpow.pop %v6319
    %v6321 = vmul.f32 %v6306, 1.442695
    %v6322 = vpow.pop %v6321
    %v6323 = vsel %vm484, %v6308, 0.0
    %6324 = vadd.xlane.f32.xlu0 %v6323
    %v6325 = vpop.xlane.xlu0 %6324
    %v6326 = vsel %vm484, %v6310, 0.0
    %6327 = vadd.xlane.f32.xlu0 %v6326
    %v6328 = vpop.xlane.xlu0 %6327
    %v6329 = vsel %vm484, %v6312, 0.0
    %6330 = vadd.xlane.f32.xlu0 %v6329
    %v6331 = vpop.xlane.xlu0 %6330
    %v6332 = vsel %vm484, %v6314, 0.0
    %6333 = vadd.xlane.f32.xlu0 %v6332
    %v6334 = vpop.xlane.xlu0 %6333
    %v6335 = vsel %vm484, %v6316, 0.0
    %6336 = vadd.xlane.f32.xlu0 %v6335
    %v6337 = vpop.xlane.xlu0 %6336
    %v6338 = vsel %vm484, %v6318, 0.0
    %6339 = vadd.xlane.f32.xlu0 %v6338
    %v6340 = vpop.xlane.xlu0 %6339
    %v6341 = vsel %vm484, %v6320, 0.0
    %6342 = vadd.xlane.f32.xlu0 %v6341
    %v6343 = vpop.xlane.xlu0 %6342
    %v6344 = vsel %vm484, %v6322, 0.0
    %6345 = vadd.xlane.f32.xlu0 %v6344
    %v6346 = vpop.xlane.xlu0 %6345
    %v6347 = vrcp.pop %v6325
    %v6348 = vrcp.pop %v6328
    %v6349 = vrcp.pop %v6331
    %v6350 = vrcp.pop %v6334
    %v6351 = vrcp.pop %v6337
    %v6352 = vrcp.pop %v6340
    %v6353 = vrcp.pop %v6343
    %v6354 = vrcp.pop %v6346
    %v6355 = vmul.f32 %v6308, %v6347
    %v6356 = vmul.f32 %v6310, %v6348
    %v6357 = vmul.f32 %v6312, %v6349
    %v6358 = vmul.f32 %v6314, %v6350
    %v6359 = vmul.f32 %v6316, %v6351
    %v6360 = vmul.f32 %v6318, %v6352
    %v6361 = vmul.f32 %v6320, %v6353
    %v6362 = vmul.f32 %v6322, %v6354
    %v6363 = vpack.c.bf16 %v6356, %v6355
    %v6364 = vpack.c.bf16 %v6358, %v6357
    %v6365 = vpack.c.bf16 %v6360, %v6359
    %v6366 = vpack.c.bf16 %v6362, %v6361
    %v6368 = vsel %vm484, %v6363, 0
    %v6371 = vsel %vm484, %v6364, 0
    %v6374 = vsel %vm484, %v6365, 0
    %v6377 = vsel %vm484, %v6366, 0
    %6379 = vmatprep.subr.bf16.mxu0 0
    %6380 = vmatpush1.bf16.msra.mxu0 %v6073
    %6381 = vmatprep.subr.bf16.mxu0 0
    %6382 = vmatpush1.bf16.msra.mxu0 %v6074
    %6383 = vmatprep.subr.bf16.mxu0 0
    %6384 = vmatpush1.bf16.msra.mxu0 %v6075
    %6385 = vmatprep.subr.bf16.mxu0 0
    %6386 = vmatpush1.bf16.msra.mxu0 %v6076
    %6387 = vmatprep.subr.bf16.mxu0 0
    %6388 = vmatpush1.bf16.msra.mxu0 0
    %6389 = vmatprep.subr.bf16.mxu0 0
    %6390 = vmatpush1.bf16.msra.mxu0 0
    %6391 = vmatprep.subr.bf16.mxu0 0
    %6392 = vmatpush1.bf16.msra.mxu0 0
    %6393 = vmatprep.subr.bf16.mxu0 0
    %6394 = vmatpush1.bf16.msra.mxu0 0
    %6395 = vmatprep.subr.bf16.mxu0 0
    %6396 = vmatpush1.bf16.msra.mxu0 0
    %6397 = vmatprep.subr.bf16.mxu0 0
    %6398 = vmatpush1.bf16.msra.mxu0 0
    %6399 = vmatprep.subr.bf16.mxu0 0
    %6400 = vmatpush1.bf16.msra.mxu0 0
    %6401 = vmatprep.subr.bf16.mxu0 0
    %6402 = vmatpush1.bf16.msra.mxu0 0
    %6403 = vmatprep.subr.bf16.mxu0 0
    %6404 = vmatpush1.bf16.msra.mxu0 0
    %6405 = vmatprep.subr.bf16.mxu0 0
    %6406 = vmatpush1.bf16.msra.mxu0 0
    %6407 = vmatprep.subr.bf16.mxu0 0
    %6408 = vmatpush1.bf16.msra.mxu0 0
    %6409 = vmatprep.subr.bf16.mxu0 0
    %6410 = vmatpush1.bf16.msra.mxu0 0
    %6411 = vmatprep.mubr.bf16.mxu0 0
    %6412 = vmatmul.mubr.bf16.gmra.mrb[0].mxu0 %v6368
    %v6413 = vpop.f32.mrb[0].mxu0
    %v6414 = vadd.f32 0.0, %v6413
    %v6415 = vpop.f32.mrb[0].mxu0
    %v6416 = vpop.f32.mrb[0].mxu0
    %v6417 = vadd.f32 0.0, %v6416
    %v6418 = vpop.f32.mrb[0].mxu0
    %6419 = vmatprep.mubr.bf16.mxu0 0
    %6420 = vmatmul.mubr.bf16.gmra.mrb[0].mxu0 %v6371
    %v6421 = vpop.f32.mrb[0].mxu0
    %v6422 = vadd.f32 0.0, %v6421
    %v6423 = vpop.f32.mrb[0].mxu0
    %v6424 = vpop.f32.mrb[0].mxu0
    %v6425 = vadd.f32 0.0, %v6424
    %v6426 = vpop.f32.mrb[0].mxu0
    %6427 = vmatprep.mubr.bf16.mxu0 0
    %6428 = vmatmul.mubr.bf16.gmra.mrb[0].mxu0 %v6374
    %v6429 = vpop.f32.mrb[0].mxu0
    %v6430 = vadd.f32 0.0, %v6429
    %v6431 = vpop.f32.mrb[0].mxu0
    %v6432 = vpop.f32.mrb[0].mxu0
    %v6433 = vadd.f32 0.0, %v6432
    %v6434 = vpop.f32.mrb[0].mxu0
    %6435 = vmatprep.mubr.bf16.mxu0 0
    %6436 = vmatmul.mubr.bf16.gmra.mrb[0].mxu0 %v6377
    %v6437 = vpop.f32.mrb[0].mxu0
    %v6438 = vadd.f32 0.0, %v6437
    %v6439 = vpop.f32.mrb[0].mxu0
    %v6440 = vpop.f32.mrb[0].mxu0
    %v6441 = vadd.f32 0.0, %v6440
    %v6442 = vpop.f32.mrb[0].mxu0
    %6443 = vdwg.mxu0
    %6444 = vst.msk [vmem:[#allocation2] sm:$0xff] %vm654, %v6414
    %6445 = vst.msk [vmem:[#allocation2 + $0x8] sm:$0xff] %vm654, %v6417
    %6446 = vst.msk [vmem:[#allocation2 + $0x10] sm:$0xff] %vm654, %v6422
    %6447 = vst.msk [vmem:[#allocation2 + $0x18] sm:$0xff] %vm654, %v6425
    %6448 = vst.msk [vmem:[#allocation2 + $0x20] sm:$0xff] %vm654, %v6430
    %6449 = vst.msk [vmem:[#allocation2 + $0x28] sm:$0xff] %vm654, %v6433
    %6450 = vst.msk [vmem:[#allocation2 + $0x30] sm:$0xff] %vm654, %v6438
    %6451 = vst.msk [vmem:[#allocation2 + $0x38] sm:$0xff] %vm654, %v6441
    %6452 = vset.pattern.permute.xlu0 1
    %6453 = vperm.xlu0 %6452, %v6161
    %v6454 = vpop.permute.xlu0 %6453
    %6456 = vset.pattern.permute.xlu0 1
    %6457 = vperm.xlu0 %6456, %v6164
    %v6458 = vpop.permute.xlu0 %6457
    %6460 = vset.pattern.permute.xlu0 1
    %6461 = vperm.xlu0 %6460, %v6169
    %v6462 = vpop.permute.xlu0 %6461
    %6464 = vset.pattern.permute.xlu0 1
    %6465 = vperm.xlu0 %6464, %v6172
    %v6466 = vpop.permute.xlu0 %6465
    %6468 = vset.pattern.permute.xlu0 1
    %6469 = vperm.xlu0 %6468, %v6177
    %v6470 = vpop.permute.xlu0 %6469
    %6472 = vset.pattern.permute.xlu0 1
    %6473 = vperm.xlu0 %6472, %v6180
    %v6474 = vpop.permute.xlu0 %6473
    %6476 = vset.pattern.permute.xlu0 1
    %6477 = vperm.xlu0 %6476, %v6185
    %v6478 = vpop.permute.xlu0 %6477
    %6480 = vset.pattern.permute.xlu0 1
    %6481 = vperm.xlu0 %6480, %v6188
    %v6482 = vpop.permute.xlu0 %6481
    %v6484 = vlaneseq
    %v6485 = vshrl.u32 %v6484, 7
    %v6486 = vsub.s32 1, %v6485
    %v6487 = vrot.slane %v6113, %v6486
    %v6488 = vadd.f32 %v6454, %v6487
    %v6489 = vadd.f32 %v6458, %v6487
    %v6490 = vadd.f32 %v6462, %v6487
    %v6491 = vadd.f32 %v6466, %v6487
    %v6492 = vadd.f32 %v6470, %v6487
    %v6493 = vadd.f32 %v6474, %v6487
    %v6494 = vadd.f32 %v6478, %v6487
    %v6495 = vadd.f32 %v6482, %v6487
    %vm6496 = vcmp.gt.f32.partialorder %v6488, 0.0
    %vm6497 = vcmp.gt.f32.partialorder %v6489, 0.0
    %vm6498 = vcmp.gt.f32.partialorder %v6490, 0.0
    %vm6499 = vcmp.gt.f32.partialorder %v6491, 0.0
    %vm6500 = vcmp.gt.f32.partialorder %v6492, 0.0
    %vm6501 = vcmp.gt.f32.partialorder %v6493, 0.0
    %vm6502 = vcmp.gt.f32.partialorder %v6494, 0.0
    %vm6503 = vcmp.gt.f32.partialorder %v6495, 0.0
    %v6504 = vmul.f32 %v6488, 0.2
    %v6505 = vmul.f32 %v6489, 0.2
    %v6506 = vmul.f32 %v6490, 0.2
    %v6507 = vmul.f32 %v6491, 0.2
    %v6508 = vmul.f32 %v6492, 0.2
    %v6509 = vmul.f32 %v6493, 0.2
    %v6510 = vmul.f32 %v6494, 0.2
    %v6511 = vmul.f32 %v6495, 0.2
    %v6512 = vsel %vm6496, %v6488, %v6504
    %v6513 = vsel %vm6497, %v6489, %v6505
    %v6514 = vsel %vm6498, %v6490, %v6506
    %v6515 = vsel %vm6499, %v6491, %v6507
    %v6516 = vsel %vm6500, %v6492, %v6508
    %v6517 = vsel %vm6501, %v6493, %v6509
    %v6518 = vsel %vm6502, %v6494, %v6510
    %v6519 = vsel %vm6503, %v6495, %v6511
    %v6520 = vadd.f32 %v6512, %v155
    %v6521 = vadd.f32 %v6513, %v156
    %v6522 = vadd.f32 %v6514, %v157
    %v6523 = vadd.f32 %v6515, %v158
    %v6524 = vadd.f32 %v6516, %v159
    %v6525 = vadd.f32 %v6517, %v160
    %v6526 = vadd.f32 %v6518, %v161
    %v6527 = vadd.f32 %v6519, %v162
    %v6528 = vsel %vm484, %v6520, -inf
    %6529 = vmax.xlane.f32.xlu0 %v6528
    %v6530 = vpop.xlane.xlu0 %6529
    %v6531 = vsel %vm484, %v6521, -inf
    %6532 = vmax.xlane.f32.xlu0 %v6531
    %v6533 = vpop.xlane.xlu0 %6532
    %v6534 = vsel %vm484, %v6522, -inf
    %6535 = vmax.xlane.f32.xlu0 %v6534
    %v6536 = vpop.xlane.xlu0 %6535
    %v6537 = vsel %vm484, %v6523, -inf
    %6538 = vmax.xlane.f32.xlu0 %v6537
    %v6539 = vpop.xlane.xlu0 %6538
    %v6540 = vsel %vm484, %v6524, -inf
    %6541 = vmax.xlane.f32.xlu0 %v6540
    %v6542 = vpop.xlane.xlu0 %6541
    %v6543 = vsel %vm484, %v6525, -inf
    %6544 = vmax.xlane.f32.xlu0 %v6543
    %v6545 = vpop.xlane.xlu0 %6544
    %v6546 = vsel %vm484, %v6526, -inf
    %6547 = vmax.xlane.f32.xlu0 %v6546
    %v6548 = vpop.xlane.xlu0 %6547
    %v6549 = vsel %vm484, %v6527, -inf
    %6550 = vmax.xlane.f32.xlu0 %v6549
    %v6551 = vpop.xlane.xlu0 %6550
    %v6552 = vsub.f32 %v6520, %v6530
    %v6553 = vsub.f32 %v6521, %v6533
    %v6554 = vsub.f32 %v6522, %v6536
    %v6555 = vsub.f32 %v6523, %v6539
    %v6556 = vsub.f32 %v6524, %v6542
    %v6557 = vsub.f32 %v6525, %v6545
    %v6558 = vsub.f32 %v6526, %v6548
    %v6559 = vsub.f32 %v6527, %v6551
    %v6560 = vmul.f32 %v6552, 1.442695
    %v6561 = vpow.pop %v6560
    %v6562 = vmul.f32 %v6553, 1.442695
    %v6563 = vpow.pop %v6562
    %v6564 = vmul.f32 %v6554, 1.442695
    %v6565 = vpow.pop %v6564
    %v6566 = vmul.f32 %v6555, 1.442695
    %v6567 = vpow.pop %v6566
    %v6568 = vmul.f32 %v6556, 1.442695
    %v6569 = vpow.pop %v6568
    %v6570 = vmul.f32 %v6557, 1.442695
    %v6571 = vpow.pop %v6570
    %v6572 = vmul.f32 %v6558, 1.442695
    %v6573 = vpow.pop %v6572
    %v6574 = vmul.f32 %v6559, 1.442695
    %v6575 = vpow.pop %v6574
    %v6576 = vsel %vm484, %v6561, 0.0
    %6577 = vadd.xlane.f32.xlu0 %v6576
    %v6578 = vpop.xlane.xlu0 %6577
    %v6579 = vsel %vm484, %v6563, 0.0
    %6580 = vadd.xlane.f32.xlu0 %v6579
    %v6581 = vpop.xlane.xlu0 %6580
    %v6582 = vsel %vm484, %v6565, 0.0
    %6583 = vadd.xlane.f32.xlu0 %v6582
    %v6584 = vpop.xlane.xlu0 %6583
    %v6585 = vsel %vm484, %v6567, 0.0
    %6586 = vadd.xlane.f32.xlu0 %v6585
    %v6587 = vpop.xlane.xlu0 %6586
    %v6588 = vsel %vm484, %v6569, 0.0
    %6589 = vadd.xlane.f32.xlu0 %v6588
    %v6590 = vpop.xlane.xlu0 %6589
    %v6591 = vsel %vm484, %v6571, 0.0
    %6592 = vadd.xlane.f32.xlu0 %v6591
    %v6593 = vpop.xlane.xlu0 %6592
    %v6594 = vsel %vm484, %v6573, 0.0
    %6595 = vadd.xlane.f32.xlu0 %v6594
    %v6596 = vpop.xlane.xlu0 %6595
    %v6597 = vsel %vm484, %v6575, 0.0
    %6598 = vadd.xlane.f32.xlu0 %v6597
    %v6599 = vpop.xlane.xlu0 %6598
    %v6600 = vrcp.pop %v6578
    %v6601 = vrcp.pop %v6581
    %v6602 = vrcp.pop %v6584
    %v6603 = vrcp.pop %v6587
    %v6604 = vrcp.pop %v6590
    %v6605 = vrcp.pop %v6593
    %v6606 = vrcp.pop %v6596
    %v6607 = vrcp.pop %v6599
    %v6608 = vmul.f32 %v6561, %v6600
    %v6609 = vmul.f32 %v6563, %v6601
    %v6610 = vmul.f32 %v6565, %v6602
    %v6611 = vmul.f32 %v6567, %v6603
    %v6612 = vmul.f32 %v6569, %v6604
    %v6613 = vmul.f32 %v6571, %v6605
    %v6614 = vmul.f32 %v6573, %v6606
    %v6615 = vmul.f32 %v6575, %v6607
    %v6616 = vpack.c.bf16 %v6609, %v6608
    %v6617 = vpack.c.bf16 %v6611, %v6610
    %v6618 = vpack.c.bf16 %v6613, %v6612
    %v6619 = vpack.c.bf16 %v6615, %v6614
    %6624 = vrot.lane.b32.xlu0 %v6073, 120
    %v6625 = vpop.permute.xlu0 %6624
    %6626 = vrot.lane.b32.xlu0 %v6074, 120
    %v6627 = vpop.permute.xlu0 %6626
    %6628 = vrot.lane.b32.xlu0 %v6075, 120
    %v6629 = vpop.permute.xlu0 %6628
    %6630 = vrot.lane.b32.xlu0 %v6076, 120
    %v6631 = vpop.permute.xlu0 %6630
    %v6637 = vsel %vm484, %v6616, 0
    %v6640 = vsel %vm484, %v6617, 0
    %v6643 = vsel %vm484, %v6618, 0
    %v6646 = vsel %vm484, %v6619, 0
    %6648 = vmatprep.subr.bf16.mxu0 0
    %6649 = vmatpush1.bf16.msra.mxu0 %v6625
    %6650 = vmatprep.subr.bf16.mxu0 0
    %6651 = vmatpush1.bf16.msra.mxu0 %v6627
    %6652 = vmatprep.subr.bf16.mxu0 0
    %6653 = vmatpush1.bf16.msra.mxu0 %v6629
    %6654 = vmatprep.subr.bf16.mxu0 0
    %6655 = vmatpush1.bf16.msra.mxu0 %v6631
    %6656 = vmatprep.subr.bf16.mxu0 0
    %6657 = vmatpush1.bf16.msra.mxu0 0
    %6658 = vmatprep.subr.bf16.mxu0 0
    %6659 = vmatpush1.bf16.msra.mxu0 0
    %6660 = vmatprep.subr.bf16.mxu0 0
    %6661 = vmatpush1.bf16.msra.mxu0 0
    %6662 = vmatprep.subr.bf16.mxu0 0
    %6663 = vmatpush1.bf16.msra.mxu0 0
    %6664 = vmatprep.subr.bf16.mxu0 0
    %6665 = vmatpush1.bf16.msra.mxu0 0
    %6666 = vmatprep.subr.bf16.mxu0 0
    %6667 = vmatpush1.bf16.msra.mxu0 0
    %6668 = vmatprep.subr.bf16.mxu0 0
    %6669 = vmatpush1.bf16.msra.mxu0 0
    %6670 = vmatprep.subr.bf16.mxu0 0
    %6671 = vmatpush1.bf16.msra.mxu0 0
    %6672 = vmatprep.subr.bf16.mxu0 0
    %6673 = vmatpush1.bf16.msra.mxu0 0
    %6674 = vmatprep.subr.bf16.mxu0 0
    %6675 = vmatpush1.bf16.msra.mxu0 0
    %6676 = vmatprep.subr.bf16.mxu0 0
    %6677 = vmatpush1.bf16.msra.mxu0 0
    %6678 = vmatprep.subr.bf16.mxu0 0
    %6679 = vmatpush1.bf16.msra.mxu0 0
    %6680 = vmatprep.mubr.bf16.mxu0 0
    %6681 = vmatmul.mubr.bf16.gmra.mrb[0].mxu0 %v6637
    %v6682 = vpop.f32.mrb[0].mxu0
    %v6683 = vadd.f32 0.0, %v6682
    %v6684 = vpop.f32.mrb[0].mxu0
    %v6685 = vpop.f32.mrb[0].mxu0
    %v6686 = vadd.f32 0.0, %v6685
    %v6687 = vpop.f32.mrb[0].mxu0
    %6688 = vmatprep.mubr.bf16.mxu0 0
    %6689 = vmatmul.mubr.bf16.gmra.mrb[0].mxu0 %v6640
    %v6690 = vpop.f32.mrb[0].mxu0
    %v6691 = vadd.f32 0.0, %v6690
    %v6692 = vpop.f32.mrb[0].mxu0
    %v6693 = vpop.f32.mrb[0].mxu0
    %v6694 = vadd.f32 0.0, %v6693
    %v6695 = vpop.f32.mrb[0].mxu0
    %6696 = vmatprep.mubr.bf16.mxu0 0
    %6697 = vmatmul.mubr.bf16.gmra.mrb[0].mxu0 %v6643
    %v6698 = vpop.f32.mrb[0].mxu0
    %v6699 = vadd.f32 0.0, %v6698
    %v6700 = vpop.f32.mrb[0].mxu0
    %v6701 = vpop.f32.mrb[0].mxu0
    %v6702 = vadd.f32 0.0, %v6701
    %v6703 = vpop.f32.mrb[0].mxu0
    %6704 = vmatprep.mubr.bf16.mxu0 0
    %6705 = vmatmul.mubr.bf16.gmra.mrb[0].mxu0 %v6646
    %v6706 = vpop.f32.mrb[0].mxu0
    %v6707 = vadd.f32 0.0, %v6706
    %v6708 = vpop.f32.mrb[0].mxu0
    %v6709 = vpop.f32.mrb[0].mxu0
    %v6710 = vadd.f32 0.0, %v6709
    %v6711 = vpop.f32.mrb[0].mxu0
    %6712 = vdwg.mxu0
    %6721 = vrot.lane.b32.xlu0 %v6683, 8
    %v6722 = vpop.permute.xlu0 %6721
    %6723 = vrot.lane.b32.xlu0 %v6686, 8
    %v6724 = vpop.permute.xlu0 %6723
    %6725 = vrot.lane.b32.xlu0 %v6691, 8
    %v6726 = vpop.permute.xlu0 %6725
    %6727 = vrot.lane.b32.xlu0 %v6694, 8
    %v6728 = vpop.permute.xlu0 %6727
    %6729 = vrot.lane.b32.xlu0 %v6699, 8
    %v6730 = vpop.permute.xlu0 %6729
    %6731 = vrot.lane.b32.xlu0 %v6702, 8
    %v6732 = vpop.permute.xlu0 %6731
    %6733 = vrot.lane.b32.xlu0 %v6707, 8
    %v6734 = vpop.permute.xlu0 %6733
    %6735 = vrot.lane.b32.xlu0 %v6710, 8
    %v6736 = vpop.permute.xlu0 %6735
    %6745 = vst.msk [vmem:[#allocation2] sm:$0xff] %vm956, %v6722
    %6746 = vst.msk [vmem:[#allocation2 + $0x8] sm:$0xff] %vm956, %v6724
    %6747 = vst.msk [vmem:[#allocation2 + $0x10] sm:$0xff] %vm956, %v6726
    %6748 = vst.msk [vmem:[#allocation2 + $0x18] sm:$0xff] %vm956, %v6728
    %6749 = vst.msk [vmem:[#allocation2 + $0x20] sm:$0xff] %vm956, %v6730
    %6750 = vst.msk [vmem:[#allocation2 + $0x28] sm:$0xff] %vm956, %v6732
    %6751 = vst.msk [vmem:[#allocation2 + $0x30] sm:$0xff] %vm956, %v6734
    %6752 = vst.msk [vmem:[#allocation2 + $0x38] sm:$0xff] %vm956, %v6736
    %6753 = vset.pattern.permute.xlu0 2
    %6754 = vperm.xlu0 %6753, %v6161
    %v6755 = vpop.permute.xlu0 %6754
    %6757 = vset.pattern.permute.xlu0 2
    %6758 = vperm.xlu0 %6757, %v6164
    %v6759 = vpop.permute.xlu0 %6758
    %6761 = vset.pattern.permute.xlu0 2
    %6762 = vperm.xlu0 %6761, %v6169
    %v6763 = vpop.permute.xlu0 %6762
    %6765 = vset.pattern.permute.xlu0 2
    %6766 = vperm.xlu0 %6765, %v6172
    %v6767 = vpop.permute.xlu0 %6766
    %6769 = vset.pattern.permute.xlu0 2
    %6770 = vperm.xlu0 %6769, %v6177
    %v6771 = vpop.permute.xlu0 %6770
    %6773 = vset.pattern.permute.xlu0 2
    %6774 = vperm.xlu0 %6773, %v6180
    %v6775 = vpop.permute.xlu0 %6774
    %6777 = vset.pattern.permute.xlu0 2
    %6778 = vperm.xlu0 %6777, %v6185
    %v6779 = vpop.permute.xlu0 %6778
    %6781 = vset.pattern.permute.xlu0 2
    %6782 = vperm.xlu0 %6781, %v6188
    %v6783 = vpop.permute.xlu0 %6782
    %v6785 = vlaneseq
    %v6786 = vshrl.u32 %v6785, 7
    %v6787 = vsub.s32 2, %v6786
    %v6788 = vrot.slane %v6113, %v6787
    %v6789 = vadd.f32 %v6755, %v6788
    %v6790 = vadd.f32 %v6759, %v6788
    %v6791 = vadd.f32 %v6763, %v6788
    %v6792 = vadd.f32 %v6767, %v6788
    %v6793 = vadd.f32 %v6771, %v6788
    %v6794 = vadd.f32 %v6775, %v6788
    %v6795 = vadd.f32 %v6779, %v6788
    %v6796 = vadd.f32 %v6783, %v6788
    %vm6797 = vcmp.gt.f32.partialorder %v6789, 0.0
    %vm6798 = vcmp.gt.f32.partialorder %v6790, 0.0
    %vm6799 = vcmp.gt.f32.partialorder %v6791, 0.0
    %vm6800 = vcmp.gt.f32.partialorder %v6792, 0.0
    %vm6801 = vcmp.gt.f32.partialorder %v6793, 0.0
    %vm6802 = vcmp.gt.f32.partialorder %v6794, 0.0
    %vm6803 = vcmp.gt.f32.partialorder %v6795, 0.0
    %vm6804 = vcmp.gt.f32.partialorder %v6796, 0.0
    %v6805 = vmul.f32 %v6789, 0.2
    %v6806 = vmul.f32 %v6790, 0.2
    %v6807 = vmul.f32 %v6791, 0.2
    %v6808 = vmul.f32 %v6792, 0.2
    %v6809 = vmul.f32 %v6793, 0.2
    %v6810 = vmul.f32 %v6794, 0.2
    %v6811 = vmul.f32 %v6795, 0.2
    %v6812 = vmul.f32 %v6796, 0.2
    %v6813 = vsel %vm6797, %v6789, %v6805
    %v6814 = vsel %vm6798, %v6790, %v6806
    %v6815 = vsel %vm6799, %v6791, %v6807
    %v6816 = vsel %vm6800, %v6792, %v6808
    %v6817 = vsel %vm6801, %v6793, %v6809
    %v6818 = vsel %vm6802, %v6794, %v6810
    %v6819 = vsel %vm6803, %v6795, %v6811
    %v6820 = vsel %vm6804, %v6796, %v6812
    %v6821 = vadd.f32 %v6813, %v155
    %v6822 = vadd.f32 %v6814, %v156
    %v6823 = vadd.f32 %v6815, %v157
    %v6824 = vadd.f32 %v6816, %v158
    %v6825 = vadd.f32 %v6817, %v159
    %v6826 = vadd.f32 %v6818, %v160
    %v6827 = vadd.f32 %v6819, %v161
    %v6828 = vadd.f32 %v6820, %v162
    %v6829 = vsel %vm484, %v6821, -inf
    %6830 = vmax.xlane.f32.xlu0 %v6829
    %v6831 = vpop.xlane.xlu0 %6830
    %v6832 = vsel %vm484, %v6822, -inf
    %6833 = vmax.xlane.f32.xlu0 %v6832
    %v6834 = vpop.xlane.xlu0 %6833
    %v6835 = vsel %vm484, %v6823, -inf
    %6836 = vmax.xlane.f32.xlu0 %v6835
    %v6837 = vpop.xlane.xlu0 %6836
    %v6838 = vsel %vm484, %v6824, -inf
    %6839 = vmax.xlane.f32.xlu0 %v6838
    %v6840 = vpop.xlane.xlu0 %6839
    %v6841 = vsel %vm484, %v6825, -inf
    %6842 = vmax.xlane.f32.xlu0 %v6841
    %v6843 = vpop.xlane.xlu0 %6842
    %v6844 = vsel %vm484, %v6826, -inf
    %6845 = vmax.xlane.f32.xlu0 %v6844
    %v6846 = vpop.xlane.xlu0 %6845
    %v6847 = vsel %vm484, %v6827, -inf
    %6848 = vmax.xlane.f32.xlu0 %v6847
    %v6849 = vpop.xlane.xlu0 %6848
    %v6850 = vsel %vm484, %v6828, -inf
    %6851 = vmax.xlane.f32.xlu0 %v6850
    %v6852 = vpop.xlane.xlu0 %6851
    %v6853 = vsub.f32 %v6821, %v6831
    %v6854 = vsub.f32 %v6822, %v6834
    %v6855 = vsub.f32 %v6823, %v6837
    %v6856 = vsub.f32 %v6824, %v6840
    %v6857 = vsub.f32 %v6825, %v6843
    %v6858 = vsub.f32 %v6826, %v6846
    %v6859 = vsub.f32 %v6827, %v6849
    %v6860 = vsub.f32 %v6828, %v6852
    %v6861 = vmul.f32 %v6853, 1.442695
    %v6862 = vpow.pop %v6861
    %v6863 = vmul.f32 %v6854, 1.442695
    %v6864 = vpow.pop %v6863
    %v6865 = vmul.f32 %v6855, 1.442695
    %v6866 = vpow.pop %v6865
    %v6867 = vmul.f32 %v6856, 1.442695
    %v6868 = vpow.pop %v6867
    %v6869 = vmul.f32 %v6857, 1.442695
    %v6870 = vpow.pop %v6869
    %v6871 = vmul.f32 %v6858, 1.442695
    %v6872 = vpow.pop %v6871
    %v6873 = vmul.f32 %v6859, 1.442695
    %v6874 = vpow.pop %v6873
    %v6875 = vmul.f32 %v6860, 1.442695
    %v6876 = vpow.pop %v6875
    %v6877 = vsel %vm484, %v6862, 0.0
    %6878 = vadd.xlane.f32.xlu0 %v6877
    %v6879 = vpop.xlane.xlu0 %6878
    %v6880 = vsel %vm484, %v6864, 0.0
    %6881 = vadd.xlane.f32.xlu0 %v6880
    %v6882 = vpop.xlane.xlu0 %6881
    %v6883 = vsel %vm484, %v6866, 0.0
    %6884 = vadd.xlane.f32.xlu0 %v6883
    %v6885 = vpop.xlane.xlu0 %6884
    %v6886 = vsel %vm484, %v6868, 0.0
    %6887 = vadd.xlane.f32.xlu0 %v6886
    %v6888 = vpop.xlane.xlu0 %6887
    %v6889 = vsel %vm484, %v6870, 0.0
    %6890 = vadd.xlane.f32.xlu0 %v6889
    %v6891 = vpop.xlane.xlu0 %6890
    %v6892 = vsel %vm484, %v6872, 0.0
    %6893 = vadd.xlane.f32.xlu0 %v6892
    %v6894 = vpop.xlane.xlu0 %6893
    %v6895 = vsel %vm484, %v6874, 0.0
    %6896 = vadd.xlane.f32.xlu0 %v6895
    %v6897 = vpop.xlane.xlu0 %6896
    %v6898 = vsel %vm484, %v6876, 0.0
    %6899 = vadd.xlane.f32.xlu0 %v6898
    %v6900 = vpop.xlane.xlu0 %6899
    %v6901 = vrcp.pop %v6879
    %v6902 = vrcp.pop %v6882
    %v6903 = vrcp.pop %v6885
    %v6904 = vrcp.pop %v6888
    %v6905 = vrcp.pop %v6891
    %v6906 = vrcp.pop %v6894
    %v6907 = vrcp.pop %v6897
    %v6908 = vrcp.pop %v6900
    %v6909 = vmul.f32 %v6862, %v6901
    %v6910 = vmul.f32 %v6864, %v6902
    %v6911 = vmul.f32 %v6866, %v6903
    %v6912 = vmul.f32 %v6868, %v6904
    %v6913 = vmul.f32 %v6870, %v6905
    %v6914 = vmul.f32 %v6872, %v6906
    %v6915 = vmul.f32 %v6874, %v6907
    %v6916 = vmul.f32 %v6876, %v6908
    %v6917 = vpack.c.bf16 %v6910, %v6909
    %v6918 = vpack.c.bf16 %v6912, %v6911
    %v6919 = vpack.c.bf16 %v6914, %v6913
    %v6920 = vpack.c.bf16 %v6916, %v6915
    %6921 = vrot.lane.b32.xlu0 %v6073, 112
    %v6922 = vpop.permute.xlu0 %6921
    %6923 = vrot.lane.b32.xlu0 %v6074, 112
    %v6924 = vpop.permute.xlu0 %6923
    %6925 = vrot.lane.b32.xlu0 %v6075, 112
    %v6926 = vpop.permute.xlu0 %6925
    %6927 = vrot.lane.b32.xlu0 %v6076, 112
    %v6928 = vpop.permute.xlu0 %6927
    %v6934 = vsel %vm484, %v6917, 0
    %v6937 = vsel %vm484, %v6918, 0
    %v6940 = vsel %vm484, %v6919, 0
    %v6943 = vsel %vm484, %v6920, 0
    %6945 = vmatprep.subr.bf16.mxu0 0
    %6946 = vmatpush1.bf16.msra.mxu0 %v6922
    %6947 = vmatprep.subr.bf16.mxu0 0
    %6948 = vmatpush1.bf16.msra.mxu0 %v6924
    %6949 = vmatprep.subr.bf16.mxu0 0
    %6950 = vmatpush1.bf16.msra.mxu0 %v6926
    %6951 = vmatprep.subr.bf16.mxu0 0
    %6952 = vmatpush1.bf16.msra.mxu0 %v6928
    %6953 = vmatprep.subr.bf16.mxu0 0
    %6954 = vmatpush1.bf16.msra.mxu0 0
    %6955 = vmatprep.subr.bf16.mxu0 0
    %6956 = vmatpush1.bf16.msra.mxu0 0
    %6957 = vmatprep.subr.bf16.mxu0 0
    %6958 = vmatpush1.bf16.msra.mxu0 0
    %6959 = vmatprep.subr.bf16.mxu0 0
    %6960 = vmatpush1.bf16.msra.mxu0 0
    %6961 = vmatprep.subr.bf16.mxu0 0
    %6962 = vmatpush1.bf16.msra.mxu0 0
    %6963 = vmatprep.subr.bf16.mxu0 0
    %6964 = vmatpush1.bf16.msra.mxu0 0
    %6965 = vmatprep.subr.bf16.mxu0 0
    %6966 = vmatpush1.bf16.msra.mxu0 0
    %6967 = vmatprep.subr.bf16.mxu0 0
    %6968 = vmatpush1.bf16.msra.mxu0 0
    %6969 = vmatprep.subr.bf16.mxu0 0
    %6970 = vmatpush1.bf16.msra.mxu0 0
    %6971 = vmatprep.subr.bf16.mxu0 0
    %6972 = vmatpush1.bf16.msra.mxu0 0
    %6973 = vmatprep.subr.bf16.mxu0 0
    %6974 = vmatpush1.bf16.msra.mxu0 0
    %6975 = vmatprep.subr.bf16.mxu0 0
    %6976 = vmatpush1.bf16.msra.mxu0 0
    %6977 = vmatprep.mubr.bf16.mxu0 0
    %6978 = vmatmul.mubr.bf16.gmra.mrb[0].mxu0 %v6934
    %v6979 = vpop.f32.mrb[0].mxu0
    %v6980 = vadd.f32 0.0, %v6979
    %v6981 = vpop.f32.mrb[0].mxu0
    %v6982 = vpop.f32.mrb[0].mxu0
    %v6983 = vadd.f32 0.0, %v6982
    %v6984 = vpop.f32.mrb[0].mxu0
    %6985 = vmatprep.mubr.bf16.mxu0 0
    %6986 = vmatmul.mubr.bf16.gmra.mrb[0].mxu0 %v6937
    %v6987 = vpop.f32.mrb[0].mxu0
    %v6988 = vadd.f32 0.0, %v6987
    %v6989 = vpop.f32.mrb[0].mxu0
    %v6990 = vpop.f32.mrb[0].mxu0
    %v6991 = vadd.f32 0.0, %v6990
    %v6992 = vpop.f32.mrb[0].mxu0
    %6993 = vmatprep.mubr.bf16.mxu0 0
    %6994 = vmatmul.mubr.bf16.gmra.mrb[0].mxu0 %v6940
    %v6995 = vpop.f32.mrb[0].mxu0
    %v6996 = vadd.f32 0.0, %v6995
    %v6997 = vpop.f32.mrb[0].mxu0
    %v6998 = vpop.f32.mrb[0].mxu0
    %v6999 = vadd.f32 0.0, %v6998
    %v7000 = vpop.f32.mrb[0].mxu0
    %7001 = vmatprep.mubr.bf16.mxu0 0
    %7002 = vmatmul.mubr.bf16.gmra.mrb[0].mxu0 %v6943
    %v7003 = vpop.f32.mrb[0].mxu0
    %v7004 = vadd.f32 0.0, %v7003
    %v7005 = vpop.f32.mrb[0].mxu0
    %v7006 = vpop.f32.mrb[0].mxu0
    %v7007 = vadd.f32 0.0, %v7006
    %v7008 = vpop.f32.mrb[0].mxu0
    %7009 = vdwg.mxu0
    %7018 = vrot.lane.b32.xlu0 %v6980, 16
    %v7019 = vpop.permute.xlu0 %7018
    %7020 = vrot.lane.b32.xlu0 %v6983, 16
    %v7021 = vpop.permute.xlu0 %7020
    %7022 = vrot.lane.b32.xlu0 %v6988, 16
    %v7023 = vpop.permute.xlu0 %7022
    %7024 = vrot.lane.b32.xlu0 %v6991, 16
    %v7025 = vpop.permute.xlu0 %7024
    %7026 = vrot.lane.b32.xlu0 %v6996, 16
    %v7027 = vpop.permute.xlu0 %7026
    %7028 = vrot.lane.b32.xlu0 %v6999, 16
    %v7029 = vpop.permute.xlu0 %7028
    %7030 = vrot.lane.b32.xlu0 %v7004, 16
    %v7031 = vpop.permute.xlu0 %7030
    %7032 = vrot.lane.b32.xlu0 %v7007, 16
    %v7033 = vpop.permute.xlu0 %7032
    %7042 = vst.msk [vmem:[#allocation2] sm:$0xff] %vm1254, %v7019
    %7043 = vst.msk [vmem:[#allocation2 + $0x8] sm:$0xff] %vm1254, %v7021
    %7044 = vst.msk [vmem:[#allocation2 + $0x10] sm:$0xff] %vm1254, %v7023
    %7045 = vst.msk [vmem:[#allocation2 + $0x18] sm:$0xff] %vm1254, %v7025
    %7046 = vst.msk [vmem:[#allocation2 + $0x20] sm:$0xff] %vm1254, %v7027
    %7047 = vst.msk [vmem:[#allocation2 + $0x28] sm:$0xff] %vm1254, %v7029
    %7048 = vst.msk [vmem:[#allocation2 + $0x30] sm:$0xff] %vm1254, %v7031
    %7049 = vst.msk [vmem:[#allocation2 + $0x38] sm:$0xff] %vm1254, %v7033
    %7050 = vset.pattern.permute.xlu0 3
    %7051 = vperm.xlu0 %7050, %v6161
    %v7052 = vpop.permute.xlu0 %7051
    %7054 = vset.pattern.permute.xlu0 3
    %7055 = vperm.xlu0 %7054, %v6164
    %v7056 = vpop.permute.xlu0 %7055
    %7058 = vset.pattern.permute.xlu0 3
    %7059 = vperm.xlu0 %7058, %v6169
    %v7060 = vpop.permute.xlu0 %7059
    %7062 = vset.pattern.permute.xlu0 3
    %7063 = vperm.xlu0 %7062, %v6172
    %v7064 = vpop.permute.xlu0 %7063
    %7066 = vset.pattern.permute.xlu0 3
    %7067 = vperm.xlu0 %7066, %v6177
    %v7068 = vpop.permute.xlu0 %7067
    %7070 = vset.pattern.permute.xlu0 3
    %7071 = vperm.xlu0 %7070, %v6180
    %v7072 = vpop.permute.xlu0 %7071
    %7074 = vset.pattern.permute.xlu0 3
    %7075 = vperm.xlu0 %7074, %v6185
    %v7076 = vpop.permute.xlu0 %7075
    %7078 = vset.pattern.permute.xlu0 3
    %7079 = vperm.xlu0 %7078, %v6188
    %v7080 = vpop.permute.xlu0 %7079
    %v7082 = vlaneseq
    %v7083 = vshrl.u32 %v7082, 7
    %v7084 = vsub.s32 3, %v7083
    %v7085 = vrot.slane %v6113, %v7084
    %v7086 = vadd.f32 %v7052, %v7085
    %v7087 = vadd.f32 %v7056, %v7085
    %v7088 = vadd.f32 %v7060, %v7085
    %v7089 = vadd.f32 %v7064, %v7085
    %v7090 = vadd.f32 %v7068, %v7085
    %v7091 = vadd.f32 %v7072, %v7085
    %v7092 = vadd.f32 %v7076, %v7085
    %v7093 = vadd.f32 %v7080, %v7085
    %vm7094 = vcmp.gt.f32.partialorder %v7086, 0.0
    %vm7095 = vcmp.gt.f32.partialorder %v7087, 0.0
    %vm7096 = vcmp.gt.f32.partialorder %v7088, 0.0
    %vm7097 = vcmp.gt.f32.partialorder %v7089, 0.0
    %vm7098 = vcmp.gt.f32.partialorder %v7090, 0.0
    %vm7099 = vcmp.gt.f32.partialorder %v7091, 0.0
    %vm7100 = vcmp.gt.f32.partialorder %v7092, 0.0
    %vm7101 = vcmp.gt.f32.partialorder %v7093, 0.0
    %v7102 = vmul.f32 %v7086, 0.2
    %v7103 = vmul.f32 %v7087, 0.2
    %v7104 = vmul.f32 %v7088, 0.2
    %v7105 = vmul.f32 %v7089, 0.2
    %v7106 = vmul.f32 %v7090, 0.2
    %v7107 = vmul.f32 %v7091, 0.2
    %v7108 = vmul.f32 %v7092, 0.2
    %v7109 = vmul.f32 %v7093, 0.2
    %v7110 = vsel %vm7094, %v7086, %v7102
    %v7111 = vsel %vm7095, %v7087, %v7103
    %v7112 = vsel %vm7096, %v7088, %v7104
    %v7113 = vsel %vm7097, %v7089, %v7105
    %v7114 = vsel %vm7098, %v7090, %v7106
    %v7115 = vsel %vm7099, %v7091, %v7107
    %v7116 = vsel %vm7100, %v7092, %v7108
    %v7117 = vsel %vm7101, %v7093, %v7109
    %v7118 = vadd.f32 %v7110, %v155
    %v7119 = vadd.f32 %v7111, %v156
    %v7120 = vadd.f32 %v7112, %v157
    %v7121 = vadd.f32 %v7113, %v158
    %v7122 = vadd.f32 %v7114, %v159
    %v7123 = vadd.f32 %v7115, %v160
    %v7124 = vadd.f32 %v7116, %v161
    %v7125 = vadd.f32 %v7117, %v162
    %v7126 = vsel %vm484, %v7118, -inf
    %7127 = vmax.xlane.f32.xlu0 %v7126
    %v7128 = vpop.xlane.xlu0 %7127
    %v7129 = vsel %vm484, %v7119, -inf
    %7130 = vmax.xlane.f32.xlu0 %v7129
    %v7131 = vpop.xlane.xlu0 %7130
    %v7132 = vsel %vm484, %v7120, -inf
    %7133 = vmax.xlane.f32.xlu0 %v7132
    %v7134 = vpop.xlane.xlu0 %7133
    %v7135 = vsel %vm484, %v7121, -inf
    %7136 = vmax.xlane.f32.xlu0 %v7135
    %v7137 = vpop.xlane.xlu0 %7136
    %v7138 = vsel %vm484, %v7122, -inf
    %7139 = vmax.xlane.f32.xlu0 %v7138
    %v7140 = vpop.xlane.xlu0 %7139
    %v7141 = vsel %vm484, %v7123, -inf
    %7142 = vmax.xlane.f32.xlu0 %v7141
    %v7143 = vpop.xlane.xlu0 %7142
    %v7144 = vsel %vm484, %v7124, -inf
    %7145 = vmax.xlane.f32.xlu0 %v7144
    %v7146 = vpop.xlane.xlu0 %7145
    %v7147 = vsel %vm484, %v7125, -inf
    %7148 = vmax.xlane.f32.xlu0 %v7147
    %v7149 = vpop.xlane.xlu0 %7148
    %v7150 = vsub.f32 %v7118, %v7128
    %v7151 = vsub.f32 %v7119, %v7131
    %v7152 = vsub.f32 %v7120, %v7134
    %v7153 = vsub.f32 %v7121, %v7137
    %v7154 = vsub.f32 %v7122, %v7140
    %v7155 = vsub.f32 %v7123, %v7143
    %v7156 = vsub.f32 %v7124, %v7146
    %v7157 = vsub.f32 %v7125, %v7149
    %v7158 = vmul.f32 %v7150, 1.442695
    %v7159 = vpow.pop %v7158
    %v7160 = vmul.f32 %v7151, 1.442695
    %v7161 = vpow.pop %v7160
    %v7162 = vmul.f32 %v7152, 1.442695
    %v7163 = vpow.pop %v7162
    %v7164 = vmul.f32 %v7153, 1.442695
    %v7165 = vpow.pop %v7164
    %v7166 = vmul.f32 %v7154, 1.442695
    %v7167 = vpow.pop %v7166
    %v7168 = vmul.f32 %v7155, 1.442695
    %v7169 = vpow.pop %v7168
    %v7170 = vmul.f32 %v7156, 1.442695
    %v7171 = vpow.pop %v7170
    %v7172 = vmul.f32 %v7157, 1.442695
    %v7173 = vpow.pop %v7172
    %v7174 = vsel %vm484, %v7159, 0.0
    %7175 = vadd.xlane.f32.xlu0 %v7174
    %v7176 = vpop.xlane.xlu0 %7175
    %v7177 = vsel %vm484, %v7161, 0.0
    %7178 = vadd.xlane.f32.xlu0 %v7177
    %v7179 = vpop.xlane.xlu0 %7178
    %v7180 = vsel %vm484, %v7163, 0.0
    %7181 = vadd.xlane.f32.xlu0 %v7180
    %v7182 = vpop.xlane.xlu0 %7181
    %v7183 = vsel %vm484, %v7165, 0.0
    %7184 = vadd.xlane.f32.xlu0 %v7183
    %v7185 = vpop.xlane.xlu0 %7184
    %v7186 = vsel %vm484, %v7167, 0.0
    %7187 = vadd.xlane.f32.xlu0 %v7186
    %v7188 = vpop.xlane.xlu0 %7187
    %v7189 = vsel %vm484, %v7169, 0.0
    %7190 = vadd.xlane.f32.xlu0 %v7189
    %v7191 = vpop.xlane.xlu0 %7190
    %v7192 = vsel %vm484, %v7171, 0.0
    %7193 = vadd.xlane.f32.xlu0 %v7192
    %v7194 = vpop.xlane.xlu0 %7193
    %v7195 = vsel %vm484, %v7173, 0.0
    %7196 = vadd.xlane.f32.xlu0 %v7195
    %v7197 = vpop.xlane.xlu0 %7196
    %v7198 = vrcp.pop %v7176
    %v7199 = vrcp.pop %v7179
    %v7200 = vrcp.pop %v7182
    %v7201 = vrcp.pop %v7185
    %v7202 = vrcp.pop %v7188
    %v7203 = vrcp.pop %v7191
    %v7204 = vrcp.pop %v7194
    %v7205 = vrcp.pop %v7197
    %v7206 = vmul.f32 %v7159, %v7198
    %v7207 = vmul.f32 %v7161, %v7199
    %v7208 = vmul.f32 %v7163, %v7200
    %v7209 = vmul.f32 %v7165, %v7201
    %v7210 = vmul.f32 %v7167, %v7202
    %v7211 = vmul.f32 %v7169, %v7203
    %v7212 = vmul.f32 %v7171, %v7204
    %v7213 = vmul.f32 %v7173, %v7205
    %v7214 = vpack.c.bf16 %v7207, %v7206
    %v7215 = vpack.c.bf16 %v7209, %v7208
    %v7216 = vpack.c.bf16 %v7211, %v7210
    %v7217 = vpack.c.bf16 %v7213, %v7212
    %7218 = vrot.lane.b32.xlu0 %v6073, 104
    %v7219 = vpop.permute.xlu0 %7218
    %7220 = vrot.lane.b32.xlu0 %v6074, 104
    %v7221 = vpop.permute.xlu0 %7220
    %7222 = vrot.lane.b32.xlu0 %v6075, 104
    %v7223 = vpop.permute.xlu0 %7222
    %7224 = vrot.lane.b32.xlu0 %v6076, 104
    %v7225 = vpop.permute.xlu0 %7224
    %v7231 = vsel %vm484, %v7214, 0
    %v7234 = vsel %vm484, %v7215, 0
    %v7237 = vsel %vm484, %v7216, 0
    %v7240 = vsel %vm484, %v7217, 0
    %7242 = vmatprep.subr.bf16.mxu0 0
    %7243 = vmatpush1.bf16.msra.mxu0 %v7219
    %7244 = vmatprep.subr.bf16.mxu0 0
    %7245 = vmatpush1.bf16.msra.mxu0 %v7221
    %7246 = vmatprep.subr.bf16.mxu0 0
    %7247 = vmatpush1.bf16.msra.mxu0 %v7223
    %7248 = vmatprep.subr.bf16.mxu0 0
    %7249 = vmatpush1.bf16.msra.mxu0 %v7225
    %7250 = vmatprep.subr.bf16.mxu0 0
    %7251 = vmatpush1.bf16.msra.mxu0 0
    %7252 = vmatprep.subr.bf16.mxu0 0
    %7253 = vmatpush1.bf16.msra.mxu0 0
    %7254 = vmatprep.subr.bf16.mxu0 0
    %7255 = vmatpush1.bf16.msra.mxu0 0
    %7256 = vmatprep.subr.bf16.mxu0 0
    %7257 = vmatpush1.bf16.msra.mxu0 0
    %7258 = vmatprep.subr.bf16.mxu0 0
    %7259 = vmatpush1.bf16.msra.mxu0 0
    %7260 = vmatprep.subr.bf16.mxu0 0
    %7261 = vmatpush1.bf16.msra.mxu0 0
    %7262 = vmatprep.subr.bf16.mxu0 0
    %7263 = vmatpush1.bf16.msra.mxu0 0
    %7264 = vmatprep.subr.bf16.mxu0 0
    %7265 = vmatpush1.bf16.msra.mxu0 0
    %7266 = vmatprep.subr.bf16.mxu0 0
    %7267 = vmatpush1.bf16.msra.mxu0 0
    %7268 = vmatprep.subr.bf16.mxu0 0
    %7269 = vmatpush1.bf16.msra.mxu0 0
    %7270 = vmatprep.subr.bf16.mxu0 0
    %7271 = vmatpush1.bf16.msra.mxu0 0
    %7272 = vmatprep.subr.bf16.mxu0 0
    %7273 = vmatpush1.bf16.msra.mxu0 0
    %7274 = vmatprep.mubr.bf16.mxu0 0
    %7275 = vmatmul.mubr.bf16.gmra.mrb[0].mxu0 %v7231
    %v7276 = vpop.f32.mrb[0].mxu0
    %v7277 = vadd.f32 0.0, %v7276
    %v7278 = vpop.f32.mrb[0].mxu0
    %v7279 = vpop.f32.mrb[0].mxu0
    %v7280 = vadd.f32 0.0, %v7279
    %v7281 = vpop.f32.mrb[0].mxu0
    %7282 = vmatprep.mubr.bf16.mxu0 0
    %7283 = vmatmul.mubr.bf16.gmra.mrb[0].mxu0 %v7234
    %v7284 = vpop.f32.mrb[0].mxu0
    %v7285 = vadd.f32 0.0, %v7284
    %v7286 = vpop.f32.mrb[0].mxu0
    %v7287 = vpop.f32.mrb[0].mxu0
    %v7288 = vadd.f32 0.0, %v7287
    %v7289 = vpop.f32.mrb[0].mxu0
    %7290 = vmatprep.mubr.bf16.mxu0 0
    %7291 = vmatmul.mubr.bf16.gmra.mrb[0].mxu0 %v7237
    %v7292 = vpop.f32.mrb[0].mxu0
    %v7293 = vadd.f32 0.0, %v7292
    %v7294 = vpop.f32.mrb[0].mxu0
    %v7295 = vpop.f32.mrb[0].mxu0
    %v7296 = vadd.f32 0.0, %v7295
    %v7297 = vpop.f32.mrb[0].mxu0
    %7298 = vmatprep.mubr.bf16.mxu0 0
    %7299 = vmatmul.mubr.bf16.gmra.mrb[0].mxu0 %v7240
    %v7300 = vpop.f32.mrb[0].mxu0
    %v7301 = vadd.f32 0.0, %v7300
    %v7302 = vpop.f32.mrb[0].mxu0
    %v7303 = vpop.f32.mrb[0].mxu0
    %v7304 = vadd.f32 0.0, %v7303
    %v7305 = vpop.f32.mrb[0].mxu0
    %7306 = vdwg.mxu0
    %7315 = vrot.lane.b32.xlu0 %v7277, 24
    %v7316 = vpop.permute.xlu0 %7315
    %7317 = vrot.lane.b32.xlu0 %v7280, 24
    %v7318 = vpop.permute.xlu0 %7317
    %7319 = vrot.lane.b32.xlu0 %v7285, 24
    %v7320 = vpop.permute.xlu0 %7319
    %7321 = vrot.lane.b32.xlu0 %v7288, 24
    %v7322 = vpop.permute.xlu0 %7321
    %7323 = vrot.lane.b32.xlu0 %v7293, 24
    %v7324 = vpop.permute.xlu0 %7323
    %7325 = vrot.lane.b32.xlu0 %v7296, 24
    %v7326 = vpop.permute.xlu0 %7325
    %7327 = vrot.lane.b32.xlu0 %v7301, 24
    %v7328 = vpop.permute.xlu0 %7327
    %7329 = vrot.lane.b32.xlu0 %v7304, 24
    %v7330 = vpop.permute.xlu0 %7329
    %7339 = vst.msk [vmem:[#allocation2] sm:$0xff] %vm1552, %v7316
    %7340 = vst.msk [vmem:[#allocation2 + $0x8] sm:$0xff] %vm1552, %v7318
    %7341 = vst.msk [vmem:[#allocation2 + $0x10] sm:$0xff] %vm1552, %v7320
    %7342 = vst.msk [vmem:[#allocation2 + $0x18] sm:$0xff] %vm1552, %v7322
    %7343 = vst.msk [vmem:[#allocation2 + $0x20] sm:$0xff] %vm1552, %v7324
    %7344 = vst.msk [vmem:[#allocation2 + $0x28] sm:$0xff] %vm1552, %v7326
    %7345 = vst.msk [vmem:[#allocation2 + $0x30] sm:$0xff] %vm1552, %v7328
    %7346 = vst.msk [vmem:[#allocation2 + $0x38] sm:$0xff] %vm1552, %v7330
    %7347 = vset.pattern.permute.xlu0 4
    %7348 = vperm.xlu0 %7347, %v6161
    %v7349 = vpop.permute.xlu0 %7348
    %7351 = vset.pattern.permute.xlu0 4
    %7352 = vperm.xlu0 %7351, %v6164
    %v7353 = vpop.permute.xlu0 %7352
    %7355 = vset.pattern.permute.xlu0 4
    %7356 = vperm.xlu0 %7355, %v6169
    %v7357 = vpop.permute.xlu0 %7356
    %7359 = vset.pattern.permute.xlu0 4
    %7360 = vperm.xlu0 %7359, %v6172
    %v7361 = vpop.permute.xlu0 %7360
    %7363 = vset.pattern.permute.xlu0 4
    %7364 = vperm.xlu0 %7363, %v6177
    %v7365 = vpop.permute.xlu0 %7364
    %7367 = vset.pattern.permute.xlu0 4
    %7368 = vperm.xlu0 %7367, %v6180
    %v7369 = vpop.permute.xlu0 %7368
    %7371 = vset.pattern.permute.xlu0 4
    %7372 = vperm.xlu0 %7371, %v6185
    %v7373 = vpop.permute.xlu0 %7372
    %7375 = vset.pattern.permute.xlu0 4
    %7376 = vperm.xlu0 %7375, %v6188
    %v7377 = vpop.permute.xlu0 %7376
    %v7379 = vlaneseq
    %v7380 = vshrl.u32 %v7379, 7
    %v7381 = vsub.s32 4, %v7380
    %v7382 = vrot.slane %v6113, %v7381
    %v7383 = vadd.f32 %v7349, %v7382
    %v7384 = vadd.f32 %v7353, %v7382
    %v7385 = vadd.f32 %v7357, %v7382
    %v7386 = vadd.f32 %v7361, %v7382
    %v7387 = vadd.f32 %v7365, %v7382
    %v7388 = vadd.f32 %v7369, %v7382
    %v7389 = vadd.f32 %v7373, %v7382
    %v7390 = vadd.f32 %v7377, %v7382
    %vm7391 = vcmp.gt.f32.partialorder %v7383, 0.0
    %vm7392 = vcmp.gt.f32.partialorder %v7384, 0.0
    %vm7393 = vcmp.gt.f32.partialorder %v7385, 0.0
    %vm7394 = vcmp.gt.f32.partialorder %v7386, 0.0
    %vm7395 = vcmp.gt.f32.partialorder %v7387, 0.0
    %vm7396 = vcmp.gt.f32.partialorder %v7388, 0.0
    %vm7397 = vcmp.gt.f32.partialorder %v7389, 0.0
    %vm7398 = vcmp.gt.f32.partialorder %v7390, 0.0
    %v7399 = vmul.f32 %v7383, 0.2
    %v7400 = vmul.f32 %v7384, 0.2
    %v7401 = vmul.f32 %v7385, 0.2
    %v7402 = vmul.f32 %v7386, 0.2
    %v7403 = vmul.f32 %v7387, 0.2
    %v7404 = vmul.f32 %v7388, 0.2
    %v7405 = vmul.f32 %v7389, 0.2
    %v7406 = vmul.f32 %v7390, 0.2
    %v7407 = vsel %vm7391, %v7383, %v7399
    %v7408 = vsel %vm7392, %v7384, %v7400
    %v7409 = vsel %vm7393, %v7385, %v7401
    %v7410 = vsel %vm7394, %v7386, %v7402
    %v7411 = vsel %vm7395, %v7387, %v7403
    %v7412 = vsel %vm7396, %v7388, %v7404
    %v7413 = vsel %vm7397, %v7389, %v7405
    %v7414 = vsel %vm7398, %v7390, %v7406
    %v7415 = vadd.f32 %v7407, %v155
    %v7416 = vadd.f32 %v7408, %v156
    %v7417 = vadd.f32 %v7409, %v157
    %v7418 = vadd.f32 %v7410, %v158
    %v7419 = vadd.f32 %v7411, %v159
    %v7420 = vadd.f32 %v7412, %v160
    %v7421 = vadd.f32 %v7413, %v161
    %v7422 = vadd.f32 %v7414, %v162
    %v7423 = vsel %vm484, %v7415, -inf
    %7424 = vmax.xlane.f32.xlu0 %v7423
    %v7425 = vpop.xlane.xlu0 %7424
    %v7426 = vsel %vm484, %v7416, -inf
    %7427 = vmax.xlane.f32.xlu0 %v7426
    %v7428 = vpop.xlane.xlu0 %7427
    %v7429 = vsel %vm484, %v7417, -inf
    %7430 = vmax.xlane.f32.xlu0 %v7429
    %v7431 = vpop.xlane.xlu0 %7430
    %v7432 = vsel %vm484, %v7418, -inf
    %7433 = vmax.xlane.f32.xlu0 %v7432
    %v7434 = vpop.xlane.xlu0 %7433
    %v7435 = vsel %vm484, %v7419, -inf
    %7436 = vmax.xlane.f32.xlu0 %v7435
    %v7437 = vpop.xlane.xlu0 %7436
    %v7438 = vsel %vm484, %v7420, -inf
    %7439 = vmax.xlane.f32.xlu0 %v7438
    %v7440 = vpop.xlane.xlu0 %7439
    %v7441 = vsel %vm484, %v7421, -inf
    %7442 = vmax.xlane.f32.xlu0 %v7441
    %v7443 = vpop.xlane.xlu0 %7442
    %v7444 = vsel %vm484, %v7422, -inf
    %7445 = vmax.xlane.f32.xlu0 %v7444
    %v7446 = vpop.xlane.xlu0 %7445
    %v7447 = vsub.f32 %v7415, %v7425
    %v7448 = vsub.f32 %v7416, %v7428
    %v7449 = vsub.f32 %v7417, %v7431
    %v7450 = vsub.f32 %v7418, %v7434
    %v7451 = vsub.f32 %v7419, %v7437
    %v7452 = vsub.f32 %v7420, %v7440
    %v7453 = vsub.f32 %v7421, %v7443
    %v7454 = vsub.f32 %v7422, %v7446
    %v7455 = vmul.f32 %v7447, 1.442695
    %v7456 = vpow.pop %v7455
    %v7457 = vmul.f32 %v7448, 1.442695
    %v7458 = vpow.pop %v7457
    %v7459 = vmul.f32 %v7449, 1.442695
    %v7460 = vpow.pop %v7459
    %v7461 = vmul.f32 %v7450, 1.442695
    %v7462 = vpow.pop %v7461
    %v7463 = vmul.f32 %v7451, 1.442695
    %v7464 = vpow.pop %v7463
    %v7465 = vmul.f32 %v7452, 1.442695
    %v7466 = vpow.pop %v7465
    %v7467 = vmul.f32 %v7453, 1.442695
    %v7468 = vpow.pop %v7467
    %v7469 = vmul.f32 %v7454, 1.442695
    %v7470 = vpow.pop %v7469
    %v7471 = vsel %vm484, %v7456, 0.0
    %7472 = vadd.xlane.f32.xlu0 %v7471
    %v7473 = vpop.xlane.xlu0 %7472
    %v7474 = vsel %vm484, %v7458, 0.0
    %7475 = vadd.xlane.f32.xlu0 %v7474
    %v7476 = vpop.xlane.xlu0 %7475
    %v7477 = vsel %vm484, %v7460, 0.0
    %7478 = vadd.xlane.f32.xlu0 %v7477
    %v7479 = vpop.xlane.xlu0 %7478
    %v7480 = vsel %vm484, %v7462, 0.0
    %7481 = vadd.xlane.f32.xlu0 %v7480
    %v7482 = vpop.xlane.xlu0 %7481
    %v7483 = vsel %vm484, %v7464, 0.0
    %7484 = vadd.xlane.f32.xlu0 %v7483
    %v7485 = vpop.xlane.xlu0 %7484
    %v7486 = vsel %vm484, %v7466, 0.0
    %7487 = vadd.xlane.f32.xlu0 %v7486
    %v7488 = vpop.xlane.xlu0 %7487
    %v7489 = vsel %vm484, %v7468, 0.0
    %7490 = vadd.xlane.f32.xlu0 %v7489
    %v7491 = vpop.xlane.xlu0 %7490
    %v7492 = vsel %vm484, %v7470, 0.0
    %7493 = vadd.xlane.f32.xlu0 %v7492
    %v7494 = vpop.xlane.xlu0 %7493
    %v7495 = vrcp.pop %v7473
    %v7496 = vrcp.pop %v7476
    %v7497 = vrcp.pop %v7479
    %v7498 = vrcp.pop %v7482
    %v7499 = vrcp.pop %v7485
    %v7500 = vrcp.pop %v7488
    %v7501 = vrcp.pop %v7491
    %v7502 = vrcp.pop %v7494
    %v7503 = vmul.f32 %v7456, %v7495
    %v7504 = vmul.f32 %v7458, %v7496
    %v7505 = vmul.f32 %v7460, %v7497
    %v7506 = vmul.f32 %v7462, %v7498
    %v7507 = vmul.f32 %v7464, %v7499
    %v7508 = vmul.f32 %v7466, %v7500
    %v7509 = vmul.f32 %v7468, %v7501
    %v7510 = vmul.f32 %v7470, %v7502
    %v7511 = vpack.c.bf16 %v7504, %v7503
    %v7512 = vpack.c.bf16 %v7506, %v7505
    %v7513 = vpack.c.bf16 %v7508, %v7507
    %v7514 = vpack.c.bf16 %v7510, %v7509
    %7515 = vrot.lane.b32.xlu0 %v6073, 96
    %v7516 = vpop.permute.xlu0 %7515
    %7517 = vrot.lane.b32.xlu0 %v6074, 96
    %v7518 = vpop.permute.xlu0 %7517
    %7519 = vrot.lane.b32.xlu0 %v6075, 96
    %v7520 = vpop.permute.xlu0 %7519
    %7521 = vrot.lane.b32.xlu0 %v6076, 96
    %v7522 = vpop.permute.xlu0 %7521
    %v7528 = vsel %vm484, %v7511, 0
    %v7531 = vsel %vm484, %v7512, 0
    %v7534 = vsel %vm484, %v7513, 0
    %v7537 = vsel %vm484, %v7514, 0
    %7539 = vmatprep.subr.bf16.mxu0 0
    %7540 = vmatpush1.bf16.msra.mxu0 %v7516
    %7541 = vmatprep.subr.bf16.mxu0 0
    %7542 = vmatpush1.bf16.msra.mxu0 %v7518
    %7543 = vmatprep.subr.bf16.mxu0 0
    %7544 = vmatpush1.bf16.msra.mxu0 %v7520
    %7545 = vmatprep.subr.bf16.mxu0 0
    %7546 = vmatpush1.bf16.msra.mxu0 %v7522
    %7547 = vmatprep.subr.bf16.mxu0 0
    %7548 = vmatpush1.bf16.msra.mxu0 0
    %7549 = vmatprep.subr.bf16.mxu0 0
    %7550 = vmatpush1.bf16.msra.mxu0 0
    %7551 = vmatprep.subr.bf16.mxu0 0
    %7552 = vmatpush1.bf16.msra.mxu0 0
    %7553 = vmatprep.subr.bf16.mxu0 0
    %7554 = vmatpush1.bf16.msra.mxu0 0
    %7555 = vmatprep.subr.bf16.mxu0 0
    %7556 = vmatpush1.bf16.msra.mxu0 0
    %7557 = vmatprep.subr.bf16.mxu0 0
    %7558 = vmatpush1.bf16.msra.mxu0 0
    %7559 = vmatprep.subr.bf16.mxu0 0
    %7560 = vmatpush1.bf16.msra.mxu0 0
    %7561 = vmatprep.subr.bf16.mxu0 0
    %7562 = vmatpush1.bf16.msra.mxu0 0
    %7563 = vmatprep.subr.bf16.mxu0 0
    %7564 = vmatpush1.bf16.msra.mxu0 0
    %7565 = vmatprep.subr.bf16.mxu0 0
    %7566 = vmatpush1.bf16.msra.mxu0 0
    %7567 = vmatprep.subr.bf16.mxu0 0
    %7568 = vmatpush1.bf16.msra.mxu0 0
    %7569 = vmatprep.subr.bf16.mxu0 0
    %7570 = vmatpush1.bf16.msra.mxu0 0
    %7571 = vmatprep.mubr.bf16.mxu0 0
    %7572 = vmatmul.mubr.bf16.gmra.mrb[0].mxu0 %v7528
    %v7573 = vpop.f32.mrb[0].mxu0
    %v7574 = vadd.f32 0.0, %v7573
    %v7575 = vpop.f32.mrb[0].mxu0
    %v7576 = vpop.f32.mrb[0].mxu0
    %v7577 = vadd.f32 0.0, %v7576
    %v7578 = vpop.f32.mrb[0].mxu0
    %7579 = vmatprep.mubr.bf16.mxu0 0
    %7580 = vmatmul.mubr.bf16.gmra.mrb[0].mxu0 %v7531
    %v7581 = vpop.f32.mrb[0].mxu0
    %v7582 = vadd.f32 0.0, %v7581
    %v7583 = vpop.f32.mrb[0].mxu0
    %v7584 = vpop.f32.mrb[0].mxu0
    %v7585 = vadd.f32 0.0, %v7584
    %v7586 = vpop.f32.mrb[0].mxu0
    %7587 = vmatprep.mubr.bf16.mxu0 0
    %7588 = vmatmul.mubr.bf16.gmra.mrb[0].mxu0 %v7534
    %v7589 = vpop.f32.mrb[0].mxu0
    %v7590 = vadd.f32 0.0, %v7589
    %v7591 = vpop.f32.mrb[0].mxu0
    %v7592 = vpop.f32.mrb[0].mxu0
    %v7593 = vadd.f32 0.0, %v7592
    %v7594 = vpop.f32.mrb[0].mxu0
    %7595 = vmatprep.mubr.bf16.mxu0 0
    %7596 = vmatmul.mubr.bf16.gmra.mrb[0].mxu0 %v7537
    %v7597 = vpop.f32.mrb[0].mxu0
    %v7598 = vadd.f32 0.0, %v7597
    %v7599 = vpop.f32.mrb[0].mxu0
    %v7600 = vpop.f32.mrb[0].mxu0
    %v7601 = vadd.f32 0.0, %v7600
    %v7602 = vpop.f32.mrb[0].mxu0
    %7603 = vdwg.mxu0
    %7612 = vrot.lane.b32.xlu0 %v7574, 32
    %v7613 = vpop.permute.xlu0 %7612
    %7614 = vrot.lane.b32.xlu0 %v7577, 32
    %v7615 = vpop.permute.xlu0 %7614
    %7616 = vrot.lane.b32.xlu0 %v7582, 32
    %v7617 = vpop.permute.xlu0 %7616
    %7618 = vrot.lane.b32.xlu0 %v7585, 32
    %v7619 = vpop.permute.xlu0 %7618
    %7620 = vrot.lane.b32.xlu0 %v7590, 32
    %v7621 = vpop.permute.xlu0 %7620
    %7622 = vrot.lane.b32.xlu0 %v7593, 32
    %v7623 = vpop.permute.xlu0 %7622
    %7624 = vrot.lane.b32.xlu0 %v7598, 32
    %v7625 = vpop.permute.xlu0 %7624
    %7626 = vrot.lane.b32.xlu0 %v7601, 32
    %v7627 = vpop.permute.xlu0 %7626
    %7636 = vst.msk [vmem:[#allocation2] sm:$0xff] %vm1850, %v7613
    %7637 = vst.msk [vmem:[#allocation2 + $0x8] sm:$0xff] %vm1850, %v7615
    %7638 = vst.msk [vmem:[#allocation2 + $0x10] sm:$0xff] %vm1850, %v7617
    %7639 = vst.msk [vmem:[#allocation2 + $0x18] sm:$0xff] %vm1850, %v7619
    %7640 = vst.msk [vmem:[#allocation2 + $0x20] sm:$0xff] %vm1850, %v7621
    %7641 = vst.msk [vmem:[#allocation2 + $0x28] sm:$0xff] %vm1850, %v7623
    %7642 = vst.msk [vmem:[#allocation2 + $0x30] sm:$0xff] %vm1850, %v7625
    %7643 = vst.msk [vmem:[#allocation2 + $0x38] sm:$0xff] %vm1850, %v7627
    %7644 = vset.pattern.permute.xlu0 5
    %7645 = vperm.xlu0 %7644, %v6161
    %v7646 = vpop.permute.xlu0 %7645
    %7648 = vset.pattern.permute.xlu0 5
    %7649 = vperm.xlu0 %7648, %v6164
    %v7650 = vpop.permute.xlu0 %7649
    %7652 = vset.pattern.permute.xlu0 5
    %7653 = vperm.xlu0 %7652, %v6169
    %v7654 = vpop.permute.xlu0 %7653
    %7656 = vset.pattern.permute.xlu0 5
    %7657 = vperm.xlu0 %7656, %v6172
    %v7658 = vpop.permute.xlu0 %7657
    %7660 = vset.pattern.permute.xlu0 5
    %7661 = vperm.xlu0 %7660, %v6177
    %v7662 = vpop.permute.xlu0 %7661
    %7664 = vset.pattern.permute.xlu0 5
    %7665 = vperm.xlu0 %7664, %v6180
    %v7666 = vpop.permute.xlu0 %7665
    %7668 = vset.pattern.permute.xlu0 5
    %7669 = vperm.xlu0 %7668, %v6185
    %v7670 = vpop.permute.xlu0 %7669
    %7672 = vset.pattern.permute.xlu0 5
    %7673 = vperm.xlu0 %7672, %v6188
    %v7674 = vpop.permute.xlu0 %7673
    %v7676 = vlaneseq
    %v7677 = vshrl.u32 %v7676, 7
    %v7678 = vsub.s32 5, %v7677
    %v7679 = vrot.slane %v6113, %v7678
    %v7680 = vadd.f32 %v7646, %v7679
    %v7681 = vadd.f32 %v7650, %v7679
    %v7682 = vadd.f32 %v7654, %v7679
    %v7683 = vadd.f32 %v7658, %v7679
    %v7684 = vadd.f32 %v7662, %v7679
    %v7685 = vadd.f32 %v7666, %v7679
    %v7686 = vadd.f32 %v7670, %v7679
    %v7687 = vadd.f32 %v7674, %v7679
    %vm7688 = vcmp.gt.f32.partialorder %v7680, 0.0
    %vm7689 = vcmp.gt.f32.partialorder %v7681, 0.0
    %vm7690 = vcmp.gt.f32.partialorder %v7682, 0.0
    %vm7691 = vcmp.gt.f32.partialorder %v7683, 0.0
    %vm7692 = vcmp.gt.f32.partialorder %v7684, 0.0
    %vm7693 = vcmp.gt.f32.partialorder %v7685, 0.0
    %vm7694 = vcmp.gt.f32.partialorder %v7686, 0.0
    %vm7695 = vcmp.gt.f32.partialorder %v7687, 0.0
    %v7696 = vmul.f32 %v7680, 0.2
    %v7697 = vmul.f32 %v7681, 0.2
    %v7698 = vmul.f32 %v7682, 0.2
    %v7699 = vmul.f32 %v7683, 0.2
    %v7700 = vmul.f32 %v7684, 0.2
    %v7701 = vmul.f32 %v7685, 0.2
    %v7702 = vmul.f32 %v7686, 0.2
    %v7703 = vmul.f32 %v7687, 0.2
    %v7704 = vsel %vm7688, %v7680, %v7696
    %v7705 = vsel %vm7689, %v7681, %v7697
    %v7706 = vsel %vm7690, %v7682, %v7698
    %v7707 = vsel %vm7691, %v7683, %v7699
    %v7708 = vsel %vm7692, %v7684, %v7700
    %v7709 = vsel %vm7693, %v7685, %v7701
    %v7710 = vsel %vm7694, %v7686, %v7702
    %v7711 = vsel %vm7695, %v7687, %v7703
    %v7712 = vadd.f32 %v7704, %v155
    %v7713 = vadd.f32 %v7705, %v156
    %v7714 = vadd.f32 %v7706, %v157
    %v7715 = vadd.f32 %v7707, %v158
    %v7716 = vadd.f32 %v7708, %v159
    %v7717 = vadd.f32 %v7709, %v160
    %v7718 = vadd.f32 %v7710, %v161
    %v7719 = vadd.f32 %v7711, %v162
    %v7720 = vsel %vm484, %v7712, -inf
    %7721 = vmax.xlane.f32.xlu0 %v7720
    %v7722 = vpop.xlane.xlu0 %7721
    %v7723 = vsel %vm484, %v7713, -inf
    %7724 = vmax.xlane.f32.xlu0 %v7723
    %v7725 = vpop.xlane.xlu0 %7724
    %v7726 = vsel %vm484, %v7714, -inf
    %7727 = vmax.xlane.f32.xlu0 %v7726
    %v7728 = vpop.xlane.xlu0 %7727
    %v7729 = vsel %vm484, %v7715, -inf
    %7730 = vmax.xlane.f32.xlu0 %v7729
    %v7731 = vpop.xlane.xlu0 %7730
    %v7732 = vsel %vm484, %v7716, -inf
    %7733 = vmax.xlane.f32.xlu0 %v7732
    %v7734 = vpop.xlane.xlu0 %7733
    %v7735 = vsel %vm484, %v7717, -inf
    %7736 = vmax.xlane.f32.xlu0 %v7735
    %v7737 = vpop.xlane.xlu0 %7736
    %v7738 = vsel %vm484, %v7718, -inf
    %7739 = vmax.xlane.f32.xlu0 %v7738
    %v7740 = vpop.xlane.xlu0 %7739
    %v7741 = vsel %vm484, %v7719, -inf
    %7742 = vmax.xlane.f32.xlu0 %v7741
    %v7743 = vpop.xlane.xlu0 %7742
    %v7744 = vsub.f32 %v7712, %v7722
    %v7745 = vsub.f32 %v7713, %v7725
    %v7746 = vsub.f32 %v7714, %v7728
    %v7747 = vsub.f32 %v7715, %v7731
    %v7748 = vsub.f32 %v7716, %v7734
    %v7749 = vsub.f32 %v7717, %v7737
    %v7750 = vsub.f32 %v7718, %v7740
    %v7751 = vsub.f32 %v7719, %v7743
    %v7752 = vmul.f32 %v7744, 1.442695
    %v7753 = vpow.pop %v7752
    %v7754 = vmul.f32 %v7745, 1.442695
    %v7755 = vpow.pop %v7754
    %v7756 = vmul.f32 %v7746, 1.442695
    %v7757 = vpow.pop %v7756
    %v7758 = vmul.f32 %v7747, 1.442695
    %v7759 = vpow.pop %v7758
    %v7760 = vmul.f32 %v7748, 1.442695
    %v7761 = vpow.pop %v7760
    %v7762 = vmul.f32 %v7749, 1.442695
    %v7763 = vpow.pop %v7762
    %v7764 = vmul.f32 %v7750, 1.442695
    %v7765 = vpow.pop %v7764
    %v7766 = vmul.f32 %v7751, 1.442695
    %v7767 = vpow.pop %v7766
    %v7768 = vsel %vm484, %v7753, 0.0
    %7769 = vadd.xlane.f32.xlu0 %v7768
    %v7770 = vpop.xlane.xlu0 %7769
    %v7771 = vsel %vm484, %v7755, 0.0
    %7772 = vadd.xlane.f32.xlu0 %v7771
    %v7773 = vpop.xlane.xlu0 %7772
    %v7774 = vsel %vm484, %v7757, 0.0
    %7775 = vadd.xlane.f32.xlu0 %v7774
    %v7776 = vpop.xlane.xlu0 %7775
    %v7777 = vsel %vm484, %v7759, 0.0
    %7778 = vadd.xlane.f32.xlu0 %v7777
    %v7779 = vpop.xlane.xlu0 %7778
    %v7780 = vsel %vm484, %v7761, 0.0
    %7781 = vadd.xlane.f32.xlu0 %v7780
    %v7782 = vpop.xlane.xlu0 %7781
    %v7783 = vsel %vm484, %v7763, 0.0
    %7784 = vadd.xlane.f32.xlu0 %v7783
    %v7785 = vpop.xlane.xlu0 %7784
    %v7786 = vsel %vm484, %v7765, 0.0
    %7787 = vadd.xlane.f32.xlu0 %v7786
    %v7788 = vpop.xlane.xlu0 %7787
    %v7789 = vsel %vm484, %v7767, 0.0
    %7790 = vadd.xlane.f32.xlu0 %v7789
    %v7791 = vpop.xlane.xlu0 %7790
    %v7792 = vrcp.pop %v7770
    %v7793 = vrcp.pop %v7773
    %v7794 = vrcp.pop %v7776
    %v7795 = vrcp.pop %v7779
    %v7796 = vrcp.pop %v7782
    %v7797 = vrcp.pop %v7785
    %v7798 = vrcp.pop %v7788
    %v7799 = vrcp.pop %v7791
    %v7800 = vmul.f32 %v7753, %v7792
    %v7801 = vmul.f32 %v7755, %v7793
    %v7802 = vmul.f32 %v7757, %v7794
    %v7803 = vmul.f32 %v7759, %v7795
    %v7804 = vmul.f32 %v7761, %v7796
    %v7805 = vmul.f32 %v7763, %v7797
    %v7806 = vmul.f32 %v7765, %v7798
    %v7807 = vmul.f32 %v7767, %v7799
    %v7808 = vpack.c.bf16 %v7801, %v7800
    %v7809 = vpack.c.bf16 %v7803, %v7802
    %v7810 = vpack.c.bf16 %v7805, %v7804
    %v7811 = vpack.c.bf16 %v7807, %v7806
    %7812 = vrot.lane.b32.xlu0 %v6073, 88
    %v7813 = vpop.permute.xlu0 %7812
    %7814 = vrot.lane.b32.xlu0 %v6074, 88
    %v7815 = vpop.permute.xlu0 %7814
    %7816 = vrot.lane.b32.xlu0 %v6075, 88
    %v7817 = vpop.permute.xlu0 %7816
    %7818 = vrot.lane.b32.xlu0 %v6076, 88
    %v7819 = vpop.permute.xlu0 %7818
    %v7825 = vsel %vm484, %v7808, 0
    %v7828 = vsel %vm484, %v7809, 0
    %v7831 = vsel %vm484, %v7810, 0
    %v7834 = vsel %vm484, %v7811, 0
    %7836 = vmatprep.subr.bf16.mxu0 0
    %7837 = vmatpush1.bf16.msra.mxu0 %v7813
    %7838 = vmatprep.subr.bf16.mxu0 0
    %7839 = vmatpush1.bf16.msra.mxu0 %v7815
    %7840 = vmatprep.subr.bf16.mxu0 0
    %7841 = vmatpush1.bf16.msra.mxu0 %v7817
    %7842 = vmatprep.subr.bf16.mxu0 0
    %7843 = vmatpush1.bf16.msra.mxu0 %v7819
    %7844 = vmatprep.subr.bf16.mxu0 0
    %7845 = vmatpush1.bf16.msra.mxu0 0
    %7846 = vmatprep.subr.bf16.mxu0 0
    %7847 = vmatpush1.bf16.msra.mxu0 0
    %7848 = vmatprep.subr.bf16.mxu0 0
    %7849 = vmatpush1.bf16.msra.mxu0 0
    %7850 = vmatprep.subr.bf16.mxu0 0
    %7851 = vmatpush1.bf16.msra.mxu0 0
    %7852 = vmatprep.subr.bf16.mxu0 0
    %7853 = vmatpush1.bf16.msra.mxu0 0
    %7854 = vmatprep.subr.bf16.mxu0 0
    %7855 = vmatpush1.bf16.msra.mxu0 0
    %7856 = vmatprep.subr.bf16.mxu0 0
    %7857 = vmatpush1.bf16.msra.mxu0 0
    %7858 = vmatprep.subr.bf16.mxu0 0
    %7859 = vmatpush1.bf16.msra.mxu0 0
    %7860 = vmatprep.subr.bf16.mxu0 0
    %7861 = vmatpush1.bf16.msra.mxu0 0
    %7862 = vmatprep.subr.bf16.mxu0 0
    %7863 = vmatpush1.bf16.msra.mxu0 0
    %7864 = vmatprep.subr.bf16.mxu0 0
    %7865 = vmatpush1.bf16.msra.mxu0 0
    %7866 = vmatprep.subr.bf16.mxu0 0
    %7867 = vmatpush1.bf16.msra.mxu0 0
    %7868 = vmatprep.mubr.bf16.mxu0 0
    %7869 = vmatmul.mubr.bf16.gmra.mrb[0].mxu0 %v7825
    %v7870 = vpop.f32.mrb[0].mxu0
    %v7871 = vadd.f32 0.0, %v7870
    %v7872 = vpop.f32.mrb[0].mxu0
    %v7873 = vpop.f32.mrb[0].mxu0
    %v7874 = vadd.f32 0.0, %v7873
    %v7875 = vpop.f32.mrb[0].mxu0
    %7876 = vmatprep.mubr.bf16.mxu0 0
    %7877 = vmatmul.mubr.bf16.gmra.mrb[0].mxu0 %v7828
    %v7878 = vpop.f32.mrb[0].mxu0
    %v7879 = vadd.f32 0.0, %v7878
    %v7880 = vpop.f32.mrb[0].mxu0
    %v7881 = vpop.f32.mrb[0].mxu0
    %v7882 = vadd.f32 0.0, %v7881
    %v7883 = vpop.f32.mrb[0].mxu0
    %7884 = vmatprep.mubr.bf16.mxu0 0
    %7885 = vmatmul.mubr.bf16.gmra.mrb[0].mxu0 %v7831
    %v7886 = vpop.f32.mrb[0].mxu0
    %v7887 = vadd.f32 0.0, %v7886
    %v7888 = vpop.f32.mrb[0].mxu0
    %v7889 = vpop.f32.mrb[0].mxu0
    %v7890 = vadd.f32 0.0, %v7889
    %v7891 = vpop.f32.mrb[0].mxu0
    %7892 = vmatprep.mubr.bf16.mxu0 0
    %7893 = vmatmul.mubr.bf16.gmra.mrb[0].mxu0 %v7834
    %v7894 = vpop.f32.mrb[0].mxu0
    %v7895 = vadd.f32 0.0, %v7894
    %v7896 = vpop.f32.mrb[0].mxu0
    %v7897 = vpop.f32.mrb[0].mxu0
    %v7898 = vadd.f32 0.0, %v7897
    %v7899 = vpop.f32.mrb[0].mxu0
    %7900 = vdwg.mxu0
    %7909 = vrot.lane.b32.xlu0 %v7871, 40
    %v7910 = vpop.permute.xlu0 %7909
    %7911 = vrot.lane.b32.xlu0 %v7874, 40
    %v7912 = vpop.permute.xlu0 %7911
    %7913 = vrot.lane.b32.xlu0 %v7879, 40
    %v7914 = vpop.permute.xlu0 %7913
    %7915 = vrot.lane.b32.xlu0 %v7882, 40
    %v7916 = vpop.permute.xlu0 %7915
    %7917 = vrot.lane.b32.xlu0 %v7887, 40
    %v7918 = vpop.permute.xlu0 %7917
    %7919 = vrot.lane.b32.xlu0 %v7890, 40
    %v7920 = vpop.permute.xlu0 %7919
    %7921 = vrot.lane.b32.xlu0 %v7895, 40
    %v7922 = vpop.permute.xlu0 %7921
    %7923 = vrot.lane.b32.xlu0 %v7898, 40
    %v7924 = vpop.permute.xlu0 %7923
    %7933 = vst.msk [vmem:[#allocation2] sm:$0xff] %vm2148, %v7910
    %7934 = vst.msk [vmem:[#allocation2 + $0x8] sm:$0xff] %vm2148, %v7912
    %7935 = vst.msk [vmem:[#allocation2 + $0x10] sm:$0xff] %vm2148, %v7914
    %7936 = vst.msk [vmem:[#allocation2 + $0x18] sm:$0xff] %vm2148, %v7916
    %7937 = vst.msk [vmem:[#allocation2 + $0x20] sm:$0xff] %vm2148, %v7918
    %7938 = vst.msk [vmem:[#allocation2 + $0x28] sm:$0xff] %vm2148, %v7920
    %7939 = vst.msk [vmem:[#allocation2 + $0x30] sm:$0xff] %vm2148, %v7922
    %7940 = vst.msk [vmem:[#allocation2 + $0x38] sm:$0xff] %vm2148, %v7924
    %7941 = vset.pattern.permute.xlu0 6
    %7942 = vperm.xlu0 %7941, %v6161
    %v7943 = vpop.permute.xlu0 %7942
    %7945 = vset.pattern.permute.xlu0 6
    %7946 = vperm.xlu0 %7945, %v6164
    %v7947 = vpop.permute.xlu0 %7946
    %7949 = vset.pattern.permute.xlu0 6
    %7950 = vperm.xlu0 %7949, %v6169
    %v7951 = vpop.permute.xlu0 %7950
    %7953 = vset.pattern.permute.xlu0 6
    %7954 = vperm.xlu0 %7953, %v6172
    %v7955 = vpop.permute.xlu0 %7954
    %7957 = vset.pattern.permute.xlu0 6
    %7958 = vperm.xlu0 %7957, %v6177
    %v7959 = vpop.permute.xlu0 %7958
    %7961 = vset.pattern.permute.xlu0 6
    %7962 = vperm.xlu0 %7961, %v6180
    %v7963 = vpop.permute.xlu0 %7962
    %7965 = vset.pattern.permute.xlu0 6
    %7966 = vperm.xlu0 %7965, %v6185
    %v7967 = vpop.permute.xlu0 %7966
    %7969 = vset.pattern.permute.xlu0 6
    %7970 = vperm.xlu0 %7969, %v6188
    %v7971 = vpop.permute.xlu0 %7970
    %v7973 = vlaneseq
    %v7974 = vshrl.u32 %v7973, 7
    %v7975 = vsub.s32 6, %v7974
    %v7976 = vrot.slane %v6113, %v7975
    %v7977 = vadd.f32 %v7943, %v7976
    %v7978 = vadd.f32 %v7947, %v7976
    %v7979 = vadd.f32 %v7951, %v7976
    %v7980 = vadd.f32 %v7955, %v7976
    %v7981 = vadd.f32 %v7959, %v7976
    %v7982 = vadd.f32 %v7963, %v7976
    %v7983 = vadd.f32 %v7967, %v7976
    %v7984 = vadd.f32 %v7971, %v7976
    %vm7985 = vcmp.gt.f32.partialorder %v7977, 0.0
    %vm7986 = vcmp.gt.f32.partialorder %v7978, 0.0
    %vm7987 = vcmp.gt.f32.partialorder %v7979, 0.0
    %vm7988 = vcmp.gt.f32.partialorder %v7980, 0.0
    %vm7989 = vcmp.gt.f32.partialorder %v7981, 0.0
    %vm7990 = vcmp.gt.f32.partialorder %v7982, 0.0
    %vm7991 = vcmp.gt.f32.partialorder %v7983, 0.0
    %vm7992 = vcmp.gt.f32.partialorder %v7984, 0.0
    %v7993 = vmul.f32 %v7977, 0.2
    %v7994 = vmul.f32 %v7978, 0.2
    %v7995 = vmul.f32 %v7979, 0.2
    %v7996 = vmul.f32 %v7980, 0.2
    %v7997 = vmul.f32 %v7981, 0.2
    %v7998 = vmul.f32 %v7982, 0.2
    %v7999 = vmul.f32 %v7983, 0.2
    %v8000 = vmul.f32 %v7984, 0.2
    %v8001 = vsel %vm7985, %v7977, %v7993
    %v8002 = vsel %vm7986, %v7978, %v7994
    %v8003 = vsel %vm7987, %v7979, %v7995
    %v8004 = vsel %vm7988, %v7980, %v7996
    %v8005 = vsel %vm7989, %v7981, %v7997
    %v8006 = vsel %vm7990, %v7982, %v7998
    %v8007 = vsel %vm7991, %v7983, %v7999
    %v8008 = vsel %vm7992, %v7984, %v8000
    %v8009 = vadd.f32 %v8001, %v155
    %v8010 = vadd.f32 %v8002, %v156
    %v8011 = vadd.f32 %v8003, %v157
    %v8012 = vadd.f32 %v8004, %v158
    %v8013 = vadd.f32 %v8005, %v159
    %v8014 = vadd.f32 %v8006, %v160
    %v8015 = vadd.f32 %v8007, %v161
    %v8016 = vadd.f32 %v8008, %v162
    %v8017 = vsel %vm484, %v8009, -inf
    %8018 = vmax.xlane.f32.xlu0 %v8017
    %v8019 = vpop.xlane.xlu0 %8018
    %v8020 = vsel %vm484, %v8010, -inf
    %8021 = vmax.xlane.f32.xlu0 %v8020
    %v8022 = vpop.xlane.xlu0 %8021
    %v8023 = vsel %vm484, %v8011, -inf
    %8024 = vmax.xlane.f32.xlu0 %v8023
    %v8025 = vpop.xlane.xlu0 %8024
    %v8026 = vsel %vm484, %v8012, -inf
    %8027 = vmax.xlane.f32.xlu0 %v8026
    %v8028 = vpop.xlane.xlu0 %8027
    %v8029 = vsel %vm484, %v8013, -inf
    %8030 = vmax.xlane.f32.xlu0 %v8029
    %v8031 = vpop.xlane.xlu0 %8030
    %v8032 = vsel %vm484, %v8014, -inf
    %8033 = vmax.xlane.f32.xlu0 %v8032
    %v8034 = vpop.xlane.xlu0 %8033
    %v8035 = vsel %vm484, %v8015, -inf
    %8036 = vmax.xlane.f32.xlu0 %v8035
    %v8037 = vpop.xlane.xlu0 %8036
    %v8038 = vsel %vm484, %v8016, -inf
    %8039 = vmax.xlane.f32.xlu0 %v8038
    %v8040 = vpop.xlane.xlu0 %8039
    %v8041 = vsub.f32 %v8009, %v8019
    %v8042 = vsub.f32 %v8010, %v8022
    %v8043 = vsub.f32 %v8011, %v8025
    %v8044 = vsub.f32 %v8012, %v8028
    %v8045 = vsub.f32 %v8013, %v8031
    %v8046 = vsub.f32 %v8014, %v8034
    %v8047 = vsub.f32 %v8015, %v8037
    %v8048 = vsub.f32 %v8016, %v8040
    %v8049 = vmul.f32 %v8041, 1.442695
    %v8050 = vpow.pop %v8049
    %v8051 = vmul.f32 %v8042, 1.442695
    %v8052 = vpow.pop %v8051
    %v8053 = vmul.f32 %v8043, 1.442695
    %v8054 = vpow.pop %v8053
    %v8055 = vmul.f32 %v8044, 1.442695
    %v8056 = vpow.pop %v8055
    %v8057 = vmul.f32 %v8045, 1.442695
    %v8058 = vpow.pop %v8057
    %v8059 = vmul.f32 %v8046, 1.442695
    %v8060 = vpow.pop %v8059
    %v8061 = vmul.f32 %v8047, 1.442695
    %v8062 = vpow.pop %v8061
    %v8063 = vmul.f32 %v8048, 1.442695
    %v8064 = vpow.pop %v8063
    %v8065 = vsel %vm484, %v8050, 0.0
    %8066 = vadd.xlane.f32.xlu0 %v8065
    %v8067 = vpop.xlane.xlu0 %8066
    %v8068 = vsel %vm484, %v8052, 0.0
    %8069 = vadd.xlane.f32.xlu0 %v8068
    %v8070 = vpop.xlane.xlu0 %8069
    %v8071 = vsel %vm484, %v8054, 0.0
    %8072 = vadd.xlane.f32.xlu0 %v8071
    %v8073 = vpop.xlane.xlu0 %8072
    %v8074 = vsel %vm484, %v8056, 0.0
    %8075 = vadd.xlane.f32.xlu0 %v8074
    %v8076 = vpop.xlane.xlu0 %8075
    %v8077 = vsel %vm484, %v8058, 0.0
    %8078 = vadd.xlane.f32.xlu0 %v8077
    %v8079 = vpop.xlane.xlu0 %8078
    %v8080 = vsel %vm484, %v8060, 0.0
    %8081 = vadd.xlane.f32.xlu0 %v8080
    %v8082 = vpop.xlane.xlu0 %8081
    %v8083 = vsel %vm484, %v8062, 0.0
    %8084 = vadd.xlane.f32.xlu0 %v8083
    %v8085 = vpop.xlane.xlu0 %8084
    %v8086 = vsel %vm484, %v8064, 0.0
    %8087 = vadd.xlane.f32.xlu0 %v8086
    %v8088 = vpop.xlane.xlu0 %8087
    %v8089 = vrcp.pop %v8067
    %v8090 = vrcp.pop %v8070
    %v8091 = vrcp.pop %v8073
    %v8092 = vrcp.pop %v8076
    %v8093 = vrcp.pop %v8079
    %v8094 = vrcp.pop %v8082
    %v8095 = vrcp.pop %v8085
    %v8096 = vrcp.pop %v8088
    %v8097 = vmul.f32 %v8050, %v8089
    %v8098 = vmul.f32 %v8052, %v8090
    %v8099 = vmul.f32 %v8054, %v8091
    %v8100 = vmul.f32 %v8056, %v8092
    %v8101 = vmul.f32 %v8058, %v8093
    %v8102 = vmul.f32 %v8060, %v8094
    %v8103 = vmul.f32 %v8062, %v8095
    %v8104 = vmul.f32 %v8064, %v8096
    %v8105 = vpack.c.bf16 %v8098, %v8097
    %v8106 = vpack.c.bf16 %v8100, %v8099
    %v8107 = vpack.c.bf16 %v8102, %v8101
    %v8108 = vpack.c.bf16 %v8104, %v8103
    %8109 = vrot.lane.b32.xlu0 %v6073, 80
    %v8110 = vpop.permute.xlu0 %8109
    %8111 = vrot.lane.b32.xlu0 %v6074, 80
    %v8112 = vpop.permute.xlu0 %8111
    %8113 = vrot.lane.b32.xlu0 %v6075, 80
    %v8114 = vpop.permute.xlu0 %8113
    %8115 = vrot.lane.b32.xlu0 %v6076, 80
    %v8116 = vpop.permute.xlu0 %8115
    %v8122 = vsel %vm484, %v8105, 0
    %v8125 = vsel %vm484, %v8106, 0
    %v8128 = vsel %vm484, %v8107, 0
    %v8131 = vsel %vm484, %v8108, 0
    %8133 = vmatprep.subr.bf16.mxu0 0
    %8134 = vmatpush1.bf16.msra.mxu0 %v8110
    %8135 = vmatprep.subr.bf16.mxu0 0
    %8136 = vmatpush1.bf16.msra.mxu0 %v8112
    %8137 = vmatprep.subr.bf16.mxu0 0
    %8138 = vmatpush1.bf16.msra.mxu0 %v8114
    %8139 = vmatprep.subr.bf16.mxu0 0
    %8140 = vmatpush1.bf16.msra.mxu0 %v8116
    %8141 = vmatprep.subr.bf16.mxu0 0
    %8142 = vmatpush1.bf16.msra.mxu0 0
    %8143 = vmatprep.subr.bf16.mxu0 0
    %8144 = vmatpush1.bf16.msra.mxu0 0
    %8145 = vmatprep.subr.bf16.mxu0 0
    %8146 = vmatpush1.bf16.msra.mxu0 0
    %8147 = vmatprep.subr.bf16.mxu0 0
    %8148 = vmatpush1.bf16.msra.mxu0 0
    %8149 = vmatprep.subr.bf16.mxu0 0
    %8150 = vmatpush1.bf16.msra.mxu0 0
    %8151 = vmatprep.subr.bf16.mxu0 0
    %8152 = vmatpush1.bf16.msra.mxu0 0
    %8153 = vmatprep.subr.bf16.mxu0 0
    %8154 = vmatpush1.bf16.msra.mxu0 0
    %8155 = vmatprep.subr.bf16.mxu0 0
    %8156 = vmatpush1.bf16.msra.mxu0 0
    %8157 = vmatprep.subr.bf16.mxu0 0
    %8158 = vmatpush1.bf16.msra.mxu0 0
    %8159 = vmatprep.subr.bf16.mxu0 0
    %8160 = vmatpush1.bf16.msra.mxu0 0
    %8161 = vmatprep.subr.bf16.mxu0 0
    %8162 = vmatpush1.bf16.msra.mxu0 0
    %8163 = vmatprep.subr.bf16.mxu0 0
    %8164 = vmatpush1.bf16.msra.mxu0 0
    %8165 = vmatprep.mubr.bf16.mxu0 0
    %8166 = vmatmul.mubr.bf16.gmra.mrb[0].mxu0 %v8122
    %v8167 = vpop.f32.mrb[0].mxu0
    %v8168 = vadd.f32 0.0, %v8167
    %v8169 = vpop.f32.mrb[0].mxu0
    %v8170 = vpop.f32.mrb[0].mxu0
    %v8171 = vadd.f32 0.0, %v8170
    %v8172 = vpop.f32.mrb[0].mxu0
    %8173 = vmatprep.mubr.bf16.mxu0 0
    %8174 = vmatmul.mubr.bf16.gmra.mrb[0].mxu0 %v8125
    %v8175 = vpop.f32.mrb[0].mxu0
    %v8176 = vadd.f32 0.0, %v8175
    %v8177 = vpop.f32.mrb[0].mxu0
    %v8178 = vpop.f32.mrb[0].mxu0
    %v8179 = vadd.f32 0.0, %v8178
    %v8180 = vpop.f32.mrb[0].mxu0
    %8181 = vmatprep.mubr.bf16.mxu0 0
    %8182 = vmatmul.mubr.bf16.gmra.mrb[0].mxu0 %v8128
    %v8183 = vpop.f32.mrb[0].mxu0
    %v8184 = vadd.f32 0.0, %v8183
    %v8185 = vpop.f32.mrb[0].mxu0
    %v8186 = vpop.f32.mrb[0].mxu0
    %v8187 = vadd.f32 0.0, %v8186
    %v8188 = vpop.f32.mrb[0].mxu0
    %8189 = vmatprep.mubr.bf16.mxu0 0
    %8190 = vmatmul.mubr.bf16.gmra.mrb[0].mxu0 %v8131
    %v8191 = vpop.f32.mrb[0].mxu0
    %v8192 = vadd.f32 0.0, %v8191
    %v8193 = vpop.f32.mrb[0].mxu0
    %v8194 = vpop.f32.mrb[0].mxu0
    %v8195 = vadd.f32 0.0, %v8194
    %v8196 = vpop.f32.mrb[0].mxu0
    %8197 = vdwg.mxu0
    %8206 = vrot.lane.b32.xlu0 %v8168, 48
    %v8207 = vpop.permute.xlu0 %8206
    %8208 = vrot.lane.b32.xlu0 %v8171, 48
    %v8209 = vpop.permute.xlu0 %8208
    %8210 = vrot.lane.b32.xlu0 %v8176, 48
    %v8211 = vpop.permute.xlu0 %8210
    %8212 = vrot.lane.b32.xlu0 %v8179, 48
    %v8213 = vpop.permute.xlu0 %8212
    %8214 = vrot.lane.b32.xlu0 %v8184, 48
    %v8215 = vpop.permute.xlu0 %8214
    %8216 = vrot.lane.b32.xlu0 %v8187, 48
    %v8217 = vpop.permute.xlu0 %8216
    %8218 = vrot.lane.b32.xlu0 %v8192, 48
    %v8219 = vpop.permute.xlu0 %8218
    %8220 = vrot.lane.b32.xlu0 %v8195, 48
    %v8221 = vpop.permute.xlu0 %8220
    %8230 = vst.msk [vmem:[#allocation2] sm:$0xff] %vm2446, %v8207
    %8231 = vst.msk [vmem:[#allocation2 + $0x8] sm:$0xff] %vm2446, %v8209
    %8232 = vst.msk [vmem:[#allocation2 + $0x10] sm:$0xff] %vm2446, %v8211
    %8233 = vst.msk [vmem:[#allocation2 + $0x18] sm:$0xff] %vm2446, %v8213
    %8234 = vst.msk [vmem:[#allocation2 + $0x20] sm:$0xff] %vm2446, %v8215
    %8235 = vst.msk [vmem:[#allocation2 + $0x28] sm:$0xff] %vm2446, %v8217
    %8236 = vst.msk [vmem:[#allocation2 + $0x30] sm:$0xff] %vm2446, %v8219
    %8237 = vst.msk [vmem:[#allocation2 + $0x38] sm:$0xff] %vm2446, %v8221
    %8238 = vset.pattern.permute.xlu0 7
    %8239 = vperm.xlu0 %8238, %v6161
    %v8240 = vpop.permute.xlu0 %8239
    %8242 = vset.pattern.permute.xlu0 7
    %8243 = vperm.xlu0 %8242, %v6164
    %v8244 = vpop.permute.xlu0 %8243
    %8246 = vset.pattern.permute.xlu0 7
    %8247 = vperm.xlu0 %8246, %v6169
    %v8248 = vpop.permute.xlu0 %8247
    %8250 = vset.pattern.permute.xlu0 7
    %8251 = vperm.xlu0 %8250, %v6172
    %v8252 = vpop.permute.xlu0 %8251
    %8254 = vset.pattern.permute.xlu0 7
    %8255 = vperm.xlu0 %8254, %v6177
    %v8256 = vpop.permute.xlu0 %8255
    %8258 = vset.pattern.permute.xlu0 7
    %8259 = vperm.xlu0 %8258, %v6180
    %v8260 = vpop.permute.xlu0 %8259
    %8262 = vset.pattern.permute.xlu0 7
    %8263 = vperm.xlu0 %8262, %v6185
    %v8264 = vpop.permute.xlu0 %8263
    %8266 = vset.pattern.permute.xlu0 7
    %8267 = vperm.xlu0 %8266, %v6188
    %v8268 = vpop.permute.xlu0 %8267
    %v8270 = vlaneseq
    %v8271 = vshrl.u32 %v8270, 7
    %v8272 = vsub.s32 7, %v8271
    %v8273 = vrot.slane %v6113, %v8272
    %v8274 = vadd.f32 %v8240, %v8273
    %v8275 = vadd.f32 %v8244, %v8273
    %v8276 = vadd.f32 %v8248, %v8273
    %v8277 = vadd.f32 %v8252, %v8273
    %v8278 = vadd.f32 %v8256, %v8273
    %v8279 = vadd.f32 %v8260, %v8273
    %v8280 = vadd.f32 %v8264, %v8273
    %v8281 = vadd.f32 %v8268, %v8273
    %vm8282 = vcmp.gt.f32.partialorder %v8274, 0.0
    %vm8283 = vcmp.gt.f32.partialorder %v8275, 0.0
    %vm8284 = vcmp.gt.f32.partialorder %v8276, 0.0
    %vm8285 = vcmp.gt.f32.partialorder %v8277, 0.0
    %vm8286 = vcmp.gt.f32.partialorder %v8278, 0.0
    %vm8287 = vcmp.gt.f32.partialorder %v8279, 0.0
    %vm8288 = vcmp.gt.f32.partialorder %v8280, 0.0
    %vm8289 = vcmp.gt.f32.partialorder %v8281, 0.0
    %v8290 = vmul.f32 %v8274, 0.2
    %v8291 = vmul.f32 %v8275, 0.2
    %v8292 = vmul.f32 %v8276, 0.2
    %v8293 = vmul.f32 %v8277, 0.2
    %v8294 = vmul.f32 %v8278, 0.2
    %v8295 = vmul.f32 %v8279, 0.2
    %v8296 = vmul.f32 %v8280, 0.2
    %v8297 = vmul.f32 %v8281, 0.2
    %v8298 = vsel %vm8282, %v8274, %v8290
    %v8299 = vsel %vm8283, %v8275, %v8291
    %v8300 = vsel %vm8284, %v8276, %v8292
    %v8301 = vsel %vm8285, %v8277, %v8293
    %v8302 = vsel %vm8286, %v8278, %v8294
    %v8303 = vsel %vm8287, %v8279, %v8295
    %v8304 = vsel %vm8288, %v8280, %v8296
    %v8305 = vsel %vm8289, %v8281, %v8297
    %v8306 = vadd.f32 %v8298, %v155
    %v8307 = vadd.f32 %v8299, %v156
    %v8308 = vadd.f32 %v8300, %v157
    %v8309 = vadd.f32 %v8301, %v158
    %v8310 = vadd.f32 %v8302, %v159
    %v8311 = vadd.f32 %v8303, %v160
    %v8312 = vadd.f32 %v8304, %v161
    %v8313 = vadd.f32 %v8305, %v162
    %v8314 = vsel %vm484, %v8306, -inf
    %8315 = vmax.xlane.f32.xlu0 %v8314
    %v8316 = vpop.xlane.xlu0 %8315
    %v8317 = vsel %vm484, %v8307, -inf
    %8318 = vmax.xlane.f32.xlu0 %v8317
    %v8319 = vpop.xlane.xlu0 %8318
    %v8320 = vsel %vm484, %v8308, -inf
    %8321 = vmax.xlane.f32.xlu0 %v8320
    %v8322 = vpop.xlane.xlu0 %8321
    %v8323 = vsel %vm484, %v8309, -inf
    %8324 = vmax.xlane.f32.xlu0 %v8323
    %v8325 = vpop.xlane.xlu0 %8324
    %v8326 = vsel %vm484, %v8310, -inf
    %8327 = vmax.xlane.f32.xlu0 %v8326
    %v8328 = vpop.xlane.xlu0 %8327
    %v8329 = vsel %vm484, %v8311, -inf
    %8330 = vmax.xlane.f32.xlu0 %v8329
    %v8331 = vpop.xlane.xlu0 %8330
    %v8332 = vsel %vm484, %v8312, -inf
    %8333 = vmax.xlane.f32.xlu0 %v8332
    %v8334 = vpop.xlane.xlu0 %8333
    %v8335 = vsel %vm484, %v8313, -inf
    %8336 = vmax.xlane.f32.xlu0 %v8335
    %v8337 = vpop.xlane.xlu0 %8336
    %v8338 = vsub.f32 %v8306, %v8316
    %v8339 = vsub.f32 %v8307, %v8319
    %v8340 = vsub.f32 %v8308, %v8322
    %v8341 = vsub.f32 %v8309, %v8325
    %v8342 = vsub.f32 %v8310, %v8328
    %v8343 = vsub.f32 %v8311, %v8331
    %v8344 = vsub.f32 %v8312, %v8334
    %v8345 = vsub.f32 %v8313, %v8337
    %v8346 = vmul.f32 %v8338, 1.442695
    %v8347 = vpow.pop %v8346
    %v8348 = vmul.f32 %v8339, 1.442695
    %v8349 = vpow.pop %v8348
    %v8350 = vmul.f32 %v8340, 1.442695
    %v8351 = vpow.pop %v8350
    %v8352 = vmul.f32 %v8341, 1.442695
    %v8353 = vpow.pop %v8352
    %v8354 = vmul.f32 %v8342, 1.442695
    %v8355 = vpow.pop %v8354
    %v8356 = vmul.f32 %v8343, 1.442695
    %v8357 = vpow.pop %v8356
    %v8358 = vmul.f32 %v8344, 1.442695
    %v8359 = vpow.pop %v8358
    %v8360 = vmul.f32 %v8345, 1.442695
    %v8361 = vpow.pop %v8360
    %v8362 = vsel %vm484, %v8347, 0.0
    %8363 = vadd.xlane.f32.xlu0 %v8362
    %v8364 = vpop.xlane.xlu0 %8363
    %v8365 = vsel %vm484, %v8349, 0.0
    %8366 = vadd.xlane.f32.xlu0 %v8365
    %v8367 = vpop.xlane.xlu0 %8366
    %v8368 = vsel %vm484, %v8351, 0.0
    %8369 = vadd.xlane.f32.xlu0 %v8368
    %v8370 = vpop.xlane.xlu0 %8369
    %v8371 = vsel %vm484, %v8353, 0.0
    %8372 = vadd.xlane.f32.xlu0 %v8371
    %v8373 = vpop.xlane.xlu0 %8372
    %v8374 = vsel %vm484, %v8355, 0.0
    %8375 = vadd.xlane.f32.xlu0 %v8374
    %v8376 = vpop.xlane.xlu0 %8375
    %v8377 = vsel %vm484, %v8357, 0.0
    %8378 = vadd.xlane.f32.xlu0 %v8377
    %v8379 = vpop.xlane.xlu0 %8378
    %v8380 = vsel %vm484, %v8359, 0.0
    %8381 = vadd.xlane.f32.xlu0 %v8380
    %v8382 = vpop.xlane.xlu0 %8381
    %v8383 = vsel %vm484, %v8361, 0.0
    %8384 = vadd.xlane.f32.xlu0 %v8383
    %v8385 = vpop.xlane.xlu0 %8384
    %v8386 = vrcp.pop %v8364
    %v8387 = vrcp.pop %v8367
    %v8388 = vrcp.pop %v8370
    %v8389 = vrcp.pop %v8373
    %v8390 = vrcp.pop %v8376
    %v8391 = vrcp.pop %v8379
    %v8392 = vrcp.pop %v8382
    %v8393 = vrcp.pop %v8385
    %v8394 = vmul.f32 %v8347, %v8386
    %v8395 = vmul.f32 %v8349, %v8387
    %v8396 = vmul.f32 %v8351, %v8388
    %v8397 = vmul.f32 %v8353, %v8389
    %v8398 = vmul.f32 %v8355, %v8390
    %v8399 = vmul.f32 %v8357, %v8391
    %v8400 = vmul.f32 %v8359, %v8392
    %v8401 = vmul.f32 %v8361, %v8393
    %v8402 = vpack.c.bf16 %v8395, %v8394
    %v8403 = vpack.c.bf16 %v8397, %v8396
    %v8404 = vpack.c.bf16 %v8399, %v8398
    %v8405 = vpack.c.bf16 %v8401, %v8400
    %8406 = vrot.lane.b32.xlu0 %v6073, 72
    %v8407 = vpop.permute.xlu0 %8406
    %8408 = vrot.lane.b32.xlu0 %v6074, 72
    %v8409 = vpop.permute.xlu0 %8408
    %8410 = vrot.lane.b32.xlu0 %v6075, 72
    %v8411 = vpop.permute.xlu0 %8410
    %8412 = vrot.lane.b32.xlu0 %v6076, 72
    %v8413 = vpop.permute.xlu0 %8412
    %v8419 = vsel %vm484, %v8402, 0
    %v8422 = vsel %vm484, %v8403, 0
    %v8425 = vsel %vm484, %v8404, 0
    %v8428 = vsel %vm484, %v8405, 0
    %8430 = vmatprep.subr.bf16.mxu0 0
    %8431 = vmatpush1.bf16.msra.mxu0 %v8407
    %8432 = vmatprep.subr.bf16.mxu0 0
    %8433 = vmatpush1.bf16.msra.mxu0 %v8409
    %8434 = vmatprep.subr.bf16.mxu0 0
    %8435 = vmatpush1.bf16.msra.mxu0 %v8411
    %8436 = vmatprep.subr.bf16.mxu0 0
    %8437 = vmatpush1.bf16.msra.mxu0 %v8413
    %8438 = vmatprep.subr.bf16.mxu0 0
    %8439 = vmatpush1.bf16.msra.mxu0 0
    %8440 = vmatprep.subr.bf16.mxu0 0
    %8441 = vmatpush1.bf16.msra.mxu0 0
    %8442 = vmatprep.subr.bf16.mxu0 0
    %8443 = vmatpush1.bf16.msra.mxu0 0
    %8444 = vmatprep.subr.bf16.mxu0 0
    %8445 = vmatpush1.bf16.msra.mxu0 0
    %8446 = vmatprep.subr.bf16.mxu0 0
    %8447 = vmatpush1.bf16.msra.mxu0 0
    %8448 = vmatprep.subr.bf16.mxu0 0
    %8449 = vmatpush1.bf16.msra.mxu0 0
    %8450 = vmatprep.subr.bf16.mxu0 0
    %8451 = vmatpush1.bf16.msra.mxu0 0
    %8452 = vmatprep.subr.bf16.mxu0 0
    %8453 = vmatpush1.bf16.msra.mxu0 0
    %8454 = vmatprep.subr.bf16.mxu0 0
    %8455 = vmatpush1.bf16.msra.mxu0 0
    %8456 = vmatprep.subr.bf16.mxu0 0
    %8457 = vmatpush1.bf16.msra.mxu0 0
    %8458 = vmatprep.subr.bf16.mxu0 0
    %8459 = vmatpush1.bf16.msra.mxu0 0
    %8460 = vmatprep.subr.bf16.mxu0 0
    %8461 = vmatpush1.bf16.msra.mxu0 0
    %8462 = vmatprep.mubr.bf16.mxu0 0
    %8463 = vmatmul.mubr.bf16.gmra.mrb[0].mxu0 %v8419
    %v8464 = vpop.f32.mrb[0].mxu0
    %v8465 = vadd.f32 0.0, %v8464
    %v8466 = vpop.f32.mrb[0].mxu0
    %v8467 = vpop.f32.mrb[0].mxu0
    %v8468 = vadd.f32 0.0, %v8467
    %v8469 = vpop.f32.mrb[0].mxu0
    %8470 = vmatprep.mubr.bf16.mxu0 0
    %8471 = vmatmul.mubr.bf16.gmra.mrb[0].mxu0 %v8422
    %v8472 = vpop.f32.mrb[0].mxu0
    %v8473 = vadd.f32 0.0, %v8472
    %v8474 = vpop.f32.mrb[0].mxu0
    %v8475 = vpop.f32.mrb[0].mxu0
    %v8476 = vadd.f32 0.0, %v8475
    %v8477 = vpop.f32.mrb[0].mxu0
    %8478 = vmatprep.mubr.bf16.mxu0 0
    %8479 = vmatmul.mubr.bf16.gmra.mrb[0].mxu0 %v8425
    %v8480 = vpop.f32.mrb[0].mxu0
    %v8481 = vadd.f32 0.0, %v8480
    %v8482 = vpop.f32.mrb[0].mxu0
    %v8483 = vpop.f32.mrb[0].mxu0
    %v8484 = vadd.f32 0.0, %v8483
    %v8485 = vpop.f32.mrb[0].mxu0
    %8486 = vmatprep.mubr.bf16.mxu0 0
    %8487 = vmatmul.mubr.bf16.gmra.mrb[0].mxu0 %v8428
    %v8488 = vpop.f32.mrb[0].mxu0
    %v8489 = vadd.f32 0.0, %v8488
    %v8490 = vpop.f32.mrb[0].mxu0
    %v8491 = vpop.f32.mrb[0].mxu0
    %v8492 = vadd.f32 0.0, %v8491
    %v8493 = vpop.f32.mrb[0].mxu0
    %8494 = vdwg.mxu0
    %8503 = vrot.lane.b32.xlu0 %v8465, 56
    %v8504 = vpop.permute.xlu0 %8503
    %8505 = vrot.lane.b32.xlu0 %v8468, 56
    %v8506 = vpop.permute.xlu0 %8505
    %8507 = vrot.lane.b32.xlu0 %v8473, 56
    %v8508 = vpop.permute.xlu0 %8507
    %8509 = vrot.lane.b32.xlu0 %v8476, 56
    %v8510 = vpop.permute.xlu0 %8509
    %8511 = vrot.lane.b32.xlu0 %v8481, 56
    %v8512 = vpop.permute.xlu0 %8511
    %8513 = vrot.lane.b32.xlu0 %v8484, 56
    %v8514 = vpop.permute.xlu0 %8513
    %8515 = vrot.lane.b32.xlu0 %v8489, 56
    %v8516 = vpop.permute.xlu0 %8515
    %8517 = vrot.lane.b32.xlu0 %v8492, 56
    %v8518 = vpop.permute.xlu0 %8517
    %8527 = vst.msk [vmem:[#allocation2] sm:$0xff] %vm2744, %v8504
    %8528 = vst.msk [vmem:[#allocation2 + $0x8] sm:$0xff] %vm2744, %v8506
    %8529 = vst.msk [vmem:[#allocation2 + $0x10] sm:$0xff] %vm2744, %v8508
    %8530 = vst.msk [vmem:[#allocation2 + $0x18] sm:$0xff] %vm2744, %v8510
    %8531 = vst.msk [vmem:[#allocation2 + $0x20] sm:$0xff] %vm2744, %v8512
    %8532 = vst.msk [vmem:[#allocation2 + $0x28] sm:$0xff] %vm2744, %v8514
    %8533 = vst.msk [vmem:[#allocation2 + $0x30] sm:$0xff] %vm2744, %v8516
    %8534 = vst.msk [vmem:[#allocation2 + $0x38] sm:$0xff] %vm2744, %v8518
    %v8535 = vld [vmem:[#allocation2] sm:$0xff]
    %v8536 = vld [vmem:[#allocation2 + $0x8] sm:$0xff]
    %v8537 = vld [vmem:[#allocation2 + $0x10] sm:$0xff]
    %v8538 = vld [vmem:[#allocation2 + $0x18] sm:$0xff]
    %v8539 = vld [vmem:[#allocation2 + $0x20] sm:$0xff]
    %v8540 = vld [vmem:[#allocation2 + $0x28] sm:$0xff]
    %v8541 = vld [vmem:[#allocation2 + $0x30] sm:$0xff]
    %v8542 = vld [vmem:[#allocation2 + $0x38] sm:$0xff]
    %v8544 = vlaneseq
    %v8545 = vshrl.u32 %v8544, 7
    %v8546 = vsub.s32 0, %v8545
    %v8547 = vrot.slane %v5995, %v8546
    %v8549 = vadd.f32 %v8535, %v8547
    %v8550 = vadd.f32 %v8536, %v8547
    %v8551 = vadd.f32 %v8537, %v8547
    %v8552 = vadd.f32 %v8538, %v8547
    %v8553 = vadd.f32 %v8539, %v8547
    %v8554 = vadd.f32 %v8540, %v8547
    %v8555 = vadd.f32 %v8541, %v8547
    %v8556 = vadd.f32 %v8542, %v8547
    %vm8557 = vcmp.gt.f32.partialorder %v8549, 0.0
    %vm8558 = vcmp.gt.f32.partialorder %v8550, 0.0
    %vm8559 = vcmp.gt.f32.partialorder %v8551, 0.0
    %vm8560 = vcmp.gt.f32.partialorder %v8552, 0.0
    %vm8561 = vcmp.gt.f32.partialorder %v8553, 0.0
    %vm8562 = vcmp.gt.f32.partialorder %v8554, 0.0
    %vm8563 = vcmp.gt.f32.partialorder %v8555, 0.0
    %vm8564 = vcmp.gt.f32.partialorder %v8556, 0.0
    %v8565 = vmin.f32 %v8549, 0.0
    %v8566 = vmin.f32 %v8550, 0.0
    %v8567 = vmin.f32 %v8551, 0.0
    %v8568 = vmin.f32 %v8552, 0.0
    %v8569 = vmin.f32 %v8553, 0.0
    %v8570 = vmin.f32 %v8554, 0.0
    %v8571 = vmin.f32 %v8555, 0.0
    %v8572 = vmin.f32 %v8556, 0.0
    %v8573 = vmul.f32 %v8565, 1.442695
    %v8574 = vpow.pop %v8573
    %v8575 = vmul.f32 %v8566, 1.442695
    %v8576 = vpow.pop %v8575
    %v8577 = vmul.f32 %v8567, 1.442695
    %v8578 = vpow.pop %v8577
    %v8579 = vmul.f32 %v8568, 1.442695
    %v8580 = vpow.pop %v8579
    %v8581 = vmul.f32 %v8569, 1.442695
    %v8582 = vpow.pop %v8581
    %v8583 = vmul.f32 %v8570, 1.442695
    %v8584 = vpow.pop %v8583
    %v8585 = vmul.f32 %v8571, 1.442695
    %v8586 = vpow.pop %v8585
    %v8587 = vmul.f32 %v8572, 1.442695
    %v8588 = vpow.pop %v8587
    %v8589 = vsub.f32 %v8574, 1.0
    %v8590 = vsub.f32 %v8576, 1.0
    %v8591 = vsub.f32 %v8578, 1.0
    %v8592 = vsub.f32 %v8580, 1.0
    %v8593 = vsub.f32 %v8582, 1.0
    %v8594 = vsub.f32 %v8584, 1.0
    %v8595 = vsub.f32 %v8586, 1.0
    %v8596 = vsub.f32 %v8588, 1.0
    %v8597 = vsel %vm8557, %v8549, %v8589
    %v8598 = vsel %vm8558, %v8550, %v8590
    %v8599 = vsel %vm8559, %v8551, %v8591
    %v8600 = vsel %vm8560, %v8552, %v8592
    %v8601 = vsel %vm8561, %v8553, %v8593
    %v8602 = vsel %vm8562, %v8554, %v8594
    %v8603 = vsel %vm8563, %v8555, %v8595
    %v8604 = vsel %vm8564, %v8556, %v8596
    %v8605 = vadd.f32 %v5950, %v8597
    %v8606 = vadd.f32 %v5951, %v8598
    %v8607 = vadd.f32 %v5952, %v8599
    %v8608 = vadd.f32 %v5953, %v8600
    %v8609 = vadd.f32 %v5954, %v8601
    %v8610 = vadd.f32 %v5955, %v8602
    %v8611 = vadd.f32 %v5956, %v8603
    %v8612 = vadd.f32 %v5957, %v8604
    %s8613 = scalar_lea.vmem %s10, 1
    %v8614 = vld [vmem:[%s8613] sm:$0x1]
    %s8615 = scalar_lea.vmem %s11, 1
    %v8616 = vld [vmem:[%s8615] sm:$0x1]
    %8617 = vadd.xlane.f32.xlu0 %v8605
    %v8618 = vpop.xlane.xlu0 %8617
    %8619 = vadd.xlane.f32.xlu0 %v8606
    %v8620 = vpop.xlane.xlu0 %8619
    %8621 = vadd.xlane.f32.xlu0 %v8607
    %v8622 = vpop.xlane.xlu0 %8621
    %8623 = vadd.xlane.f32.xlu0 %v8608
    %v8624 = vpop.xlane.xlu0 %8623
    %8625 = vadd.xlane.f32.xlu0 %v8609
    %v8626 = vpop.xlane.xlu0 %8625
    %8627 = vadd.xlane.f32.xlu0 %v8610
    %v8628 = vpop.xlane.xlu0 %8627
    %8629 = vadd.xlane.f32.xlu0 %v8611
    %v8630 = vpop.xlane.xlu0 %8629
    %8631 = vadd.xlane.f32.xlu0 %v8612
    %v8632 = vpop.xlane.xlu0 %8631
    %v8633 = vmul.f32 %v8605, %v8605
    %v8634 = vmul.f32 %v8606, %v8606
    %v8635 = vmul.f32 %v8607, %v8607
    %v8636 = vmul.f32 %v8608, %v8608
    %v8637 = vmul.f32 %v8609, %v8609
    %v8638 = vmul.f32 %v8610, %v8610
    %v8639 = vmul.f32 %v8611, %v8611
    %v8640 = vmul.f32 %v8612, %v8612
    %8641 = vadd.xlane.f32.xlu0 %v8633
    %v8642 = vpop.xlane.xlu0 %8641
    %8643 = vadd.xlane.f32.xlu0 %v8634
    %v8644 = vpop.xlane.xlu0 %8643
    %8645 = vadd.xlane.f32.xlu0 %v8635
    %v8646 = vpop.xlane.xlu0 %8645
    %8647 = vadd.xlane.f32.xlu0 %v8636
    %v8648 = vpop.xlane.xlu0 %8647
    %8649 = vadd.xlane.f32.xlu0 %v8637
    %v8650 = vpop.xlane.xlu0 %8649
    %8651 = vadd.xlane.f32.xlu0 %v8638
    %v8652 = vpop.xlane.xlu0 %8651
    %8653 = vadd.xlane.f32.xlu0 %v8639
    %v8654 = vpop.xlane.xlu0 %8653
    %8655 = vadd.xlane.f32.xlu0 %v8640
    %v8656 = vpop.xlane.xlu0 %8655
    %v8657 = vmul.f32 %v8618, 0.015625
    %v8658 = vmul.f32 %v8620, 0.015625
    %v8659 = vmul.f32 %v8622, 0.015625
    %v8660 = vmul.f32 %v8624, 0.015625
    %v8661 = vmul.f32 %v8626, 0.015625
    %v8662 = vmul.f32 %v8628, 0.015625
    %v8663 = vmul.f32 %v8630, 0.015625
    %v8664 = vmul.f32 %v8632, 0.015625
    %v8665 = vmul.f32 %v8642, 0.015625
    %v8666 = vmul.f32 %v8644, 0.015625
    %v8667 = vmul.f32 %v8646, 0.015625
    %v8668 = vmul.f32 %v8648, 0.015625
    %v8669 = vmul.f32 %v8650, 0.015625
    %v8670 = vmul.f32 %v8652, 0.015625
    %v8671 = vmul.f32 %v8654, 0.015625
    %v8672 = vmul.f32 %v8656, 0.015625
    %v8673 = vmul.f32 %v8657, %v8657
    %v8674 = vmul.f32 %v8658, %v8658
    %v8675 = vmul.f32 %v8659, %v8659
    %v8676 = vmul.f32 %v8660, %v8660
    %v8677 = vmul.f32 %v8661, %v8661
    %v8678 = vmul.f32 %v8662, %v8662
    %v8679 = vmul.f32 %v8663, %v8663
    %v8680 = vmul.f32 %v8664, %v8664
    %v8681 = vsub.f32 %v8665, %v8673
    %v8682 = vsub.f32 %v8666, %v8674
    %v8683 = vsub.f32 %v8667, %v8675
    %v8684 = vsub.f32 %v8668, %v8676
    %v8685 = vsub.f32 %v8669, %v8677
    %v8686 = vsub.f32 %v8670, %v8678
    %v8687 = vsub.f32 %v8671, %v8679
    %v8688 = vsub.f32 %v8672, %v8680
    %v8689 = vadd.f32 %v8681, 1e-05
    %v8690 = vadd.f32 %v8682, 1e-05
    %v8691 = vadd.f32 %v8683, 1e-05
    %v8692 = vadd.f32 %v8684, 1e-05
    %v8693 = vadd.f32 %v8685, 1e-05
    %v8694 = vadd.f32 %v8686, 1e-05
    %v8695 = vadd.f32 %v8687, 1e-05
    %v8696 = vadd.f32 %v8688, 1e-05
    %v8697 = vrsqrt.pop %v8689
    %v8698 = vrsqrt.pop %v8690
    %v8699 = vrsqrt.pop %v8691
    %v8700 = vrsqrt.pop %v8692
    %v8701 = vrsqrt.pop %v8693
    %v8702 = vrsqrt.pop %v8694
    %v8703 = vrsqrt.pop %v8695
    %v8704 = vrsqrt.pop %v8696
    %v8705 = vsub.f32 %v8605, %v8657
    %v8706 = vsub.f32 %v8606, %v8658
    %v8707 = vsub.f32 %v8607, %v8659
    %v8708 = vsub.f32 %v8608, %v8660
    %v8709 = vsub.f32 %v8609, %v8661
    %v8710 = vsub.f32 %v8610, %v8662
    %v8711 = vsub.f32 %v8611, %v8663
    %v8712 = vsub.f32 %v8612, %v8664
    %v8713 = vmul.f32 %v8705, %v8697
    %v8714 = vmul.f32 %v8706, %v8698
    %v8715 = vmul.f32 %v8707, %v8699
    %v8716 = vmul.f32 %v8708, %v8700
    %v8717 = vmul.f32 %v8709, %v8701
    %v8718 = vmul.f32 %v8710, %v8702
    %v8719 = vmul.f32 %v8711, %v8703
    %v8720 = vmul.f32 %v8712, %v8704
    %v8722 = vlaneseq
    %v8723 = vshrl.u32 %v8722, 7
    %v8724 = vsub.s32 0, %v8723
    %v8725 = vrot.slane %v8614, %v8724
    %v8727 = vmul.f32 %v8713, %v8725
    %v8728 = vmul.f32 %v8714, %v8725
    %v8729 = vmul.f32 %v8715, %v8725
    %v8730 = vmul.f32 %v8716, %v8725
    %v8731 = vmul.f32 %v8717, %v8725
    %v8732 = vmul.f32 %v8718, %v8725
    %v8733 = vmul.f32 %v8719, %v8725
    %v8734 = vmul.f32 %v8720, %v8725
    %v8736 = vlaneseq
    %v8737 = vshrl.u32 %v8736, 7
    %v8738 = vsub.s32 0, %v8737
    %v8739 = vrot.slane %v8616, %v8738
    %v8741 = vadd.f32 %v8727, %v8739
    %v8742 = vadd.f32 %v8728, %v8739
    %v8743 = vadd.f32 %v8729, %v8739
    %v8744 = vadd.f32 %v8730, %v8739
    %v8745 = vadd.f32 %v8731, %v8739
    %v8746 = vadd.f32 %v8732, %v8739
    %v8747 = vadd.f32 %v8733, %v8739
    %v8748 = vadd.f32 %v8734, %v8739
    %v8749 = vpack.c.bf16 %v8742, %v8741
    %v8750 = vpack.c.bf16 %v8744, %v8743
    %v8751 = vpack.c.bf16 %v8746, %v8745
    %v8752 = vpack.c.bf16 %v8748, %v8747
    %s8753 = scalar_lea.vmem [#allocation11], 128
    %v8754 = vld [vmem:[%s8753] sm:$0xff]
    %v8755 = vld [vmem:[%s8753 + $0x8] sm:$0xff]
    %v8756 = vld [vmem:[%s8753 + $0x10] sm:$0xff]
    %v8757 = vld [vmem:[%s8753 + $0x18] sm:$0xff]
    %v8758 = vld [vmem:[%s8753 + $0x20] sm:$0xff]
    %v8759 = vld [vmem:[%s8753 + $0x28] sm:$0xff]
    %v8760 = vld [vmem:[%s8753 + $0x30] sm:$0xff]
    %v8761 = vld [vmem:[%s8753 + $0x38] sm:$0xff]
    %v8762 = vld [vmem:[%s8753 + $0x40] sm:$0xff]
    %v8763 = vld [vmem:[%s8753 + $0x48] sm:$0xff]
    %v8764 = vld [vmem:[%s8753 + $0x50] sm:$0xff]
    %v8765 = vld [vmem:[%s8753 + $0x58] sm:$0xff]
    %v8766 = vld [vmem:[%s8753 + $0x60] sm:$0xff]
    %v8767 = vld [vmem:[%s8753 + $0x68] sm:$0xff]
    %v8768 = vld [vmem:[%s8753 + $0x70] sm:$0xff]
    %v8769 = vld [vmem:[%s8753 + $0x78] sm:$0xff]
    %v8770 = vpack.c.bf16 %v8755, %v8754
    %v8771 = vpack.c.bf16 %v8757, %v8756
    %v8772 = vpack.c.bf16 %v8759, %v8758
    %v8773 = vpack.c.bf16 %v8761, %v8760
    %v8774 = vpack.c.bf16 %v8763, %v8762
    %v8775 = vpack.c.bf16 %v8765, %v8764
    %v8776 = vpack.c.bf16 %v8767, %v8766
    %v8777 = vpack.c.bf16 %v8769, %v8768
    %s8778 = scalar_lea.vmem %s13, 1
    %v8779 = vld [vmem:[%s8778] sm:$0x1]
    %v8781 = vlaneseq
    %v8782 = vshrl.u32 %v8781, 7
    %v8783 = vsub.s32 0, %v8782
    %v8784 = vrot.slane %v8779, %v8783
    %8786 = vmatprep.subr.bf16.mxu0 0
    %8787 = vmatpush1.bf16.msra.mxu0 %v8770
    %8788 = vmatprep.subr.bf16.mxu0 0
    %8789 = vmatpush1.bf16.msra.mxu0 %v8771
    %8790 = vmatprep.subr.bf16.mxu0 0
    %8791 = vmatpush1.bf16.msra.mxu0 %v8772
    %8792 = vmatprep.subr.bf16.mxu0 0
    %8793 = vmatpush1.bf16.msra.mxu0 %v8773
    %8794 = vmatprep.subr.bf16.mxu0 0
    %8795 = vmatpush1.bf16.msra.mxu0 %v8774
    %8796 = vmatprep.subr.bf16.mxu0 0
    %8797 = vmatpush1.bf16.msra.mxu0 %v8775
    %8798 = vmatprep.subr.bf16.mxu0 0
    %8799 = vmatpush1.bf16.msra.mxu0 %v8776
    %8800 = vmatprep.subr.bf16.mxu0 0
    %8801 = vmatpush1.bf16.msra.mxu0 %v8777
    %8802 = vmatprep.subr.bf16.mxu0 0
    %8803 = vmatpush1.bf16.msra.mxu0 0
    %8804 = vmatprep.subr.bf16.mxu0 0
    %8805 = vmatpush1.bf16.msra.mxu0 0
    %8806 = vmatprep.subr.bf16.mxu0 0
    %8807 = vmatpush1.bf16.msra.mxu0 0
    %8808 = vmatprep.subr.bf16.mxu0 0
    %8809 = vmatpush1.bf16.msra.mxu0 0
    %8810 = vmatprep.subr.bf16.mxu0 0
    %8811 = vmatpush1.bf16.msra.mxu0 0
    %8812 = vmatprep.subr.bf16.mxu0 0
    %8813 = vmatpush1.bf16.msra.mxu0 0
    %8814 = vmatprep.subr.bf16.mxu0 0
    %8815 = vmatpush1.bf16.msra.mxu0 0
    %8816 = vmatprep.subr.bf16.mxu0 0
    %8817 = vmatpush1.bf16.msra.mxu0 0
    %8818 = vmatprep.mubr.bf16.mxu0 0
    %8819 = vmatmul.mubr.bf16.gmra.mrb[0].mxu0 %v8749
    %v8820 = vpop.f32.mrb[0].mxu0
    %v8821 = vadd.f32 %v8784, %v8820
    %v8822 = vpop.f32.mrb[0].mxu0
    %v8823 = vpop.f32.mrb[0].mxu0
    %v8824 = vadd.f32 %v8784, %v8823
    %v8825 = vpop.f32.mrb[0].mxu0
    %8826 = vmatprep.mubr.bf16.mxu0 0
    %8827 = vmatmul.mubr.bf16.gmra.mrb[0].mxu0 %v8750
    %v8828 = vpop.f32.mrb[0].mxu0
    %v8829 = vadd.f32 %v8784, %v8828
    %v8830 = vpop.f32.mrb[0].mxu0
    %v8831 = vpop.f32.mrb[0].mxu0
    %v8832 = vadd.f32 %v8784, %v8831
    %v8833 = vpop.f32.mrb[0].mxu0
    %8834 = vmatprep.mubr.bf16.mxu0 0
    %8835 = vmatmul.mubr.bf16.gmra.mrb[0].mxu0 %v8751
    %v8836 = vpop.f32.mrb[0].mxu0
    %v8837 = vadd.f32 %v8784, %v8836
    %v8838 = vpop.f32.mrb[0].mxu0
    %v8839 = vpop.f32.mrb[0].mxu0
    %v8840 = vadd.f32 %v8784, %v8839
    %v8841 = vpop.f32.mrb[0].mxu0
    %8842 = vmatprep.mubr.bf16.mxu0 0
    %8843 = vmatmul.mubr.bf16.gmra.mrb[0].mxu0 %v8752
    %v8844 = vpop.f32.mrb[0].mxu0
    %v8845 = vadd.f32 %v8784, %v8844
    %v8846 = vpop.f32.mrb[0].mxu0
    %v8847 = vpop.f32.mrb[0].mxu0
    %v8848 = vadd.f32 %v8784, %v8847
    %v8849 = vpop.f32.mrb[0].mxu0
    %8850 = vdwg.mxu0
    %v8851 = vmax.f32 %v8821, 0.0
    %v8852 = vmax.f32 %v8824, 0.0
    %v8853 = vmax.f32 %v8829, 0.0
    %v8854 = vmax.f32 %v8832, 0.0
    %v8855 = vmax.f32 %v8837, 0.0
    %v8856 = vmax.f32 %v8840, 0.0
    %v8857 = vmax.f32 %v8845, 0.0
    %v8858 = vmax.f32 %v8848, 0.0
    %v8859 = vpack.c.bf16 %v8852, %v8851
    %v8860 = vpack.c.bf16 %v8854, %v8853
    %v8861 = vpack.c.bf16 %v8856, %v8855
    %v8862 = vpack.c.bf16 %v8858, %v8857
    %s8863 = scalar_lea.vmem [#allocation12], 128
    %v8864 = vld [vmem:[%s8863] sm:$0xff]
    %v8865 = vld [vmem:[%s8863 + $0x8] sm:$0xff]
    %v8866 = vld [vmem:[%s8863 + $0x10] sm:$0xff]
    %v8867 = vld [vmem:[%s8863 + $0x18] sm:$0xff]
    %v8868 = vld [vmem:[%s8863 + $0x20] sm:$0xff]
    %v8869 = vld [vmem:[%s8863 + $0x28] sm:$0xff]
    %v8870 = vld [vmem:[%s8863 + $0x30] sm:$0xff]
    %v8871 = vld [vmem:[%s8863 + $0x38] sm:$0xff]
    %v8872 = vld [vmem:[%s8863 + $0x40] sm:$0xff]
    %v8873 = vld [vmem:[%s8863 + $0x48] sm:$0xff]
    %v8874 = vld [vmem:[%s8863 + $0x50] sm:$0xff]
    %v8875 = vld [vmem:[%s8863 + $0x58] sm:$0xff]
    %v8876 = vld [vmem:[%s8863 + $0x60] sm:$0xff]
    %v8877 = vld [vmem:[%s8863 + $0x68] sm:$0xff]
    %v8878 = vld [vmem:[%s8863 + $0x70] sm:$0xff]
    %v8879 = vld [vmem:[%s8863 + $0x78] sm:$0xff]
    %v8880 = vpack.c.bf16 %v8865, %v8864
    %v8881 = vpack.c.bf16 %v8867, %v8866
    %v8882 = vpack.c.bf16 %v8869, %v8868
    %v8883 = vpack.c.bf16 %v8871, %v8870
    %v8884 = vpack.c.bf16 %v8873, %v8872
    %v8885 = vpack.c.bf16 %v8875, %v8874
    %v8886 = vpack.c.bf16 %v8877, %v8876
    %v8887 = vpack.c.bf16 %v8879, %v8878
    %s8888 = scalar_lea.vmem %s15, 1
    %v8889 = vld [vmem:[%s8888] sm:$0x1]
    %v8891 = vlaneseq
    %v8892 = vshrl.u32 %v8891, 7
    %v8893 = vsub.s32 0, %v8892
    %v8894 = vrot.slane %v8889, %v8893
    %8896 = vmatprep.subr.bf16.mxu0 0
    %8897 = vmatpush1.bf16.msra.mxu0 %v8880
    %8898 = vmatprep.subr.bf16.mxu0 0
    %8899 = vmatpush1.bf16.msra.mxu0 %v8881
    %8900 = vmatprep.subr.bf16.mxu0 0
    %8901 = vmatpush1.bf16.msra.mxu0 %v8882
    %8902 = vmatprep.subr.bf16.mxu0 0
    %8903 = vmatpush1.bf16.msra.mxu0 %v8883
    %8904 = vmatprep.subr.bf16.mxu0 0
    %8905 = vmatpush1.bf16.msra.mxu0 %v8884
    %8906 = vmatprep.subr.bf16.mxu0 0
    %8907 = vmatpush1.bf16.msra.mxu0 %v8885
    %8908 = vmatprep.subr.bf16.mxu0 0
    %8909 = vmatpush1.bf16.msra.mxu0 %v8886
    %8910 = vmatprep.subr.bf16.mxu0 0
    %8911 = vmatpush1.bf16.msra.mxu0 %v8887
    %8912 = vmatprep.subr.bf16.mxu0 0
    %8913 = vmatpush1.bf16.msra.mxu0 0
    %8914 = vmatprep.subr.bf16.mxu0 0
    %8915 = vmatpush1.bf16.msra.mxu0 0
    %8916 = vmatprep.subr.bf16.mxu0 0
    %8917 = vmatpush1.bf16.msra.mxu0 0
    %8918 = vmatprep.subr.bf16.mxu0 0
    %8919 = vmatpush1.bf16.msra.mxu0 0
    %8920 = vmatprep.subr.bf16.mxu0 0
    %8921 = vmatpush1.bf16.msra.mxu0 0
    %8922 = vmatprep.subr.bf16.mxu0 0
    %8923 = vmatpush1.bf16.msra.mxu0 0
    %8924 = vmatprep.subr.bf16.mxu0 0
    %8925 = vmatpush1.bf16.msra.mxu0 0
    %8926 = vmatprep.subr.bf16.mxu0 0
    %8927 = vmatpush1.bf16.msra.mxu0 0
    %8928 = vmatprep.mubr.bf16.mxu0 0
    %8929 = vmatmul.mubr.bf16.gmra.mrb[0].mxu0 %v8859
    %v8930 = vpop.f32.mrb[0].mxu0
    %v8931 = vadd.f32 %v8894, %v8930
    %v8932 = vpop.f32.mrb[0].mxu0
    %v8933 = vpop.f32.mrb[0].mxu0
    %v8934 = vadd.f32 %v8894, %v8933
    %v8935 = vpop.f32.mrb[0].mxu0
    %8936 = vmatprep.mubr.bf16.mxu0 0
    %8937 = vmatmul.mubr.bf16.gmra.mrb[0].mxu0 %v8860
    %v8938 = vpop.f32.mrb[0].mxu0
    %v8939 = vadd.f32 %v8894, %v8938
    %v8940 = vpop.f32.mrb[0].mxu0
    %v8941 = vpop.f32.mrb[0].mxu0
    %v8942 = vadd.f32 %v8894, %v8941
    %v8943 = vpop.f32.mrb[0].mxu0
    %8944 = vmatprep.mubr.bf16.mxu0 0
    %8945 = vmatmul.mubr.bf16.gmra.mrb[0].mxu0 %v8861
    %v8946 = vpop.f32.mrb[0].mxu0
    %v8947 = vadd.f32 %v8894, %v8946
    %v8948 = vpop.f32.mrb[0].mxu0
    %v8949 = vpop.f32.mrb[0].mxu0
    %v8950 = vadd.f32 %v8894, %v8949
    %v8951 = vpop.f32.mrb[0].mxu0
    %8952 = vmatprep.mubr.bf16.mxu0 0
    %8953 = vmatmul.mubr.bf16.gmra.mrb[0].mxu0 %v8862
    %v8954 = vpop.f32.mrb[0].mxu0
    %v8955 = vadd.f32 %v8894, %v8954
    %v8956 = vpop.f32.mrb[0].mxu0
    %v8957 = vpop.f32.mrb[0].mxu0
    %v8958 = vadd.f32 %v8894, %v8957
    %v8959 = vpop.f32.mrb[0].mxu0
    %8960 = vdwg.mxu0
    %v8961 = vadd.f32 %v8741, %v8931
    %v8962 = vadd.f32 %v8742, %v8934
    %v8963 = vadd.f32 %v8743, %v8939
    %v8964 = vadd.f32 %v8744, %v8942
    %v8965 = vadd.f32 %v8745, %v8947
    %v8966 = vadd.f32 %v8746, %v8950
    %v8967 = vadd.f32 %v8747, %v8955
    %v8968 = vadd.f32 %v8748, %v8958
    %s8969 = scalar_lea.vmem %s16, 1
    %v8970 = vld [vmem:[%s8969] sm:$0x1]
    %s8971 = scalar_lea.vmem %s17, 1
    %v8972 = vld [vmem:[%s8971] sm:$0x1]
    %8973 = vadd.xlane.f32.xlu0 %v8961
    %v8974 = vpop.xlane.xlu0 %8973
    %8975 = vadd.xlane.f32.xlu0 %v8962
    %v8976 = vpop.xlane.xlu0 %8975
    %8977 = vadd.xlane.f32.xlu0 %v8963
    %v8978 = vpop.xlane.xlu0 %8977
    %8979 = vadd.xlane.f32.xlu0 %v8964
    %v8980 = vpop.xlane.xlu0 %8979
    %8981 = vadd.xlane.f32.xlu0 %v8965
    %v8982 = vpop.xlane.xlu0 %8981
    %8983 = vadd.xlane.f32.xlu0 %v8966
    %v8984 = vpop.xlane.xlu0 %8983
    %8985 = vadd.xlane.f32.xlu0 %v8967
    %v8986 = vpop.xlane.xlu0 %8985
    %8987 = vadd.xlane.f32.xlu0 %v8968
    %v8988 = vpop.xlane.xlu0 %8987
    %v8989 = vmul.f32 %v8961, %v8961
    %v8990 = vmul.f32 %v8962, %v8962
    %v8991 = vmul.f32 %v8963, %v8963
    %v8992 = vmul.f32 %v8964, %v8964
    %v8993 = vmul.f32 %v8965, %v8965
    %v8994 = vmul.f32 %v8966, %v8966
    %v8995 = vmul.f32 %v8967, %v8967
    %v8996 = vmul.f32 %v8968, %v8968
    %8997 = vadd.xlane.f32.xlu0 %v8989
    %v8998 = vpop.xlane.xlu0 %8997
    %8999 = vadd.xlane.f32.xlu0 %v8990
    %v9000 = vpop.xlane.xlu0 %8999
    %9001 = vadd.xlane.f32.xlu0 %v8991
    %v9002 = vpop.xlane.xlu0 %9001
    %9003 = vadd.xlane.f32.xlu0 %v8992
    %v9004 = vpop.xlane.xlu0 %9003
    %9005 = vadd.xlane.f32.xlu0 %v8993
    %v9006 = vpop.xlane.xlu0 %9005
    %9007 = vadd.xlane.f32.xlu0 %v8994
    %v9008 = vpop.xlane.xlu0 %9007
    %9009 = vadd.xlane.f32.xlu0 %v8995
    %v9010 = vpop.xlane.xlu0 %9009
    %9011 = vadd.xlane.f32.xlu0 %v8996
    %v9012 = vpop.xlane.xlu0 %9011
    %v9013 = vmul.f32 %v8974, 0.015625
    %v9014 = vmul.f32 %v8976, 0.015625
    %v9015 = vmul.f32 %v8978, 0.015625
    %v9016 = vmul.f32 %v8980, 0.015625
    %v9017 = vmul.f32 %v8982, 0.015625
    %v9018 = vmul.f32 %v8984, 0.015625
    %v9019 = vmul.f32 %v8986, 0.015625
    %v9020 = vmul.f32 %v8988, 0.015625
    %v9021 = vmul.f32 %v8998, 0.015625
    %v9022 = vmul.f32 %v9000, 0.015625
    %v9023 = vmul.f32 %v9002, 0.015625
    %v9024 = vmul.f32 %v9004, 0.015625
    %v9025 = vmul.f32 %v9006, 0.015625
    %v9026 = vmul.f32 %v9008, 0.015625
    %v9027 = vmul.f32 %v9010, 0.015625
    %v9028 = vmul.f32 %v9012, 0.015625
    %v9029 = vmul.f32 %v9013, %v9013
    %v9030 = vmul.f32 %v9014, %v9014
    %v9031 = vmul.f32 %v9015, %v9015
    %v9032 = vmul.f32 %v9016, %v9016
    %v9033 = vmul.f32 %v9017, %v9017
    %v9034 = vmul.f32 %v9018, %v9018
    %v9035 = vmul.f32 %v9019, %v9019
    %v9036 = vmul.f32 %v9020, %v9020
    %v9037 = vsub.f32 %v9021, %v9029
    %v9038 = vsub.f32 %v9022, %v9030
    %v9039 = vsub.f32 %v9023, %v9031
    %v9040 = vsub.f32 %v9024, %v9032
    %v9041 = vsub.f32 %v9025, %v9033
    %v9042 = vsub.f32 %v9026, %v9034
    %v9043 = vsub.f32 %v9027, %v9035
    %v9044 = vsub.f32 %v9028, %v9036
    %v9045 = vadd.f32 %v9037, 1e-05
    %v9046 = vadd.f32 %v9038, 1e-05
    %v9047 = vadd.f32 %v9039, 1e-05
    %v9048 = vadd.f32 %v9040, 1e-05
    %v9049 = vadd.f32 %v9041, 1e-05
    %v9050 = vadd.f32 %v9042, 1e-05
    %v9051 = vadd.f32 %v9043, 1e-05
    %v9052 = vadd.f32 %v9044, 1e-05
    %v9053 = vrsqrt.pop %v9045
    %v9054 = vrsqrt.pop %v9046
    %v9055 = vrsqrt.pop %v9047
    %v9056 = vrsqrt.pop %v9048
    %v9057 = vrsqrt.pop %v9049
    %v9058 = vrsqrt.pop %v9050
    %v9059 = vrsqrt.pop %v9051
    %v9060 = vrsqrt.pop %v9052
    %v9061 = vsub.f32 %v8961, %v9013
    %v9062 = vsub.f32 %v8962, %v9014
    %v9063 = vsub.f32 %v8963, %v9015
    %v9064 = vsub.f32 %v8964, %v9016
    %v9065 = vsub.f32 %v8965, %v9017
    %v9066 = vsub.f32 %v8966, %v9018
    %v9067 = vsub.f32 %v8967, %v9019
    %v9068 = vsub.f32 %v8968, %v9020
    %v9069 = vmul.f32 %v9061, %v9053
    %v9070 = vmul.f32 %v9062, %v9054
    %v9071 = vmul.f32 %v9063, %v9055
    %v9072 = vmul.f32 %v9064, %v9056
    %v9073 = vmul.f32 %v9065, %v9057
    %v9074 = vmul.f32 %v9066, %v9058
    %v9075 = vmul.f32 %v9067, %v9059
    %v9076 = vmul.f32 %v9068, %v9060
    %v9078 = vlaneseq
    %v9079 = vshrl.u32 %v9078, 7
    %v9080 = vsub.s32 0, %v9079
    %v9081 = vrot.slane %v8970, %v9080
    %v9083 = vmul.f32 %v9069, %v9081
    %v9084 = vmul.f32 %v9070, %v9081
    %v9085 = vmul.f32 %v9071, %v9081
    %v9086 = vmul.f32 %v9072, %v9081
    %v9087 = vmul.f32 %v9073, %v9081
    %v9088 = vmul.f32 %v9074, %v9081
    %v9089 = vmul.f32 %v9075, %v9081
    %v9090 = vmul.f32 %v9076, %v9081
    %v9092 = vlaneseq
    %v9093 = vshrl.u32 %v9092, 7
    %v9094 = vsub.s32 0, %v9093
    %v9095 = vrot.slane %v8972, %v9094
    %v9097 = vadd.f32 %v9083, %v9095
    %v9098 = vadd.f32 %v9084, %v9095
    %v9099 = vadd.f32 %v9085, %v9095
    %v9100 = vadd.f32 %v9086, %v9095
    %v9101 = vadd.f32 %v9087, %v9095
    %v9102 = vadd.f32 %v9088, %v9095
    %v9103 = vadd.f32 %v9089, %v9095
    %v9104 = vadd.f32 %v9090, %v9095
    %9105 = vst [vmem:[#allocation14] sm:$0xff] %v9097
    %9106 = vst [vmem:[#allocation14 + $0x8] sm:$0xff] %v9098
    %9107 = vst [vmem:[#allocation14 + $0x10] sm:$0xff] %v9099
    %9108 = vst [vmem:[#allocation14 + $0x18] sm:$0xff] %v9100
    %9109 = vst [vmem:[#allocation14 + $0x20] sm:$0xff] %v9101
    %9110 = vst [vmem:[#allocation14 + $0x28] sm:$0xff] %v9102
    %9111 = vst [vmem:[#allocation14 + $0x30] sm:$0xff] %v9103
    %9112 = vst [vmem:[#allocation14 + $0x38] sm:$0xff] %v9104
    // Predicated region
    $region98: #{tpu_custom_call.1} parent=1 // pred_check
      _
    $region99: #{tpu_custom_call.1} parent=1 // pred_check_branch
      %9114 = sbr.rel (0) target = $region101
    $region100: #{tpu_custom_call.1} parent=1 // pred_region
      %s9116 = ssub.s32 1024, 1024
      %9117 = vsyncadd [#allocation5], %s9116
      %s9118 = sshll.u32 [#allocation14], 4
      %s9119 = int_to_ptr.vmem [resolvable:$true] %s9118
      %9124 = dma.vmem_to_hbm [thread:$0]  %s9119, 1024, %s18, [#allocation5], 128, 128, 8
    $region101: #{tpu_custom_call.1} parent=1 // pred_fallthru
      _
    // Predicated region
    $region102: #{tpu_custom_call.1} parent=1 // pred_check
      _
    $region103: #{tpu_custom_call.1} parent=1 // pred_check_branch
      %9126 = sbr.rel (0) target = $region105
    $region104: #{tpu_custom_call.1} parent=1 // pred_region
      %9127 = dma.done [#allocation5], 1024
    $region105: #{tpu_custom_call.1} parent=1 // pred_fallthru
      _
    %9128 = vsyncpa [#allocation4], 1
    %9129 = vsyncpa [#allocation7], 1
    %9130 = vsyncpa [#allocation10], 1
    %9131 = vsyncpa [#allocation13], 1
    %9132 = vsyncpa [#allocation5], 1

</llo_original>
